<compile_context>
chip_gen: v5e
topology: v5e:2x2
jax: 0.10.0
libtpu: 0.0.40
codegen_flags: <defaults>
</compile_context>

<pallas_src>
import functools
import numpy as np
import jax
import jax.numpy as jnp
from jax.experimental import pallas as pl
from jax.experimental.pallas import tpu as pltpu

GROUPS = 32
EPS = 1e-5


# ----------------------------- Pallas kernel --------------------------------
def resblock_kernel(x_ref, temb_ref,
                    g1_ref, b1_ref, a1_ref, cw1_ref, cb1_ref,
                    g2_ref, b2_ref, a2_ref, cw2_ref, cb2_ref,
                    *rest, H, W, identity_residual):
    if identity_residual:
        (o_ref,) = rest
        rw_ref = rb_ref = None
    else:
        rw_ref, rb_ref, o_ref = rest

    HW = H * W
    NPAD = HW + 2 * (W + 1)
    xf = x_ref[0]                                            # (HW, Cin) f32

    def silu(v):
        return v * jax.nn.sigmoid(v)

    def group_norm(h, a_ref, g_ref, b_ref):
        # a_ref[i, j] = 1/(HW*group_size) if channels i, j share a group (f32, few KB).
        # Two-pass (subtract mean first) -> no E[x^2]-E[x]^2 cancellation.
        s1 = jnp.sum(h, axis=0, keepdims=True)                               # (1, C)
        mean = jnp.dot(s1, a_ref[...], preferred_element_type=jnp.float32)   # (1, C)
        d = h - mean
        s2 = jnp.sum(d * d, axis=0, keepdims=True)
        var = jnp.dot(s2, a_ref[...], preferred_element_type=jnp.float32)
        inv = jax.lax.rsqrt(jnp.maximum(var, 0.0) + EPS)
        return d * inv * g_ref[...] + b_ref[...]

    # Column index of the pixel behind each padded row (pad rows are zero anyway, so
    # their value is irrelevant).  Built in-kernel: a couple of VPU ops, no DMA.
    col = (jax.lax.broadcasted_iota(jnp.int32, (NPAD, 1), 0) + (W - 1)) % W

    def conv3x3(h, w_ref, b_ref):
        # 3x3 SAME conv as 9 accumulating MXU matmuls (K = C each) over statically
        # shifted bf16 taps of a zero-padded flat image.  No (HW, 9C) im2col buffer.
        C = h.shape[-1]
        Cout = b_ref.shape[-1]
        hb = h.astype(jnp.bfloat16)                          # cast BEFORE building taps
        zpad = jnp.zeros((W + 1, C), jnp.bfloat16)
        hp = jnp.concatenate([zpad, hb, zpad], axis=0)       # (NPAD, C) bf16
        # Pre-mask the source once per horizontal direction instead of masking 6 taps:
        #   dj=-1 taps can only wrap-read source col W-1 -> zero those source pixels,
        #   dj=+1 taps can only wrap-read source col 0    -> zero those source pixels.
        zero = jnp.zeros_like(hp)
        hp_r = jnp.where(col != (W - 1), hp, zero)           # source for dj = -1
        hp_l = jnp.where(col != 0, hp, zero)                 # source for dj = +1
        src = {-1: hp_r, 0: hp, 1: hp_l}

        acc = jnp.zeros((HW, Cout), jnp.float32)
        k = 0
        for di in (-1, 0, 1):
            for dj in (-1, 0, 1):
                s = di * W + dj
                tap = src[dj][W + 1 + s: W + 1 + s + HW, :]  # (HW, C) bf16, static slice
                acc += jnp.dot(tap, w_ref[k], preferred_element_type=jnp.float32)
                k += 1
        return acc + b_ref[...]

    # feature branch
    h = silu(group_norm(xf, a1_ref, g1_ref, b1_ref))
    feat = conv3x3(h, cw1_ref, cb1_ref)                      # (HW, Cout)

    # + time embedding (precomputed in the wrapper), broadcast over HW
    merged = feat + temb_ref[0]

    m = silu(group_norm(merged, a2_ref, g2_ref, b2_ref))
    out = conv3x3(m, cw2_ref, cb2_ref)                       # (HW, Cout)

    # residual path
    if identity_residual:
        res = xf                                             # exact f32 skip, no matmul
    else:
        res = jnp.dot(xf.astype(jnp.bfloat16), rw_ref[...],
                      preferred_element_type=jnp.float32) + rb_ref[...]
    o_ref[0] = out + res


# ------------------------------- host glue ----------------------------------
@functools.lru_cache(maxsize=None)
def _group_mean_mat(C, groups, HW):
    gs = C // groups
    gidx = np.arange(C) // gs
    A = (gidx[:, None] == gidx[None, :]).astype(np.float32) / float(HW * gs)
    return jnp.asarray(A)


def unet_residual_block(feature_nchw, time, params):
    B, Cin, H, W = feature_nchw.shape
    Cout = params["conv1_b"].shape[-1]
    HW = H * W
    identity_residual = "res_w" not in params
    assert (not identity_residual) or (Cin == Cout)

    x = jnp.transpose(feature_nchw, (0, 2, 3, 1)).reshape(B, HW, Cin)   # (B, HW, Cin)

    # Time branch hoisted out of the kernel: an M=1, K=n_time GEMM is a terrible MXU
    # fit and lin_w would only waste VMEM; XLA handles it fine on the outside.
    t = time * jax.nn.sigmoid(time)
    temb = (t @ params["lin_w"] + params["lin_b"]).reshape(B, 1, Cout)

    a_in = _group_mean_mat(Cin, GROUPS, HW)
    a_out = _group_mean_mat(Cout, GROUPS, HW)

    # conv weights kept as (9, C, Cout) bf16; indexed statically per tap in the kernel.
    w1 = params["conv1_w"].astype(jnp.bfloat16)
    w2 = params["conv2_w"].astype(jnp.bfloat16)

    args = [x, temb,
            params["gn1_g"], params["gn1_b"], a_in, w1, params["conv1_b"],
            params["gn2_g"], params["gn2_b"], a_out, w2, params["conv2_b"]]
    if not identity_residual:
        args += [params["res_w"].astype(jnp.bfloat16), params["res_b"]]

    def const_spec(arr):
        # Constant across the grid -> fetched once; single buffer (no pointless
        # double-buffering of grid-invariant weights).
        n = arr.ndim
        return pl.BlockSpec(arr.shape, lambda b, _n=n: (0,) * _n,
                            pipeline_mode=pl.Buffered(1))

    in_specs = [pl.BlockSpec((1, HW, Cin), lambda b: (b, 0, 0)),
                pl.BlockSpec((1, 1, Cout), lambda b: (b, 0, 0))]
    in_specs += [const_spec(a) for a in args[2:]]

    # VMEM budget sized from the actual per-invocation footprint (plus headroom).
    def _nbytes(a):
        return int(a.size) * a.dtype.itemsize

    npad = HW + 2 * (W + 1)
    cmax = max(Cin, Cout)
    footprint = (
        2 * (_nbytes(x) // B + _nbytes(temb) // B)       # per-batch tiles, double-buffered
        + sum(_nbytes(a) for a in args[2:])              # grid-constant blocks, Buffered(1)
        + 2 * HW * Cout * 4                              # output tile, double-buffered
        + 3 * npad * cmax * 2                            # padded image + 2 masked copies (bf16)
        + 6 * HW * cmax * 4                              # activation / accumulator temporaries
    )
    vmem_limit = int(min(112 * 2**20, max(32 * 2**20, 2 * footprint)))

    out = pl.pallas_call(
        functools.partial(resblock_kernel, H=H, W=W,
                          identity_residual=identity_residual),
        grid=(B,),
        in_specs=in_specs,
        out_specs=pl.BlockSpec((1, HW, Cout), lambda b: (b, 0, 0)),
        out_shape=jax.ShapeDtypeStruct((B, HW, Cout), jnp.float32),
        compiler_params=pltpu.CompilerParams(
            dimension_semantics=("parallel",),
            vmem_limit_bytes=vmem_limit),
    )(*args)

    return jnp.transpose(out.reshape(B, H, W, Cout), (0, 3, 1, 2))       # back to NCHW


# --------------------------- pure-JAX reference ------------------------------
def group_norm_ref(x_nhwc, gamma, beta, groups=GROUPS, eps=EPS):
    B, H, W, C = x_nhwc.shape
    gs = C // groups
    xr = x_nhwc.reshape(B, H, W, groups, gs)
    mean = xr.mean(axis=(1, 2, 4), keepdims=True)
    var = ((xr - mean) ** 2).mean(axis=(1, 2, 4), keepdims=True)
    xn = ((xr - mean) / jnp.sqrt(var + eps)).reshape(B, H, W, C)
    return xn * gamma.reshape(1, 1, 1, C) + beta.reshape(1, 1, 1, C)


def forward_ref(feature_nchw, time, params):
    B, Cin, H, W = feature_nchw.shape
    Cout = params["conv1_b"].shape[-1]
    x = jnp.transpose(feature_nchw, (0, 2, 3, 1))                        # NHWC
    silu = lambda v: v * jax.nn.sigmoid(v)

    h = silu(group_norm_ref(x, params["gn1_g"][0], params["gn1_b"][0]))
    w1 = params["conv1_w"].reshape(3, 3, Cin, Cout)                      # HWIO
    h = jax.lax.conv_general_dilated(h, w1, (1, 1), "SAME",
        dimension_numbers=("NHWC", "HWIO", "NHWC")) + params["conv1_b"][0]

    t = silu(time)
    temb = t @ params["lin_w"] + params["lin_b"][0]
    m = h + temb[:, None, None, :]

    m = silu(group_norm_ref(m, params["gn2_g"][0], params["gn2_b"][0]))
    w2 = params["conv2_w"].reshape(3, 3, Cout, Cout)
    m = jax.lax.conv_general_dilated(m, w2, (1, 1), "SAME",
        dimension_numbers=("NHWC", "HWIO", "NHWC")) + params["conv2_b"][0]

    if "res_w" in params:
        res = x @ params["res_w"] + params["res_b"][0]
    else:
        res = x
    return jnp.transpose(m + res, (0, 3, 1, 2))                          # NCHW


# ---------------------------------- main -------------------------------------
if __name__ == "__main__":
    B, H, W, NT = 2, 16, 16, 1280
    key = jax.random.PRNGKey(0)

    def make_params(k, Cin, Cout):
        ks = jax.random.split(k, 12)
        rnd = lambda kk, shape, s=0.1: s * jax.random.normal(kk, shape, jnp.float32)
        p = dict(
            gn1_g=1.0 + rnd(ks[0], (1, Cin)),
            gn1_b=rnd(ks[1], (1, Cin)),
            conv1_w=rnd(ks[2], (9, Cin, Cout)),      # taps (3x3) x Cin x Cout
            conv1_b=rnd(ks[3], (1, Cout)),
            lin_w=rnd(ks[4], (NT, Cout), 0.02),      # Linear stored (in, out)
            lin_b=rnd(ks[5], (1, Cout)),
            gn2_g=1.0 + rnd(ks[6], (1, Cout)),
            gn2_b=rnd(ks[7], (1, Cout)),
            conv2_w=rnd(ks[8], (9, Cout, Cout)),
            conv2_b=rnd(ks[9], (1, Cout)),
        )
        if Cin != Cout:                              # nn.Conv2d(1x1) residual path
            p["res_w"] = rnd(ks[10], (Cin, Cout))
            p["res_b"] = rnd(ks[11], (1, Cout))
        return p                                     # Cin == Cout -> nn.Identity path

    # Case 1: Cin != Cout (real 1x1-conv residual).  Case 2: Cin == Cout (identity skip).
    for (Cin, Cout) in [(64, 128), (64, 64)]:
        key, k1, k2, k3 = jax.random.split(key, 4)
        params = make_params(k1, Cin, Cout)
        feature = jax.random.normal(k2, (B, Cin, H, W), jnp.float32)     # NCHW like PyTorch
        time = jax.random.normal(k3, (B, NT), jnp.float32)

        out = jax.block_until_ready(unet_residual_block(feature, time, params))
        ref = jax.block_until_ready(forward_ref(feature, time, params))

        # Tolerance reflects bf16 matmul operands through two chained 3x3 convs
        # (accumulation is f32); structural bugs would produce O(1) errors.
        np.testing.assert_allclose(np.asarray(out), np.asarray(ref), rtol=2e-2, atol=5e-2)

    print("KERNEL_OK")
</pallas_src>

<mosaic_0001>
module attributes {stable_mosaic.version = 11 : i64} {
  func.func @resblock_kernel(%arg0: i32, %arg1: memref<1x256x64xf32, #tpu.memory_space<vmem>>, %arg2: memref<1x1x128xf32, #tpu.memory_space<vmem>>, %arg3: memref<1x64xf32, #tpu.memory_space<vmem>>, %arg4: memref<1x64xf32, #tpu.memory_space<vmem>>, %arg5: memref<64x64xf32, #tpu.memory_space<vmem>>, %arg6: memref<9x64x128xbf16, #tpu.memory_space<vmem>>, %arg7: memref<1x128xf32, #tpu.memory_space<vmem>>, %arg8: memref<1x128xf32, #tpu.memory_space<vmem>>, %arg9: memref<1x128xf32, #tpu.memory_space<vmem>>, %arg10: memref<128x128xf32, #tpu.memory_space<vmem>>, %arg11: memref<9x128x128xbf16, #tpu.memory_space<vmem>>, %arg12: memref<1x128xf32, #tpu.memory_space<vmem>>, %arg13: memref<64x128xbf16, #tpu.memory_space<vmem>>, %arg14: memref<1x128xf32, #tpu.memory_space<vmem>>, %arg15: memref<1x256x128xf32, #tpu.memory_space<vmem>>) attributes {dimension_semantics = [#tpu.dimension_semantics<parallel>], iteration_bounds = array<i64: 2>, scalar_prefetch = 0 : i64, scratch_operands = 0 : i64, tpu.core_type = #tpu.core_type<tc>, window_params = [{transform_indices = @transform_0, window_bounds = array<i64: 1, 256, 64>}, {transform_indices = @transform_1, window_bounds = array<i64: 1, 1, 128>}, {pipeline_mode = #tpu.pipeline_mode<synchronous>, transform_indices = @transform_2, window_bounds = array<i64: 1, 64>}, {pipeline_mode = #tpu.pipeline_mode<synchronous>, transform_indices = @transform_3, window_bounds = array<i64: 1, 64>}, {pipeline_mode = #tpu.pipeline_mode<synchronous>, transform_indices = @transform_4, window_bounds = array<i64: 64, 64>}, {pipeline_mode = #tpu.pipeline_mode<synchronous>, transform_indices = @transform_5, window_bounds = array<i64: 9, 64, 128>}, {pipeline_mode = #tpu.pipeline_mode<synchronous>, transform_indices = @transform_6, window_bounds = array<i64: 1, 128>}, {pipeline_mode = #tpu.pipeline_mode<synchronous>, transform_indices = @transform_7, window_bounds = array<i64: 1, 128>}, {pipeline_mode = #tpu.pipeline_mode<synchronous>, transform_indices = @transform_8, window_bounds = array<i64: 1, 128>}, {pipeline_mode = #tpu.pipeline_mode<synchronous>, transform_indices = @transform_9, window_bounds = array<i64: 128, 128>}, {pipeline_mode = #tpu.pipeline_mode<synchronous>, transform_indices = @transform_10, window_bounds = array<i64: 9, 128, 128>}, {pipeline_mode = #tpu.pipeline_mode<synchronous>, transform_indices = @transform_11, window_bounds = array<i64: 1, 128>}, {pipeline_mode = #tpu.pipeline_mode<synchronous>, transform_indices = @transform_12, window_bounds = array<i64: 64, 128>}, {pipeline_mode = #tpu.pipeline_mode<synchronous>, transform_indices = @transform_13, window_bounds = array<i64: 1, 128>}, {transform_indices = @transform_14, window_bounds = array<i64: 1, 256, 128>}]} {
    %c0 = arith.constant 0 : index
    %c0_0 = arith.constant 0 : index
    %c0_1 = arith.constant 0 : index
    %0 = vector.load %arg1[%c0, %c0_0, %c0_1] : memref<1x256x64xf32, #tpu.memory_space<vmem>>, vector<1x256x64xf32>
    %1 = vector.shape_cast %0 : vector<1x256x64xf32> to vector<256x64xf32>
    %2 = tpu.iota {dimensions = array<i32: 0>} : vector<290x1xi32>
    %c15_i32 = arith.constant 15 : i32
    %3 = vector.broadcast %c15_i32 : i32 to vector<290x1xi32>
    %4 = arith.addi %2, %3 : vector<290x1xi32>
    %c16_i32 = arith.constant 16 : i32
    %c0_i32 = arith.constant 0 : i32
    %5 = arith.cmpi eq, %c16_i32, %c0_i32 : i32
    %c1_i32 = arith.constant 1 : i32
    %6 = arith.select %5, %c1_i32, %c16_i32 : i32
    %7 = vector.broadcast %6 : i32 to vector<290x1xi32>
    %8 = arith.remsi %4, %7 : vector<290x1xi32>
    %c0_i32_2 = arith.constant 0 : i32
    %9 = vector.broadcast %c0_i32_2 : i32 to vector<290x1xi32>
    %10 = arith.cmpi ne, %8, %9 : vector<290x1xi32>
    %c0_i32_3 = arith.constant 0 : i32
    %11 = vector.broadcast %c0_i32_3 : i32 to vector<290x1xi32>
    %12 = arith.cmpi slt, %8, %11 : vector<290x1xi32>
    %c0_i32_4 = arith.constant 0 : i32
    %13 = arith.cmpi slt, %6, %c0_i32_4 : i32
    %14 = vector.broadcast %13 : i1 to vector<290x1xi1>
    %15 = vector.broadcast %14 : vector<290x1xi1> to vector<290x1xi1>
    %16 = arith.xori %12, %15 : vector<290x1xi1>
    %17 = arith.andi %16, %10 : vector<290x1xi1>
    %18 = vector.broadcast %6 : i32 to vector<290x1xi32>
    %19 = arith.addi %8, %18 : vector<290x1xi32>
    %20 = arith.select %17, %19, %8 : vector<290x1xi1>, vector<290x1xi32>
    %cst = arith.constant dense<0.000000e+00> : vector<64xf32>
    %21 = vector.multi_reduction <add>, %1, %cst [0] : vector<256x64xf32> to vector<64xf32>
    %22 = vector.shape_cast %21 : vector<64xf32> to vector<1x64xf32>
    %c0_5 = arith.constant 0 : index
    %c0_6 = arith.constant 0 : index
    %23 = vector.load %arg5[%c0_5, %c0_6] : memref<64x64xf32, #tpu.memory_space<vmem>>, vector<64x64xf32>
    %cst_7 = arith.constant dense<0.000000e+00> : vector<1x64xf32>
    %24 = tpu.matmul %22, %23, %cst_7 {dimension_numbers = #tpu.dot_dimension_numbers<[1], [0], [0], [1], [0, 0, 1, 1], [], []>} : vector<1x64xf32>, vector<64x64xf32>, vector<1x64xf32> -> vector<1x64xf32>
    %25 = vector.broadcast %24 : vector<1x64xf32> to vector<256x64xf32>
    %26 = arith.subf %1, %25 : vector<256x64xf32>
    %27 = arith.mulf %26, %26 : vector<256x64xf32>
    %cst_8 = arith.constant dense<0.000000e+00> : vector<64xf32>
    %28 = vector.multi_reduction <add>, %27, %cst_8 [0] : vector<256x64xf32> to vector<64xf32>
    %29 = vector.shape_cast %28 : vector<64xf32> to vector<1x64xf32>
    %c0_9 = arith.constant 0 : index
    %c0_10 = arith.constant 0 : index
    %30 = vector.load %arg5[%c0_9, %c0_10] : memref<64x64xf32, #tpu.memory_space<vmem>>, vector<64x64xf32>
    %cst_11 = arith.constant dense<0.000000e+00> : vector<1x64xf32>
    %31 = tpu.matmul %29, %30, %cst_11 {dimension_numbers = #tpu.dot_dimension_numbers<[1], [0], [0], [1], [0, 0, 1, 1], [], []>} : vector<1x64xf32>, vector<64x64xf32>, vector<1x64xf32> -> vector<1x64xf32>
    %cst_12 = arith.constant 0.000000e+00 : f32
    %32 = vector.broadcast %cst_12 : f32 to vector<1x64xf32>
    %33 = arith.maximumf %31, %32 : vector<1x64xf32>
    %cst_13 = arith.constant 9.99999974E-6 : f32
    %34 = vector.broadcast %cst_13 : f32 to vector<1x64xf32>
    %35 = arith.addf %33, %34 : vector<1x64xf32>
    %36 = math.rsqrt %35 : vector<1x64xf32>
    %37 = vector.broadcast %36 : vector<1x64xf32> to vector<256x64xf32>
    %38 = arith.mulf %26, %37 : vector<256x64xf32>
    %c0_14 = arith.constant 0 : index
    %c0_15 = arith.constant 0 : index
    %39 = vector.load %arg3[%c0_14, %c0_15] : memref<1x64xf32, #tpu.memory_space<vmem>>, vector<1x64xf32>
    %40 = vector.broadcast %39 : vector<1x64xf32> to vector<256x64xf32>
    %41 = arith.mulf %38, %40 : vector<256x64xf32>
    %c0_16 = arith.constant 0 : index
    %c0_17 = arith.constant 0 : index
    %42 = vector.load %arg4[%c0_16, %c0_17] : memref<1x64xf32, #tpu.memory_space<vmem>>, vector<1x64xf32>
    %43 = vector.broadcast %42 : vector<1x64xf32> to vector<256x64xf32>
    %44 = arith.addf %41, %43 : vector<256x64xf32>
    %45 = arith.negf %44 : vector<256x64xf32>
    %46 = math.exp %45 : vector<256x64xf32>
    %cst_18 = arith.constant 1.000000e+00 : f32
    %47 = vector.broadcast %cst_18 : f32 to vector<256x64xf32>
    %48 = arith.addf %47, %46 : vector<256x64xf32>
    %49 = arith.divf %47, %48 : vector<256x64xf32>
    %50 = arith.mulf %44, %49 : vector<256x64xf32>
    %51 = arith.truncf %50 : vector<256x64xf32> to vector<256x64xbf16>
    %cst_19 = arith.constant 0.000000e+00 : bf16
    %52 = vector.broadcast %cst_19 : bf16 to vector<17x64xbf16>
    %53 = tpu.concatenate %52, %51, %52 in 0 : vector<17x64xbf16>, vector<256x64xbf16>, vector<17x64xbf16> -> vector<290x64xbf16>
    %cst_20 = arith.constant 0.000000e+00 : bf16
    %54 = vector.broadcast %cst_20 : bf16 to vector<290x64xbf16>
    %c15_i32_21 = arith.constant 15 : i32
    %55 = vector.broadcast %c15_i32_21 : i32 to vector<290x1xi32>
    %56 = arith.cmpi ne, %20, %55 : vector<290x1xi32>
    %57 = vector.shape_cast %56 : vector<290x1xi1> to vector<290x1xi1>
    %58 = vector.broadcast %57 : vector<290x1xi1> to vector<290x64xi1>
    %59 = arith.select %58, %53, %54 : vector<290x64xi1>, vector<290x64xbf16>
    %c0_i32_22 = arith.constant 0 : i32
    %60 = vector.broadcast %c0_i32_22 : i32 to vector<290x1xi32>
    %61 = arith.cmpi ne, %20, %60 : vector<290x1xi32>
    %62 = vector.shape_cast %61 : vector<290x1xi1> to vector<290x1xi1>
    %63 = vector.broadcast %62 : vector<290x1xi1> to vector<290x64xi1>
    %64 = arith.select %63, %53, %54 : vector<290x64xi1>, vector<290x64xbf16>
    %cst_23 = arith.constant 0.000000e+00 : f32
    %65 = vector.broadcast %cst_23 : f32 to vector<256x128xf32>
    %66 = vector.extract_strided_slice %59 {offsets = [0, 0], sizes = [256, 64], strides = [1, 1]} : vector<290x64xbf16> to vector<256x64xbf16>
    %c0_24 = arith.constant 0 : index
    %c0_25 = arith.constant 0 : index
    %c0_26 = arith.constant 0 : index
    %67 = vector.load %arg6[%c0_24, %c0_25, %c0_26] : memref<9x64x128xbf16, #tpu.memory_space<vmem>>, vector<1x64x128xbf16>
    %68 = vector.shape_cast %67 : vector<1x64x128xbf16> to vector<64x128xbf16>
    %cst_27 = arith.constant dense<0.000000e+00> : vector<256x128xf32>
    %69 = tpu.matmul %66, %68, %cst_27 {dimension_numbers = #tpu.dot_dimension_numbers<[1], [0], [0], [1], [0, 0, 1, 1], [], []>} : vector<256x64xbf16>, vector<64x128xbf16>, vector<256x128xf32> -> vector<256x128xf32>
    %70 = arith.addf %65, %69 : vector<256x128xf32>
    %71 = vector.extract_strided_slice %53 {offsets = [1, 0], sizes = [256, 64], strides = [1, 1]} : vector<290x64xbf16> to vector<256x64xbf16>
    %c1 = arith.constant 1 : index
    %c0_28 = arith.constant 0 : index
    %c0_29 = arith.constant 0 : index
    %72 = vector.load %arg6[%c1, %c0_28, %c0_29] : memref<9x64x128xbf16, #tpu.memory_space<vmem>>, vector<1x64x128xbf16>
    %73 = vector.shape_cast %72 : vector<1x64x128xbf16> to vector<64x128xbf16>
    %cst_30 = arith.constant dense<0.000000e+00> : vector<256x128xf32>
    %74 = tpu.matmul %71, %73, %cst_30 {dimension_numbers = #tpu.dot_dimension_numbers<[1], [0], [0], [1], [0, 0, 1, 1], [], []>} : vector<256x64xbf16>, vector<64x128xbf16>, vector<256x128xf32> -> vector<256x128xf32>
    %75 = arith.addf %70, %74 : vector<256x128xf32>
    %76 = vector.extract_strided_slice %64 {offsets = [2, 0], sizes = [256, 64], strides = [1, 1]} : vector<290x64xbf16> to vector<256x64xbf16>
    %c2 = arith.constant 2 : index
    %c0_31 = arith.constant 0 : index
    %c0_32 = arith.constant 0 : index
    %77 = vector.load %arg6[%c2, %c0_31, %c0_32] : memref<9x64x128xbf16, #tpu.memory_space<vmem>>, vector<1x64x128xbf16>
    %78 = vector.shape_cast %77 : vector<1x64x128xbf16> to vector<64x128xbf16>
    %cst_33 = arith.constant dense<0.000000e+00> : vector<256x128xf32>
    %79 = tpu.matmul %76, %78, %cst_33 {dimension_numbers = #tpu.dot_dimension_numbers<[1], [0], [0], [1], [0, 0, 1, 1], [], []>} : vector<256x64xbf16>, vector<64x128xbf16>, vector<256x128xf32> -> vector<256x128xf32>
    %80 = arith.addf %75, %79 : vector<256x128xf32>
    %81 = vector.extract_strided_slice %59 {offsets = [16, 0], sizes = [256, 64], strides = [1, 1]} : vector<290x64xbf16> to vector<256x64xbf16>
    %c3 = arith.constant 3 : index
    %c0_34 = arith.constant 0 : index
    %c0_35 = arith.constant 0 : index
    %82 = vector.load %arg6[%c3, %c0_34, %c0_35] : memref<9x64x128xbf16, #tpu.memory_space<vmem>>, vector<1x64x128xbf16>
    %83 = vector.shape_cast %82 : vector<1x64x128xbf16> to vector<64x128xbf16>
    %cst_36 = arith.constant dense<0.000000e+00> : vector<256x128xf32>
    %84 = tpu.matmul %81, %83, %cst_36 {dimension_numbers = #tpu.dot_dimension_numbers<[1], [0], [0], [1], [0, 0, 1, 1], [], []>} : vector<256x64xbf16>, vector<64x128xbf16>, vector<256x128xf32> -> vector<256x128xf32>
    %85 = arith.addf %80, %84 : vector<256x128xf32>
    %86 = vector.extract_strided_slice %53 {offsets = [17, 0], sizes = [256, 64], strides = [1, 1]} : vector<290x64xbf16> to vector<256x64xbf16>
    %c4 = arith.constant 4 : index
    %c0_37 = arith.constant 0 : index
    %c0_38 = arith.constant 0 : index
    %87 = vector.load %arg6[%c4, %c0_37, %c0_38] : memref<9x64x128xbf16, #tpu.memory_space<vmem>>, vector<1x64x128xbf16>
    %88 = vector.shape_cast %87 : vector<1x64x128xbf16> to vector<64x128xbf16>
    %cst_39 = arith.constant dense<0.000000e+00> : vector<256x128xf32>
    %89 = tpu.matmul %86, %88, %cst_39 {dimension_numbers = #tpu.dot_dimension_numbers<[1], [0], [0], [1], [0, 0, 1, 1], [], []>} : vector<256x64xbf16>, vector<64x128xbf16>, vector<256x128xf32> -> vector<256x128xf32>
    %90 = arith.addf %85, %89 : vector<256x128xf32>
    %91 = vector.extract_strided_slice %64 {offsets = [18, 0], sizes = [256, 64], strides = [1, 1]} : vector<290x64xbf16> to vector<256x64xbf16>
    %c5 = arith.constant 5 : index
    %c0_40 = arith.constant 0 : index
    %c0_41 = arith.constant 0 : index
    %92 = vector.load %arg6[%c5, %c0_40, %c0_41] : memref<9x64x128xbf16, #tpu.memory_space<vmem>>, vector<1x64x128xbf16>
    %93 = vector.shape_cast %92 : vector<1x64x128xbf16> to vector<64x128xbf16>
    %cst_42 = arith.constant dense<0.000000e+00> : vector<256x128xf32>
    %94 = tpu.matmul %91, %93, %cst_42 {dimension_numbers = #tpu.dot_dimension_numbers<[1], [0], [0], [1], [0, 0, 1, 1], [], []>} : vector<256x64xbf16>, vector<64x128xbf16>, vector<256x128xf32> -> vector<256x128xf32>
    %95 = arith.addf %90, %94 : vector<256x128xf32>
    %96 = vector.extract_strided_slice %59 {offsets = [32, 0], sizes = [256, 64], strides = [1, 1]} : vector<290x64xbf16> to vector<256x64xbf16>
    %c6 = arith.constant 6 : index
    %c0_43 = arith.constant 0 : index
    %c0_44 = arith.constant 0 : index
    %97 = vector.load %arg6[%c6, %c0_43, %c0_44] : memref<9x64x128xbf16, #tpu.memory_space<vmem>>, vector<1x64x128xbf16>
    %98 = vector.shape_cast %97 : vector<1x64x128xbf16> to vector<64x128xbf16>
    %cst_45 = arith.constant dense<0.000000e+00> : vector<256x128xf32>
    %99 = tpu.matmul %96, %98, %cst_45 {dimension_numbers = #tpu.dot_dimension_numbers<[1], [0], [0], [1], [0, 0, 1, 1], [], []>} : vector<256x64xbf16>, vector<64x128xbf16>, vector<256x128xf32> -> vector<256x128xf32>
    %100 = arith.addf %95, %99 : vector<256x128xf32>
    %101 = vector.extract_strided_slice %53 {offsets = [33, 0], sizes = [256, 64], strides = [1, 1]} : vector<290x64xbf16> to vector<256x64xbf16>
    %c7 = arith.constant 7 : index
    %c0_46 = arith.constant 0 : index
    %c0_47 = arith.constant 0 : index
    %102 = vector.load %arg6[%c7, %c0_46, %c0_47] : memref<9x64x128xbf16, #tpu.memory_space<vmem>>, vector<1x64x128xbf16>
    %103 = vector.shape_cast %102 : vector<1x64x128xbf16> to vector<64x128xbf16>
    %cst_48 = arith.constant dense<0.000000e+00> : vector<256x128xf32>
    %104 = tpu.matmul %101, %103, %cst_48 {dimension_numbers = #tpu.dot_dimension_numbers<[1], [0], [0], [1], [0, 0, 1, 1], [], []>} : vector<256x64xbf16>, vector<64x128xbf16>, vector<256x128xf32> -> vector<256x128xf32>
    %105 = arith.addf %100, %104 : vector<256x128xf32>
    %106 = vector.extract_strided_slice %64 {offsets = [34, 0], sizes = [256, 64], strides = [1, 1]} : vector<290x64xbf16> to vector<256x64xbf16>
    %c8 = arith.constant 8 : index
    %c0_49 = arith.constant 0 : index
    %c0_50 = arith.constant 0 : index
    %107 = vector.load %arg6[%c8, %c0_49, %c0_50] : memref<9x64x128xbf16, #tpu.memory_space<vmem>>, vector<1x64x128xbf16>
    %108 = vector.shape_cast %107 : vector<1x64x128xbf16> to vector<64x128xbf16>
    %cst_51 = arith.constant dense<0.000000e+00> : vector<256x128xf32>
    %109 = tpu.matmul %106, %108, %cst_51 {dimension_numbers = #tpu.dot_dimension_numbers<[1], [0], [0], [1], [0, 0, 1, 1], [], []>} : vector<256x64xbf16>, vector<64x128xbf16>, vector<256x128xf32> -> vector<256x128xf32>
    %110 = arith.addf %105, %109 : vector<256x128xf32>
    %c0_52 = arith.constant 0 : index
    %c0_53 = arith.constant 0 : index
    %111 = vector.load %arg7[%c0_52, %c0_53] : memref<1x128xf32, #tpu.memory_space<vmem>>, vector<1x128xf32>
    %112 = vector.broadcast %111 : vector<1x128xf32> to vector<256x128xf32>
    %113 = arith.addf %110, %112 : vector<256x128xf32>
    %c0_54 = arith.constant 0 : index
    %c0_55 = arith.constant 0 : index
    %c0_56 = arith.constant 0 : index
    %114 = vector.load %arg2[%c0_54, %c0_55, %c0_56] : memref<1x1x128xf32, #tpu.memory_space<vmem>>, vector<1x1x128xf32>
    %115 = vector.shape_cast %114 : vector<1x1x128xf32> to vector<1x128xf32>
    %116 = vector.broadcast %115 : vector<1x128xf32> to vector<256x128xf32>
    %117 = arith.addf %113, %116 : vector<256x128xf32>
    %cst_57 = arith.constant dense<0.000000e+00> : vector<128xf32>
    %118 = vector.multi_reduction <add>, %117, %cst_57 [0] : vector<256x128xf32> to vector<128xf32>
    %119 = vector.shape_cast %118 : vector<128xf32> to vector<1x128xf32>
    %c0_58 = arith.constant 0 : index
    %c0_59 = arith.constant 0 : index
    %120 = vector.load %arg10[%c0_58, %c0_59] : memref<128x128xf32, #tpu.memory_space<vmem>>, vector<128x128xf32>
    %cst_60 = arith.constant dense<0.000000e+00> : vector<1x128xf32>
    %121 = tpu.matmul %119, %120, %cst_60 {dimension_numbers = #tpu.dot_dimension_numbers<[1], [0], [0], [1], [0, 0, 1, 1], [], []>} : vector<1x128xf32>, vector<128x128xf32>, vector<1x128xf32> -> vector<1x128xf32>
    %122 = vector.broadcast %121 : vector<1x128xf32> to vector<256x128xf32>
    %123 = arith.subf %117, %122 : vector<256x128xf32>
    %124 = arith.mulf %123, %123 : vector<256x128xf32>
    %cst_61 = arith.constant dense<0.000000e+00> : vector<128xf32>
    %125 = vector.multi_reduction <add>, %124, %cst_61 [0] : vector<256x128xf32> to vector<128xf32>
    %126 = vector.shape_cast %125 : vector<128xf32> to vector<1x128xf32>
    %c0_62 = arith.constant 0 : index
    %c0_63 = arith.constant 0 : index
    %127 = vector.load %arg10[%c0_62, %c0_63] : memref<128x128xf32, #tpu.memory_space<vmem>>, vector<128x128xf32>
    %cst_64 = arith.constant dense<0.000000e+00> : vector<1x128xf32>
    %128 = tpu.matmul %126, %127, %cst_64 {dimension_numbers = #tpu.dot_dimension_numbers<[1], [0], [0], [1], [0, 0, 1, 1], [], []>} : vector<1x128xf32>, vector<128x128xf32>, vector<1x128xf32> -> vector<1x128xf32>
    %cst_65 = arith.constant 0.000000e+00 : f32
    %129 = vector.broadcast %cst_65 : f32 to vector<1x128xf32>
    %130 = arith.maximumf %128, %129 : vector<1x128xf32>
    %cst_66 = arith.constant 9.99999974E-6 : f32
    %131 = vector.broadcast %cst_66 : f32 to vector<1x128xf32>
    %132 = arith.addf %130, %131 : vector<1x128xf32>
    %133 = math.rsqrt %132 : vector<1x128xf32>
    %134 = vector.broadcast %133 : vector<1x128xf32> to vector<256x128xf32>
    %135 = arith.mulf %123, %134 : vector<256x128xf32>
    %c0_67 = arith.constant 0 : index
    %c0_68 = arith.constant 0 : index
    %136 = vector.load %arg8[%c0_67, %c0_68] : memref<1x128xf32, #tpu.memory_space<vmem>>, vector<1x128xf32>
    %137 = vector.broadcast %136 : vector<1x128xf32> to vector<256x128xf32>
    %138 = arith.mulf %135, %137 : vector<256x128xf32>
    %c0_69 = arith.constant 0 : index
    %c0_70 = arith.constant 0 : index
    %139 = vector.load %arg9[%c0_69, %c0_70] : memref<1x128xf32, #tpu.memory_space<vmem>>, vector<1x128xf32>
    %140 = vector.broadcast %139 : vector<1x128xf32> to vector<256x128xf32>
    %141 = arith.addf %138, %140 : vector<256x128xf32>
    %142 = arith.negf %141 : vector<256x128xf32>
    %143 = math.exp %142 : vector<256x128xf32>
    %cst_71 = arith.constant 1.000000e+00 : f32
    %144 = vector.broadcast %cst_71 : f32 to vector<256x128xf32>
    %145 = arith.addf %144, %143 : vector<256x128xf32>
    %146 = arith.divf %144, %145 : vector<256x128xf32>
    %147 = arith.mulf %141, %146 : vector<256x128xf32>
    %148 = arith.truncf %147 : vector<256x128xf32> to vector<256x128xbf16>
    %cst_72 = arith.constant 0.000000e+00 : bf16
    %149 = vector.broadcast %cst_72 : bf16 to vector<17x128xbf16>
    %150 = tpu.concatenate %149, %148, %149 in 0 : vector<17x128xbf16>, vector<256x128xbf16>, vector<17x128xbf16> -> vector<290x128xbf16>
    %cst_73 = arith.constant 0.000000e+00 : bf16
    %151 = vector.broadcast %cst_73 : bf16 to vector<290x128xbf16>
    %c15_i32_74 = arith.constant 15 : i32
    %152 = vector.broadcast %c15_i32_74 : i32 to vector<290x1xi32>
    %153 = arith.cmpi ne, %20, %152 : vector<290x1xi32>
    %154 = vector.shape_cast %153 : vector<290x1xi1> to vector<290x1xi1>
    %155 = vector.broadcast %154 : vector<290x1xi1> to vector<290x128xi1>
    %156 = arith.select %155, %150, %151 : vector<290x128xi1>, vector<290x128xbf16>
    %c0_i32_75 = arith.constant 0 : i32
    %157 = vector.broadcast %c0_i32_75 : i32 to vector<290x1xi32>
    %158 = arith.cmpi ne, %20, %157 : vector<290x1xi32>
    %159 = vector.shape_cast %158 : vector<290x1xi1> to vector<290x1xi1>
    %160 = vector.broadcast %159 : vector<290x1xi1> to vector<290x128xi1>
    %161 = arith.select %160, %150, %151 : vector<290x128xi1>, vector<290x128xbf16>
    %cst_76 = arith.constant 0.000000e+00 : f32
    %162 = vector.broadcast %cst_76 : f32 to vector<256x128xf32>
    %163 = vector.extract_strided_slice %156 {offsets = [0, 0], sizes = [256, 128], strides = [1, 1]} : vector<290x128xbf16> to vector<256x128xbf16>
    %c0_77 = arith.constant 0 : index
    %c0_78 = arith.constant 0 : index
    %c0_79 = arith.constant 0 : index
    %164 = vector.load %arg11[%c0_77, %c0_78, %c0_79] : memref<9x128x128xbf16, #tpu.memory_space<vmem>>, vector<1x128x128xbf16>
    %165 = vector.shape_cast %164 : vector<1x128x128xbf16> to vector<128x128xbf16>
    %cst_80 = arith.constant dense<0.000000e+00> : vector<256x128xf32>
    %166 = tpu.matmul %163, %165, %cst_80 {dimension_numbers = #tpu.dot_dimension_numbers<[1], [0], [0], [1], [0, 0, 1, 1], [], []>} : vector<256x128xbf16>, vector<128x128xbf16>, vector<256x128xf32> -> vector<256x128xf32>
    %167 = arith.addf %162, %166 : vector<256x128xf32>
    %168 = vector.extract_strided_slice %150 {offsets = [1, 0], sizes = [256, 128], strides = [1, 1]} : vector<290x128xbf16> to vector<256x128xbf16>
    %c1_81 = arith.constant 1 : index
    %c0_82 = arith.constant 0 : index
    %c0_83 = arith.constant 0 : index
    %169 = vector.load %arg11[%c1_81, %c0_82, %c0_83] : memref<9x128x128xbf16, #tpu.memory_space<vmem>>, vector<1x128x128xbf16>
    %170 = vector.shape_cast %169 : vector<1x128x128xbf16> to vector<128x128xbf16>
    %cst_84 = arith.constant dense<0.000000e+00> : vector<256x128xf32>
    %171 = tpu.matmul %168, %170, %cst_84 {dimension_numbers = #tpu.dot_dimension_numbers<[1], [0], [0], [1], [0, 0, 1, 1], [], []>} : vector<256x128xbf16>, vector<128x128xbf16>, vector<256x128xf32> -> vector<256x128xf32>
    %172 = arith.addf %167, %171 : vector<256x128xf32>
    %173 = vector.extract_strided_slice %161 {offsets = [2, 0], sizes = [256, 128], strides = [1, 1]} : vector<290x128xbf16> to vector<256x128xbf16>
    %c2_85 = arith.constant 2 : index
    %c0_86 = arith.constant 0 : index
    %c0_87 = arith.constant 0 : index
    %174 = vector.load %arg11[%c2_85, %c0_86, %c0_87] : memref<9x128x128xbf16, #tpu.memory_space<vmem>>, vector<1x128x128xbf16>
    %175 = vector.shape_cast %174 : vector<1x128x128xbf16> to vector<128x128xbf16>
    %cst_88 = arith.constant dense<0.000000e+00> : vector<256x128xf32>
    %176 = tpu.matmul %173, %175, %cst_88 {dimension_numbers = #tpu.dot_dimension_numbers<[1], [0], [0], [1], [0, 0, 1, 1], [], []>} : vector<256x128xbf16>, vector<128x128xbf16>, vector<256x128xf32> -> vector<256x128xf32>
    %177 = arith.addf %172, %176 : vector<256x128xf32>
    %178 = vector.extract_strided_slice %156 {offsets = [16, 0], sizes = [256, 128], strides = [1, 1]} : vector<290x128xbf16> to vector<256x128xbf16>
    %c3_89 = arith.constant 3 : index
    %c0_90 = arith.constant 0 : index
    %c0_91 = arith.constant 0 : index
    %179 = vector.load %arg11[%c3_89, %c0_90, %c0_91] : memref<9x128x128xbf16, #tpu.memory_space<vmem>>, vector<1x128x128xbf16>
    %180 = vector.shape_cast %179 : vector<1x128x128xbf16> to vector<128x128xbf16>
    %cst_92 = arith.constant dense<0.000000e+00> : vector<256x128xf32>
    %181 = tpu.matmul %178, %180, %cst_92 {dimension_numbers = #tpu.dot_dimension_numbers<[1], [0], [0], [1], [0, 0, 1, 1], [], []>} : vector<256x128xbf16>, vector<128x128xbf16>, vector<256x128xf32> -> vector<256x128xf32>
    %182 = arith.addf %177, %181 : vector<256x128xf32>
    %183 = vector.extract_strided_slice %150 {offsets = [17, 0], sizes = [256, 128], strides = [1, 1]} : vector<290x128xbf16> to vector<256x128xbf16>
    %c4_93 = arith.constant 4 : index
    %c0_94 = arith.constant 0 : index
    %c0_95 = arith.constant 0 : index
    %184 = vector.load %arg11[%c4_93, %c0_94, %c0_95] : memref<9x128x128xbf16, #tpu.memory_space<vmem>>, vector<1x128x128xbf16>
    %185 = vector.shape_cast %184 : vector<1x128x128xbf16> to vector<128x128xbf16>
    %cst_96 = arith.constant dense<0.000000e+00> : vector<256x128xf32>
    %186 = tpu.matmul %183, %185, %cst_96 {dimension_numbers = #tpu.dot_dimension_numbers<[1], [0], [0], [1], [0, 0, 1, 1], [], []>} : vector<256x128xbf16>, vector<128x128xbf16>, vector<256x128xf32> -> vector<256x128xf32>
    %187 = arith.addf %182, %186 : vector<256x128xf32>
    %188 = vector.extract_strided_slice %161 {offsets = [18, 0], sizes = [256, 128], strides = [1, 1]} : vector<290x128xbf16> to vector<256x128xbf16>
    %c5_97 = arith.constant 5 : index
    %c0_98 = arith.constant 0 : index
    %c0_99 = arith.constant 0 : index
    %189 = vector.load %arg11[%c5_97, %c0_98, %c0_99] : memref<9x128x128xbf16, #tpu.memory_space<vmem>>, vector<1x128x128xbf16>
    %190 = vector.shape_cast %189 : vector<1x128x128xbf16> to vector<128x128xbf16>
    %cst_100 = arith.constant dense<0.000000e+00> : vector<256x128xf32>
    %191 = tpu.matmul %188, %190, %cst_100 {dimension_numbers = #tpu.dot_dimension_numbers<[1], [0], [0], [1], [0, 0, 1, 1], [], []>} : vector<256x128xbf16>, vector<128x128xbf16>, vector<256x128xf32> -> vector<256x128xf32>
    %192 = arith.addf %187, %191 : vector<256x128xf32>
    %193 = vector.extract_strided_slice %156 {offsets = [32, 0], sizes = [256, 128], strides = [1, 1]} : vector<290x128xbf16> to vector<256x128xbf16>
    %c6_101 = arith.constant 6 : index
    %c0_102 = arith.constant 0 : index
    %c0_103 = arith.constant 0 : index
    %194 = vector.load %arg11[%c6_101, %c0_102, %c0_103] : memref<9x128x128xbf16, #tpu.memory_space<vmem>>, vector<1x128x128xbf16>
    %195 = vector.shape_cast %194 : vector<1x128x128xbf16> to vector<128x128xbf16>
    %cst_104 = arith.constant dense<0.000000e+00> : vector<256x128xf32>
    %196 = tpu.matmul %193, %195, %cst_104 {dimension_numbers = #tpu.dot_dimension_numbers<[1], [0], [0], [1], [0, 0, 1, 1], [], []>} : vector<256x128xbf16>, vector<128x128xbf16>, vector<256x128xf32> -> vector<256x128xf32>
    %197 = arith.addf %192, %196 : vector<256x128xf32>
    %198 = vector.extract_strided_slice %150 {offsets = [33, 0], sizes = [256, 128], strides = [1, 1]} : vector<290x128xbf16> to vector<256x128xbf16>
    %c7_105 = arith.constant 7 : index
    %c0_106 = arith.constant 0 : index
    %c0_107 = arith.constant 0 : index
    %199 = vector.load %arg11[%c7_105, %c0_106, %c0_107] : memref<9x128x128xbf16, #tpu.memory_space<vmem>>, vector<1x128x128xbf16>
    %200 = vector.shape_cast %199 : vector<1x128x128xbf16> to vector<128x128xbf16>
    %cst_108 = arith.constant dense<0.000000e+00> : vector<256x128xf32>
    %201 = tpu.matmul %198, %200, %cst_108 {dimension_numbers = #tpu.dot_dimension_numbers<[1], [0], [0], [1], [0, 0, 1, 1], [], []>} : vector<256x128xbf16>, vector<128x128xbf16>, vector<256x128xf32> -> vector<256x128xf32>
    %202 = arith.addf %197, %201 : vector<256x128xf32>
    %203 = vector.extract_strided_slice %161 {offsets = [34, 0], sizes = [256, 128], strides = [1, 1]} : vector<290x128xbf16> to vector<256x128xbf16>
    %c8_109 = arith.constant 8 : index
    %c0_110 = arith.constant 0 : index
    %c0_111 = arith.constant 0 : index
    %204 = vector.load %arg11[%c8_109, %c0_110, %c0_111] : memref<9x128x128xbf16, #tpu.memory_space<vmem>>, vector<1x128x128xbf16>
    %205 = vector.shape_cast %204 : vector<1x128x128xbf16> to vector<128x128xbf16>
    %cst_112 = arith.constant dense<0.000000e+00> : vector<256x128xf32>
    %206 = tpu.matmul %203, %205, %cst_112 {dimension_numbers = #tpu.dot_dimension_numbers<[1], [0], [0], [1], [0, 0, 1, 1], [], []>} : vector<256x128xbf16>, vector<128x128xbf16>, vector<256x128xf32> -> vector<256x128xf32>
    %207 = arith.addf %202, %206 : vector<256x128xf32>
    %c0_113 = arith.constant 0 : index
    %c0_114 = arith.constant 0 : index
    %208 = vector.load %arg12[%c0_113, %c0_114] : memref<1x128xf32, #tpu.memory_space<vmem>>, vector<1x128xf32>
    %209 = vector.broadcast %208 : vector<1x128xf32> to vector<256x128xf32>
    %210 = arith.addf %207, %209 : vector<256x128xf32>
    %211 = arith.truncf %1 : vector<256x64xf32> to vector<256x64xbf16>
    %c0_115 = arith.constant 0 : index
    %c0_116 = arith.constant 0 : index
    %212 = vector.load %arg13[%c0_115, %c0_116] : memref<64x128xbf16, #tpu.memory_space<vmem>>, vector<64x128xbf16>
    %cst_117 = arith.constant dense<0.000000e+00> : vector<256x128xf32>
    %213 = tpu.matmul %211, %212, %cst_117 {dimension_numbers = #tpu.dot_dimension_numbers<[1], [0], [0], [1], [0, 0, 1, 1], [], []>} : vector<256x64xbf16>, vector<64x128xbf16>, vector<256x128xf32> -> vector<256x128xf32>
    %c0_118 = arith.constant 0 : index
    %c0_119 = arith.constant 0 : index
    %214 = vector.load %arg14[%c0_118, %c0_119] : memref<1x128xf32, #tpu.memory_space<vmem>>, vector<1x128xf32>
    %215 = vector.broadcast %214 : vector<1x128xf32> to vector<256x128xf32>
    %216 = arith.addf %213, %215 : vector<256x128xf32>
    %217 = arith.addf %210, %216 : vector<256x128xf32>
    %c0_120 = arith.constant 0 : index
    %c0_121 = arith.constant 0 : index
    %c0_122 = arith.constant 0 : index
    %218 = vector.load %arg15[%c0_120, %c0_121, %c0_122] : memref<1x256x128xf32, #tpu.memory_space<vmem>>, vector<1x256x128xf32>
    %219 = vector.shape_cast %218 : vector<1x256x128xf32> to vector<256x128xf32>
    %220 = vector.shape_cast %217 : vector<256x128xf32> to vector<1x256x128xf32>
    tpu.vector_store %arg15[%c0_120, %c0_121, %c0_122], %220 {strides = array<i32>} : memref<1x256x128xf32, #tpu.memory_space<vmem>>, vector<1x256x128xf32>,
    return
  }
  func.func @transform_0(%arg0: i32) -> (i32, i32, i32) {
    %c0_i32 = arith.constant 0 : i32
    %c0_i32_0 = arith.constant 0 : i32
    %c0_i32_1 = arith.constant 0 : i32
    return %arg0, %c0_i32, %c0_i32_0 : i32, i32, i32
  }
  func.func @transform_1(%arg0: i32) -> (i32, i32, i32) {
    %c0_i32 = arith.constant 0 : i32
    %c0_i32_0 = arith.constant 0 : i32
    %c0_i32_1 = arith.constant 0 : i32
    return %arg0, %c0_i32, %c0_i32_0 : i32, i32, i32
  }
  func.func @transform_2(%arg0: i32) -> (i32, i32) {
    %c0_i32 = arith.constant 0 : i32
    %c0_i32_0 = arith.constant 0 : i32
    %c0_i32_1 = arith.constant 0 : i32
    return %c0_i32, %c0_i32_0 : i32, i32
  }
  func.func @transform_3(%arg0: i32) -> (i32, i32) {
    %c0_i32 = arith.constant 0 : i32
    %c0_i32_0 = arith.constant 0 : i32
    %c0_i32_1 = arith.constant 0 : i32
    return %c0_i32, %c0_i32_0 : i32, i32
  }
  func.func @transform_4(%arg0: i32) -> (i32, i32) {
    %c0_i32 = arith.constant 0 : i32
    %c0_i32_0 = arith.constant 0 : i32
    %c0_i32_1 = arith.constant 0 : i32
    return %c0_i32, %c0_i32_0 : i32, i32
  }
  func.func @transform_5(%arg0: i32) -> (i32, i32, i32) {
    %c0_i32 = arith.constant 0 : i32
    %c0_i32_0 = arith.constant 0 : i32
    %c0_i32_1 = arith.constant 0 : i32
    %c0_i32_2 = arith.constant 0 : i32
    return %c0_i32, %c0_i32_0, %c0_i32_1 : i32, i32, i32
  }
  func.func @transform_6(%arg0: i32) -> (i32, i32) {
    %c0_i32 = arith.constant 0 : i32
    %c0_i32_0 = arith.constant 0 : i32
    %c0_i32_1 = arith.constant 0 : i32
    return %c0_i32, %c0_i32_0 : i32, i32
  }
  func.func @transform_7(%arg0: i32) -> (i32, i32) {
    %c0_i32 = arith.constant 0 : i32
    %c0_i32_0 = arith.constant 0 : i32
    %c0_i32_1 = arith.constant 0 : i32
    return %c0_i32, %c0_i32_0 : i32, i32
  }
  func.func @transform_8(%arg0: i32) -> (i32, i32) {
    %c0_i32 = arith.constant 0 : i32
    %c0_i32_0 = arith.constant 0 : i32
    %c0_i32_1 = arith.constant 0 : i32
    return %c0_i32, %c0_i32_0 : i32, i32
  }
  func.func @transform_9(%arg0: i32) -> (i32, i32) {
    %c0_i32 = arith.constant 0 : i32
    %c0_i32_0 = arith.constant 0 : i32
    %c0_i32_1 = arith.constant 0 : i32
    return %c0_i32, %c0_i32_0 : i32, i32
  }
  func.func @transform_10(%arg0: i32) -> (i32, i32, i32) {
    %c0_i32 = arith.constant 0 : i32
    %c0_i32_0 = arith.constant 0 : i32
    %c0_i32_1 = arith.constant 0 : i32
    %c0_i32_2 = arith.constant 0 : i32
    return %c0_i32, %c0_i32_0, %c0_i32_1 : i32, i32, i32
  }
  func.func @transform_11(%arg0: i32) -> (i32, i32) {
    %c0_i32 = arith.constant 0 : i32
    %c0_i32_0 = arith.constant 0 : i32
    %c0_i32_1 = arith.constant 0 : i32
    return %c0_i32, %c0_i32_0 : i32, i32
  }
  func.func @transform_12(%arg0: i32) -> (i32, i32) {
    %c0_i32 = arith.constant 0 : i32
    %c0_i32_0 = arith.constant 0 : i32
    %c0_i32_1 = arith.constant 0 : i32
    return %c0_i32, %c0_i32_0 : i32, i32
  }
  func.func @transform_13(%arg0: i32) -> (i32, i32) {
    %c0_i32 = arith.constant 0 : i32
    %c0_i32_0 = arith.constant 0 : i32
    %c0_i32_1 = arith.constant 0 : i32
    return %c0_i32, %c0_i32_0 : i32, i32
  }
  func.func @transform_14(%arg0: i32) -> (i32, i32, i32) {
    %c0_i32 = arith.constant 0 : i32
    %c0_i32_0 = arith.constant 0 : i32
    %c0_i32_1 = arith.constant 0 : i32
    return %arg0, %c0_i32, %c0_i32_0 : i32, i32, i32
  }
}

</mosaic_0001>

<llo_original>
// kernel: tpu_custom_call.1
$region0: #{tpu_custom_call.1}
  #allocation0 [shape = 'u32[]', space=smem, size = 0x4, offset = 0x4, fixed_abs, tag = 'smem constant byte address 0x4 - core index']
  #allocation1 [shape = 'u32[72,128]{1,0:T(1,128)}', space=vmem, size = 0x9000, scoped, tag = 'internal scratch']
  %s0 = inlined_call_operand.vmem [shape: f32[2,256,64], index: 0, kind: input, shape index: {}]
  %s1 = inlined_call_operand.vmem [shape: f32[2,1,128], index: 1, kind: input, shape index: {}]
  %s2 = inlined_call_operand.vmem [shape: f32[1,64], index: 2, kind: input, shape index: {}]
  %s3 = inlined_call_operand.vmem [shape: f32[1,64], index: 3, kind: input, shape index: {}]
  %s4 = inlined_call_operand.vmem [shape: f32[64,64], index: 4, kind: input, shape index: {}]
  %s5 = inlined_call_operand.hbm [shape: bf16[9,64,128], index: 5, kind: input, shape index: {}]
  %s6 = inlined_call_operand.vmem [shape: f32[1,128], index: 6, kind: input, shape index: {}]
  %s7 = inlined_call_operand.vmem [shape: f32[1,128], index: 7, kind: input, shape index: {}]
  %s8 = inlined_call_operand.vmem [shape: f32[1,128], index: 8, kind: input, shape index: {}]
  %s9 = inlined_call_operand.vmem [shape: f32[128,128], index: 9, kind: input, shape index: {}]
  %s10 = inlined_call_operand.vmem [shape: bf16[9,128,128], index: 10, kind: input, shape index: {}]
  %s11 = inlined_call_operand.vmem [shape: f32[1,128], index: 11, kind: input, shape index: {}]
  %s12 = inlined_call_operand.hbm [shape: bf16[64,128], index: 12, kind: input, shape index: {}]
  %s13 = inlined_call_operand.vmem [shape: f32[1,128], index: 13, kind: input, shape index: {}]
  %s14 = inlined_call_operand.hbm [shape: f32[2,256,128], index: 14, kind: output, shape index: {}]
  %s15 = sld [smem:[#allocation0]]
  $region97: #{tpu_custom_call.1} parent=0
    _
  %s17 = ssub.s32 1, %s15
  %s18 = scalar_select 0, %s17, %s15
  $region1: #{tpu_custom_call.1} parent=0
    #allocation2 [shape = 'u8[147456]{0}', space=vmem, size = 0x24000, scoped, tag = 'input window, operand 5, single buffered']
    #allocation3 [shape = 's32[2]{0}', space=sflag, size = 0x8, scoped, tag = 'scoped memory for tpu_custom_call.1']
    #allocation4 [shape = 's32[2]{0}', space=sflag, size = 0x8, scoped, tag = 'scoped memory for tpu_custom_call.1']
    #allocation5 [shape = 'u8[16384]{0}', space=vmem, size = 0x4000, scoped, tag = 'input window, operand 12, single buffered']
    #allocation6 [shape = 's32[1]{0}', space=sflag, size = 0x4, scoped, tag = 'scoped memory for tpu_custom_call.1']
    #allocation7 [shape = 'u8[262144]{0}', space=vmem, size = 0x40000, scoped, tag = 'output window, operand 0']
    %19 = vsyncpa [#allocation3], 0
    %20 = vsyncpa [#allocation6], 0
    %21 = vsyncpa [#allocation4], 0
    %s22 = scalar_lea.sflag [#allocation4], 1
    %23 = vsyncpa %s22, 0
    loop: start=0, step=1, limit=4
    $region2: #{tpu_custom_call.1} parent=1 // loop_pre_header
      _
    $region3: #{tpu_custom_call.1} parent=1 // loop_header
      %s25 = sphi 0, %s29
      %p26 = scmp.ge.s32.totalorder %s25, 4
      %s35 = sphi 0, %s37
      %s38 = sphi 0, %s35
      %s39 = sphi 0, %s38
      %s55 = sphi 0, %s39
      %s61 = sphi 0, %s63
      %s64 = sphi 0, %s61
      %s65 = sphi 0, %s64
      %s81 = sphi 0, %s65
      %s85 = sphi 0, %s85
      %s87 = sphi 0, %s85
      %s88 = sphi 0, %s87
      %s102 = sphi 0, %s88
      %s106 = sphi 0, %s106
      %s108 = sphi 0, %s106
      %s109 = sphi 0, %s108
      %s123 = sphi 0, %s109
      %s127 = sphi 0, %s127
      %s129 = sphi 0, %s127
      %s130 = sphi 0, %s129
      %s144 = sphi 0, %s130
      %s148 = sphi 0, %s148
      %s150 = sphi 0, %s148
      %s151 = sphi 0, %s150
      %s165 = sphi 0, %s151
      %s169 = sphi 0, %s169
      %s171 = sphi 0, %s169
      %s172 = sphi 0, %s171
      %s186 = sphi 0, %s172
      %s190 = sphi 0, %s190
      %s192 = sphi 0, %s190
      %s193 = sphi 0, %s192
      %s207 = sphi 0, %s193
      %s211 = sphi 0, %s211
      %s213 = sphi 0, %s211
      %s214 = sphi 0, %s213
      %s228 = sphi 0, %s214
      %s232 = sphi 0, %s232
      %s234 = sphi 0, %s232
      %s235 = sphi 0, %s234
      %s249 = sphi 0, %s235
      %s253 = sphi 0, %s253
      %s255 = sphi 0, %s253
      %s256 = sphi 0, %s255
      %s270 = sphi 0, %s256
      %s274 = sphi 0, %s274
      %s276 = sphi 0, %s274
      %s277 = sphi 0, %s276
      %s291 = sphi 0, %s277
      %s295 = sphi 0, %s295
      %s297 = sphi 0, %s295
      %s298 = sphi 0, %s297
      %s312 = sphi 0, %s298
      %s316 = sphi 0, %s316
      %s318 = sphi 0, %s316
      %s319 = sphi 0, %s318
      %s333 = sphi 0, %s319
      %s339 = sphi 0, %s341
      %s342 = sphi 0, %s339
      %s343 = sphi 0, %s342
      %s359 = sphi 0, %s343
    $region4: #{tpu_custom_call.1} parent=1 // loop_header_branch
      %28 = sbr.rel (%p26) target = $region8
    $region5: #{tpu_custom_call.1} parent=1 // loop_body
      %s30 = ssub.s32 %s25, 1
      %s31 = ssub.s32 %s25, 2
      %s32 = sadd.s32 %s25, 1
      %s33 = ssub.s32 %s25, %s32
      %p34 = scmp.eq.s32.totalorder %s33, 0
      %s36 = sadd.s32 %s35, 1
      %s37 = scalar_select %p34, %s35, %s36
      %p40 = pneg %p34
      %p41 = scmp.eq.s32.totalorder %s25, 1
      %p42 = por %p40, %p41
      %p43 = scmp.ne.s32.totalorder %s35, %s38
      %p44 = scmp.eq.s32.totalorder %s25, 0
      %p45 = por %p43, %p44
      %p46 = scmp.ne.s32.totalorder %s35, %s38
      %p47 = scmp.eq.s32.totalorder %s30, 1
      %p48 = por %p46, %p47
      %p49 = scmp.ne.s32.totalorder %s38, %s39
      %p50 = scmp.eq.s32.totalorder %s30, 0
      %p51 = por %p49, %p50
      %p52 = scmp.ne.s32.totalorder %s38, %s39
      %p53 = scmp.eq.s32.totalorder %s31, 1
      %p54 = por %p52, %p53
      %p56 = scmp.ne.s32.totalorder %s39, %s55
      %p57 = scmp.eq.s32.totalorder %s31, 0
      %p58 = por %p56, %p57
      %s59 = ssub.s32 %s25, %s32
      %p60 = scmp.eq.s32.totalorder %s59, 0
      %s62 = sadd.s32 %s61, 1
      %s63 = scalar_select %p60, %s61, %s62
      %p66 = pneg %p60
      %p67 = scmp.eq.s32.totalorder %s25, 1
      %p68 = por %p66, %p67
      %p69 = scmp.ne.s32.totalorder %s61, %s64
      %p70 = scmp.eq.s32.totalorder %s25, 0
      %p71 = por %p69, %p70
      %p72 = scmp.ne.s32.totalorder %s61, %s64
      %p73 = scmp.eq.s32.totalorder %s30, 1
      %p74 = por %p72, %p73
      %p75 = scmp.ne.s32.totalorder %s64, %s65
      %p76 = scmp.eq.s32.totalorder %s30, 0
      %p77 = por %p75, %p76
      %p78 = scmp.ne.s32.totalorder %s64, %s65
      %p79 = scmp.eq.s32.totalorder %s31, 1
      %p80 = por %p78, %p79
      %p82 = scmp.ne.s32.totalorder %s65, %s81
      %p83 = scmp.eq.s32.totalorder %s31, 0
      %p84 = por %p82, %p83
      %s86 = sadd.s32 %s85, 1
      %p89 = scmp.eq.s32.totalorder %s25, 1
      %p90 = scmp.ne.s32.totalorder %s85, %s87
      %p91 = scmp.eq.s32.totalorder %s25, 0
      %p92 = por %p90, %p91
      %p93 = scmp.ne.s32.totalorder %s85, %s87
      %p94 = scmp.eq.s32.totalorder %s30, 1
      %p95 = por %p93, %p94
      %p96 = scmp.ne.s32.totalorder %s87, %s88
      %p97 = scmp.eq.s32.totalorder %s30, 0
      %p98 = por %p96, %p97
      %p99 = scmp.ne.s32.totalorder %s87, %s88
      %p100 = scmp.eq.s32.totalorder %s31, 1
      %p101 = por %p99, %p100
      %p103 = scmp.ne.s32.totalorder %s88, %s102
      %p104 = scmp.eq.s32.totalorder %s31, 0
      %p105 = por %p103, %p104
      %s107 = sadd.s32 %s106, 1
      %p110 = scmp.eq.s32.totalorder %s25, 1
      %p111 = scmp.ne.s32.totalorder %s106, %s108
      %p112 = scmp.eq.s32.totalorder %s25, 0
      %p113 = por %p111, %p112
      %p114 = scmp.ne.s32.totalorder %s106, %s108
      %p115 = scmp.eq.s32.totalorder %s30, 1
      %p116 = por %p114, %p115
      %p117 = scmp.ne.s32.totalorder %s108, %s109
      %p118 = scmp.eq.s32.totalorder %s30, 0
      %p119 = por %p117, %p118
      %p120 = scmp.ne.s32.totalorder %s108, %s109
      %p121 = scmp.eq.s32.totalorder %s31, 1
      %p122 = por %p120, %p121
      %p124 = scmp.ne.s32.totalorder %s109, %s123
      %p125 = scmp.eq.s32.totalorder %s31, 0
      %p126 = por %p124, %p125
      %s128 = sadd.s32 %s127, 1
      %p131 = scmp.eq.s32.totalorder %s25, 1
      %p132 = scmp.ne.s32.totalorder %s127, %s129
      %p133 = scmp.eq.s32.totalorder %s25, 0
      %p134 = por %p132, %p133
      %p135 = scmp.ne.s32.totalorder %s127, %s129
      %p136 = scmp.eq.s32.totalorder %s30, 1
      %p137 = por %p135, %p136
      %p138 = scmp.ne.s32.totalorder %s129, %s130
      %p139 = scmp.eq.s32.totalorder %s30, 0
      %p140 = por %p138, %p139
      %p141 = scmp.ne.s32.totalorder %s129, %s130
      %p142 = scmp.eq.s32.totalorder %s31, 1
      %p143 = por %p141, %p142
      %p145 = scmp.ne.s32.totalorder %s130, %s144
      %p146 = scmp.eq.s32.totalorder %s31, 0
      %p147 = por %p145, %p146
      %s149 = sadd.s32 %s148, 1
      %p152 = scmp.eq.s32.totalorder %s25, 1
      %p153 = scmp.ne.s32.totalorder %s148, %s150
      %p154 = scmp.eq.s32.totalorder %s25, 0
      %p155 = por %p153, %p154
      %p156 = scmp.ne.s32.totalorder %s148, %s150
      %p157 = scmp.eq.s32.totalorder %s30, 1
      %p158 = por %p156, %p157
      %p159 = scmp.ne.s32.totalorder %s150, %s151
      %p160 = scmp.eq.s32.totalorder %s30, 0
      %p161 = por %p159, %p160
      %p162 = scmp.ne.s32.totalorder %s150, %s151
      %p163 = scmp.eq.s32.totalorder %s31, 1
      %p164 = por %p162, %p163
      %p166 = scmp.ne.s32.totalorder %s151, %s165
      %p167 = scmp.eq.s32.totalorder %s31, 0
      %p168 = por %p166, %p167
      %s170 = sadd.s32 %s169, 1
      %p173 = scmp.eq.s32.totalorder %s25, 1
      %p174 = scmp.ne.s32.totalorder %s169, %s171
      %p175 = scmp.eq.s32.totalorder %s25, 0
      %p176 = por %p174, %p175
      %p177 = scmp.ne.s32.totalorder %s169, %s171
      %p178 = scmp.eq.s32.totalorder %s30, 1
      %p179 = por %p177, %p178
      %p180 = scmp.ne.s32.totalorder %s171, %s172
      %p181 = scmp.eq.s32.totalorder %s30, 0
      %p182 = por %p180, %p181
      %p183 = scmp.ne.s32.totalorder %s171, %s172
      %p184 = scmp.eq.s32.totalorder %s31, 1
      %p185 = por %p183, %p184
      %p187 = scmp.ne.s32.totalorder %s172, %s186
      %p188 = scmp.eq.s32.totalorder %s31, 0
      %p189 = por %p187, %p188
      %s191 = sadd.s32 %s190, 1
      %p194 = scmp.eq.s32.totalorder %s25, 1
      %p195 = scmp.ne.s32.totalorder %s190, %s192
      %p196 = scmp.eq.s32.totalorder %s25, 0
      %p197 = por %p195, %p196
      %p198 = scmp.ne.s32.totalorder %s190, %s192
      %p199 = scmp.eq.s32.totalorder %s30, 1
      %p200 = por %p198, %p199
      %p201 = scmp.ne.s32.totalorder %s192, %s193
      %p202 = scmp.eq.s32.totalorder %s30, 0
      %p203 = por %p201, %p202
      %p204 = scmp.ne.s32.totalorder %s192, %s193
      %p205 = scmp.eq.s32.totalorder %s31, 1
      %p206 = por %p204, %p205
      %p208 = scmp.ne.s32.totalorder %s193, %s207
      %p209 = scmp.eq.s32.totalorder %s31, 0
      %p210 = por %p208, %p209
      %s212 = sadd.s32 %s211, 1
      %p215 = scmp.eq.s32.totalorder %s25, 1
      %p216 = scmp.ne.s32.totalorder %s211, %s213
      %p217 = scmp.eq.s32.totalorder %s25, 0
      %p218 = por %p216, %p217
      %p219 = scmp.ne.s32.totalorder %s211, %s213
      %p220 = scmp.eq.s32.totalorder %s30, 1
      %p221 = por %p219, %p220
      %p222 = scmp.ne.s32.totalorder %s213, %s214
      %p223 = scmp.eq.s32.totalorder %s30, 0
      %p224 = por %p222, %p223
      %p225 = scmp.ne.s32.totalorder %s213, %s214
      %p226 = scmp.eq.s32.totalorder %s31, 1
      %p227 = por %p225, %p226
      %p229 = scmp.ne.s32.totalorder %s214, %s228
      %p230 = scmp.eq.s32.totalorder %s31, 0
      %p231 = por %p229, %p230
      %s233 = sadd.s32 %s232, 1
      %p236 = scmp.eq.s32.totalorder %s25, 1
      %p237 = scmp.ne.s32.totalorder %s232, %s234
      %p238 = scmp.eq.s32.totalorder %s25, 0
      %p239 = por %p237, %p238
      %p240 = scmp.ne.s32.totalorder %s232, %s234
      %p241 = scmp.eq.s32.totalorder %s30, 1
      %p242 = por %p240, %p241
      %p243 = scmp.ne.s32.totalorder %s234, %s235
      %p244 = scmp.eq.s32.totalorder %s30, 0
      %p245 = por %p243, %p244
      %p246 = scmp.ne.s32.totalorder %s234, %s235
      %p247 = scmp.eq.s32.totalorder %s31, 1
      %p248 = por %p246, %p247
      %p250 = scmp.ne.s32.totalorder %s235, %s249
      %p251 = scmp.eq.s32.totalorder %s31, 0
      %p252 = por %p250, %p251
      %s254 = sadd.s32 %s253, 1
      %p257 = scmp.eq.s32.totalorder %s25, 1
      %p258 = scmp.ne.s32.totalorder %s253, %s255
      %p259 = scmp.eq.s32.totalorder %s25, 0
      %p260 = por %p258, %p259
      %p261 = scmp.ne.s32.totalorder %s253, %s255
      %p262 = scmp.eq.s32.totalorder %s30, 1
      %p263 = por %p261, %p262
      %p264 = scmp.ne.s32.totalorder %s255, %s256
      %p265 = scmp.eq.s32.totalorder %s30, 0
      %p266 = por %p264, %p265
      %p267 = scmp.ne.s32.totalorder %s255, %s256
      %p268 = scmp.eq.s32.totalorder %s31, 1
      %p269 = por %p267, %p268
      %p271 = scmp.ne.s32.totalorder %s256, %s270
      %p272 = scmp.eq.s32.totalorder %s31, 0
      %p273 = por %p271, %p272
      %s275 = sadd.s32 %s274, 1
      %p278 = scmp.eq.s32.totalorder %s25, 1
      %p279 = scmp.ne.s32.totalorder %s274, %s276
      %p280 = scmp.eq.s32.totalorder %s25, 0
      %p281 = por %p279, %p280
      %p282 = scmp.ne.s32.totalorder %s274, %s276
      %p283 = scmp.eq.s32.totalorder %s30, 1
      %p284 = por %p282, %p283
      %p285 = scmp.ne.s32.totalorder %s276, %s277
      %p286 = scmp.eq.s32.totalorder %s30, 0
      %p287 = por %p285, %p286
      %p288 = scmp.ne.s32.totalorder %s276, %s277
      %p289 = scmp.eq.s32.totalorder %s31, 1
      %p290 = por %p288, %p289
      %p292 = scmp.ne.s32.totalorder %s277, %s291
      %p293 = scmp.eq.s32.totalorder %s31, 0
      %p294 = por %p292, %p293
      %s296 = sadd.s32 %s295, 1
      %p299 = scmp.eq.s32.totalorder %s25, 1
      %p300 = scmp.ne.s32.totalorder %s295, %s297
      %p301 = scmp.eq.s32.totalorder %s25, 0
      %p302 = por %p300, %p301
      %p303 = scmp.ne.s32.totalorder %s295, %s297
      %p304 = scmp.eq.s32.totalorder %s30, 1
      %p305 = por %p303, %p304
      %p306 = scmp.ne.s32.totalorder %s297, %s298
      %p307 = scmp.eq.s32.totalorder %s30, 0
      %p308 = por %p306, %p307
      %p309 = scmp.ne.s32.totalorder %s297, %s298
      %p310 = scmp.eq.s32.totalorder %s31, 1
      %p311 = por %p309, %p310
      %p313 = scmp.ne.s32.totalorder %s298, %s312
      %p314 = scmp.eq.s32.totalorder %s31, 0
      %p315 = por %p313, %p314
      %s317 = sadd.s32 %s316, 1
      %p320 = scmp.eq.s32.totalorder %s25, 1
      %p321 = scmp.ne.s32.totalorder %s316, %s318
      %p322 = scmp.eq.s32.totalorder %s25, 0
      %p323 = por %p321, %p322
      %p324 = scmp.ne.s32.totalorder %s316, %s318
      %p325 = scmp.eq.s32.totalorder %s30, 1
      %p326 = por %p324, %p325
      %p327 = scmp.ne.s32.totalorder %s318, %s319
      %p328 = scmp.eq.s32.totalorder %s30, 0
      %p329 = por %p327, %p328
      %p330 = scmp.ne.s32.totalorder %s318, %s319
      %p331 = scmp.eq.s32.totalorder %s31, 1
      %p332 = por %p330, %p331
      %p334 = scmp.ne.s32.totalorder %s319, %s333
      %p335 = scmp.eq.s32.totalorder %s31, 0
      %p336 = por %p334, %p335
      %s337 = ssub.s32 %s25, %s32
      %p338 = scmp.eq.s32.totalorder %s337, 0
      %s340 = sadd.s32 %s339, 1
      %s341 = scalar_select %p338, %s339, %s340
      %p344 = pneg %p338
      %p345 = scmp.eq.s32.totalorder %s25, 1
      %p346 = por %p344, %p345
      %p347 = scmp.ne.s32.totalorder %s339, %s342
      %p348 = scmp.eq.s32.totalorder %s25, 0
      %p349 = por %p347, %p348
      %p350 = scmp.ne.s32.totalorder %s339, %s342
      %p351 = scmp.eq.s32.totalorder %s30, 1
      %p352 = por %p350, %p351
      %p353 = scmp.ne.s32.totalorder %s342, %s343
      %p354 = scmp.eq.s32.totalorder %s30, 0
      %p355 = por %p353, %p354
      %p356 = scmp.ne.s32.totalorder %s342, %s343
      %p357 = scmp.eq.s32.totalorder %s31, 1
      %p358 = por %p356, %p357
      %p360 = scmp.ne.s32.totalorder %s343, %s359
      %p361 = scmp.eq.s32.totalorder %s31, 0
      %p362 = por %p360, %p361
      %p363 = scmp.le.s32.totalorder 1, %s25
      %p364 = scmp.lt.s32.totalorder %s25, 3
      %p365 = pnand %p363, %p364
      %p366 = pneg %p365
      // Predicated region
      $region9: #{tpu_custom_call.1} parent=5 // pred_check
        _
      $region10: #{tpu_custom_call.1} parent=5 // pred_check_branch
        %368 = sbr.rel (%p365) target = $region12
      $region11: #{tpu_custom_call.1} parent=5 // pred_region
        %s369 = ssub.s32 %s25, 1
        // Predicated region
        $region13: #{tpu_custom_call.1} parent=11 // pred_check
          %p370 = pneg %p98
        $region14: #{tpu_custom_call.1} parent=11 // pred_check_branch
          %372 = sbr.rel (%p370) target = $region16
        $region15: #{tpu_custom_call.1} parent=11 // pred_region
          _
        $region16: #{tpu_custom_call.1} parent=11 // pred_fallthru
          _
        // Predicated region
        $region17: #{tpu_custom_call.1} parent=11 // pred_check
          %p373 = pneg %p119
        $region18: #{tpu_custom_call.1} parent=11 // pred_check_branch
          %375 = sbr.rel (%p373) target = $region20
        $region19: #{tpu_custom_call.1} parent=11 // pred_region
          _
        $region20: #{tpu_custom_call.1} parent=11 // pred_fallthru
          _
        // Predicated region
        $region21: #{tpu_custom_call.1} parent=11 // pred_check
          %p376 = pneg %p140
        $region22: #{tpu_custom_call.1} parent=11 // pred_check_branch
          %378 = sbr.rel (%p376) target = $region24
        $region23: #{tpu_custom_call.1} parent=11 // pred_region
          _
        $region24: #{tpu_custom_call.1} parent=11 // pred_fallthru
          _
        // Predicated region
        $region25: #{tpu_custom_call.1} parent=11 // pred_check
          %p379 = pneg %p161
        $region26: #{tpu_custom_call.1} parent=11 // pred_check_branch
          %381 = sbr.rel (%p379) target = $region28
        $region27: #{tpu_custom_call.1} parent=11 // pred_region
          %383 = vsyncadd [#allocation3], 0
          %s384 = sshll.u32 %s5, 4
          %s385 = int_to_ptr.hbm [resolvable:$true] %s384
          %s386 = sshll.u32 [#allocation2], 4
          %s387 = int_to_ptr.vmem [resolvable:$true] %s386
          %392 = dma.hbm_to_vmem [thread:$0]  %s385, 4608, %s387, [#allocation3], 64, 64, 4
        $region28: #{tpu_custom_call.1} parent=11 // pred_fallthru
          _
        // Predicated region
        $region29: #{tpu_custom_call.1} parent=11 // pred_check
          %p393 = pneg %p182
        $region30: #{tpu_custom_call.1} parent=11 // pred_check_branch
          %395 = sbr.rel (%p393) target = $region32
        $region31: #{tpu_custom_call.1} parent=11 // pred_region
          _
        $region32: #{tpu_custom_call.1} parent=11 // pred_fallthru
          _
        // Predicated region
        $region33: #{tpu_custom_call.1} parent=11 // pred_check
          %p396 = pneg %p203
        $region34: #{tpu_custom_call.1} parent=11 // pred_check_branch
          %398 = sbr.rel (%p396) target = $region36
        $region35: #{tpu_custom_call.1} parent=11 // pred_region
          _
        $region36: #{tpu_custom_call.1} parent=11 // pred_fallthru
          _
        // Predicated region
        $region37: #{tpu_custom_call.1} parent=11 // pred_check
          %p399 = pneg %p224
        $region38: #{tpu_custom_call.1} parent=11 // pred_check_branch
          %401 = sbr.rel (%p399) target = $region40
        $region39: #{tpu_custom_call.1} parent=11 // pred_region
          _
        $region40: #{tpu_custom_call.1} parent=11 // pred_fallthru
          _
        // Predicated region
        $region41: #{tpu_custom_call.1} parent=11 // pred_check
          %p402 = pneg %p245
        $region42: #{tpu_custom_call.1} parent=11 // pred_check_branch
          %404 = sbr.rel (%p402) target = $region44
        $region43: #{tpu_custom_call.1} parent=11 // pred_region
          _
        $region44: #{tpu_custom_call.1} parent=11 // pred_fallthru
          _
        // Predicated region
        $region45: #{tpu_custom_call.1} parent=11 // pred_check
          %p405 = pneg %p266
        $region46: #{tpu_custom_call.1} parent=11 // pred_check_branch
          %407 = sbr.rel (%p405) target = $region48
        $region47: #{tpu_custom_call.1} parent=11 // pred_region
          _
        $region48: #{tpu_custom_call.1} parent=11 // pred_fallthru
          _
        // Predicated region
        $region49: #{tpu_custom_call.1} parent=11 // pred_check
          %p408 = pneg %p287
        $region50: #{tpu_custom_call.1} parent=11 // pred_check_branch
          %410 = sbr.rel (%p408) target = $region52
        $region51: #{tpu_custom_call.1} parent=11 // pred_region
          _
        $region52: #{tpu_custom_call.1} parent=11 // pred_fallthru
          _
        // Predicated region
        $region53: #{tpu_custom_call.1} parent=11 // pred_check
          %p411 = pneg %p308
        $region54: #{tpu_custom_call.1} parent=11 // pred_check_branch
          %413 = sbr.rel (%p411) target = $region56
        $region55: #{tpu_custom_call.1} parent=11 // pred_region
          %415 = vsyncadd [#allocation6], 0
          %s416 = sshll.u32 %s12, 4
          %s417 = int_to_ptr.hbm [resolvable:$true] %s416
          %s418 = sshll.u32 [#allocation5], 4
          %s419 = int_to_ptr.vmem [resolvable:$true] %s418
          %424 = dma.hbm_to_vmem [thread:$0]  %s417, 512, %s419, [#allocation6], 64, 64, 4
        $region56: #{tpu_custom_call.1} parent=11 // pred_fallthru
          _
        // Predicated region
        $region57: #{tpu_custom_call.1} parent=11 // pred_check
          %p425 = pneg %p329
        $region58: #{tpu_custom_call.1} parent=11 // pred_check_branch
          %427 = sbr.rel (%p425) target = $region60
        $region59: #{tpu_custom_call.1} parent=11 // pred_region
          _
        $region60: #{tpu_custom_call.1} parent=11 // pred_fallthru
          _
      $region12: #{tpu_custom_call.1} parent=5 // pred_fallthru
        _
      %p428 = scmp.lt.s32.totalorder %s25, 2
      // Predicated region
      $region61: #{tpu_custom_call.1} parent=5 // pred_check
        %p429 = pneg %p428
      $region62: #{tpu_custom_call.1} parent=5 // pred_check_branch
        %431 = sbr.rel (%p429) target = $region64
      $region63: #{tpu_custom_call.1} parent=5 // pred_region
        // Predicated region
        $region65: #{tpu_custom_call.1} parent=63 // pred_check
          %p432 = pneg %p45
        $region66: #{tpu_custom_call.1} parent=63 // pred_check_branch
          %434 = sbr.rel (%p432) target = $region68
        $region67: #{tpu_custom_call.1} parent=63 // pred_region
          %p435 = scmp.lt.s32.totalorder %s25, 1
          %s436 = scalar_select %p435, %s25, 1
          %s437 = smul.addr %s436, 32
          %s438 = smul.addr %s437, 8
          %s439 = scalar_lea.vmem %s0, %s438
        $region68: #{tpu_custom_call.1} parent=63 // pred_fallthru
          _
        // Predicated region
        $region69: #{tpu_custom_call.1} parent=63 // pred_check
          %p440 = pneg %p71
        $region70: #{tpu_custom_call.1} parent=63 // pred_check_branch
          %442 = sbr.rel (%p440) target = $region72
        $region71: #{tpu_custom_call.1} parent=63 // pred_region
          %p443 = scmp.lt.s32.totalorder %s25, 1
          %s444 = scalar_select %p443, %s25, 1
          %s445 = scalar_lea.vmem %s1, %s444
        $region72: #{tpu_custom_call.1} parent=63 // pred_fallthru
          _
      $region64: #{tpu_custom_call.1} parent=5 // pred_fallthru
        _
      %p446 = scmp.le.s32.totalorder 1, %s25
      %p447 = scmp.lt.s32.totalorder %s25, 3
      %p448 = pnand %p446, %p447
      %p449 = pneg %p448
      // Predicated region
      $region73: #{tpu_custom_call.1} parent=5 // pred_check
        _
      $region74: #{tpu_custom_call.1} parent=5 // pred_check_branch
        %451 = sbr.rel (%p448) target = $region76
      $region75: #{tpu_custom_call.1} parent=5 // pred_region
        %s452 = ssub.s32 %s25, 1
        // Predicated region
        $region77: #{tpu_custom_call.1} parent=75 // pred_check
          %p453 = pneg %p161
        $region78: #{tpu_custom_call.1} parent=75 // pred_check_branch
          %455 = sbr.rel (%p453) target = $region80
        $region79: #{tpu_custom_call.1} parent=75 // pred_region
          %457 = dma.done [#allocation3], 4608
        $region80: #{tpu_custom_call.1} parent=75 // pred_fallthru
          _
        // Predicated region
        $region81: #{tpu_custom_call.1} parent=75 // pred_check
          %p458 = pneg %p308
        $region82: #{tpu_custom_call.1} parent=75 // pred_check_branch
          %460 = sbr.rel (%p458) target = $region84
        $region83: #{tpu_custom_call.1} parent=75 // pred_region
          %462 = dma.done [#allocation6], 512
        $region84: #{tpu_custom_call.1} parent=75 // pred_fallthru
          _
        %p463 = scmp.lt.s32.totalorder %s30, 1
        %s464 = scalar_select %p463, %s30, 1
        %s465 = smul.addr %s464, 32
        %s466 = smul.addr %s465, 8
        %s467 = scalar_lea.vmem %s0, %s466
        %p468 = pneg %p51
        %p469 = pneg %p48
        %p470 = scmp.lt.s32.totalorder %s30, 1
        %s471 = scalar_select %p470, %s30, 1
        %s472 = scalar_lea.vmem %s1, %s471
        %p473 = pneg %p77
        %p474 = pneg %p74
        %p475 = pneg %p98
        %p476 = pneg %p95
        %p477 = pneg %p119
        %p478 = pneg %p116
        %p479 = pneg %p140
        %p480 = pneg %p137
        %p481 = pneg %p161
        %p482 = pneg %p158
        %p483 = pneg %p182
        %p484 = pneg %p179
        %p485 = pneg %p203
        %p486 = pneg %p200
        %p487 = pneg %p224
        %p488 = pneg %p221
        %p489 = pneg %p245
        %p490 = pneg %p242
        %p491 = pneg %p266
        %p492 = pneg %p263
        %p493 = pneg %p287
        %p494 = pneg %p284
        %p495 = pneg %p308
        %p496 = pneg %p305
        %p497 = pneg %p329
        %p498 = pneg %p326
        %p499 = pneg %p355
        %p500 = pneg %p352
        %s501 = sand.u32 %s342, 1
        %s502 = scalar_lea.sflag [#allocation4], %s501
        %s503 = sand.u32 %s342, 1
        %s504 = smul.addr %s503, 256
        %s505 = scalar_lea.vmem [#allocation7], %s504
        %p506 = scmp.lt.s32.totalorder %s30, 1
        %s507 = scalar_select %p506, %s30, 1
        %s508 = smul.addr %s507, 32
        %s509 = smul.addr %s508, 8
        %s510 = scalar_lea.vmem %s0, %s509
        %p511 = scmp.lt.s32.totalorder %s30, 1
        %s512 = scalar_select %p511, %s30, 1
        %s513 = scalar_lea.vmem %s1, %s512
        %v517 = vld [vmem:[%s510] sm:$0xff]
        %v518 = vld [vmem:[%s510 + $0x8] sm:$0xff]
        %v519 = vld [vmem:[%s510 + $0x10] sm:$0xff]
        %v520 = vld [vmem:[%s510 + $0x18] sm:$0xff]
        %v521 = vld [vmem:[%s510 + $0x20] sm:$0xff]
        %v522 = vld [vmem:[%s510 + $0x28] sm:$0xff]
        %v523 = vld [vmem:[%s510 + $0x30] sm:$0xff]
        %v524 = vld [vmem:[%s510 + $0x38] sm:$0xff]
        %v525 = vld [vmem:[%s510 + $0x40] sm:$0xff]
        %v526 = vld [vmem:[%s510 + $0x48] sm:$0xff]
        %v527 = vld [vmem:[%s510 + $0x50] sm:$0xff]
        %v528 = vld [vmem:[%s510 + $0x58] sm:$0xff]
        %v529 = vld [vmem:[%s510 + $0x60] sm:$0xff]
        %v530 = vld [vmem:[%s510 + $0x68] sm:$0xff]
        %v531 = vld [vmem:[%s510 + $0x70] sm:$0xff]
        %v532 = vld [vmem:[%s510 + $0x78] sm:$0xff]
        %v533 = vld [vmem:[%s510 + $0x80] sm:$0xff]
        %v534 = vld [vmem:[%s510 + $0x88] sm:$0xff]
        %v535 = vld [vmem:[%s510 + $0x90] sm:$0xff]
        %v536 = vld [vmem:[%s510 + $0x98] sm:$0xff]
        %v537 = vld [vmem:[%s510 + $0xa0] sm:$0xff]
        %v538 = vld [vmem:[%s510 + $0xa8] sm:$0xff]
        %v539 = vld [vmem:[%s510 + $0xb0] sm:$0xff]
        %v540 = vld [vmem:[%s510 + $0xb8] sm:$0xff]
        %v541 = vld [vmem:[%s510 + $0xc0] sm:$0xff]
        %v542 = vld [vmem:[%s510 + $0xc8] sm:$0xff]
        %v543 = vld [vmem:[%s510 + $0xd0] sm:$0xff]
        %v544 = vld [vmem:[%s510 + $0xd8] sm:$0xff]
        %v545 = vld [vmem:[%s510 + $0xe0] sm:$0xff]
        %v546 = vld [vmem:[%s510 + $0xe8] sm:$0xff]
        %v547 = vld [vmem:[%s510 + $0xf0] sm:$0xff]
        %v548 = vld [vmem:[%s510 + $0xf8] sm:$0xff]
        %v549 = vlaneseq
        %v550 = vshrl.u32 %v549, 7
        %v551 = vadd.s32 %v550, 16
        %v552 = vadd.s32 %v550, 24
        %v553 = vadd.s32 %v550, 32
        %v554 = vadd.s32 %v550, 40
        %v555 = vadd.s32 %v550, 48
        %v556 = vadd.s32 %v550, 56
        %v557 = vadd.s32 %v550, 64
        %v558 = vadd.s32 %v550, 72
        %v559 = vadd.s32 %v550, 80
        %v560 = vadd.s32 %v550, 88
        %v561 = vadd.s32 %v550, 96
        %v562 = vadd.s32 %v550, 104
        %v563 = vadd.s32 %v550, 112
        %v564 = vadd.s32 %v550, 120
        %v565 = vadd.s32 %v550, 128
        %v566 = vadd.s32 %v550, 136
        %v567 = vadd.s32 %v550, 144
        %v568 = vadd.s32 %v550, 152
        %v569 = vadd.s32 %v550, 160
        %v570 = vadd.s32 %v550, 168
        %v571 = vadd.s32 %v550, 176
        %v572 = vadd.s32 %v550, 184
        %v573 = vadd.s32 %v550, 192
        %v574 = vadd.s32 %v550, 200
        %v575 = vadd.s32 %v550, 208
        %v576 = vadd.s32 %v550, 216
        %v577 = vadd.s32 %v550, 224
        %v578 = vadd.s32 %v550, 232
        %v579 = vadd.s32 %v550, 240
        %v580 = vadd.s32 %v550, 248
        %v581 = vadd.s32 %v550, 256
        %v582 = vadd.s32 %v550, 264
        %v583 = vadd.s32 %v550, 272
        %v584 = vadd.s32 %v550, 280
        %v585 = vadd.s32 %v551, 15
        %v586 = vadd.s32 %v552, 15
        %v587 = vadd.s32 %v553, 15
        %v588 = vadd.s32 %v554, 15
        %v589 = vadd.s32 %v555, 15
        %v590 = vadd.s32 %v556, 15
        %v591 = vadd.s32 %v557, 15
        %v592 = vadd.s32 %v558, 15
        %v593 = vadd.s32 %v559, 15
        %v594 = vadd.s32 %v560, 15
        %v595 = vadd.s32 %v561, 15
        %v596 = vadd.s32 %v562, 15
        %v597 = vadd.s32 %v563, 15
        %v598 = vadd.s32 %v564, 15
        %v599 = vadd.s32 %v565, 15
        %v600 = vadd.s32 %v566, 15
        %v601 = vadd.s32 %v567, 15
        %v602 = vadd.s32 %v568, 15
        %v603 = vadd.s32 %v569, 15
        %v604 = vadd.s32 %v570, 15
        %v605 = vadd.s32 %v571, 15
        %v606 = vadd.s32 %v572, 15
        %v607 = vadd.s32 %v573, 15
        %v608 = vadd.s32 %v574, 15
        %v609 = vadd.s32 %v575, 15
        %v610 = vadd.s32 %v576, 15
        %v611 = vadd.s32 %v577, 15
        %v612 = vadd.s32 %v578, 15
        %v613 = vadd.s32 %v579, 15
        %v614 = vadd.s32 %v580, 15
        %v615 = vadd.s32 %v581, 15
        %v616 = vadd.s32 %v582, 15
        %v617 = vadd.s32 %v583, 15
        %v618 = vadd.s32 %v584, 15
        %vm619 = vcmp.lt.s32.totalorder %v585, 0
        %v620 = vsub.s32 0, %v585
        %v621 = vsel %vm619, %v620, %v585
        %v622 = vshrl.u32 %v621, 4
        %v623 = vand.u32 %v621, 15
        %v624 = vsub.s32 0, %v623
        %v625 = vsel %vm619, %v624, %v623
        %vm626 = vcmp.lt.s32.totalorder %v586, 0
        %v627 = vsub.s32 0, %v586
        %v628 = vsel %vm626, %v627, %v586
        %v629 = vshrl.u32 %v628, 4
        %v630 = vand.u32 %v628, 15
        %v631 = vsub.s32 0, %v630
        %v632 = vsel %vm626, %v631, %v630
        %vm633 = vcmp.lt.s32.totalorder %v587, 0
        %v634 = vsub.s32 0, %v587
        %v635 = vsel %vm633, %v634, %v587
        %v636 = vshrl.u32 %v635, 4
        %v637 = vand.u32 %v635, 15
        %v638 = vsub.s32 0, %v637
        %v639 = vsel %vm633, %v638, %v637
        %vm640 = vcmp.lt.s32.totalorder %v588, 0
        %v641 = vsub.s32 0, %v588
        %v642 = vsel %vm640, %v641, %v588
        %v643 = vshrl.u32 %v642, 4
        %v644 = vand.u32 %v642, 15
        %v645 = vsub.s32 0, %v644
        %v646 = vsel %vm640, %v645, %v644
        %vm647 = vcmp.lt.s32.totalorder %v589, 0
        %v648 = vsub.s32 0, %v589
        %v649 = vsel %vm647, %v648, %v589
        %v650 = vshrl.u32 %v649, 4
        %v651 = vand.u32 %v649, 15
        %v652 = vsub.s32 0, %v651
        %v653 = vsel %vm647, %v652, %v651
        %vm654 = vcmp.lt.s32.totalorder %v590, 0
        %v655 = vsub.s32 0, %v590
        %v656 = vsel %vm654, %v655, %v590
        %v657 = vshrl.u32 %v656, 4
        %v658 = vand.u32 %v656, 15
        %v659 = vsub.s32 0, %v658
        %v660 = vsel %vm654, %v659, %v658
        %vm661 = vcmp.lt.s32.totalorder %v591, 0
        %v662 = vsub.s32 0, %v591
        %v663 = vsel %vm661, %v662, %v591
        %v664 = vshrl.u32 %v663, 4
        %v665 = vand.u32 %v663, 15
        %v666 = vsub.s32 0, %v665
        %v667 = vsel %vm661, %v666, %v665
        %vm668 = vcmp.lt.s32.totalorder %v592, 0
        %v669 = vsub.s32 0, %v592
        %v670 = vsel %vm668, %v669, %v592
        %v671 = vshrl.u32 %v670, 4
        %v672 = vand.u32 %v670, 15
        %v673 = vsub.s32 0, %v672
        %v674 = vsel %vm668, %v673, %v672
        %vm675 = vcmp.lt.s32.totalorder %v593, 0
        %v676 = vsub.s32 0, %v593
        %v677 = vsel %vm675, %v676, %v593
        %v678 = vshrl.u32 %v677, 4
        %v679 = vand.u32 %v677, 15
        %v680 = vsub.s32 0, %v679
        %v681 = vsel %vm675, %v680, %v679
        %vm682 = vcmp.lt.s32.totalorder %v594, 0
        %v683 = vsub.s32 0, %v594
        %v684 = vsel %vm682, %v683, %v594
        %v685 = vshrl.u32 %v684, 4
        %v686 = vand.u32 %v684, 15
        %v687 = vsub.s32 0, %v686
        %v688 = vsel %vm682, %v687, %v686
        %vm689 = vcmp.lt.s32.totalorder %v595, 0
        %v690 = vsub.s32 0, %v595
        %v691 = vsel %vm689, %v690, %v595
        %v692 = vshrl.u32 %v691, 4
        %v693 = vand.u32 %v691, 15
        %v694 = vsub.s32 0, %v693
        %v695 = vsel %vm689, %v694, %v693
        %vm696 = vcmp.lt.s32.totalorder %v596, 0
        %v697 = vsub.s32 0, %v596
        %v698 = vsel %vm696, %v697, %v596
        %v699 = vshrl.u32 %v698, 4
        %v700 = vand.u32 %v698, 15
        %v701 = vsub.s32 0, %v700
        %v702 = vsel %vm696, %v701, %v700
        %vm703 = vcmp.lt.s32.totalorder %v597, 0
        %v704 = vsub.s32 0, %v597
        %v705 = vsel %vm703, %v704, %v597
        %v706 = vshrl.u32 %v705, 4
        %v707 = vand.u32 %v705, 15
        %v708 = vsub.s32 0, %v707
        %v709 = vsel %vm703, %v708, %v707
        %vm710 = vcmp.lt.s32.totalorder %v598, 0
        %v711 = vsub.s32 0, %v598
        %v712 = vsel %vm710, %v711, %v598
        %v713 = vshrl.u32 %v712, 4
        %v714 = vand.u32 %v712, 15
        %v715 = vsub.s32 0, %v714
        %v716 = vsel %vm710, %v715, %v714
        %vm717 = vcmp.lt.s32.totalorder %v599, 0
        %v718 = vsub.s32 0, %v599
        %v719 = vsel %vm717, %v718, %v599
        %v720 = vshrl.u32 %v719, 4
        %v721 = vand.u32 %v719, 15
        %v722 = vsub.s32 0, %v721
        %v723 = vsel %vm717, %v722, %v721
        %vm724 = vcmp.lt.s32.totalorder %v600, 0
        %v725 = vsub.s32 0, %v600
        %v726 = vsel %vm724, %v725, %v600
        %v727 = vshrl.u32 %v726, 4
        %v728 = vand.u32 %v726, 15
        %v729 = vsub.s32 0, %v728
        %v730 = vsel %vm724, %v729, %v728
        %vm731 = vcmp.lt.s32.totalorder %v601, 0
        %v732 = vsub.s32 0, %v601
        %v733 = vsel %vm731, %v732, %v601
        %v734 = vshrl.u32 %v733, 4
        %v735 = vand.u32 %v733, 15
        %v736 = vsub.s32 0, %v735
        %v737 = vsel %vm731, %v736, %v735
        %vm738 = vcmp.lt.s32.totalorder %v602, 0
        %v739 = vsub.s32 0, %v602
        %v740 = vsel %vm738, %v739, %v602
        %v741 = vshrl.u32 %v740, 4
        %v742 = vand.u32 %v740, 15
        %v743 = vsub.s32 0, %v742
        %v744 = vsel %vm738, %v743, %v742
        %vm745 = vcmp.lt.s32.totalorder %v603, 0
        %v746 = vsub.s32 0, %v603
        %v747 = vsel %vm745, %v746, %v603
        %v748 = vshrl.u32 %v747, 4
        %v749 = vand.u32 %v747, 15
        %v750 = vsub.s32 0, %v749
        %v751 = vsel %vm745, %v750, %v749
        %vm752 = vcmp.lt.s32.totalorder %v604, 0
        %v753 = vsub.s32 0, %v604
        %v754 = vsel %vm752, %v753, %v604
        %v755 = vshrl.u32 %v754, 4
        %v756 = vand.u32 %v754, 15
        %v757 = vsub.s32 0, %v756
        %v758 = vsel %vm752, %v757, %v756
        %vm759 = vcmp.lt.s32.totalorder %v605, 0
        %v760 = vsub.s32 0, %v605
        %v761 = vsel %vm759, %v760, %v605
        %v762 = vshrl.u32 %v761, 4
        %v763 = vand.u32 %v761, 15
        %v764 = vsub.s32 0, %v763
        %v765 = vsel %vm759, %v764, %v763
        %vm766 = vcmp.lt.s32.totalorder %v606, 0
        %v767 = vsub.s32 0, %v606
        %v768 = vsel %vm766, %v767, %v606
        %v769 = vshrl.u32 %v768, 4
        %v770 = vand.u32 %v768, 15
        %v771 = vsub.s32 0, %v770
        %v772 = vsel %vm766, %v771, %v770
        %vm773 = vcmp.lt.s32.totalorder %v607, 0
        %v774 = vsub.s32 0, %v607
        %v775 = vsel %vm773, %v774, %v607
        %v776 = vshrl.u32 %v775, 4
        %v777 = vand.u32 %v775, 15
        %v778 = vsub.s32 0, %v777
        %v779 = vsel %vm773, %v778, %v777
        %vm780 = vcmp.lt.s32.totalorder %v608, 0
        %v781 = vsub.s32 0, %v608
        %v782 = vsel %vm780, %v781, %v608
        %v783 = vshrl.u32 %v782, 4
        %v784 = vand.u32 %v782, 15
        %v785 = vsub.s32 0, %v784
        %v786 = vsel %vm780, %v785, %v784
        %vm787 = vcmp.lt.s32.totalorder %v609, 0
        %v788 = vsub.s32 0, %v609
        %v789 = vsel %vm787, %v788, %v609
        %v790 = vshrl.u32 %v789, 4
        %v791 = vand.u32 %v789, 15
        %v792 = vsub.s32 0, %v791
        %v793 = vsel %vm787, %v792, %v791
        %vm794 = vcmp.lt.s32.totalorder %v610, 0
        %v795 = vsub.s32 0, %v610
        %v796 = vsel %vm794, %v795, %v610
        %v797 = vshrl.u32 %v796, 4
        %v798 = vand.u32 %v796, 15
        %v799 = vsub.s32 0, %v798
        %v800 = vsel %vm794, %v799, %v798
        %vm801 = vcmp.lt.s32.totalorder %v611, 0
        %v802 = vsub.s32 0, %v611
        %v803 = vsel %vm801, %v802, %v611
        %v804 = vshrl.u32 %v803, 4
        %v805 = vand.u32 %v803, 15
        %v806 = vsub.s32 0, %v805
        %v807 = vsel %vm801, %v806, %v805
        %vm808 = vcmp.lt.s32.totalorder %v612, 0
        %v809 = vsub.s32 0, %v612
        %v810 = vsel %vm808, %v809, %v612
        %v811 = vshrl.u32 %v810, 4
        %v812 = vand.u32 %v810, 15
        %v813 = vsub.s32 0, %v812
        %v814 = vsel %vm808, %v813, %v812
        %vm815 = vcmp.lt.s32.totalorder %v613, 0
        %v816 = vsub.s32 0, %v613
        %v817 = vsel %vm815, %v816, %v613
        %v818 = vshrl.u32 %v817, 4
        %v819 = vand.u32 %v817, 15
        %v820 = vsub.s32 0, %v819
        %v821 = vsel %vm815, %v820, %v819
        %vm822 = vcmp.lt.s32.totalorder %v614, 0
        %v823 = vsub.s32 0, %v614
        %v824 = vsel %vm822, %v823, %v614
        %v825 = vshrl.u32 %v824, 4
        %v826 = vand.u32 %v824, 15
        %v827 = vsub.s32 0, %v826
        %v828 = vsel %vm822, %v827, %v826
        %vm829 = vcmp.lt.s32.totalorder %v615, 0
        %v830 = vsub.s32 0, %v615
        %v831 = vsel %vm829, %v830, %v615
        %v832 = vshrl.u32 %v831, 4
        %v833 = vand.u32 %v831, 15
        %v834 = vsub.s32 0, %v833
        %v835 = vsel %vm829, %v834, %v833
        %vm836 = vcmp.lt.s32.totalorder %v616, 0
        %v837 = vsub.s32 0, %v616
        %v838 = vsel %vm836, %v837, %v616
        %v839 = vshrl.u32 %v838, 4
        %v840 = vand.u32 %v838, 15
        %v841 = vsub.s32 0, %v840
        %v842 = vsel %vm836, %v841, %v840
        %vm843 = vcmp.lt.s32.totalorder %v617, 0
        %v844 = vsub.s32 0, %v617
        %v845 = vsel %vm843, %v844, %v617
        %v846 = vshrl.u32 %v845, 4
        %v847 = vand.u32 %v845, 15
        %v848 = vsub.s32 0, %v847
        %v849 = vsel %vm843, %v848, %v847
        %vm850 = vcmp.lt.s32.totalorder %v618, 0
        %v851 = vsub.s32 0, %v618
        %v852 = vsel %vm850, %v851, %v618
        %v853 = vshrl.u32 %v852, 4
        %v854 = vand.u32 %v852, 15
        %v855 = vsub.s32 0, %v854
        %v856 = vsel %vm850, %v855, %v854
        %vm857 = vcmp.ne.s32.totalorder %v625, 0
        %vm858 = vcmp.ne.s32.totalorder %v632, 0
        %vm859 = vcmp.ne.s32.totalorder %v639, 0
        %vm860 = vcmp.ne.s32.totalorder %v646, 0
        %vm861 = vcmp.ne.s32.totalorder %v653, 0
        %vm862 = vcmp.ne.s32.totalorder %v660, 0
        %vm863 = vcmp.ne.s32.totalorder %v667, 0
        %vm864 = vcmp.ne.s32.totalorder %v674, 0
        %vm865 = vcmp.ne.s32.totalorder %v681, 0
        %vm866 = vcmp.ne.s32.totalorder %v688, 0
        %vm867 = vcmp.ne.s32.totalorder %v695, 0
        %vm868 = vcmp.ne.s32.totalorder %v702, 0
        %vm869 = vcmp.ne.s32.totalorder %v709, 0
        %vm870 = vcmp.ne.s32.totalorder %v716, 0
        %vm871 = vcmp.ne.s32.totalorder %v723, 0
        %vm872 = vcmp.ne.s32.totalorder %v730, 0
        %vm873 = vcmp.ne.s32.totalorder %v737, 0
        %vm874 = vcmp.ne.s32.totalorder %v744, 0
        %vm875 = vcmp.ne.s32.totalorder %v751, 0
        %vm876 = vcmp.ne.s32.totalorder %v758, 0
        %vm877 = vcmp.ne.s32.totalorder %v765, 0
        %vm878 = vcmp.ne.s32.totalorder %v772, 0
        %vm879 = vcmp.ne.s32.totalorder %v779, 0
        %vm880 = vcmp.ne.s32.totalorder %v786, 0
        %vm881 = vcmp.ne.s32.totalorder %v793, 0
        %vm882 = vcmp.ne.s32.totalorder %v800, 0
        %vm883 = vcmp.ne.s32.totalorder %v807, 0
        %vm884 = vcmp.ne.s32.totalorder %v814, 0
        %vm885 = vcmp.ne.s32.totalorder %v821, 0
        %vm886 = vcmp.ne.s32.totalorder %v828, 0
        %vm887 = vcmp.ne.s32.totalorder %v835, 0
        %vm888 = vcmp.ne.s32.totalorder %v842, 0
        %vm889 = vcmp.ne.s32.totalorder %v849, 0
        %vm890 = vcmp.ne.s32.totalorder %v856, 0
        %vm891 = vcmp.lt.s32.totalorder %v625, 0
        %vm892 = vcmp.lt.s32.totalorder %v632, 0
        %vm893 = vcmp.lt.s32.totalorder %v639, 0
        %vm894 = vcmp.lt.s32.totalorder %v646, 0
        %vm895 = vcmp.lt.s32.totalorder %v653, 0
        %vm896 = vcmp.lt.s32.totalorder %v660, 0
        %vm897 = vcmp.lt.s32.totalorder %v667, 0
        %vm898 = vcmp.lt.s32.totalorder %v674, 0
        %vm899 = vcmp.lt.s32.totalorder %v681, 0
        %vm900 = vcmp.lt.s32.totalorder %v688, 0
        %vm901 = vcmp.lt.s32.totalorder %v695, 0
        %vm902 = vcmp.lt.s32.totalorder %v702, 0
        %vm903 = vcmp.lt.s32.totalorder %v709, 0
        %vm904 = vcmp.lt.s32.totalorder %v716, 0
        %vm905 = vcmp.lt.s32.totalorder %v723, 0
        %vm906 = vcmp.lt.s32.totalorder %v730, 0
        %vm907 = vcmp.lt.s32.totalorder %v737, 0
        %vm908 = vcmp.lt.s32.totalorder %v744, 0
        %vm909 = vcmp.lt.s32.totalorder %v751, 0
        %vm910 = vcmp.lt.s32.totalorder %v758, 0
        %vm911 = vcmp.lt.s32.totalorder %v765, 0
        %vm912 = vcmp.lt.s32.totalorder %v772, 0
        %vm913 = vcmp.lt.s32.totalorder %v779, 0
        %vm914 = vcmp.lt.s32.totalorder %v786, 0
        %vm915 = vcmp.lt.s32.totalorder %v793, 0
        %vm916 = vcmp.lt.s32.totalorder %v800, 0
        %vm917 = vcmp.lt.s32.totalorder %v807, 0
        %vm918 = vcmp.lt.s32.totalorder %v814, 0
        %vm919 = vcmp.lt.s32.totalorder %v821, 0
        %vm920 = vcmp.lt.s32.totalorder %v828, 0
        %vm921 = vcmp.lt.s32.totalorder %v835, 0
        %vm922 = vcmp.lt.s32.totalorder %v842, 0
        %vm923 = vcmp.lt.s32.totalorder %v849, 0
        %vm924 = vcmp.lt.s32.totalorder %v856, 0
        %vm925 = vmand %vm891, %vm857
        %vm926 = vmand %vm892, %vm858
        %vm927 = vmand %vm893, %vm859
        %vm928 = vmand %vm894, %vm860
        %vm929 = vmand %vm895, %vm861
        %vm930 = vmand %vm896, %vm862
        %vm931 = vmand %vm897, %vm863
        %vm932 = vmand %vm898, %vm864
        %vm933 = vmand %vm899, %vm865
        %vm934 = vmand %vm900, %vm866
        %vm935 = vmand %vm901, %vm867
        %vm936 = vmand %vm902, %vm868
        %vm937 = vmand %vm903, %vm869
        %vm938 = vmand %vm904, %vm870
        %vm939 = vmand %vm905, %vm871
        %vm940 = vmand %vm906, %vm872
        %vm941 = vmand %vm907, %vm873
        %vm942 = vmand %vm908, %vm874
        %vm943 = vmand %vm909, %vm875
        %vm944 = vmand %vm910, %vm876
        %vm945 = vmand %vm911, %vm877
        %vm946 = vmand %vm912, %vm878
        %vm947 = vmand %vm913, %vm879
        %vm948 = vmand %vm914, %vm880
        %vm949 = vmand %vm915, %vm881
        %vm950 = vmand %vm916, %vm882
        %vm951 = vmand %vm917, %vm883
        %vm952 = vmand %vm918, %vm884
        %vm953 = vmand %vm919, %vm885
        %vm954 = vmand %vm920, %vm886
        %vm955 = vmand %vm921, %vm887
        %vm956 = vmand %vm922, %vm888
        %vm957 = vmand %vm923, %vm889
        %vm958 = vmand %vm924, %vm890
        %v959 = vadd.s32 %v625, 16
        %v960 = vadd.s32 %v632, 16
        %v961 = vadd.s32 %v639, 16
        %v962 = vadd.s32 %v646, 16
        %v963 = vadd.s32 %v653, 16
        %v964 = vadd.s32 %v660, 16
        %v965 = vadd.s32 %v667, 16
        %v966 = vadd.s32 %v674, 16
        %v967 = vadd.s32 %v681, 16
        %v968 = vadd.s32 %v688, 16
        %v969 = vadd.s32 %v695, 16
        %v970 = vadd.s32 %v702, 16
        %v971 = vadd.s32 %v709, 16
        %v972 = vadd.s32 %v716, 16
        %v973 = vadd.s32 %v723, 16
        %v974 = vadd.s32 %v730, 16
        %v975 = vadd.s32 %v737, 16
        %v976 = vadd.s32 %v744, 16
        %v977 = vadd.s32 %v751, 16
        %v978 = vadd.s32 %v758, 16
        %v979 = vadd.s32 %v765, 16
        %v980 = vadd.s32 %v772, 16
        %v981 = vadd.s32 %v779, 16
        %v982 = vadd.s32 %v786, 16
        %v983 = vadd.s32 %v793, 16
        %v984 = vadd.s32 %v800, 16
        %v985 = vadd.s32 %v807, 16
        %v986 = vadd.s32 %v814, 16
        %v987 = vadd.s32 %v821, 16
        %v988 = vadd.s32 %v828, 16
        %v989 = vadd.s32 %v835, 16
        %v990 = vadd.s32 %v842, 16
        %v991 = vadd.s32 %v849, 16
        %v992 = vadd.s32 %v856, 16
        %v993 = vsel %vm925, %v959, %v625
        %v994 = vsel %vm926, %v960, %v632
        %v995 = vsel %vm927, %v961, %v639
        %v996 = vsel %vm928, %v962, %v646
        %v997 = vsel %vm929, %v963, %v653
        %v998 = vsel %vm930, %v964, %v660
        %v999 = vsel %vm931, %v965, %v667
        %v1000 = vsel %vm932, %v966, %v674
        %v1001 = vsel %vm933, %v967, %v681
        %v1002 = vsel %vm934, %v968, %v688
        %v1003 = vsel %vm935, %v969, %v695
        %v1004 = vsel %vm936, %v970, %v702
        %v1005 = vsel %vm937, %v971, %v709
        %v1006 = vsel %vm938, %v972, %v716
        %v1007 = vsel %vm939, %v973, %v723
        %v1008 = vsel %vm940, %v974, %v730
        %v1009 = vsel %vm941, %v975, %v737
        %v1010 = vsel %vm942, %v976, %v744
        %v1011 = vsel %vm943, %v977, %v751
        %v1012 = vsel %vm944, %v978, %v758
        %v1013 = vsel %vm945, %v979, %v765
        %v1014 = vsel %vm946, %v980, %v772
        %v1015 = vsel %vm947, %v981, %v779
        %v1016 = vsel %vm948, %v982, %v786
        %v1017 = vsel %vm949, %v983, %v793
        %v1018 = vsel %vm950, %v984, %v800
        %v1019 = vsel %vm951, %v985, %v807
        %v1020 = vsel %vm952, %v986, %v814
        %v1021 = vsel %vm953, %v987, %v821
        %v1022 = vsel %vm954, %v988, %v828
        %v1023 = vsel %vm955, %v989, %v835
        %v1024 = vsel %vm956, %v990, %v842
        %v1025 = vsel %vm957, %v991, %v849
        %v1026 = vsel %vm958, %v992, %v856
        %vm1027 = vcmask 523264
        %v1028 = vsel %vm1027, %v517, 0.0
        %v1029 = vsel %vm1027, %v518, 0.0
        %v1030 = vadd.f32 %v1028, %v1029
        %v1031 = vsel %vm1027, %v519, 0.0
        %v1032 = vadd.f32 %v1030, %v1031
        %v1033 = vsel %vm1027, %v520, 0.0
        %v1034 = vadd.f32 %v1032, %v1033
        %v1035 = vsel %vm1027, %v521, 0.0
        %v1036 = vadd.f32 %v1034, %v1035
        %v1037 = vsel %vm1027, %v522, 0.0
        %v1038 = vadd.f32 %v1036, %v1037
        %v1039 = vsel %vm1027, %v523, 0.0
        %v1040 = vadd.f32 %v1038, %v1039
        %v1041 = vsel %vm1027, %v524, 0.0
        %v1042 = vadd.f32 %v1040, %v1041
        %v1043 = vsel %vm1027, %v525, 0.0
        %v1044 = vadd.f32 %v1042, %v1043
        %v1045 = vsel %vm1027, %v526, 0.0
        %v1046 = vadd.f32 %v1044, %v1045
        %v1047 = vsel %vm1027, %v527, 0.0
        %v1048 = vadd.f32 %v1046, %v1047
        %v1049 = vsel %vm1027, %v528, 0.0
        %v1050 = vadd.f32 %v1048, %v1049
        %v1051 = vsel %vm1027, %v529, 0.0
        %v1052 = vadd.f32 %v1050, %v1051
        %v1053 = vsel %vm1027, %v530, 0.0
        %v1054 = vadd.f32 %v1052, %v1053
        %v1055 = vsel %vm1027, %v531, 0.0
        %v1056 = vadd.f32 %v1054, %v1055
        %v1057 = vsel %vm1027, %v532, 0.0
        %v1058 = vadd.f32 %v1056, %v1057
        %v1059 = vsel %vm1027, %v533, 0.0
        %v1060 = vadd.f32 %v1058, %v1059
        %v1061 = vsel %vm1027, %v534, 0.0
        %v1062 = vadd.f32 %v1060, %v1061
        %v1063 = vsel %vm1027, %v535, 0.0
        %v1064 = vadd.f32 %v1062, %v1063
        %v1065 = vsel %vm1027, %v536, 0.0
        %v1066 = vadd.f32 %v1064, %v1065
        %v1067 = vsel %vm1027, %v537, 0.0
        %v1068 = vadd.f32 %v1066, %v1067
        %v1069 = vsel %vm1027, %v538, 0.0
        %v1070 = vadd.f32 %v1068, %v1069
        %v1071 = vsel %vm1027, %v539, 0.0
        %v1072 = vadd.f32 %v1070, %v1071
        %v1073 = vsel %vm1027, %v540, 0.0
        %v1074 = vadd.f32 %v1072, %v1073
        %v1075 = vsel %vm1027, %v541, 0.0
        %v1076 = vadd.f32 %v1074, %v1075
        %v1077 = vsel %vm1027, %v542, 0.0
        %v1078 = vadd.f32 %v1076, %v1077
        %v1079 = vsel %vm1027, %v543, 0.0
        %v1080 = vadd.f32 %v1078, %v1079
        %v1081 = vsel %vm1027, %v544, 0.0
        %v1082 = vadd.f32 %v1080, %v1081
        %v1083 = vsel %vm1027, %v545, 0.0
        %v1084 = vadd.f32 %v1082, %v1083
        %v1085 = vsel %vm1027, %v546, 0.0
        %v1086 = vadd.f32 %v1084, %v1085
        %v1087 = vsel %vm1027, %v547, 0.0
        %v1088 = vadd.f32 %v1086, %v1087
        %v1089 = vsel %vm1027, %v548, 0.0
        %v1090 = vadd.f32 %v1088, %v1089
        %v1091 = vrot.slane %v1090, 4
        %v1092 = vadd.f32 %v1090, %v1091
        %v1093 = vrot.slane %v1092, 2
        %v1094 = vadd.f32 %v1092, %v1093
        %v1095 = vrot.slane %v1094, 1
        %v1096 = vadd.f32 %v1094, %v1095
        %v1097 = vld [vmem:[%s4] sm:$0xff]
        %v1098 = vld [vmem:[%s4 + $0x8] sm:$0xff]
        %v1099 = vld [vmem:[%s4 + $0x10] sm:$0xff]
        %v1100 = vld [vmem:[%s4 + $0x18] sm:$0xff]
        %v1101 = vld [vmem:[%s4 + $0x20] sm:$0xff]
        %v1102 = vld [vmem:[%s4 + $0x28] sm:$0xff]
        %v1103 = vld [vmem:[%s4 + $0x30] sm:$0xff]
        %v1104 = vld [vmem:[%s4 + $0x38] sm:$0xff]
        %v1106 = vsel %vm1027, %v1096, 0
        %1108 = vmatpush.msra.mxu0 0.0
        %1109 = vmatpush.msra.mxu0 0.0
        %1110 = vmatpush.msra.mxu0 0.0
        %1111 = vmatpush.msra.mxu0 0.0
        %1112 = vmatpush.msra.mxu0 0.0
        %1113 = vmatpush.msra.mxu0 0.0
        %1114 = vmatpush.msra.mxu0 0.0
        %1115 = vmatpush.msra.mxu0 0.0
        %1116 = vmatpush.msra.mxu0 %v1104
        %1117 = vmatpush.msra.mxu0 %v1103
        %1118 = vmatpush.msra.mxu0 %v1102
        %1119 = vmatpush.msra.mxu0 %v1101
        %1120 = vmatpush.msra.mxu0 %v1100
        %1121 = vmatpush.msra.mxu0 %v1099
        %1122 = vmatpush.msra.mxu0 %v1098
        %1123 = vmatpush.msra.mxu0 %v1097
        %1124 = vmatmul.f32.gmra.mxu0 %v1106
        %v1125 = vpop.f32.mrf.mxu0
        %v1126 = vadd.f32 0.0, %v1125
        %1127 = vdwg.mxu0
        %v1128 = vperm.slane %v1126, 0
        %v1129 = vsub.f32 %v517, %v1128
        %v1130 = vsub.f32 %v518, %v1128
        %v1131 = vsub.f32 %v519, %v1128
        %v1132 = vsub.f32 %v520, %v1128
        %v1133 = vsub.f32 %v521, %v1128
        %v1134 = vsub.f32 %v522, %v1128
        %v1135 = vsub.f32 %v523, %v1128
        %v1136 = vsub.f32 %v524, %v1128
        %v1137 = vsub.f32 %v525, %v1128
        %v1138 = vsub.f32 %v526, %v1128
        %v1139 = vsub.f32 %v527, %v1128
        %v1140 = vsub.f32 %v528, %v1128
        %v1141 = vsub.f32 %v529, %v1128
        %v1142 = vsub.f32 %v530, %v1128
        %v1143 = vsub.f32 %v531, %v1128
        %v1144 = vsub.f32 %v532, %v1128
        %v1145 = vsub.f32 %v533, %v1128
        %v1146 = vsub.f32 %v534, %v1128
        %v1147 = vsub.f32 %v535, %v1128
        %v1148 = vsub.f32 %v536, %v1128
        %v1149 = vsub.f32 %v537, %v1128
        %v1150 = vsub.f32 %v538, %v1128
        %v1151 = vsub.f32 %v539, %v1128
        %v1152 = vsub.f32 %v540, %v1128
        %v1153 = vsub.f32 %v541, %v1128
        %v1154 = vsub.f32 %v542, %v1128
        %v1155 = vsub.f32 %v543, %v1128
        %v1156 = vsub.f32 %v544, %v1128
        %v1157 = vsub.f32 %v545, %v1128
        %v1158 = vsub.f32 %v546, %v1128
        %v1159 = vsub.f32 %v547, %v1128
        %v1160 = vsub.f32 %v548, %v1128
        %v1161 = vmul.f32 %v1129, %v1129
        %v1162 = vmul.f32 %v1130, %v1130
        %v1163 = vmul.f32 %v1131, %v1131
        %v1164 = vmul.f32 %v1132, %v1132
        %v1165 = vmul.f32 %v1133, %v1133
        %v1166 = vmul.f32 %v1134, %v1134
        %v1167 = vmul.f32 %v1135, %v1135
        %v1168 = vmul.f32 %v1136, %v1136
        %v1169 = vmul.f32 %v1137, %v1137
        %v1170 = vmul.f32 %v1138, %v1138
        %v1171 = vmul.f32 %v1139, %v1139
        %v1172 = vmul.f32 %v1140, %v1140
        %v1173 = vmul.f32 %v1141, %v1141
        %v1174 = vmul.f32 %v1142, %v1142
        %v1175 = vmul.f32 %v1143, %v1143
        %v1176 = vmul.f32 %v1144, %v1144
        %v1177 = vmul.f32 %v1145, %v1145
        %v1178 = vmul.f32 %v1146, %v1146
        %v1179 = vmul.f32 %v1147, %v1147
        %v1180 = vmul.f32 %v1148, %v1148
        %v1181 = vmul.f32 %v1149, %v1149
        %v1182 = vmul.f32 %v1150, %v1150
        %v1183 = vmul.f32 %v1151, %v1151
        %v1184 = vmul.f32 %v1152, %v1152
        %v1185 = vmul.f32 %v1153, %v1153
        %v1186 = vmul.f32 %v1154, %v1154
        %v1187 = vmul.f32 %v1155, %v1155
        %v1188 = vmul.f32 %v1156, %v1156
        %v1189 = vmul.f32 %v1157, %v1157
        %v1190 = vmul.f32 %v1158, %v1158
        %v1191 = vmul.f32 %v1159, %v1159
        %v1192 = vmul.f32 %v1160, %v1160
        %v1193 = vsel %vm1027, %v1161, 0.0
        %v1194 = vsel %vm1027, %v1162, 0.0
        %v1195 = vadd.f32 %v1193, %v1194
        %v1196 = vsel %vm1027, %v1163, 0.0
        %v1197 = vadd.f32 %v1195, %v1196
        %v1198 = vsel %vm1027, %v1164, 0.0
        %v1199 = vadd.f32 %v1197, %v1198
        %v1200 = vsel %vm1027, %v1165, 0.0
        %v1201 = vadd.f32 %v1199, %v1200
        %v1202 = vsel %vm1027, %v1166, 0.0
        %v1203 = vadd.f32 %v1201, %v1202
        %v1204 = vsel %vm1027, %v1167, 0.0
        %v1205 = vadd.f32 %v1203, %v1204
        %v1206 = vsel %vm1027, %v1168, 0.0
        %v1207 = vadd.f32 %v1205, %v1206
        %v1208 = vsel %vm1027, %v1169, 0.0
        %v1209 = vadd.f32 %v1207, %v1208
        %v1210 = vsel %vm1027, %v1170, 0.0
        %v1211 = vadd.f32 %v1209, %v1210
        %v1212 = vsel %vm1027, %v1171, 0.0
        %v1213 = vadd.f32 %v1211, %v1212
        %v1214 = vsel %vm1027, %v1172, 0.0
        %v1215 = vadd.f32 %v1213, %v1214
        %v1216 = vsel %vm1027, %v1173, 0.0
        %v1217 = vadd.f32 %v1215, %v1216
        %v1218 = vsel %vm1027, %v1174, 0.0
        %v1219 = vadd.f32 %v1217, %v1218
        %v1220 = vsel %vm1027, %v1175, 0.0
        %v1221 = vadd.f32 %v1219, %v1220
        %v1222 = vsel %vm1027, %v1176, 0.0
        %v1223 = vadd.f32 %v1221, %v1222
        %v1224 = vsel %vm1027, %v1177, 0.0
        %v1225 = vadd.f32 %v1223, %v1224
        %v1226 = vsel %vm1027, %v1178, 0.0
        %v1227 = vadd.f32 %v1225, %v1226
        %v1228 = vsel %vm1027, %v1179, 0.0
        %v1229 = vadd.f32 %v1227, %v1228
        %v1230 = vsel %vm1027, %v1180, 0.0
        %v1231 = vadd.f32 %v1229, %v1230
        %v1232 = vsel %vm1027, %v1181, 0.0
        %v1233 = vadd.f32 %v1231, %v1232
        %v1234 = vsel %vm1027, %v1182, 0.0
        %v1235 = vadd.f32 %v1233, %v1234
        %v1236 = vsel %vm1027, %v1183, 0.0
        %v1237 = vadd.f32 %v1235, %v1236
        %v1238 = vsel %vm1027, %v1184, 0.0
        %v1239 = vadd.f32 %v1237, %v1238
        %v1240 = vsel %vm1027, %v1185, 0.0
        %v1241 = vadd.f32 %v1239, %v1240
        %v1242 = vsel %vm1027, %v1186, 0.0
        %v1243 = vadd.f32 %v1241, %v1242
        %v1244 = vsel %vm1027, %v1187, 0.0
        %v1245 = vadd.f32 %v1243, %v1244
        %v1246 = vsel %vm1027, %v1188, 0.0
        %v1247 = vadd.f32 %v1245, %v1246
        %v1248 = vsel %vm1027, %v1189, 0.0
        %v1249 = vadd.f32 %v1247, %v1248
        %v1250 = vsel %vm1027, %v1190, 0.0
        %v1251 = vadd.f32 %v1249, %v1250
        %v1252 = vsel %vm1027, %v1191, 0.0
        %v1253 = vadd.f32 %v1251, %v1252
        %v1254 = vsel %vm1027, %v1192, 0.0
        %v1255 = vadd.f32 %v1253, %v1254
        %v1256 = vrot.slane %v1255, 4
        %v1257 = vadd.f32 %v1255, %v1256
        %v1258 = vrot.slane %v1257, 2
        %v1259 = vadd.f32 %v1257, %v1258
        %v1260 = vrot.slane %v1259, 1
        %v1261 = vadd.f32 %v1259, %v1260
        %v1263 = vsel %vm1027, %v1261, 0
        %1265 = vmatpush.msra.mxu0 0.0
        %1266 = vmatpush.msra.mxu0 0.0
        %1267 = vmatpush.msra.mxu0 0.0
        %1268 = vmatpush.msra.mxu0 0.0
        %1269 = vmatpush.msra.mxu0 0.0
        %1270 = vmatpush.msra.mxu0 0.0
        %1271 = vmatpush.msra.mxu0 0.0
        %1272 = vmatpush.msra.mxu0 0.0
        %1273 = vmatpush.msra.mxu0 %v1104
        %1274 = vmatpush.msra.mxu0 %v1103
        %1275 = vmatpush.msra.mxu0 %v1102
        %1276 = vmatpush.msra.mxu0 %v1101
        %1277 = vmatpush.msra.mxu0 %v1100
        %1278 = vmatpush.msra.mxu0 %v1099
        %1279 = vmatpush.msra.mxu0 %v1098
        %1280 = vmatpush.msra.mxu0 %v1097
        %1281 = vmatmul.f32.gmra.mxu0 %v1263
        %v1282 = vpop.f32.mrf.mxu0
        %v1283 = vadd.f32 0.0, %v1282
        %1284 = vdwg.mxu0
        %v1285 = vmax.f32 %v1283, 0.0
        %v1286 = vadd.f32 %v1285, 1e-05
        %v1287 = vrsqrt.pop %v1286
        %v1288 = vmul.f32 %v1287, %v1286
        %v1289 = vmul.f32 %v1288, %v1287
        %v1290 = vmul.f32 0.5, %v1289
        %v1291 = vsub.f32 1.5, %v1290
        %v1292 = vmul.f32 %v1287, %v1291
        %vm1293 = vweird.f32 %v1286
        %vm1294 = vweird.f32 %v1287
        %vm1295 = vmor %vm1293, %vm1294
        %v1296 = vsel %vm1295, %v1287, %v1292
        %v1297 = vperm.slane %v1296, 0
        %v1298 = vmul.f32 %v1129, %v1297
        %v1299 = vmul.f32 %v1130, %v1297
        %v1300 = vmul.f32 %v1131, %v1297
        %v1301 = vmul.f32 %v1132, %v1297
        %v1302 = vmul.f32 %v1133, %v1297
        %v1303 = vmul.f32 %v1134, %v1297
        %v1304 = vmul.f32 %v1135, %v1297
        %v1305 = vmul.f32 %v1136, %v1297
        %v1306 = vmul.f32 %v1137, %v1297
        %v1307 = vmul.f32 %v1138, %v1297
        %v1308 = vmul.f32 %v1139, %v1297
        %v1309 = vmul.f32 %v1140, %v1297
        %v1310 = vmul.f32 %v1141, %v1297
        %v1311 = vmul.f32 %v1142, %v1297
        %v1312 = vmul.f32 %v1143, %v1297
        %v1313 = vmul.f32 %v1144, %v1297
        %v1314 = vmul.f32 %v1145, %v1297
        %v1315 = vmul.f32 %v1146, %v1297
        %v1316 = vmul.f32 %v1147, %v1297
        %v1317 = vmul.f32 %v1148, %v1297
        %v1318 = vmul.f32 %v1149, %v1297
        %v1319 = vmul.f32 %v1150, %v1297
        %v1320 = vmul.f32 %v1151, %v1297
        %v1321 = vmul.f32 %v1152, %v1297
        %v1322 = vmul.f32 %v1153, %v1297
        %v1323 = vmul.f32 %v1154, %v1297
        %v1324 = vmul.f32 %v1155, %v1297
        %v1325 = vmul.f32 %v1156, %v1297
        %v1326 = vmul.f32 %v1157, %v1297
        %v1327 = vmul.f32 %v1158, %v1297
        %v1328 = vmul.f32 %v1159, %v1297
        %v1329 = vmul.f32 %v1160, %v1297
        %v1330 = vld [vmem:[%s2] sm:$0x1]
        %v1332 = vperm.slane %v1330, 0
        %v1334 = vmul.f32 %v1298, %v1332
        %v1335 = vmul.f32 %v1299, %v1332
        %v1336 = vmul.f32 %v1300, %v1332
        %v1337 = vmul.f32 %v1301, %v1332
        %v1338 = vmul.f32 %v1302, %v1332
        %v1339 = vmul.f32 %v1303, %v1332
        %v1340 = vmul.f32 %v1304, %v1332
        %v1341 = vmul.f32 %v1305, %v1332
        %v1342 = vmul.f32 %v1306, %v1332
        %v1343 = vmul.f32 %v1307, %v1332
        %v1344 = vmul.f32 %v1308, %v1332
        %v1345 = vmul.f32 %v1309, %v1332
        %v1346 = vmul.f32 %v1310, %v1332
        %v1347 = vmul.f32 %v1311, %v1332
        %v1348 = vmul.f32 %v1312, %v1332
        %v1349 = vmul.f32 %v1313, %v1332
        %v1350 = vmul.f32 %v1314, %v1332
        %v1351 = vmul.f32 %v1315, %v1332
        %v1352 = vmul.f32 %v1316, %v1332
        %v1353 = vmul.f32 %v1317, %v1332
        %v1354 = vmul.f32 %v1318, %v1332
        %v1355 = vmul.f32 %v1319, %v1332
        %v1356 = vmul.f32 %v1320, %v1332
        %v1357 = vmul.f32 %v1321, %v1332
        %v1358 = vmul.f32 %v1322, %v1332
        %v1359 = vmul.f32 %v1323, %v1332
        %v1360 = vmul.f32 %v1324, %v1332
        %v1361 = vmul.f32 %v1325, %v1332
        %v1362 = vmul.f32 %v1326, %v1332
        %v1363 = vmul.f32 %v1327, %v1332
        %v1364 = vmul.f32 %v1328, %v1332
        %v1365 = vmul.f32 %v1329, %v1332
        %v1366 = vld [vmem:[%s3] sm:$0x1]
        %v1368 = vperm.slane %v1366, 0
        %v1370 = vadd.f32 %v1334, %v1368
        %v1371 = vadd.f32 %v1335, %v1368
        %v1372 = vadd.f32 %v1336, %v1368
        %v1373 = vadd.f32 %v1337, %v1368
        %v1374 = vadd.f32 %v1338, %v1368
        %v1375 = vadd.f32 %v1339, %v1368
        %v1376 = vadd.f32 %v1340, %v1368
        %v1377 = vadd.f32 %v1341, %v1368
        %v1378 = vadd.f32 %v1342, %v1368
        %v1379 = vadd.f32 %v1343, %v1368
        %v1380 = vadd.f32 %v1344, %v1368
        %v1381 = vadd.f32 %v1345, %v1368
        %v1382 = vadd.f32 %v1346, %v1368
        %v1383 = vadd.f32 %v1347, %v1368
        %v1384 = vadd.f32 %v1348, %v1368
        %v1385 = vadd.f32 %v1349, %v1368
        %v1386 = vadd.f32 %v1350, %v1368
        %v1387 = vadd.f32 %v1351, %v1368
        %v1388 = vadd.f32 %v1352, %v1368
        %v1389 = vadd.f32 %v1353, %v1368
        %v1390 = vadd.f32 %v1354, %v1368
        %v1391 = vadd.f32 %v1355, %v1368
        %v1392 = vadd.f32 %v1356, %v1368
        %v1393 = vadd.f32 %v1357, %v1368
        %v1394 = vadd.f32 %v1358, %v1368
        %v1395 = vadd.f32 %v1359, %v1368
        %v1396 = vadd.f32 %v1360, %v1368
        %v1397 = vadd.f32 %v1361, %v1368
        %v1398 = vadd.f32 %v1362, %v1368
        %v1399 = vadd.f32 %v1363, %v1368
        %v1400 = vadd.f32 %v1364, %v1368
        %v1401 = vadd.f32 %v1365, %v1368
        %v1402 = vxor.u32 %v1370, 2147483648
        %v1403 = vxor.u32 %v1371, 2147483648
        %v1404 = vxor.u32 %v1372, 2147483648
        %v1405 = vxor.u32 %v1373, 2147483648
        %v1406 = vxor.u32 %v1374, 2147483648
        %v1407 = vxor.u32 %v1375, 2147483648
        %v1408 = vxor.u32 %v1376, 2147483648
        %v1409 = vxor.u32 %v1377, 2147483648
        %v1410 = vxor.u32 %v1378, 2147483648
        %v1411 = vxor.u32 %v1379, 2147483648
        %v1412 = vxor.u32 %v1380, 2147483648
        %v1413 = vxor.u32 %v1381, 2147483648
        %v1414 = vxor.u32 %v1382, 2147483648
        %v1415 = vxor.u32 %v1383, 2147483648
        %v1416 = vxor.u32 %v1384, 2147483648
        %v1417 = vxor.u32 %v1385, 2147483648
        %v1418 = vxor.u32 %v1386, 2147483648
        %v1419 = vxor.u32 %v1387, 2147483648
        %v1420 = vxor.u32 %v1388, 2147483648
        %v1421 = vxor.u32 %v1389, 2147483648
        %v1422 = vxor.u32 %v1390, 2147483648
        %v1423 = vxor.u32 %v1391, 2147483648
        %v1424 = vxor.u32 %v1392, 2147483648
        %v1425 = vxor.u32 %v1393, 2147483648
        %v1426 = vxor.u32 %v1394, 2147483648
        %v1427 = vxor.u32 %v1395, 2147483648
        %v1428 = vxor.u32 %v1396, 2147483648
        %v1429 = vxor.u32 %v1397, 2147483648
        %v1430 = vxor.u32 %v1398, 2147483648
        %v1431 = vxor.u32 %v1399, 2147483648
        %v1432 = vxor.u32 %v1400, 2147483648
        %v1433 = vxor.u32 %v1401, 2147483648
        %v1434 = vmul.f32 %v1402, 1.442695
        %v1435 = vpow.pop %v1434
        %v1436 = vmul.f32 %v1403, 1.442695
        %v1437 = vpow.pop %v1436
        %v1438 = vmul.f32 %v1404, 1.442695
        %v1439 = vpow.pop %v1438
        %v1440 = vmul.f32 %v1405, 1.442695
        %v1441 = vpow.pop %v1440
        %v1442 = vmul.f32 %v1406, 1.442695
        %v1443 = vpow.pop %v1442
        %v1444 = vmul.f32 %v1407, 1.442695
        %v1445 = vpow.pop %v1444
        %v1446 = vmul.f32 %v1408, 1.442695
        %v1447 = vpow.pop %v1446
        %v1448 = vmul.f32 %v1409, 1.442695
        %v1449 = vpow.pop %v1448
        %v1450 = vmul.f32 %v1410, 1.442695
        %v1451 = vpow.pop %v1450
        %v1452 = vmul.f32 %v1411, 1.442695
        %v1453 = vpow.pop %v1452
        %v1454 = vmul.f32 %v1412, 1.442695
        %v1455 = vpow.pop %v1454
        %v1456 = vmul.f32 %v1413, 1.442695
        %v1457 = vpow.pop %v1456
        %v1458 = vmul.f32 %v1414, 1.442695
        %v1459 = vpow.pop %v1458
        %v1460 = vmul.f32 %v1415, 1.442695
        %v1461 = vpow.pop %v1460
        %v1462 = vmul.f32 %v1416, 1.442695
        %v1463 = vpow.pop %v1462
        %v1464 = vmul.f32 %v1417, 1.442695
        %v1465 = vpow.pop %v1464
        %v1466 = vmul.f32 %v1418, 1.442695
        %v1467 = vpow.pop %v1466
        %v1468 = vmul.f32 %v1419, 1.442695
        %v1469 = vpow.pop %v1468
        %v1470 = vmul.f32 %v1420, 1.442695
        %v1471 = vpow.pop %v1470
        %v1472 = vmul.f32 %v1421, 1.442695
        %v1473 = vpow.pop %v1472
        %v1474 = vmul.f32 %v1422, 1.442695
        %v1475 = vpow.pop %v1474
        %v1476 = vmul.f32 %v1423, 1.442695
        %v1477 = vpow.pop %v1476
        %v1478 = vmul.f32 %v1424, 1.442695
        %v1479 = vpow.pop %v1478
        %v1480 = vmul.f32 %v1425, 1.442695
        %v1481 = vpow.pop %v1480
        %v1482 = vmul.f32 %v1426, 1.442695
        %v1483 = vpow.pop %v1482
        %v1484 = vmul.f32 %v1427, 1.442695
        %v1485 = vpow.pop %v1484
        %v1486 = vmul.f32 %v1428, 1.442695
        %v1487 = vpow.pop %v1486
        %v1488 = vmul.f32 %v1429, 1.442695
        %v1489 = vpow.pop %v1488
        %v1490 = vmul.f32 %v1430, 1.442695
        %v1491 = vpow.pop %v1490
        %v1492 = vmul.f32 %v1431, 1.442695
        %v1493 = vpow.pop %v1492
        %v1494 = vmul.f32 %v1432, 1.442695
        %v1495 = vpow.pop %v1494
        %v1496 = vmul.f32 %v1433, 1.442695
        %v1497 = vpow.pop %v1496
        %v1498 = vadd.f32 %v1435, 1.0
        %v1499 = vadd.f32 %v1437, 1.0
        %v1500 = vadd.f32 %v1439, 1.0
        %v1501 = vadd.f32 %v1441, 1.0
        %v1502 = vadd.f32 %v1443, 1.0
        %v1503 = vadd.f32 %v1445, 1.0
        %v1504 = vadd.f32 %v1447, 1.0
        %v1505 = vadd.f32 %v1449, 1.0
        %v1506 = vadd.f32 %v1451, 1.0
        %v1507 = vadd.f32 %v1453, 1.0
        %v1508 = vadd.f32 %v1455, 1.0
        %v1509 = vadd.f32 %v1457, 1.0
        %v1510 = vadd.f32 %v1459, 1.0
        %v1511 = vadd.f32 %v1461, 1.0
        %v1512 = vadd.f32 %v1463, 1.0
        %v1513 = vadd.f32 %v1465, 1.0
        %v1514 = vadd.f32 %v1467, 1.0
        %v1515 = vadd.f32 %v1469, 1.0
        %v1516 = vadd.f32 %v1471, 1.0
        %v1517 = vadd.f32 %v1473, 1.0
        %v1518 = vadd.f32 %v1475, 1.0
        %v1519 = vadd.f32 %v1477, 1.0
        %v1520 = vadd.f32 %v1479, 1.0
        %v1521 = vadd.f32 %v1481, 1.0
        %v1522 = vadd.f32 %v1483, 1.0
        %v1523 = vadd.f32 %v1485, 1.0
        %v1524 = vadd.f32 %v1487, 1.0
        %v1525 = vadd.f32 %v1489, 1.0
        %v1526 = vadd.f32 %v1491, 1.0
        %v1527 = vadd.f32 %v1493, 1.0
        %v1528 = vadd.f32 %v1495, 1.0
        %v1529 = vadd.f32 %v1497, 1.0
        %v1530 = vrcp.pop %v1498
        %v1531 = vmul.f32 %v1498, %v1530
        %v1532 = vsub.f32 1.0, %v1531
        %v1533 = vmul.f32 %v1530, %v1532
        %v1534 = vadd.f32 %v1530, %v1533
        %vm1535 = vweird.f32 %v1498
        %vm1536 = vweird.f32 %v1530
        %vm1537 = vmor %vm1535, %vm1536
        %v1538 = vsel %vm1537, %v1530, %v1534
        %v1539 = vand.u32 2147483647, %v1498
        %vm1540 = vcmp.eq.f32.partialorder %v1539, 8.507059e+37
        %v1541 = vand.u32 %v1498, 2147483648
        %v1542 = vor.u32 1.1754944e-38, %v1541
        %v1543 = vsel %vm1540, %v1542, %v1538
        %v1544 = vmul.f32 1.0, %v1543
        %v1545 = vrcp.pop %v1499
        %v1546 = vmul.f32 %v1499, %v1545
        %v1547 = vsub.f32 1.0, %v1546
        %v1548 = vmul.f32 %v1545, %v1547
        %v1549 = vadd.f32 %v1545, %v1548
        %vm1550 = vweird.f32 %v1499
        %vm1551 = vweird.f32 %v1545
        %vm1552 = vmor %vm1550, %vm1551
        %v1553 = vsel %vm1552, %v1545, %v1549
        %v1554 = vand.u32 2147483647, %v1499
        %vm1555 = vcmp.eq.f32.partialorder %v1554, 8.507059e+37
        %v1556 = vand.u32 %v1499, 2147483648
        %v1557 = vor.u32 1.1754944e-38, %v1556
        %v1558 = vsel %vm1555, %v1557, %v1553
        %v1559 = vmul.f32 1.0, %v1558
        %v1560 = vrcp.pop %v1500
        %v1561 = vmul.f32 %v1500, %v1560
        %v1562 = vsub.f32 1.0, %v1561
        %v1563 = vmul.f32 %v1560, %v1562
        %v1564 = vadd.f32 %v1560, %v1563
        %vm1565 = vweird.f32 %v1500
        %vm1566 = vweird.f32 %v1560
        %vm1567 = vmor %vm1565, %vm1566
        %v1568 = vsel %vm1567, %v1560, %v1564
        %v1569 = vand.u32 2147483647, %v1500
        %vm1570 = vcmp.eq.f32.partialorder %v1569, 8.507059e+37
        %v1571 = vand.u32 %v1500, 2147483648
        %v1572 = vor.u32 1.1754944e-38, %v1571
        %v1573 = vsel %vm1570, %v1572, %v1568
        %v1574 = vmul.f32 1.0, %v1573
        %v1575 = vrcp.pop %v1501
        %v1576 = vmul.f32 %v1501, %v1575
        %v1577 = vsub.f32 1.0, %v1576
        %v1578 = vmul.f32 %v1575, %v1577
        %v1579 = vadd.f32 %v1575, %v1578
        %vm1580 = vweird.f32 %v1501
        %vm1581 = vweird.f32 %v1575
        %vm1582 = vmor %vm1580, %vm1581
        %v1583 = vsel %vm1582, %v1575, %v1579
        %v1584 = vand.u32 2147483647, %v1501
        %vm1585 = vcmp.eq.f32.partialorder %v1584, 8.507059e+37
        %v1586 = vand.u32 %v1501, 2147483648
        %v1587 = vor.u32 1.1754944e-38, %v1586
        %v1588 = vsel %vm1585, %v1587, %v1583
        %v1589 = vmul.f32 1.0, %v1588
        %v1590 = vrcp.pop %v1502
        %v1591 = vmul.f32 %v1502, %v1590
        %v1592 = vsub.f32 1.0, %v1591
        %v1593 = vmul.f32 %v1590, %v1592
        %v1594 = vadd.f32 %v1590, %v1593
        %vm1595 = vweird.f32 %v1502
        %vm1596 = vweird.f32 %v1590
        %vm1597 = vmor %vm1595, %vm1596
        %v1598 = vsel %vm1597, %v1590, %v1594
        %v1599 = vand.u32 2147483647, %v1502
        %vm1600 = vcmp.eq.f32.partialorder %v1599, 8.507059e+37
        %v1601 = vand.u32 %v1502, 2147483648
        %v1602 = vor.u32 1.1754944e-38, %v1601
        %v1603 = vsel %vm1600, %v1602, %v1598
        %v1604 = vmul.f32 1.0, %v1603
        %v1605 = vrcp.pop %v1503
        %v1606 = vmul.f32 %v1503, %v1605
        %v1607 = vsub.f32 1.0, %v1606
        %v1608 = vmul.f32 %v1605, %v1607
        %v1609 = vadd.f32 %v1605, %v1608
        %vm1610 = vweird.f32 %v1503
        %vm1611 = vweird.f32 %v1605
        %vm1612 = vmor %vm1610, %vm1611
        %v1613 = vsel %vm1612, %v1605, %v1609
        %v1614 = vand.u32 2147483647, %v1503
        %vm1615 = vcmp.eq.f32.partialorder %v1614, 8.507059e+37
        %v1616 = vand.u32 %v1503, 2147483648
        %v1617 = vor.u32 1.1754944e-38, %v1616
        %v1618 = vsel %vm1615, %v1617, %v1613
        %v1619 = vmul.f32 1.0, %v1618
        %v1620 = vrcp.pop %v1504
        %v1621 = vmul.f32 %v1504, %v1620
        %v1622 = vsub.f32 1.0, %v1621
        %v1623 = vmul.f32 %v1620, %v1622
        %v1624 = vadd.f32 %v1620, %v1623
        %vm1625 = vweird.f32 %v1504
        %vm1626 = vweird.f32 %v1620
        %vm1627 = vmor %vm1625, %vm1626
        %v1628 = vsel %vm1627, %v1620, %v1624
        %v1629 = vand.u32 2147483647, %v1504
        %vm1630 = vcmp.eq.f32.partialorder %v1629, 8.507059e+37
        %v1631 = vand.u32 %v1504, 2147483648
        %v1632 = vor.u32 1.1754944e-38, %v1631
        %v1633 = vsel %vm1630, %v1632, %v1628
        %v1634 = vmul.f32 1.0, %v1633
        %v1635 = vrcp.pop %v1505
        %v1636 = vmul.f32 %v1505, %v1635
        %v1637 = vsub.f32 1.0, %v1636
        %v1638 = vmul.f32 %v1635, %v1637
        %v1639 = vadd.f32 %v1635, %v1638
        %vm1640 = vweird.f32 %v1505
        %vm1641 = vweird.f32 %v1635
        %vm1642 = vmor %vm1640, %vm1641
        %v1643 = vsel %vm1642, %v1635, %v1639
        %v1644 = vand.u32 2147483647, %v1505
        %vm1645 = vcmp.eq.f32.partialorder %v1644, 8.507059e+37
        %v1646 = vand.u32 %v1505, 2147483648
        %v1647 = vor.u32 1.1754944e-38, %v1646
        %v1648 = vsel %vm1645, %v1647, %v1643
        %v1649 = vmul.f32 1.0, %v1648
        %v1650 = vrcp.pop %v1506
        %v1651 = vmul.f32 %v1506, %v1650
        %v1652 = vsub.f32 1.0, %v1651
        %v1653 = vmul.f32 %v1650, %v1652
        %v1654 = vadd.f32 %v1650, %v1653
        %vm1655 = vweird.f32 %v1506
        %vm1656 = vweird.f32 %v1650
        %vm1657 = vmor %vm1655, %vm1656
        %v1658 = vsel %vm1657, %v1650, %v1654
        %v1659 = vand.u32 2147483647, %v1506
        %vm1660 = vcmp.eq.f32.partialorder %v1659, 8.507059e+37
        %v1661 = vand.u32 %v1506, 2147483648
        %v1662 = vor.u32 1.1754944e-38, %v1661
        %v1663 = vsel %vm1660, %v1662, %v1658
        %v1664 = vmul.f32 1.0, %v1663
        %v1665 = vrcp.pop %v1507
        %v1666 = vmul.f32 %v1507, %v1665
        %v1667 = vsub.f32 1.0, %v1666
        %v1668 = vmul.f32 %v1665, %v1667
        %v1669 = vadd.f32 %v1665, %v1668
        %vm1670 = vweird.f32 %v1507
        %vm1671 = vweird.f32 %v1665
        %vm1672 = vmor %vm1670, %vm1671
        %v1673 = vsel %vm1672, %v1665, %v1669
        %v1674 = vand.u32 2147483647, %v1507
        %vm1675 = vcmp.eq.f32.partialorder %v1674, 8.507059e+37
        %v1676 = vand.u32 %v1507, 2147483648
        %v1677 = vor.u32 1.1754944e-38, %v1676
        %v1678 = vsel %vm1675, %v1677, %v1673
        %v1679 = vmul.f32 1.0, %v1678
        %v1680 = vrcp.pop %v1508
        %v1681 = vmul.f32 %v1508, %v1680
        %v1682 = vsub.f32 1.0, %v1681
        %v1683 = vmul.f32 %v1680, %v1682
        %v1684 = vadd.f32 %v1680, %v1683
        %vm1685 = vweird.f32 %v1508
        %vm1686 = vweird.f32 %v1680
        %vm1687 = vmor %vm1685, %vm1686
        %v1688 = vsel %vm1687, %v1680, %v1684
        %v1689 = vand.u32 2147483647, %v1508
        %vm1690 = vcmp.eq.f32.partialorder %v1689, 8.507059e+37
        %v1691 = vand.u32 %v1508, 2147483648
        %v1692 = vor.u32 1.1754944e-38, %v1691
        %v1693 = vsel %vm1690, %v1692, %v1688
        %v1694 = vmul.f32 1.0, %v1693
        %v1695 = vrcp.pop %v1509
        %v1696 = vmul.f32 %v1509, %v1695
        %v1697 = vsub.f32 1.0, %v1696
        %v1698 = vmul.f32 %v1695, %v1697
        %v1699 = vadd.f32 %v1695, %v1698
        %vm1700 = vweird.f32 %v1509
        %vm1701 = vweird.f32 %v1695
        %vm1702 = vmor %vm1700, %vm1701
        %v1703 = vsel %vm1702, %v1695, %v1699
        %v1704 = vand.u32 2147483647, %v1509
        %vm1705 = vcmp.eq.f32.partialorder %v1704, 8.507059e+37
        %v1706 = vand.u32 %v1509, 2147483648
        %v1707 = vor.u32 1.1754944e-38, %v1706
        %v1708 = vsel %vm1705, %v1707, %v1703
        %v1709 = vmul.f32 1.0, %v1708
        %v1710 = vrcp.pop %v1510
        %v1711 = vmul.f32 %v1510, %v1710
        %v1712 = vsub.f32 1.0, %v1711
        %v1713 = vmul.f32 %v1710, %v1712
        %v1714 = vadd.f32 %v1710, %v1713
        %vm1715 = vweird.f32 %v1510
        %vm1716 = vweird.f32 %v1710
        %vm1717 = vmor %vm1715, %vm1716
        %v1718 = vsel %vm1717, %v1710, %v1714
        %v1719 = vand.u32 2147483647, %v1510
        %vm1720 = vcmp.eq.f32.partialorder %v1719, 8.507059e+37
        %v1721 = vand.u32 %v1510, 2147483648
        %v1722 = vor.u32 1.1754944e-38, %v1721
        %v1723 = vsel %vm1720, %v1722, %v1718
        %v1724 = vmul.f32 1.0, %v1723
        %v1725 = vrcp.pop %v1511
        %v1726 = vmul.f32 %v1511, %v1725
        %v1727 = vsub.f32 1.0, %v1726
        %v1728 = vmul.f32 %v1725, %v1727
        %v1729 = vadd.f32 %v1725, %v1728
        %vm1730 = vweird.f32 %v1511
        %vm1731 = vweird.f32 %v1725
        %vm1732 = vmor %vm1730, %vm1731
        %v1733 = vsel %vm1732, %v1725, %v1729
        %v1734 = vand.u32 2147483647, %v1511
        %vm1735 = vcmp.eq.f32.partialorder %v1734, 8.507059e+37
        %v1736 = vand.u32 %v1511, 2147483648
        %v1737 = vor.u32 1.1754944e-38, %v1736
        %v1738 = vsel %vm1735, %v1737, %v1733
        %v1739 = vmul.f32 1.0, %v1738
        %v1740 = vrcp.pop %v1512
        %v1741 = vmul.f32 %v1512, %v1740
        %v1742 = vsub.f32 1.0, %v1741
        %v1743 = vmul.f32 %v1740, %v1742
        %v1744 = vadd.f32 %v1740, %v1743
        %vm1745 = vweird.f32 %v1512
        %vm1746 = vweird.f32 %v1740
        %vm1747 = vmor %vm1745, %vm1746
        %v1748 = vsel %vm1747, %v1740, %v1744
        %v1749 = vand.u32 2147483647, %v1512
        %vm1750 = vcmp.eq.f32.partialorder %v1749, 8.507059e+37
        %v1751 = vand.u32 %v1512, 2147483648
        %v1752 = vor.u32 1.1754944e-38, %v1751
        %v1753 = vsel %vm1750, %v1752, %v1748
        %v1754 = vmul.f32 1.0, %v1753
        %v1755 = vrcp.pop %v1513
        %v1756 = vmul.f32 %v1513, %v1755
        %v1757 = vsub.f32 1.0, %v1756
        %v1758 = vmul.f32 %v1755, %v1757
        %v1759 = vadd.f32 %v1755, %v1758
        %vm1760 = vweird.f32 %v1513
        %vm1761 = vweird.f32 %v1755
        %vm1762 = vmor %vm1760, %vm1761
        %v1763 = vsel %vm1762, %v1755, %v1759
        %v1764 = vand.u32 2147483647, %v1513
        %vm1765 = vcmp.eq.f32.partialorder %v1764, 8.507059e+37
        %v1766 = vand.u32 %v1513, 2147483648
        %v1767 = vor.u32 1.1754944e-38, %v1766
        %v1768 = vsel %vm1765, %v1767, %v1763
        %v1769 = vmul.f32 1.0, %v1768
        %v1770 = vrcp.pop %v1514
        %v1771 = vmul.f32 %v1514, %v1770
        %v1772 = vsub.f32 1.0, %v1771
        %v1773 = vmul.f32 %v1770, %v1772
        %v1774 = vadd.f32 %v1770, %v1773
        %vm1775 = vweird.f32 %v1514
        %vm1776 = vweird.f32 %v1770
        %vm1777 = vmor %vm1775, %vm1776
        %v1778 = vsel %vm1777, %v1770, %v1774
        %v1779 = vand.u32 2147483647, %v1514
        %vm1780 = vcmp.eq.f32.partialorder %v1779, 8.507059e+37
        %v1781 = vand.u32 %v1514, 2147483648
        %v1782 = vor.u32 1.1754944e-38, %v1781
        %v1783 = vsel %vm1780, %v1782, %v1778
        %v1784 = vmul.f32 1.0, %v1783
        %v1785 = vrcp.pop %v1515
        %v1786 = vmul.f32 %v1515, %v1785
        %v1787 = vsub.f32 1.0, %v1786
        %v1788 = vmul.f32 %v1785, %v1787
        %v1789 = vadd.f32 %v1785, %v1788
        %vm1790 = vweird.f32 %v1515
        %vm1791 = vweird.f32 %v1785
        %vm1792 = vmor %vm1790, %vm1791
        %v1793 = vsel %vm1792, %v1785, %v1789
        %v1794 = vand.u32 2147483647, %v1515
        %vm1795 = vcmp.eq.f32.partialorder %v1794, 8.507059e+37
        %v1796 = vand.u32 %v1515, 2147483648
        %v1797 = vor.u32 1.1754944e-38, %v1796
        %v1798 = vsel %vm1795, %v1797, %v1793
        %v1799 = vmul.f32 1.0, %v1798
        %v1800 = vrcp.pop %v1516
        %v1801 = vmul.f32 %v1516, %v1800
        %v1802 = vsub.f32 1.0, %v1801
        %v1803 = vmul.f32 %v1800, %v1802
        %v1804 = vadd.f32 %v1800, %v1803
        %vm1805 = vweird.f32 %v1516
        %vm1806 = vweird.f32 %v1800
        %vm1807 = vmor %vm1805, %vm1806
        %v1808 = vsel %vm1807, %v1800, %v1804
        %v1809 = vand.u32 2147483647, %v1516
        %vm1810 = vcmp.eq.f32.partialorder %v1809, 8.507059e+37
        %v1811 = vand.u32 %v1516, 2147483648
        %v1812 = vor.u32 1.1754944e-38, %v1811
        %v1813 = vsel %vm1810, %v1812, %v1808
        %v1814 = vmul.f32 1.0, %v1813
        %v1815 = vrcp.pop %v1517
        %v1816 = vmul.f32 %v1517, %v1815
        %v1817 = vsub.f32 1.0, %v1816
        %v1818 = vmul.f32 %v1815, %v1817
        %v1819 = vadd.f32 %v1815, %v1818
        %vm1820 = vweird.f32 %v1517
        %vm1821 = vweird.f32 %v1815
        %vm1822 = vmor %vm1820, %vm1821
        %v1823 = vsel %vm1822, %v1815, %v1819
        %v1824 = vand.u32 2147483647, %v1517
        %vm1825 = vcmp.eq.f32.partialorder %v1824, 8.507059e+37
        %v1826 = vand.u32 %v1517, 2147483648
        %v1827 = vor.u32 1.1754944e-38, %v1826
        %v1828 = vsel %vm1825, %v1827, %v1823
        %v1829 = vmul.f32 1.0, %v1828
        %v1830 = vrcp.pop %v1518
        %v1831 = vmul.f32 %v1518, %v1830
        %v1832 = vsub.f32 1.0, %v1831
        %v1833 = vmul.f32 %v1830, %v1832
        %v1834 = vadd.f32 %v1830, %v1833
        %vm1835 = vweird.f32 %v1518
        %vm1836 = vweird.f32 %v1830
        %vm1837 = vmor %vm1835, %vm1836
        %v1838 = vsel %vm1837, %v1830, %v1834
        %v1839 = vand.u32 2147483647, %v1518
        %vm1840 = vcmp.eq.f32.partialorder %v1839, 8.507059e+37
        %v1841 = vand.u32 %v1518, 2147483648
        %v1842 = vor.u32 1.1754944e-38, %v1841
        %v1843 = vsel %vm1840, %v1842, %v1838
        %v1844 = vmul.f32 1.0, %v1843
        %v1845 = vrcp.pop %v1519
        %v1846 = vmul.f32 %v1519, %v1845
        %v1847 = vsub.f32 1.0, %v1846
        %v1848 = vmul.f32 %v1845, %v1847
        %v1849 = vadd.f32 %v1845, %v1848
        %vm1850 = vweird.f32 %v1519
        %vm1851 = vweird.f32 %v1845
        %vm1852 = vmor %vm1850, %vm1851
        %v1853 = vsel %vm1852, %v1845, %v1849
        %v1854 = vand.u32 2147483647, %v1519
        %vm1855 = vcmp.eq.f32.partialorder %v1854, 8.507059e+37
        %v1856 = vand.u32 %v1519, 2147483648
        %v1857 = vor.u32 1.1754944e-38, %v1856
        %v1858 = vsel %vm1855, %v1857, %v1853
        %v1859 = vmul.f32 1.0, %v1858
        %v1860 = vrcp.pop %v1520
        %v1861 = vmul.f32 %v1520, %v1860
        %v1862 = vsub.f32 1.0, %v1861
        %v1863 = vmul.f32 %v1860, %v1862
        %v1864 = vadd.f32 %v1860, %v1863
        %vm1865 = vweird.f32 %v1520
        %vm1866 = vweird.f32 %v1860
        %vm1867 = vmor %vm1865, %vm1866
        %v1868 = vsel %vm1867, %v1860, %v1864
        %v1869 = vand.u32 2147483647, %v1520
        %vm1870 = vcmp.eq.f32.partialorder %v1869, 8.507059e+37
        %v1871 = vand.u32 %v1520, 2147483648
        %v1872 = vor.u32 1.1754944e-38, %v1871
        %v1873 = vsel %vm1870, %v1872, %v1868
        %v1874 = vmul.f32 1.0, %v1873
        %v1875 = vrcp.pop %v1521
        %v1876 = vmul.f32 %v1521, %v1875
        %v1877 = vsub.f32 1.0, %v1876
        %v1878 = vmul.f32 %v1875, %v1877
        %v1879 = vadd.f32 %v1875, %v1878
        %vm1880 = vweird.f32 %v1521
        %vm1881 = vweird.f32 %v1875
        %vm1882 = vmor %vm1880, %vm1881
        %v1883 = vsel %vm1882, %v1875, %v1879
        %v1884 = vand.u32 2147483647, %v1521
        %vm1885 = vcmp.eq.f32.partialorder %v1884, 8.507059e+37
        %v1886 = vand.u32 %v1521, 2147483648
        %v1887 = vor.u32 1.1754944e-38, %v1886
        %v1888 = vsel %vm1885, %v1887, %v1883
        %v1889 = vmul.f32 1.0, %v1888
        %v1890 = vrcp.pop %v1522
        %v1891 = vmul.f32 %v1522, %v1890
        %v1892 = vsub.f32 1.0, %v1891
        %v1893 = vmul.f32 %v1890, %v1892
        %v1894 = vadd.f32 %v1890, %v1893
        %vm1895 = vweird.f32 %v1522
        %vm1896 = vweird.f32 %v1890
        %vm1897 = vmor %vm1895, %vm1896
        %v1898 = vsel %vm1897, %v1890, %v1894
        %v1899 = vand.u32 2147483647, %v1522
        %vm1900 = vcmp.eq.f32.partialorder %v1899, 8.507059e+37
        %v1901 = vand.u32 %v1522, 2147483648
        %v1902 = vor.u32 1.1754944e-38, %v1901
        %v1903 = vsel %vm1900, %v1902, %v1898
        %v1904 = vmul.f32 1.0, %v1903
        %v1905 = vrcp.pop %v1523
        %v1906 = vmul.f32 %v1523, %v1905
        %v1907 = vsub.f32 1.0, %v1906
        %v1908 = vmul.f32 %v1905, %v1907
        %v1909 = vadd.f32 %v1905, %v1908
        %vm1910 = vweird.f32 %v1523
        %vm1911 = vweird.f32 %v1905
        %vm1912 = vmor %vm1910, %vm1911
        %v1913 = vsel %vm1912, %v1905, %v1909
        %v1914 = vand.u32 2147483647, %v1523
        %vm1915 = vcmp.eq.f32.partialorder %v1914, 8.507059e+37
        %v1916 = vand.u32 %v1523, 2147483648
        %v1917 = vor.u32 1.1754944e-38, %v1916
        %v1918 = vsel %vm1915, %v1917, %v1913
        %v1919 = vmul.f32 1.0, %v1918
        %v1920 = vrcp.pop %v1524
        %v1921 = vmul.f32 %v1524, %v1920
        %v1922 = vsub.f32 1.0, %v1921
        %v1923 = vmul.f32 %v1920, %v1922
        %v1924 = vadd.f32 %v1920, %v1923
        %vm1925 = vweird.f32 %v1524
        %vm1926 = vweird.f32 %v1920
        %vm1927 = vmor %vm1925, %vm1926
        %v1928 = vsel %vm1927, %v1920, %v1924
        %v1929 = vand.u32 2147483647, %v1524
        %vm1930 = vcmp.eq.f32.partialorder %v1929, 8.507059e+37
        %v1931 = vand.u32 %v1524, 2147483648
        %v1932 = vor.u32 1.1754944e-38, %v1931
        %v1933 = vsel %vm1930, %v1932, %v1928
        %v1934 = vmul.f32 1.0, %v1933
        %v1935 = vrcp.pop %v1525
        %v1936 = vmul.f32 %v1525, %v1935
        %v1937 = vsub.f32 1.0, %v1936
        %v1938 = vmul.f32 %v1935, %v1937
        %v1939 = vadd.f32 %v1935, %v1938
        %vm1940 = vweird.f32 %v1525
        %vm1941 = vweird.f32 %v1935
        %vm1942 = vmor %vm1940, %vm1941
        %v1943 = vsel %vm1942, %v1935, %v1939
        %v1944 = vand.u32 2147483647, %v1525
        %vm1945 = vcmp.eq.f32.partialorder %v1944, 8.507059e+37
        %v1946 = vand.u32 %v1525, 2147483648
        %v1947 = vor.u32 1.1754944e-38, %v1946
        %v1948 = vsel %vm1945, %v1947, %v1943
        %v1949 = vmul.f32 1.0, %v1948
        %v1950 = vrcp.pop %v1526
        %v1951 = vmul.f32 %v1526, %v1950
        %v1952 = vsub.f32 1.0, %v1951
        %v1953 = vmul.f32 %v1950, %v1952
        %v1954 = vadd.f32 %v1950, %v1953
        %vm1955 = vweird.f32 %v1526
        %vm1956 = vweird.f32 %v1950
        %vm1957 = vmor %vm1955, %vm1956
        %v1958 = vsel %vm1957, %v1950, %v1954
        %v1959 = vand.u32 2147483647, %v1526
        %vm1960 = vcmp.eq.f32.partialorder %v1959, 8.507059e+37
        %v1961 = vand.u32 %v1526, 2147483648
        %v1962 = vor.u32 1.1754944e-38, %v1961
        %v1963 = vsel %vm1960, %v1962, %v1958
        %v1964 = vmul.f32 1.0, %v1963
        %v1965 = vrcp.pop %v1527
        %v1966 = vmul.f32 %v1527, %v1965
        %v1967 = vsub.f32 1.0, %v1966
        %v1968 = vmul.f32 %v1965, %v1967
        %v1969 = vadd.f32 %v1965, %v1968
        %vm1970 = vweird.f32 %v1527
        %vm1971 = vweird.f32 %v1965
        %vm1972 = vmor %vm1970, %vm1971
        %v1973 = vsel %vm1972, %v1965, %v1969
        %v1974 = vand.u32 2147483647, %v1527
        %vm1975 = vcmp.eq.f32.partialorder %v1974, 8.507059e+37
        %v1976 = vand.u32 %v1527, 2147483648
        %v1977 = vor.u32 1.1754944e-38, %v1976
        %v1978 = vsel %vm1975, %v1977, %v1973
        %v1979 = vmul.f32 1.0, %v1978
        %v1980 = vrcp.pop %v1528
        %v1981 = vmul.f32 %v1528, %v1980
        %v1982 = vsub.f32 1.0, %v1981
        %v1983 = vmul.f32 %v1980, %v1982
        %v1984 = vadd.f32 %v1980, %v1983
        %vm1985 = vweird.f32 %v1528
        %vm1986 = vweird.f32 %v1980
        %vm1987 = vmor %vm1985, %vm1986
        %v1988 = vsel %vm1987, %v1980, %v1984
        %v1989 = vand.u32 2147483647, %v1528
        %vm1990 = vcmp.eq.f32.partialorder %v1989, 8.507059e+37
        %v1991 = vand.u32 %v1528, 2147483648
        %v1992 = vor.u32 1.1754944e-38, %v1991
        %v1993 = vsel %vm1990, %v1992, %v1988
        %v1994 = vmul.f32 1.0, %v1993
        %v1995 = vrcp.pop %v1529
        %v1996 = vmul.f32 %v1529, %v1995
        %v1997 = vsub.f32 1.0, %v1996
        %v1998 = vmul.f32 %v1995, %v1997
        %v1999 = vadd.f32 %v1995, %v1998
        %vm2000 = vweird.f32 %v1529
        %vm2001 = vweird.f32 %v1995
        %vm2002 = vmor %vm2000, %vm2001
        %v2003 = vsel %vm2002, %v1995, %v1999
        %v2004 = vand.u32 2147483647, %v1529
        %vm2005 = vcmp.eq.f32.partialorder %v2004, 8.507059e+37
        %v2006 = vand.u32 %v1529, 2147483648
        %v2007 = vor.u32 1.1754944e-38, %v2006
        %v2008 = vsel %vm2005, %v2007, %v2003
        %v2009 = vmul.f32 1.0, %v2008
        %v2010 = vmul.f32 %v1370, %v1544
        %v2011 = vmul.f32 %v1371, %v1559
        %v2012 = vmul.f32 %v1372, %v1574
        %v2013 = vmul.f32 %v1373, %v1589
        %v2014 = vmul.f32 %v1374, %v1604
        %v2015 = vmul.f32 %v1375, %v1619
        %v2016 = vmul.f32 %v1376, %v1634
        %v2017 = vmul.f32 %v1377, %v1649
        %v2018 = vmul.f32 %v1378, %v1664
        %v2019 = vmul.f32 %v1379, %v1679
        %v2020 = vmul.f32 %v1380, %v1694
        %v2021 = vmul.f32 %v1381, %v1709
        %v2022 = vmul.f32 %v1382, %v1724
        %v2023 = vmul.f32 %v1383, %v1739
        %v2024 = vmul.f32 %v1384, %v1754
        %v2025 = vmul.f32 %v1385, %v1769
        %v2026 = vmul.f32 %v1386, %v1784
        %v2027 = vmul.f32 %v1387, %v1799
        %v2028 = vmul.f32 %v1388, %v1814
        %v2029 = vmul.f32 %v1389, %v1829
        %v2030 = vmul.f32 %v1390, %v1844
        %v2031 = vmul.f32 %v1391, %v1859
        %v2032 = vmul.f32 %v1392, %v1874
        %v2033 = vmul.f32 %v1393, %v1889
        %v2034 = vmul.f32 %v1394, %v1904
        %v2035 = vmul.f32 %v1395, %v1919
        %v2036 = vmul.f32 %v1396, %v1934
        %v2037 = vmul.f32 %v1397, %v1949
        %v2038 = vmul.f32 %v1398, %v1964
        %v2039 = vmul.f32 %v1399, %v1979
        %v2040 = vmul.f32 %v1400, %v1994
        %v2041 = vmul.f32 %v1401, %v2009
        %v2042 = vpack.c.bf16 %v2010, %v2010
        %v2043 = vpack.c.bf16 %v2011, %v2011
        %v2044 = vpack.c.bf16 %v2012, %v2012
        %v2045 = vpack.c.bf16 %v2013, %v2013
        %v2046 = vpack.c.bf16 %v2014, %v2014
        %v2047 = vpack.c.bf16 %v2015, %v2015
        %v2048 = vpack.c.bf16 %v2016, %v2016
        %v2049 = vpack.c.bf16 %v2017, %v2017
        %v2050 = vpack.c.bf16 %v2018, %v2018
        %v2051 = vpack.c.bf16 %v2019, %v2019
        %v2052 = vpack.c.bf16 %v2020, %v2020
        %v2053 = vpack.c.bf16 %v2021, %v2021
        %v2054 = vpack.c.bf16 %v2022, %v2022
        %v2055 = vpack.c.bf16 %v2023, %v2023
        %v2056 = vpack.c.bf16 %v2024, %v2024
        %v2057 = vpack.c.bf16 %v2025, %v2025
        %v2058 = vpack.c.bf16 %v2026, %v2026
        %v2059 = vpack.c.bf16 %v2027, %v2027
        %v2060 = vpack.c.bf16 %v2028, %v2028
        %v2061 = vpack.c.bf16 %v2029, %v2029
        %v2062 = vpack.c.bf16 %v2030, %v2030
        %v2063 = vpack.c.bf16 %v2031, %v2031
        %v2064 = vpack.c.bf16 %v2032, %v2032
        %v2065 = vpack.c.bf16 %v2033, %v2033
        %v2066 = vpack.c.bf16 %v2034, %v2034
        %v2067 = vpack.c.bf16 %v2035, %v2035
        %v2068 = vpack.c.bf16 %v2036, %v2036
        %v2069 = vpack.c.bf16 %v2037, %v2037
        %v2070 = vpack.c.bf16 %v2038, %v2038
        %v2071 = vpack.c.bf16 %v2039, %v2039
        %v2072 = vpack.c.bf16 %v2040, %v2040
        %v2073 = vpack.c.bf16 %v2041, %v2041
        %v2106 = vunpack.c.l.b16 %v2042
        %v2107 = vunpack.c.l.b16 %v2043
        %v2108 = vunpack.c.l.b16 %v2044
        %v2109 = vunpack.c.l.b16 %v2045
        %v2110 = vunpack.c.l.b16 %v2046
        %v2111 = vunpack.c.l.b16 %v2047
        %v2112 = vunpack.c.l.b16 %v2048
        %v2113 = vunpack.c.l.b16 %v2049
        %v2114 = vunpack.c.l.b16 %v2050
        %v2115 = vunpack.c.l.b16 %v2051
        %v2116 = vunpack.c.l.b16 %v2052
        %v2117 = vunpack.c.l.b16 %v2053
        %v2118 = vunpack.c.l.b16 %v2054
        %v2119 = vunpack.c.l.b16 %v2055
        %v2120 = vunpack.c.l.b16 %v2056
        %v2121 = vunpack.c.l.b16 %v2057
        %v2122 = vunpack.c.l.b16 %v2058
        %v2123 = vunpack.c.l.b16 %v2059
        %v2124 = vunpack.c.l.b16 %v2060
        %v2125 = vunpack.c.l.b16 %v2061
        %v2126 = vunpack.c.l.b16 %v2062
        %v2127 = vunpack.c.l.b16 %v2063
        %v2128 = vunpack.c.l.b16 %v2064
        %v2129 = vunpack.c.l.b16 %v2065
        %v2130 = vunpack.c.l.b16 %v2066
        %v2131 = vunpack.c.l.b16 %v2067
        %v2132 = vunpack.c.l.b16 %v2068
        %v2133 = vunpack.c.l.b16 %v2069
        %v2134 = vunpack.c.l.b16 %v2070
        %v2135 = vunpack.c.l.b16 %v2071
        %v2136 = vunpack.c.l.b16 %v2072
        %v2137 = vunpack.c.l.b16 %v2073
        %v2138 = vpack.c.b16 %v2107, %v2106
        %v2139 = vpack.c.b16 %v2109, %v2108
        %v2140 = vpack.c.b16 %v2111, %v2110
        %v2141 = vpack.c.b16 %v2113, %v2112
        %v2142 = vpack.c.b16 %v2115, %v2114
        %v2143 = vpack.c.b16 %v2117, %v2116
        %v2144 = vpack.c.b16 %v2119, %v2118
        %v2145 = vpack.c.b16 %v2121, %v2120
        %v2146 = vpack.c.b16 %v2123, %v2122
        %v2147 = vpack.c.b16 %v2125, %v2124
        %v2148 = vpack.c.b16 %v2127, %v2126
        %v2149 = vpack.c.b16 %v2129, %v2128
        %v2150 = vpack.c.b16 %v2131, %v2130
        %v2151 = vpack.c.b16 %v2133, %v2132
        %v2152 = vpack.c.b16 %v2135, %v2134
        %v2153 = vpack.c.b16 %v2137, %v2136
        %vm2154 = vsmask.f32 256
        %v2156 = vshrl.u32 %v2138, 16
        %v2158 = vrot.slane %v2156, 7
        %v2159 = vshll.u32 %v2138, 16
        %v2161 = vor.u32 %v2158, %v2159
        %v2163 = vshrl.u32 %v2139, 16
        %v2165 = vrot.slane %v2163, 7
        %v2166 = vshll.u32 %v2139, 16
        %v2168 = vor.u32 %v2165, %v2166
        %v2169 = vsel %vm2154, %v2158, %v2168
        %v2171 = vshrl.u32 %v2140, 16
        %v2173 = vrot.slane %v2171, 7
        %v2174 = vshll.u32 %v2140, 16
        %v2176 = vor.u32 %v2173, %v2174
        %v2177 = vsel %vm2154, %v2165, %v2176
        %v2179 = vshrl.u32 %v2141, 16
        %v2181 = vrot.slane %v2179, 7
        %v2182 = vshll.u32 %v2141, 16
        %v2184 = vor.u32 %v2181, %v2182
        %v2185 = vsel %vm2154, %v2173, %v2184
        %v2187 = vshrl.u32 %v2142, 16
        %v2189 = vrot.slane %v2187, 7
        %v2190 = vshll.u32 %v2142, 16
        %v2192 = vor.u32 %v2189, %v2190
        %v2193 = vsel %vm2154, %v2181, %v2192
        %v2195 = vshrl.u32 %v2143, 16
        %v2197 = vrot.slane %v2195, 7
        %v2198 = vshll.u32 %v2143, 16
        %v2200 = vor.u32 %v2197, %v2198
        %v2201 = vsel %vm2154, %v2189, %v2200
        %v2203 = vshrl.u32 %v2144, 16
        %v2205 = vrot.slane %v2203, 7
        %v2206 = vshll.u32 %v2144, 16
        %v2208 = vor.u32 %v2205, %v2206
        %v2209 = vsel %vm2154, %v2197, %v2208
        %v2211 = vshrl.u32 %v2145, 16
        %v2213 = vrot.slane %v2211, 7
        %v2214 = vshll.u32 %v2145, 16
        %v2216 = vor.u32 %v2213, %v2214
        %v2217 = vsel %vm2154, %v2205, %v2216
        %v2219 = vshrl.u32 %v2146, 16
        %v2221 = vrot.slane %v2219, 7
        %v2222 = vshll.u32 %v2146, 16
        %v2224 = vor.u32 %v2221, %v2222
        %v2225 = vsel %vm2154, %v2213, %v2224
        %v2227 = vshrl.u32 %v2147, 16
        %v2229 = vrot.slane %v2227, 7
        %v2230 = vshll.u32 %v2147, 16
        %v2232 = vor.u32 %v2229, %v2230
        %v2233 = vsel %vm2154, %v2221, %v2232
        %v2235 = vshrl.u32 %v2148, 16
        %v2237 = vrot.slane %v2235, 7
        %v2238 = vshll.u32 %v2148, 16
        %v2240 = vor.u32 %v2237, %v2238
        %v2241 = vsel %vm2154, %v2229, %v2240
        %v2243 = vshrl.u32 %v2149, 16
        %v2245 = vrot.slane %v2243, 7
        %v2246 = vshll.u32 %v2149, 16
        %v2248 = vor.u32 %v2245, %v2246
        %v2249 = vsel %vm2154, %v2237, %v2248
        %v2251 = vshrl.u32 %v2150, 16
        %v2253 = vrot.slane %v2251, 7
        %v2254 = vshll.u32 %v2150, 16
        %v2256 = vor.u32 %v2253, %v2254
        %v2257 = vsel %vm2154, %v2245, %v2256
        %v2259 = vshrl.u32 %v2151, 16
        %v2261 = vrot.slane %v2259, 7
        %v2262 = vshll.u32 %v2151, 16
        %v2264 = vor.u32 %v2261, %v2262
        %v2265 = vsel %vm2154, %v2253, %v2264
        %v2267 = vshrl.u32 %v2152, 16
        %v2269 = vrot.slane %v2267, 7
        %v2270 = vshll.u32 %v2152, 16
        %v2272 = vor.u32 %v2269, %v2270
        %v2273 = vsel %vm2154, %v2261, %v2272
        %v2275 = vshrl.u32 %v2153, 16
        %v2277 = vrot.slane %v2275, 7
        %v2278 = vshll.u32 %v2153, 16
        %v2280 = vor.u32 %v2277, %v2278
        %v2281 = vsel %vm2154, %v2269, %v2280
        %vm2299 = vcmask 1040384
        %vm2300 = vmand %vm2299, %vm2154
        %v2301 = vsel %vm2300, 0, %v2161
        %v2302 = vsel %vm2300, %v2277, 0
        %vm2303 = vcmp.ne.s32.totalorder %v993, 15
        %vm2304 = vcmp.ne.s32.totalorder %v994, 15
        %vm2305 = vcmp.ne.s32.totalorder %v995, 15
        %vm2306 = vcmp.ne.s32.totalorder %v996, 15
        %vm2307 = vcmp.ne.s32.totalorder %v997, 15
        %vm2308 = vcmp.ne.s32.totalorder %v998, 15
        %vm2309 = vcmp.ne.s32.totalorder %v999, 15
        %vm2310 = vcmp.ne.s32.totalorder %v1000, 15
        %vm2311 = vcmp.ne.s32.totalorder %v1001, 15
        %vm2312 = vcmp.ne.s32.totalorder %v1002, 15
        %vm2313 = vcmp.ne.s32.totalorder %v1003, 15
        %vm2314 = vcmp.ne.s32.totalorder %v1004, 15
        %vm2315 = vcmp.ne.s32.totalorder %v1005, 15
        %vm2316 = vcmp.ne.s32.totalorder %v1006, 15
        %vm2317 = vcmp.ne.s32.totalorder %v1007, 15
        %vm2318 = vcmp.ne.s32.totalorder %v1008, 15
        %vm2319 = vcmp.ne.s32.totalorder %v1009, 15
        %vm2320 = vcmp.ne.s32.totalorder %v1010, 15
        %vm2321 = vcmp.ne.s32.totalorder %v1011, 15
        %vm2322 = vcmp.ne.s32.totalorder %v1012, 15
        %vm2323 = vcmp.ne.s32.totalorder %v1013, 15
        %vm2324 = vcmp.ne.s32.totalorder %v1014, 15
        %vm2325 = vcmp.ne.s32.totalorder %v1015, 15
        %vm2326 = vcmp.ne.s32.totalorder %v1016, 15
        %vm2327 = vcmp.ne.s32.totalorder %v1017, 15
        %vm2328 = vcmp.ne.s32.totalorder %v1018, 15
        %vm2329 = vcmp.ne.s32.totalorder %v1019, 15
        %vm2330 = vcmp.ne.s32.totalorder %v1020, 15
        %vm2331 = vcmp.ne.s32.totalorder %v1021, 15
        %vm2332 = vcmp.ne.s32.totalorder %v1022, 15
        %vm2333 = vcmp.ne.s32.totalorder %v1023, 15
        %vm2334 = vcmp.ne.s32.totalorder %v1024, 15
        %vm2335 = vcmp.ne.s32.totalorder %v1025, 15
        %vm2336 = vcmp.ne.s32.totalorder %v1026, 15
        %v2337 = vsel %vm2303, 1, 0
        %v2338 = vsel %vm2304, 1, 0
        %v2339 = vsel %vm2305, 1, 0
        %v2340 = vsel %vm2306, 1, 0
        %v2341 = vsel %vm2307, 1, 0
        %v2342 = vsel %vm2308, 1, 0
        %v2343 = vsel %vm2309, 1, 0
        %v2344 = vsel %vm2310, 1, 0
        %v2345 = vsel %vm2311, 1, 0
        %v2346 = vsel %vm2312, 1, 0
        %v2347 = vsel %vm2313, 1, 0
        %v2348 = vsel %vm2314, 1, 0
        %v2349 = vsel %vm2315, 1, 0
        %v2350 = vsel %vm2316, 1, 0
        %v2351 = vsel %vm2317, 1, 0
        %v2352 = vsel %vm2318, 1, 0
        %v2353 = vsel %vm2319, 1, 0
        %v2354 = vsel %vm2320, 1, 0
        %v2355 = vsel %vm2321, 1, 0
        %v2356 = vsel %vm2322, 1, 0
        %v2357 = vsel %vm2323, 1, 0
        %v2358 = vsel %vm2324, 1, 0
        %v2359 = vsel %vm2325, 1, 0
        %v2360 = vsel %vm2326, 1, 0
        %v2361 = vsel %vm2327, 1, 0
        %v2362 = vsel %vm2328, 1, 0
        %v2363 = vsel %vm2329, 1, 0
        %v2364 = vsel %vm2330, 1, 0
        %v2365 = vsel %vm2331, 1, 0
        %v2366 = vsel %vm2332, 1, 0
        %v2367 = vsel %vm2333, 1, 0
        %v2368 = vsel %vm2334, 1, 0
        %v2369 = vsel %vm2335, 1, 0
        %v2370 = vsel %vm2336, 1, 0
        %vm2371 = vcmp.eq.s32.totalorder %v2337, 1
        %vm2372 = vcmp.eq.s32.totalorder %v2338, 1
        %vm2373 = vcmp.eq.s32.totalorder %v2339, 1
        %vm2374 = vcmp.eq.s32.totalorder %v2340, 1
        %vm2375 = vcmp.eq.s32.totalorder %v2341, 1
        %vm2376 = vcmp.eq.s32.totalorder %v2342, 1
        %vm2377 = vcmp.eq.s32.totalorder %v2343, 1
        %vm2378 = vcmp.eq.s32.totalorder %v2344, 1
        %vm2379 = vcmp.eq.s32.totalorder %v2345, 1
        %vm2380 = vcmp.eq.s32.totalorder %v2346, 1
        %vm2381 = vcmp.eq.s32.totalorder %v2347, 1
        %vm2382 = vcmp.eq.s32.totalorder %v2348, 1
        %vm2383 = vcmp.eq.s32.totalorder %v2349, 1
        %vm2384 = vcmp.eq.s32.totalorder %v2350, 1
        %vm2385 = vcmp.eq.s32.totalorder %v2351, 1
        %vm2386 = vcmp.eq.s32.totalorder %v2352, 1
        %vm2387 = vcmp.eq.s32.totalorder %v2353, 1
        %vm2388 = vcmp.eq.s32.totalorder %v2354, 1
        %vm2389 = vcmp.eq.s32.totalorder %v2355, 1
        %vm2390 = vcmp.eq.s32.totalorder %v2356, 1
        %vm2391 = vcmp.eq.s32.totalorder %v2357, 1
        %vm2392 = vcmp.eq.s32.totalorder %v2358, 1
        %vm2393 = vcmp.eq.s32.totalorder %v2359, 1
        %vm2394 = vcmp.eq.s32.totalorder %v2360, 1
        %vm2395 = vcmp.eq.s32.totalorder %v2361, 1
        %vm2396 = vcmp.eq.s32.totalorder %v2362, 1
        %vm2397 = vcmp.eq.s32.totalorder %v2363, 1
        %vm2398 = vcmp.eq.s32.totalorder %v2364, 1
        %vm2399 = vcmp.eq.s32.totalorder %v2365, 1
        %vm2400 = vcmp.eq.s32.totalorder %v2366, 1
        %vm2401 = vcmp.eq.s32.totalorder %v2367, 1
        %vm2402 = vcmp.eq.s32.totalorder %v2368, 1
        %vm2403 = vcmp.eq.s32.totalorder %v2369, 1
        %vm2404 = vcmp.eq.s32.totalorder %v2370, 1
        %vm2405 = vmpackc.low %vm2371, %vm2371
        %vm2406 = vmpackc.low %vm2372, %vm2372
        %vm2407 = vmpackc.low %vm2373, %vm2373
        %vm2408 = vmpackc.low %vm2374, %vm2374
        %vm2409 = vmpackc.low %vm2375, %vm2375
        %vm2410 = vmpackc.low %vm2376, %vm2376
        %vm2411 = vmpackc.low %vm2377, %vm2377
        %vm2412 = vmpackc.low %vm2378, %vm2378
        %vm2413 = vmpackc.low %vm2379, %vm2379
        %vm2414 = vmpackc.low %vm2380, %vm2380
        %vm2415 = vmpackc.low %vm2381, %vm2381
        %vm2416 = vmpackc.low %vm2382, %vm2382
        %vm2417 = vmpackc.low %vm2383, %vm2383
        %vm2418 = vmpackc.low %vm2384, %vm2384
        %vm2419 = vmpackc.low %vm2385, %vm2385
        %vm2420 = vmpackc.low %vm2386, %vm2386
        %vm2421 = vmpackc.low %vm2387, %vm2387
        %vm2422 = vmpackc.low %vm2388, %vm2388
        %vm2423 = vmpackc.low %vm2389, %vm2389
        %vm2424 = vmpackc.low %vm2390, %vm2390
        %vm2425 = vmpackc.low %vm2391, %vm2391
        %vm2426 = vmpackc.low %vm2392, %vm2392
        %vm2427 = vmpackc.low %vm2393, %vm2393
        %vm2428 = vmpackc.low %vm2394, %vm2394
        %vm2429 = vmpackc.low %vm2395, %vm2395
        %vm2430 = vmpackc.low %vm2396, %vm2396
        %vm2431 = vmpackc.low %vm2397, %vm2397
        %vm2432 = vmpackc.low %vm2398, %vm2398
        %vm2433 = vmpackc.low %vm2399, %vm2399
        %vm2434 = vmpackc.low %vm2400, %vm2400
        %vm2435 = vmpackc.low %vm2401, %vm2401
        %vm2436 = vmpackc.low %vm2402, %vm2402
        %vm2437 = vmpackc.low %vm2403, %vm2403
        %vm2438 = vmpackc.low %vm2404, %vm2404
        %v2439 = vsel %vm2405, 65537, 0
        %v2440 = vsel %vm2406, 65537, 0
        %v2441 = vsel %vm2407, 65537, 0
        %v2442 = vsel %vm2408, 65537, 0
        %v2443 = vsel %vm2409, 65537, 0
        %v2444 = vsel %vm2410, 65537, 0
        %v2445 = vsel %vm2411, 65537, 0
        %v2446 = vsel %vm2412, 65537, 0
        %v2447 = vsel %vm2413, 65537, 0
        %v2448 = vsel %vm2414, 65537, 0
        %v2449 = vsel %vm2415, 65537, 0
        %v2450 = vsel %vm2416, 65537, 0
        %v2451 = vsel %vm2417, 65537, 0
        %v2452 = vsel %vm2418, 65537, 0
        %v2453 = vsel %vm2419, 65537, 0
        %v2454 = vsel %vm2420, 65537, 0
        %v2455 = vsel %vm2421, 65537, 0
        %v2456 = vsel %vm2422, 65537, 0
        %v2457 = vsel %vm2423, 65537, 0
        %v2458 = vsel %vm2424, 65537, 0
        %v2459 = vsel %vm2425, 65537, 0
        %v2460 = vsel %vm2426, 65537, 0
        %v2461 = vsel %vm2427, 65537, 0
        %v2462 = vsel %vm2428, 65537, 0
        %v2463 = vsel %vm2429, 65537, 0
        %v2464 = vsel %vm2430, 65537, 0
        %v2465 = vsel %vm2431, 65537, 0
        %v2466 = vsel %vm2432, 65537, 0
        %v2467 = vsel %vm2433, 65537, 0
        %v2468 = vsel %vm2434, 65537, 0
        %v2469 = vsel %vm2435, 65537, 0
        %v2470 = vsel %vm2436, 65537, 0
        %v2471 = vsel %vm2437, 65537, 0
        %v2472 = vsel %vm2438, 65537, 0
        %v2473 = vunpack.c.l.b16 %v2439
        %v2474 = vunpack.c.l.b16 %v2440
        %v2475 = vunpack.c.l.b16 %v2441
        %v2476 = vunpack.c.l.b16 %v2442
        %v2477 = vunpack.c.l.b16 %v2443
        %v2478 = vunpack.c.l.b16 %v2444
        %v2479 = vunpack.c.l.b16 %v2445
        %v2480 = vunpack.c.l.b16 %v2446
        %v2481 = vunpack.c.l.b16 %v2447
        %v2482 = vunpack.c.l.b16 %v2448
        %v2483 = vunpack.c.l.b16 %v2449
        %v2484 = vunpack.c.l.b16 %v2450
        %v2485 = vunpack.c.l.b16 %v2451
        %v2486 = vunpack.c.l.b16 %v2452
        %v2487 = vunpack.c.l.b16 %v2453
        %v2488 = vunpack.c.l.b16 %v2454
        %v2489 = vunpack.c.l.b16 %v2455
        %v2490 = vunpack.c.l.b16 %v2456
        %v2491 = vunpack.c.l.b16 %v2457
        %v2492 = vunpack.c.l.b16 %v2458
        %v2493 = vunpack.c.l.b16 %v2459
        %v2494 = vunpack.c.l.b16 %v2460
        %v2495 = vunpack.c.l.b16 %v2461
        %v2496 = vunpack.c.l.b16 %v2462
        %v2497 = vunpack.c.l.b16 %v2463
        %v2498 = vunpack.c.l.b16 %v2464
        %v2499 = vunpack.c.l.b16 %v2465
        %v2500 = vunpack.c.l.b16 %v2466
        %v2501 = vunpack.c.l.b16 %v2467
        %v2502 = vunpack.c.l.b16 %v2468
        %v2503 = vunpack.c.l.b16 %v2469
        %v2504 = vunpack.c.l.b16 %v2470
        %v2505 = vunpack.c.l.b16 %v2471
        %v2506 = vunpack.c.l.b16 %v2472
        %v2507 = vpack.c.b16 %v2474, %v2473
        %v2508 = vpack.c.b16 %v2476, %v2475
        %v2509 = vpack.c.b16 %v2478, %v2477
        %v2510 = vpack.c.b16 %v2480, %v2479
        %v2511 = vpack.c.b16 %v2482, %v2481
        %v2512 = vpack.c.b16 %v2484, %v2483
        %v2513 = vpack.c.b16 %v2486, %v2485
        %v2514 = vpack.c.b16 %v2488, %v2487
        %v2515 = vpack.c.b16 %v2490, %v2489
        %v2516 = vpack.c.b16 %v2492, %v2491
        %v2517 = vpack.c.b16 %v2494, %v2493
        %v2518 = vpack.c.b16 %v2496, %v2495
        %v2519 = vpack.c.b16 %v2498, %v2497
        %v2520 = vpack.c.b16 %v2500, %v2499
        %v2521 = vpack.c.b16 %v2502, %v2501
        %v2522 = vpack.c.b16 %v2504, %v2503
        %v2523 = vpack.c.b16 %v2506, %v2505
        %v2524 = vunpack.c.l.b16 %v2507
        %v2525 = vunpack.c.h.b16 %v2507
        %v2526 = vunpack.c.l.b16 0
        %v2527 = vunpack.c.h.b16 0
        %vm2528 = vcmp.ne.s32.totalorder %v2524, %v2526
        %vm2529 = vcmp.ne.s32.totalorder %v2525, %v2527
        %vm2530 = vmpackc.low %vm2529, %vm2528
        %v2531 = vunpack.c.l.b16 %v2508
        %v2532 = vunpack.c.h.b16 %v2508
        %v2533 = vunpack.c.l.b16 0
        %v2534 = vunpack.c.h.b16 0
        %vm2535 = vcmp.ne.s32.totalorder %v2531, %v2533
        %vm2536 = vcmp.ne.s32.totalorder %v2532, %v2534
        %vm2537 = vmpackc.low %vm2536, %vm2535
        %v2538 = vunpack.c.l.b16 %v2509
        %v2539 = vunpack.c.h.b16 %v2509
        %v2540 = vunpack.c.l.b16 0
        %v2541 = vunpack.c.h.b16 0
        %vm2542 = vcmp.ne.s32.totalorder %v2538, %v2540
        %vm2543 = vcmp.ne.s32.totalorder %v2539, %v2541
        %vm2544 = vmpackc.low %vm2543, %vm2542
        %v2545 = vunpack.c.l.b16 %v2510
        %v2546 = vunpack.c.h.b16 %v2510
        %v2547 = vunpack.c.l.b16 0
        %v2548 = vunpack.c.h.b16 0
        %vm2549 = vcmp.ne.s32.totalorder %v2545, %v2547
        %vm2550 = vcmp.ne.s32.totalorder %v2546, %v2548
        %vm2551 = vmpackc.low %vm2550, %vm2549
        %v2552 = vunpack.c.l.b16 %v2511
        %v2553 = vunpack.c.h.b16 %v2511
        %v2554 = vunpack.c.l.b16 0
        %v2555 = vunpack.c.h.b16 0
        %vm2556 = vcmp.ne.s32.totalorder %v2552, %v2554
        %vm2557 = vcmp.ne.s32.totalorder %v2553, %v2555
        %vm2558 = vmpackc.low %vm2557, %vm2556
        %v2559 = vunpack.c.l.b16 %v2512
        %v2560 = vunpack.c.h.b16 %v2512
        %v2561 = vunpack.c.l.b16 0
        %v2562 = vunpack.c.h.b16 0
        %vm2563 = vcmp.ne.s32.totalorder %v2559, %v2561
        %vm2564 = vcmp.ne.s32.totalorder %v2560, %v2562
        %vm2565 = vmpackc.low %vm2564, %vm2563
        %v2566 = vunpack.c.l.b16 %v2513
        %v2567 = vunpack.c.h.b16 %v2513
        %v2568 = vunpack.c.l.b16 0
        %v2569 = vunpack.c.h.b16 0
        %vm2570 = vcmp.ne.s32.totalorder %v2566, %v2568
        %vm2571 = vcmp.ne.s32.totalorder %v2567, %v2569
        %vm2572 = vmpackc.low %vm2571, %vm2570
        %v2573 = vunpack.c.l.b16 %v2514
        %v2574 = vunpack.c.h.b16 %v2514
        %v2575 = vunpack.c.l.b16 0
        %v2576 = vunpack.c.h.b16 0
        %vm2577 = vcmp.ne.s32.totalorder %v2573, %v2575
        %vm2578 = vcmp.ne.s32.totalorder %v2574, %v2576
        %vm2579 = vmpackc.low %vm2578, %vm2577
        %v2580 = vunpack.c.l.b16 %v2515
        %v2581 = vunpack.c.h.b16 %v2515
        %v2582 = vunpack.c.l.b16 0
        %v2583 = vunpack.c.h.b16 0
        %vm2584 = vcmp.ne.s32.totalorder %v2580, %v2582
        %vm2585 = vcmp.ne.s32.totalorder %v2581, %v2583
        %vm2586 = vmpackc.low %vm2585, %vm2584
        %v2587 = vunpack.c.l.b16 %v2516
        %v2588 = vunpack.c.h.b16 %v2516
        %v2589 = vunpack.c.l.b16 0
        %v2590 = vunpack.c.h.b16 0
        %vm2591 = vcmp.ne.s32.totalorder %v2587, %v2589
        %vm2592 = vcmp.ne.s32.totalorder %v2588, %v2590
        %vm2593 = vmpackc.low %vm2592, %vm2591
        %v2594 = vunpack.c.l.b16 %v2517
        %v2595 = vunpack.c.h.b16 %v2517
        %v2596 = vunpack.c.l.b16 0
        %v2597 = vunpack.c.h.b16 0
        %vm2598 = vcmp.ne.s32.totalorder %v2594, %v2596
        %vm2599 = vcmp.ne.s32.totalorder %v2595, %v2597
        %vm2600 = vmpackc.low %vm2599, %vm2598
        %v2601 = vunpack.c.l.b16 %v2518
        %v2602 = vunpack.c.h.b16 %v2518
        %v2603 = vunpack.c.l.b16 0
        %v2604 = vunpack.c.h.b16 0
        %vm2605 = vcmp.ne.s32.totalorder %v2601, %v2603
        %vm2606 = vcmp.ne.s32.totalorder %v2602, %v2604
        %vm2607 = vmpackc.low %vm2606, %vm2605
        %v2608 = vunpack.c.l.b16 %v2519
        %v2609 = vunpack.c.h.b16 %v2519
        %v2610 = vunpack.c.l.b16 0
        %v2611 = vunpack.c.h.b16 0
        %vm2612 = vcmp.ne.s32.totalorder %v2608, %v2610
        %vm2613 = vcmp.ne.s32.totalorder %v2609, %v2611
        %vm2614 = vmpackc.low %vm2613, %vm2612
        %v2615 = vunpack.c.l.b16 %v2520
        %v2616 = vunpack.c.h.b16 %v2520
        %v2617 = vunpack.c.l.b16 0
        %v2618 = vunpack.c.h.b16 0
        %vm2619 = vcmp.ne.s32.totalorder %v2615, %v2617
        %vm2620 = vcmp.ne.s32.totalorder %v2616, %v2618
        %vm2621 = vmpackc.low %vm2620, %vm2619
        %v2622 = vunpack.c.l.b16 %v2521
        %v2623 = vunpack.c.h.b16 %v2521
        %v2624 = vunpack.c.l.b16 0
        %v2625 = vunpack.c.h.b16 0
        %vm2626 = vcmp.ne.s32.totalorder %v2622, %v2624
        %vm2627 = vcmp.ne.s32.totalorder %v2623, %v2625
        %vm2628 = vmpackc.low %vm2627, %vm2626
        %v2629 = vunpack.c.l.b16 %v2522
        %v2630 = vunpack.c.h.b16 %v2522
        %v2631 = vunpack.c.l.b16 0
        %v2632 = vunpack.c.h.b16 0
        %vm2633 = vcmp.ne.s32.totalorder %v2629, %v2631
        %vm2634 = vcmp.ne.s32.totalorder %v2630, %v2632
        %vm2635 = vmpackc.low %vm2634, %vm2633
        %v2636 = vunpack.c.l.b16 %v2523
        %v2637 = vunpack.c.h.b16 %v2523
        %v2638 = vunpack.c.l.b16 0
        %v2639 = vunpack.c.h.b16 0
        %vm2640 = vcmp.ne.s32.totalorder %v2636, %v2638
        %vm2641 = vcmp.ne.s32.totalorder %v2637, %v2639
        %vm2642 = vmpackc.low %vm2641, %vm2640
        %v2643 = vsel %vm2530, %v2301, 0
        %v2644 = vsel %vm2537, %v2169, 0
        %v2645 = vsel %vm2544, %v2177, 0
        %v2646 = vsel %vm2551, %v2185, 0
        %v2647 = vsel %vm2558, %v2193, 0
        %v2648 = vsel %vm2565, %v2201, 0
        %v2649 = vsel %vm2572, %v2209, 0
        %v2650 = vsel %vm2579, %v2217, 0
        %v2651 = vsel %vm2586, %v2225, 0
        %v2652 = vsel %vm2593, %v2233, 0
        %v2653 = vsel %vm2600, %v2241, 0
        %v2654 = vsel %vm2607, %v2249, 0
        %v2655 = vsel %vm2614, %v2257, 0
        %v2656 = vsel %vm2621, %v2265, 0
        %v2657 = vsel %vm2628, %v2273, 0
        %v2658 = vsel %vm2635, %v2281, 0
        %v2659 = vsel %vm2642, %v2302, 0
        %vm2660 = vcmp.ne.s32.totalorder %v993, 0
        %vm2661 = vcmp.ne.s32.totalorder %v994, 0
        %vm2662 = vcmp.ne.s32.totalorder %v995, 0
        %vm2663 = vcmp.ne.s32.totalorder %v996, 0
        %vm2664 = vcmp.ne.s32.totalorder %v997, 0
        %vm2665 = vcmp.ne.s32.totalorder %v998, 0
        %vm2666 = vcmp.ne.s32.totalorder %v999, 0
        %vm2667 = vcmp.ne.s32.totalorder %v1000, 0
        %vm2668 = vcmp.ne.s32.totalorder %v1001, 0
        %vm2669 = vcmp.ne.s32.totalorder %v1002, 0
        %vm2670 = vcmp.ne.s32.totalorder %v1003, 0
        %vm2671 = vcmp.ne.s32.totalorder %v1004, 0
        %vm2672 = vcmp.ne.s32.totalorder %v1005, 0
        %vm2673 = vcmp.ne.s32.totalorder %v1006, 0
        %vm2674 = vcmp.ne.s32.totalorder %v1007, 0
        %vm2675 = vcmp.ne.s32.totalorder %v1008, 0
        %vm2676 = vcmp.ne.s32.totalorder %v1009, 0
        %vm2677 = vcmp.ne.s32.totalorder %v1010, 0
        %vm2678 = vcmp.ne.s32.totalorder %v1011, 0
        %vm2679 = vcmp.ne.s32.totalorder %v1012, 0
        %vm2680 = vcmp.ne.s32.totalorder %v1013, 0
        %vm2681 = vcmp.ne.s32.totalorder %v1014, 0
        %vm2682 = vcmp.ne.s32.totalorder %v1015, 0
        %vm2683 = vcmp.ne.s32.totalorder %v1016, 0
        %vm2684 = vcmp.ne.s32.totalorder %v1017, 0
        %vm2685 = vcmp.ne.s32.totalorder %v1018, 0
        %vm2686 = vcmp.ne.s32.totalorder %v1019, 0
        %vm2687 = vcmp.ne.s32.totalorder %v1020, 0
        %vm2688 = vcmp.ne.s32.totalorder %v1021, 0
        %vm2689 = vcmp.ne.s32.totalorder %v1022, 0
        %vm2690 = vcmp.ne.s32.totalorder %v1023, 0
        %vm2691 = vcmp.ne.s32.totalorder %v1024, 0
        %vm2692 = vcmp.ne.s32.totalorder %v1025, 0
        %vm2693 = vcmp.ne.s32.totalorder %v1026, 0
        %v2694 = vsel %vm2660, 1, 0
        %v2695 = vsel %vm2661, 1, 0
        %v2696 = vsel %vm2662, 1, 0
        %v2697 = vsel %vm2663, 1, 0
        %v2698 = vsel %vm2664, 1, 0
        %v2699 = vsel %vm2665, 1, 0
        %v2700 = vsel %vm2666, 1, 0
        %v2701 = vsel %vm2667, 1, 0
        %v2702 = vsel %vm2668, 1, 0
        %v2703 = vsel %vm2669, 1, 0
        %v2704 = vsel %vm2670, 1, 0
        %v2705 = vsel %vm2671, 1, 0
        %v2706 = vsel %vm2672, 1, 0
        %v2707 = vsel %vm2673, 1, 0
        %v2708 = vsel %vm2674, 1, 0
        %v2709 = vsel %vm2675, 1, 0
        %v2710 = vsel %vm2676, 1, 0
        %v2711 = vsel %vm2677, 1, 0
        %v2712 = vsel %vm2678, 1, 0
        %v2713 = vsel %vm2679, 1, 0
        %v2714 = vsel %vm2680, 1, 0
        %v2715 = vsel %vm2681, 1, 0
        %v2716 = vsel %vm2682, 1, 0
        %v2717 = vsel %vm2683, 1, 0
        %v2718 = vsel %vm2684, 1, 0
        %v2719 = vsel %vm2685, 1, 0
        %v2720 = vsel %vm2686, 1, 0
        %v2721 = vsel %vm2687, 1, 0
        %v2722 = vsel %vm2688, 1, 0
        %v2723 = vsel %vm2689, 1, 0
        %v2724 = vsel %vm2690, 1, 0
        %v2725 = vsel %vm2691, 1, 0
        %v2726 = vsel %vm2692, 1, 0
        %v2727 = vsel %vm2693, 1, 0
        %vm2728 = vcmp.eq.s32.totalorder %v2694, 1
        %vm2729 = vcmp.eq.s32.totalorder %v2695, 1
        %vm2730 = vcmp.eq.s32.totalorder %v2696, 1
        %vm2731 = vcmp.eq.s32.totalorder %v2697, 1
        %vm2732 = vcmp.eq.s32.totalorder %v2698, 1
        %vm2733 = vcmp.eq.s32.totalorder %v2699, 1
        %vm2734 = vcmp.eq.s32.totalorder %v2700, 1
        %vm2735 = vcmp.eq.s32.totalorder %v2701, 1
        %vm2736 = vcmp.eq.s32.totalorder %v2702, 1
        %vm2737 = vcmp.eq.s32.totalorder %v2703, 1
        %vm2738 = vcmp.eq.s32.totalorder %v2704, 1
        %vm2739 = vcmp.eq.s32.totalorder %v2705, 1
        %vm2740 = vcmp.eq.s32.totalorder %v2706, 1
        %vm2741 = vcmp.eq.s32.totalorder %v2707, 1
        %vm2742 = vcmp.eq.s32.totalorder %v2708, 1
        %vm2743 = vcmp.eq.s32.totalorder %v2709, 1
        %vm2744 = vcmp.eq.s32.totalorder %v2710, 1
        %vm2745 = vcmp.eq.s32.totalorder %v2711, 1
        %vm2746 = vcmp.eq.s32.totalorder %v2712, 1
        %vm2747 = vcmp.eq.s32.totalorder %v2713, 1
        %vm2748 = vcmp.eq.s32.totalorder %v2714, 1
        %vm2749 = vcmp.eq.s32.totalorder %v2715, 1
        %vm2750 = vcmp.eq.s32.totalorder %v2716, 1
        %vm2751 = vcmp.eq.s32.totalorder %v2717, 1
        %vm2752 = vcmp.eq.s32.totalorder %v2718, 1
        %vm2753 = vcmp.eq.s32.totalorder %v2719, 1
        %vm2754 = vcmp.eq.s32.totalorder %v2720, 1
        %vm2755 = vcmp.eq.s32.totalorder %v2721, 1
        %vm2756 = vcmp.eq.s32.totalorder %v2722, 1
        %vm2757 = vcmp.eq.s32.totalorder %v2723, 1
        %vm2758 = vcmp.eq.s32.totalorder %v2724, 1
        %vm2759 = vcmp.eq.s32.totalorder %v2725, 1
        %vm2760 = vcmp.eq.s32.totalorder %v2726, 1
        %vm2761 = vcmp.eq.s32.totalorder %v2727, 1
        %vm2762 = vmpackc.low %vm2728, %vm2728
        %vm2763 = vmpackc.low %vm2729, %vm2729
        %vm2764 = vmpackc.low %vm2730, %vm2730
        %vm2765 = vmpackc.low %vm2731, %vm2731
        %vm2766 = vmpackc.low %vm2732, %vm2732
        %vm2767 = vmpackc.low %vm2733, %vm2733
        %vm2768 = vmpackc.low %vm2734, %vm2734
        %vm2769 = vmpackc.low %vm2735, %vm2735
        %vm2770 = vmpackc.low %vm2736, %vm2736
        %vm2771 = vmpackc.low %vm2737, %vm2737
        %vm2772 = vmpackc.low %vm2738, %vm2738
        %vm2773 = vmpackc.low %vm2739, %vm2739
        %vm2774 = vmpackc.low %vm2740, %vm2740
        %vm2775 = vmpackc.low %vm2741, %vm2741
        %vm2776 = vmpackc.low %vm2742, %vm2742
        %vm2777 = vmpackc.low %vm2743, %vm2743
        %vm2778 = vmpackc.low %vm2744, %vm2744
        %vm2779 = vmpackc.low %vm2745, %vm2745
        %vm2780 = vmpackc.low %vm2746, %vm2746
        %vm2781 = vmpackc.low %vm2747, %vm2747
        %vm2782 = vmpackc.low %vm2748, %vm2748
        %vm2783 = vmpackc.low %vm2749, %vm2749
        %vm2784 = vmpackc.low %vm2750, %vm2750
        %vm2785 = vmpackc.low %vm2751, %vm2751
        %vm2786 = vmpackc.low %vm2752, %vm2752
        %vm2787 = vmpackc.low %vm2753, %vm2753
        %vm2788 = vmpackc.low %vm2754, %vm2754
        %vm2789 = vmpackc.low %vm2755, %vm2755
        %vm2790 = vmpackc.low %vm2756, %vm2756
        %vm2791 = vmpackc.low %vm2757, %vm2757
        %vm2792 = vmpackc.low %vm2758, %vm2758
        %vm2793 = vmpackc.low %vm2759, %vm2759
        %vm2794 = vmpackc.low %vm2760, %vm2760
        %vm2795 = vmpackc.low %vm2761, %vm2761
        %v2796 = vsel %vm2762, 65537, 0
        %v2797 = vsel %vm2763, 65537, 0
        %v2798 = vsel %vm2764, 65537, 0
        %v2799 = vsel %vm2765, 65537, 0
        %v2800 = vsel %vm2766, 65537, 0
        %v2801 = vsel %vm2767, 65537, 0
        %v2802 = vsel %vm2768, 65537, 0
        %v2803 = vsel %vm2769, 65537, 0
        %v2804 = vsel %vm2770, 65537, 0
        %v2805 = vsel %vm2771, 65537, 0
        %v2806 = vsel %vm2772, 65537, 0
        %v2807 = vsel %vm2773, 65537, 0
        %v2808 = vsel %vm2774, 65537, 0
        %v2809 = vsel %vm2775, 65537, 0
        %v2810 = vsel %vm2776, 65537, 0
        %v2811 = vsel %vm2777, 65537, 0
        %v2812 = vsel %vm2778, 65537, 0
        %v2813 = vsel %vm2779, 65537, 0
        %v2814 = vsel %vm2780, 65537, 0
        %v2815 = vsel %vm2781, 65537, 0
        %v2816 = vsel %vm2782, 65537, 0
        %v2817 = vsel %vm2783, 65537, 0
        %v2818 = vsel %vm2784, 65537, 0
        %v2819 = vsel %vm2785, 65537, 0
        %v2820 = vsel %vm2786, 65537, 0
        %v2821 = vsel %vm2787, 65537, 0
        %v2822 = vsel %vm2788, 65537, 0
        %v2823 = vsel %vm2789, 65537, 0
        %v2824 = vsel %vm2790, 65537, 0
        %v2825 = vsel %vm2791, 65537, 0
        %v2826 = vsel %vm2792, 65537, 0
        %v2827 = vsel %vm2793, 65537, 0
        %v2828 = vsel %vm2794, 65537, 0
        %v2829 = vsel %vm2795, 65537, 0
        %v2830 = vunpack.c.l.b16 %v2796
        %v2831 = vunpack.c.l.b16 %v2797
        %v2832 = vunpack.c.l.b16 %v2798
        %v2833 = vunpack.c.l.b16 %v2799
        %v2834 = vunpack.c.l.b16 %v2800
        %v2835 = vunpack.c.l.b16 %v2801
        %v2836 = vunpack.c.l.b16 %v2802
        %v2837 = vunpack.c.l.b16 %v2803
        %v2838 = vunpack.c.l.b16 %v2804
        %v2839 = vunpack.c.l.b16 %v2805
        %v2840 = vunpack.c.l.b16 %v2806
        %v2841 = vunpack.c.l.b16 %v2807
        %v2842 = vunpack.c.l.b16 %v2808
        %v2843 = vunpack.c.l.b16 %v2809
        %v2844 = vunpack.c.l.b16 %v2810
        %v2845 = vunpack.c.l.b16 %v2811
        %v2846 = vunpack.c.l.b16 %v2812
        %v2847 = vunpack.c.l.b16 %v2813
        %v2848 = vunpack.c.l.b16 %v2814
        %v2849 = vunpack.c.l.b16 %v2815
        %v2850 = vunpack.c.l.b16 %v2816
        %v2851 = vunpack.c.l.b16 %v2817
        %v2852 = vunpack.c.l.b16 %v2818
        %v2853 = vunpack.c.l.b16 %v2819
        %v2854 = vunpack.c.l.b16 %v2820
        %v2855 = vunpack.c.l.b16 %v2821
        %v2856 = vunpack.c.l.b16 %v2822
        %v2857 = vunpack.c.l.b16 %v2823
        %v2858 = vunpack.c.l.b16 %v2824
        %v2859 = vunpack.c.l.b16 %v2825
        %v2860 = vunpack.c.l.b16 %v2826
        %v2861 = vunpack.c.l.b16 %v2827
        %v2862 = vunpack.c.l.b16 %v2828
        %v2863 = vunpack.c.l.b16 %v2829
        %v2864 = vpack.c.b16 %v2831, %v2830
        %v2865 = vpack.c.b16 %v2833, %v2832
        %v2866 = vpack.c.b16 %v2835, %v2834
        %v2867 = vpack.c.b16 %v2837, %v2836
        %v2868 = vpack.c.b16 %v2839, %v2838
        %v2869 = vpack.c.b16 %v2841, %v2840
        %v2870 = vpack.c.b16 %v2843, %v2842
        %v2871 = vpack.c.b16 %v2845, %v2844
        %v2872 = vpack.c.b16 %v2847, %v2846
        %v2873 = vpack.c.b16 %v2849, %v2848
        %v2874 = vpack.c.b16 %v2851, %v2850
        %v2875 = vpack.c.b16 %v2853, %v2852
        %v2876 = vpack.c.b16 %v2855, %v2854
        %v2877 = vpack.c.b16 %v2857, %v2856
        %v2878 = vpack.c.b16 %v2859, %v2858
        %v2879 = vpack.c.b16 %v2861, %v2860
        %v2880 = vpack.c.b16 %v2863, %v2862
        %v2881 = vunpack.c.l.b16 %v2864
        %v2882 = vunpack.c.h.b16 %v2864
        %v2883 = vunpack.c.l.b16 0
        %v2884 = vunpack.c.h.b16 0
        %vm2885 = vcmp.ne.s32.totalorder %v2881, %v2883
        %vm2886 = vcmp.ne.s32.totalorder %v2882, %v2884
        %vm2887 = vmpackc.low %vm2886, %vm2885
        %v2888 = vunpack.c.l.b16 %v2865
        %v2889 = vunpack.c.h.b16 %v2865
        %v2890 = vunpack.c.l.b16 0
        %v2891 = vunpack.c.h.b16 0
        %vm2892 = vcmp.ne.s32.totalorder %v2888, %v2890
        %vm2893 = vcmp.ne.s32.totalorder %v2889, %v2891
        %vm2894 = vmpackc.low %vm2893, %vm2892
        %v2895 = vunpack.c.l.b16 %v2866
        %v2896 = vunpack.c.h.b16 %v2866
        %v2897 = vunpack.c.l.b16 0
        %v2898 = vunpack.c.h.b16 0
        %vm2899 = vcmp.ne.s32.totalorder %v2895, %v2897
        %vm2900 = vcmp.ne.s32.totalorder %v2896, %v2898
        %vm2901 = vmpackc.low %vm2900, %vm2899
        %v2902 = vunpack.c.l.b16 %v2867
        %v2903 = vunpack.c.h.b16 %v2867
        %v2904 = vunpack.c.l.b16 0
        %v2905 = vunpack.c.h.b16 0
        %vm2906 = vcmp.ne.s32.totalorder %v2902, %v2904
        %vm2907 = vcmp.ne.s32.totalorder %v2903, %v2905
        %vm2908 = vmpackc.low %vm2907, %vm2906
        %v2909 = vunpack.c.l.b16 %v2868
        %v2910 = vunpack.c.h.b16 %v2868
        %v2911 = vunpack.c.l.b16 0
        %v2912 = vunpack.c.h.b16 0
        %vm2913 = vcmp.ne.s32.totalorder %v2909, %v2911
        %vm2914 = vcmp.ne.s32.totalorder %v2910, %v2912
        %vm2915 = vmpackc.low %vm2914, %vm2913
        %v2916 = vunpack.c.l.b16 %v2869
        %v2917 = vunpack.c.h.b16 %v2869
        %v2918 = vunpack.c.l.b16 0
        %v2919 = vunpack.c.h.b16 0
        %vm2920 = vcmp.ne.s32.totalorder %v2916, %v2918
        %vm2921 = vcmp.ne.s32.totalorder %v2917, %v2919
        %vm2922 = vmpackc.low %vm2921, %vm2920
        %v2923 = vunpack.c.l.b16 %v2870
        %v2924 = vunpack.c.h.b16 %v2870
        %v2925 = vunpack.c.l.b16 0
        %v2926 = vunpack.c.h.b16 0
        %vm2927 = vcmp.ne.s32.totalorder %v2923, %v2925
        %vm2928 = vcmp.ne.s32.totalorder %v2924, %v2926
        %vm2929 = vmpackc.low %vm2928, %vm2927
        %v2930 = vunpack.c.l.b16 %v2871
        %v2931 = vunpack.c.h.b16 %v2871
        %v2932 = vunpack.c.l.b16 0
        %v2933 = vunpack.c.h.b16 0
        %vm2934 = vcmp.ne.s32.totalorder %v2930, %v2932
        %vm2935 = vcmp.ne.s32.totalorder %v2931, %v2933
        %vm2936 = vmpackc.low %vm2935, %vm2934
        %v2937 = vunpack.c.l.b16 %v2872
        %v2938 = vunpack.c.h.b16 %v2872
        %v2939 = vunpack.c.l.b16 0
        %v2940 = vunpack.c.h.b16 0
        %vm2941 = vcmp.ne.s32.totalorder %v2937, %v2939
        %vm2942 = vcmp.ne.s32.totalorder %v2938, %v2940
        %vm2943 = vmpackc.low %vm2942, %vm2941
        %v2944 = vunpack.c.l.b16 %v2873
        %v2945 = vunpack.c.h.b16 %v2873
        %v2946 = vunpack.c.l.b16 0
        %v2947 = vunpack.c.h.b16 0
        %vm2948 = vcmp.ne.s32.totalorder %v2944, %v2946
        %vm2949 = vcmp.ne.s32.totalorder %v2945, %v2947
        %vm2950 = vmpackc.low %vm2949, %vm2948
        %v2951 = vunpack.c.l.b16 %v2874
        %v2952 = vunpack.c.h.b16 %v2874
        %v2953 = vunpack.c.l.b16 0
        %v2954 = vunpack.c.h.b16 0
        %vm2955 = vcmp.ne.s32.totalorder %v2951, %v2953
        %vm2956 = vcmp.ne.s32.totalorder %v2952, %v2954
        %vm2957 = vmpackc.low %vm2956, %vm2955
        %v2958 = vunpack.c.l.b16 %v2875
        %v2959 = vunpack.c.h.b16 %v2875
        %v2960 = vunpack.c.l.b16 0
        %v2961 = vunpack.c.h.b16 0
        %vm2962 = vcmp.ne.s32.totalorder %v2958, %v2960
        %vm2963 = vcmp.ne.s32.totalorder %v2959, %v2961
        %vm2964 = vmpackc.low %vm2963, %vm2962
        %v2965 = vunpack.c.l.b16 %v2876
        %v2966 = vunpack.c.h.b16 %v2876
        %v2967 = vunpack.c.l.b16 0
        %v2968 = vunpack.c.h.b16 0
        %vm2969 = vcmp.ne.s32.totalorder %v2965, %v2967
        %vm2970 = vcmp.ne.s32.totalorder %v2966, %v2968
        %vm2971 = vmpackc.low %vm2970, %vm2969
        %v2972 = vunpack.c.l.b16 %v2877
        %v2973 = vunpack.c.h.b16 %v2877
        %v2974 = vunpack.c.l.b16 0
        %v2975 = vunpack.c.h.b16 0
        %vm2976 = vcmp.ne.s32.totalorder %v2972, %v2974
        %vm2977 = vcmp.ne.s32.totalorder %v2973, %v2975
        %vm2978 = vmpackc.low %vm2977, %vm2976
        %v2979 = vunpack.c.l.b16 %v2878
        %v2980 = vunpack.c.h.b16 %v2878
        %v2981 = vunpack.c.l.b16 0
        %v2982 = vunpack.c.h.b16 0
        %vm2983 = vcmp.ne.s32.totalorder %v2979, %v2981
        %vm2984 = vcmp.ne.s32.totalorder %v2980, %v2982
        %vm2985 = vmpackc.low %vm2984, %vm2983
        %v2986 = vunpack.c.l.b16 %v2879
        %v2987 = vunpack.c.h.b16 %v2879
        %v2988 = vunpack.c.l.b16 0
        %v2989 = vunpack.c.h.b16 0
        %vm2990 = vcmp.ne.s32.totalorder %v2986, %v2988
        %vm2991 = vcmp.ne.s32.totalorder %v2987, %v2989
        %vm2992 = vmpackc.low %vm2991, %vm2990
        %v2993 = vunpack.c.l.b16 %v2880
        %v2994 = vunpack.c.h.b16 %v2880
        %v2995 = vunpack.c.l.b16 0
        %v2996 = vunpack.c.h.b16 0
        %vm2997 = vcmp.ne.s32.totalorder %v2993, %v2995
        %vm2998 = vcmp.ne.s32.totalorder %v2994, %v2996
        %vm2999 = vmpackc.low %vm2998, %vm2997
        %v3000 = vsel %vm2887, %v2301, 0
        %v3001 = vsel %vm2894, %v2169, 0
        %v3002 = vsel %vm2901, %v2177, 0
        %v3003 = vsel %vm2908, %v2185, 0
        %v3004 = vsel %vm2915, %v2193, 0
        %v3005 = vsel %vm2922, %v2201, 0
        %v3006 = vsel %vm2929, %v2209, 0
        %v3007 = vsel %vm2936, %v2217, 0
        %v3008 = vsel %vm2943, %v2225, 0
        %v3009 = vsel %vm2950, %v2233, 0
        %v3010 = vsel %vm2957, %v2241, 0
        %v3011 = vsel %vm2964, %v2249, 0
        %v3012 = vsel %vm2971, %v2257, 0
        %v3013 = vsel %vm2978, %v2265, 0
        %v3014 = vsel %vm2985, %v2273, 0
        %v3015 = vsel %vm2992, %v2281, 0
        %v3016 = vsel %vm2999, %v2302, 0
        %v3017 = vld [vmem:[#allocation2] sm:$0xf]
        %v3018 = vld [vmem:[#allocation2 + $0x4] sm:$0xf]
        %v3019 = vld [vmem:[#allocation2 + $0x8] sm:$0xf]
        %v3020 = vld [vmem:[#allocation2 + $0xc] sm:$0xf]
        %v3021 = vld [vmem:[#allocation2 + $0x10] sm:$0xf]
        %v3022 = vld [vmem:[#allocation2 + $0x14] sm:$0xf]
        %v3023 = vld [vmem:[#allocation2 + $0x18] sm:$0xf]
        %v3024 = vld [vmem:[#allocation2 + $0x1c] sm:$0xf]
        %s3025 = scalar_lea.vmem [#allocation2], 32
        %v3026 = vld [vmem:[%s3025] sm:$0xf]
        %v3027 = vld [vmem:[%s3025 + $0x4] sm:$0xf]
        %v3028 = vld [vmem:[%s3025 + $0x8] sm:$0xf]
        %v3029 = vld [vmem:[%s3025 + $0xc] sm:$0xf]
        %v3030 = vld [vmem:[%s3025 + $0x10] sm:$0xf]
        %v3031 = vld [vmem:[%s3025 + $0x14] sm:$0xf]
        %v3032 = vld [vmem:[%s3025 + $0x18] sm:$0xf]
        %v3033 = vld [vmem:[%s3025 + $0x1c] sm:$0xf]
        %vm3034 = vsmask.f32 7424
        %v3036 = vshrl.u32 0, 16
        %v3038 = vshll.u32 0, 16
        %v3040 = vrot.slane %v3038, 1
        %v3041 = vor.u32 %v3036, %v3040
        %v3043 = vshll.u32 %v2301, 16
        %v3045 = vrot.slane %v3043, 1
        %v3046 = vsel %vm3034, %v3041, %v3045
        %v3047 = vshrl.u32 %v2301, 16
        %v3049 = vor.u32 %v3047, %v3045
        %v3051 = vshll.u32 %v2169, 16
        %v3053 = vrot.slane %v3051, 1
        %v3054 = vsel %vm3034, %v3049, %v3053
        %v3055 = vshrl.u32 %v2169, 16
        %v3057 = vor.u32 %v3055, %v3053
        %v3059 = vshll.u32 %v2177, 16
        %v3061 = vrot.slane %v3059, 1
        %v3062 = vsel %vm3034, %v3057, %v3061
        %v3063 = vshrl.u32 %v2177, 16
        %v3065 = vor.u32 %v3063, %v3061
        %v3067 = vshll.u32 %v2185, 16
        %v3069 = vrot.slane %v3067, 1
        %v3070 = vsel %vm3034, %v3065, %v3069
        %v3071 = vshrl.u32 %v2185, 16
        %v3073 = vor.u32 %v3071, %v3069
        %v3075 = vshll.u32 %v2193, 16
        %v3077 = vrot.slane %v3075, 1
        %v3078 = vsel %vm3034, %v3073, %v3077
        %v3079 = vshrl.u32 %v2193, 16
        %v3081 = vor.u32 %v3079, %v3077
        %v3083 = vshll.u32 %v2201, 16
        %v3085 = vrot.slane %v3083, 1
        %v3086 = vsel %vm3034, %v3081, %v3085
        %v3087 = vshrl.u32 %v2201, 16
        %v3089 = vor.u32 %v3087, %v3085
        %v3091 = vshll.u32 %v2209, 16
        %v3093 = vrot.slane %v3091, 1
        %v3094 = vsel %vm3034, %v3089, %v3093
        %v3095 = vshrl.u32 %v2209, 16
        %v3097 = vor.u32 %v3095, %v3093
        %v3099 = vshll.u32 %v2217, 16
        %v3101 = vrot.slane %v3099, 1
        %v3102 = vsel %vm3034, %v3097, %v3101
        %v3103 = vshrl.u32 %v2217, 16
        %v3105 = vor.u32 %v3103, %v3101
        %v3107 = vshll.u32 %v2225, 16
        %v3109 = vrot.slane %v3107, 1
        %v3110 = vsel %vm3034, %v3105, %v3109
        %v3111 = vshrl.u32 %v2225, 16
        %v3113 = vor.u32 %v3111, %v3109
        %v3115 = vshll.u32 %v2233, 16
        %v3117 = vrot.slane %v3115, 1
        %v3118 = vsel %vm3034, %v3113, %v3117
        %v3119 = vshrl.u32 %v2233, 16
        %v3121 = vor.u32 %v3119, %v3117
        %v3123 = vshll.u32 %v2241, 16
        %v3125 = vrot.slane %v3123, 1
        %v3126 = vsel %vm3034, %v3121, %v3125
        %v3127 = vshrl.u32 %v2241, 16
        %v3129 = vor.u32 %v3127, %v3125
        %v3131 = vshll.u32 %v2249, 16
        %v3133 = vrot.slane %v3131, 1
        %v3134 = vsel %vm3034, %v3129, %v3133
        %v3135 = vshrl.u32 %v2249, 16
        %v3137 = vor.u32 %v3135, %v3133
        %v3139 = vshll.u32 %v2257, 16
        %v3141 = vrot.slane %v3139, 1
        %v3142 = vsel %vm3034, %v3137, %v3141
        %v3143 = vshrl.u32 %v2257, 16
        %v3145 = vor.u32 %v3143, %v3141
        %v3147 = vshll.u32 %v2265, 16
        %v3149 = vrot.slane %v3147, 1
        %v3150 = vsel %vm3034, %v3145, %v3149
        %v3151 = vshrl.u32 %v2265, 16
        %v3153 = vor.u32 %v3151, %v3149
        %v3155 = vshll.u32 %v2273, 16
        %v3157 = vrot.slane %v3155, 1
        %v3158 = vsel %vm3034, %v3153, %v3157
        %v3159 = vshrl.u32 %v2273, 16
        %v3161 = vor.u32 %v3159, %v3157
        %v3163 = vshll.u32 %v2281, 16
        %v3165 = vrot.slane %v3163, 1
        %v3166 = vsel %vm3034, %v3161, %v3165
        %v3175 = vunpack.c.l.b16 %v3026
        %v3176 = vunpack.c.l.b16 %v3027
        %v3177 = vunpack.c.l.b16 %v3028
        %v3178 = vunpack.c.l.b16 %v3029
        %v3179 = vunpack.c.l.b16 %v3030
        %v3180 = vunpack.c.l.b16 %v3031
        %v3181 = vunpack.c.l.b16 %v3032
        %v3182 = vunpack.c.l.b16 %v3033
        %v3183 = vpack.c.b16 %v3176, %v3175
        %v3184 = vpack.c.b16 %v3178, %v3177
        %v3185 = vpack.c.b16 %v3180, %v3179
        %v3186 = vpack.c.b16 %v3182, %v3181
        %v3192 = vsel %vm1027, %v3046, 0
        %v3195 = vsel %vm1027, %v3054, 0
        %v3198 = vsel %vm1027, %v3062, 0
        %v3201 = vsel %vm1027, %v3070, 0
        %v3204 = vsel %vm1027, %v3078, 0
        %v3207 = vsel %vm1027, %v3086, 0
        %v3210 = vsel %vm1027, %v3094, 0
        %v3213 = vsel %vm1027, %v3102, 0
        %v3216 = vsel %vm1027, %v3110, 0
        %v3219 = vsel %vm1027, %v3118, 0
        %v3222 = vsel %vm1027, %v3126, 0
        %v3225 = vsel %vm1027, %v3134, 0
        %v3228 = vsel %vm1027, %v3142, 0
        %v3231 = vsel %vm1027, %v3150, 0
        %v3234 = vsel %vm1027, %v3158, 0
        %v3237 = vsel %vm1027, %v3166, 0
        %3239 = vmatpush.bf16.msra.mxu0 0
        %3240 = vmatpush.bf16.msra.mxu0 0
        %3241 = vmatpush.bf16.msra.mxu0 0
        %3242 = vmatpush.bf16.msra.mxu0 0
        %3243 = vmatpush.bf16.msra.mxu0 %v3186
        %3244 = vmatpush.bf16.msra.mxu0 %v3185
        %3245 = vmatpush.bf16.msra.mxu0 %v3184
        %3246 = vmatpush.bf16.msra.mxu0 %v3183
        %3247 = vmatmul.bf16.gmra.mxu0 %v3192
        %v3248 = vpop.f32.mrf.mxu0
        %v3249 = vadd.f32 0.0, %v3248
        %v3250 = vpop.f32.mrf.mxu0
        %v3251 = vadd.f32 0.0, %v3250
        %3252 = vmatmul.bf16.gmra.mxu0 %v3195
        %v3253 = vpop.f32.mrf.mxu0
        %v3254 = vadd.f32 0.0, %v3253
        %v3255 = vpop.f32.mrf.mxu0
        %v3256 = vadd.f32 0.0, %v3255
        %3257 = vmatmul.bf16.gmra.mxu0 %v3198
        %v3258 = vpop.f32.mrf.mxu0
        %v3259 = vadd.f32 0.0, %v3258
        %v3260 = vpop.f32.mrf.mxu0
        %v3261 = vadd.f32 0.0, %v3260
        %3262 = vmatmul.bf16.gmra.mxu0 %v3201
        %v3263 = vpop.f32.mrf.mxu0
        %v3264 = vadd.f32 0.0, %v3263
        %v3265 = vpop.f32.mrf.mxu0
        %v3266 = vadd.f32 0.0, %v3265
        %3267 = vmatmul.bf16.gmra.mxu0 %v3204
        %v3268 = vpop.f32.mrf.mxu0
        %v3269 = vadd.f32 0.0, %v3268
        %v3270 = vpop.f32.mrf.mxu0
        %v3271 = vadd.f32 0.0, %v3270
        %3272 = vmatmul.bf16.gmra.mxu0 %v3207
        %v3273 = vpop.f32.mrf.mxu0
        %v3274 = vadd.f32 0.0, %v3273
        %v3275 = vpop.f32.mrf.mxu0
        %v3276 = vadd.f32 0.0, %v3275
        %3277 = vmatmul.bf16.gmra.mxu0 %v3210
        %v3278 = vpop.f32.mrf.mxu0
        %v3279 = vadd.f32 0.0, %v3278
        %v3280 = vpop.f32.mrf.mxu0
        %v3281 = vadd.f32 0.0, %v3280
        %3282 = vmatmul.bf16.gmra.mxu0 %v3213
        %v3283 = vpop.f32.mrf.mxu0
        %v3284 = vadd.f32 0.0, %v3283
        %v3285 = vpop.f32.mrf.mxu0
        %v3286 = vadd.f32 0.0, %v3285
        %3287 = vmatmul.bf16.gmra.mxu0 %v3216
        %v3288 = vpop.f32.mrf.mxu0
        %v3289 = vadd.f32 0.0, %v3288
        %v3290 = vpop.f32.mrf.mxu0
        %v3291 = vadd.f32 0.0, %v3290
        %3292 = vmatmul.bf16.gmra.mxu0 %v3219
        %v3293 = vpop.f32.mrf.mxu0
        %v3294 = vadd.f32 0.0, %v3293
        %v3295 = vpop.f32.mrf.mxu0
        %v3296 = vadd.f32 0.0, %v3295
        %3297 = vmatmul.bf16.gmra.mxu0 %v3222
        %v3298 = vpop.f32.mrf.mxu0
        %v3299 = vadd.f32 0.0, %v3298
        %v3300 = vpop.f32.mrf.mxu0
        %v3301 = vadd.f32 0.0, %v3300
        %3302 = vmatmul.bf16.gmra.mxu0 %v3225
        %v3303 = vpop.f32.mrf.mxu0
        %v3304 = vadd.f32 0.0, %v3303
        %v3305 = vpop.f32.mrf.mxu0
        %v3306 = vadd.f32 0.0, %v3305
        %3307 = vmatmul.bf16.gmra.mxu0 %v3228
        %v3308 = vpop.f32.mrf.mxu0
        %v3309 = vadd.f32 0.0, %v3308
        %v3310 = vpop.f32.mrf.mxu0
        %v3311 = vadd.f32 0.0, %v3310
        %3312 = vmatmul.bf16.gmra.mxu0 %v3231
        %v3313 = vpop.f32.mrf.mxu0
        %v3314 = vadd.f32 0.0, %v3313
        %v3315 = vpop.f32.mrf.mxu0
        %v3316 = vadd.f32 0.0, %v3315
        %3317 = vmatmul.bf16.gmra.mxu0 %v3234
        %v3318 = vpop.f32.mrf.mxu0
        %v3319 = vadd.f32 0.0, %v3318
        %v3320 = vpop.f32.mrf.mxu0
        %v3321 = vadd.f32 0.0, %v3320
        %3322 = vmatmul.bf16.gmra.mxu0 %v3237
        %v3323 = vpop.f32.mrf.mxu0
        %v3324 = vadd.f32 0.0, %v3323
        %v3325 = vpop.f32.mrf.mxu0
        %v3326 = vadd.f32 0.0, %v3325
        %3327 = vdwg.mxu0
        %v3336 = vunpack.c.l.b16 %v3017
        %v3337 = vunpack.c.l.b16 %v3018
        %v3338 = vunpack.c.l.b16 %v3019
        %v3339 = vunpack.c.l.b16 %v3020
        %v3340 = vunpack.c.l.b16 %v3021
        %v3341 = vunpack.c.l.b16 %v3022
        %v3342 = vunpack.c.l.b16 %v3023
        %v3343 = vunpack.c.l.b16 %v3024
        %v3344 = vpack.c.b16 %v3337, %v3336
        %v3345 = vpack.c.b16 %v3339, %v3338
        %v3346 = vpack.c.b16 %v3341, %v3340
        %v3347 = vpack.c.b16 %v3343, %v3342
        %v3352 = vsel %vm1027, 0, 0
        %v3355 = vsel %vm1027, %v2643, 0
        %v3358 = vsel %vm1027, %v2644, 0
        %v3361 = vsel %vm1027, %v2645, 0
        %v3364 = vsel %vm1027, %v2646, 0
        %v3367 = vsel %vm1027, %v2647, 0
        %v3370 = vsel %vm1027, %v2648, 0
        %v3373 = vsel %vm1027, %v2649, 0
        %v3376 = vsel %vm1027, %v2650, 0
        %v3379 = vsel %vm1027, %v2651, 0
        %v3382 = vsel %vm1027, %v2652, 0
        %v3385 = vsel %vm1027, %v2653, 0
        %v3388 = vsel %vm1027, %v2654, 0
        %v3391 = vsel %vm1027, %v2655, 0
        %v3394 = vsel %vm1027, %v2656, 0
        %v3397 = vsel %vm1027, %v2657, 0
        %3399 = vmatpush.bf16.msra.mxu0 0
        %3400 = vmatpush.bf16.msra.mxu0 0
        %3401 = vmatpush.bf16.msra.mxu0 0
        %3402 = vmatpush.bf16.msra.mxu0 0
        %3403 = vmatpush.bf16.msra.mxu0 %v3347
        %3404 = vmatpush.bf16.msra.mxu0 %v3346
        %3405 = vmatpush.bf16.msra.mxu0 %v3345
        %3406 = vmatpush.bf16.msra.mxu0 %v3344
        %3407 = vmatmul.bf16.gmra.mxu0 %v3352
        %v3408 = vpop.f32.mrf.mxu0
        %v3409 = vadd.f32 %v3249, %v3408
        %v3410 = vpop.f32.mrf.mxu0
        %v3411 = vadd.f32 %v3251, %v3410
        %3412 = vmatmul.bf16.gmra.mxu0 %v3355
        %v3413 = vpop.f32.mrf.mxu0
        %v3414 = vadd.f32 %v3254, %v3413
        %v3415 = vpop.f32.mrf.mxu0
        %v3416 = vadd.f32 %v3256, %v3415
        %3417 = vmatmul.bf16.gmra.mxu0 %v3358
        %v3418 = vpop.f32.mrf.mxu0
        %v3419 = vadd.f32 %v3259, %v3418
        %v3420 = vpop.f32.mrf.mxu0
        %v3421 = vadd.f32 %v3261, %v3420
        %3422 = vmatmul.bf16.gmra.mxu0 %v3361
        %v3423 = vpop.f32.mrf.mxu0
        %v3424 = vadd.f32 %v3264, %v3423
        %v3425 = vpop.f32.mrf.mxu0
        %v3426 = vadd.f32 %v3266, %v3425
        %3427 = vmatmul.bf16.gmra.mxu0 %v3364
        %v3428 = vpop.f32.mrf.mxu0
        %v3429 = vadd.f32 %v3269, %v3428
        %v3430 = vpop.f32.mrf.mxu0
        %v3431 = vadd.f32 %v3271, %v3430
        %3432 = vmatmul.bf16.gmra.mxu0 %v3367
        %v3433 = vpop.f32.mrf.mxu0
        %v3434 = vadd.f32 %v3274, %v3433
        %v3435 = vpop.f32.mrf.mxu0
        %v3436 = vadd.f32 %v3276, %v3435
        %3437 = vmatmul.bf16.gmra.mxu0 %v3370
        %v3438 = vpop.f32.mrf.mxu0
        %v3439 = vadd.f32 %v3279, %v3438
        %v3440 = vpop.f32.mrf.mxu0
        %v3441 = vadd.f32 %v3281, %v3440
        %3442 = vmatmul.bf16.gmra.mxu0 %v3373
        %v3443 = vpop.f32.mrf.mxu0
        %v3444 = vadd.f32 %v3284, %v3443
        %v3445 = vpop.f32.mrf.mxu0
        %v3446 = vadd.f32 %v3286, %v3445
        %3447 = vmatmul.bf16.gmra.mxu0 %v3376
        %v3448 = vpop.f32.mrf.mxu0
        %v3449 = vadd.f32 %v3289, %v3448
        %v3450 = vpop.f32.mrf.mxu0
        %v3451 = vadd.f32 %v3291, %v3450
        %3452 = vmatmul.bf16.gmra.mxu0 %v3379
        %v3453 = vpop.f32.mrf.mxu0
        %v3454 = vadd.f32 %v3294, %v3453
        %v3455 = vpop.f32.mrf.mxu0
        %v3456 = vadd.f32 %v3296, %v3455
        %3457 = vmatmul.bf16.gmra.mxu0 %v3382
        %v3458 = vpop.f32.mrf.mxu0
        %v3459 = vadd.f32 %v3299, %v3458
        %v3460 = vpop.f32.mrf.mxu0
        %v3461 = vadd.f32 %v3301, %v3460
        %3462 = vmatmul.bf16.gmra.mxu0 %v3385
        %v3463 = vpop.f32.mrf.mxu0
        %v3464 = vadd.f32 %v3304, %v3463
        %v3465 = vpop.f32.mrf.mxu0
        %v3466 = vadd.f32 %v3306, %v3465
        %3467 = vmatmul.bf16.gmra.mxu0 %v3388
        %v3468 = vpop.f32.mrf.mxu0
        %v3469 = vadd.f32 %v3309, %v3468
        %v3470 = vpop.f32.mrf.mxu0
        %v3471 = vadd.f32 %v3311, %v3470
        %3472 = vmatmul.bf16.gmra.mxu0 %v3391
        %v3473 = vpop.f32.mrf.mxu0
        %v3474 = vadd.f32 %v3314, %v3473
        %v3475 = vpop.f32.mrf.mxu0
        %v3476 = vadd.f32 %v3316, %v3475
        %3477 = vmatmul.bf16.gmra.mxu0 %v3394
        %v3478 = vpop.f32.mrf.mxu0
        %v3479 = vadd.f32 %v3319, %v3478
        %v3480 = vpop.f32.mrf.mxu0
        %v3481 = vadd.f32 %v3321, %v3480
        %3482 = vmatmul.bf16.gmra.mxu0 %v3397
        %v3483 = vpop.f32.mrf.mxu0
        %v3484 = vadd.f32 %v3324, %v3483
        %v3485 = vpop.f32.mrf.mxu0
        %v3486 = vadd.f32 %v3326, %v3485
        %3487 = vdwg.mxu0
        %s3488 = scalar_lea.vmem [#allocation2], 64
        %v3489 = vld [vmem:[%s3488] sm:$0xf]
        %v3490 = vld [vmem:[%s3488 + $0x4] sm:$0xf]
        %v3491 = vld [vmem:[%s3488 + $0x8] sm:$0xf]
        %v3492 = vld [vmem:[%s3488 + $0xc] sm:$0xf]
        %v3493 = vld [vmem:[%s3488 + $0x10] sm:$0xf]
        %v3494 = vld [vmem:[%s3488 + $0x14] sm:$0xf]
        %v3495 = vld [vmem:[%s3488 + $0x18] sm:$0xf]
        %v3496 = vld [vmem:[%s3488 + $0x1c] sm:$0xf]
        %vm3514 = vcmask 1046528
        %v3515 = vrot.slane 0, 1
        %v3516 = vrot.slane %v3000, 1
        %v3517 = vsel %vm3514, %v3515, %v3516
        %v3518 = vrot.slane %v3001, 1
        %v3519 = vsel %vm3514, %v3516, %v3518
        %v3520 = vrot.slane %v3002, 1
        %v3521 = vsel %vm3514, %v3518, %v3520
        %v3522 = vrot.slane %v3003, 1
        %v3523 = vsel %vm3514, %v3520, %v3522
        %v3524 = vrot.slane %v3004, 1
        %v3525 = vsel %vm3514, %v3522, %v3524
        %v3526 = vrot.slane %v3005, 1
        %v3527 = vsel %vm3514, %v3524, %v3526
        %v3528 = vrot.slane %v3006, 1
        %v3529 = vsel %vm3514, %v3526, %v3528
        %v3530 = vrot.slane %v3007, 1
        %v3531 = vsel %vm3514, %v3528, %v3530
        %v3532 = vrot.slane %v3008, 1
        %v3533 = vsel %vm3514, %v3530, %v3532
        %v3534 = vrot.slane %v3009, 1
        %v3535 = vsel %vm3514, %v3532, %v3534
        %v3536 = vrot.slane %v3010, 1
        %v3537 = vsel %vm3514, %v3534, %v3536
        %v3538 = vrot.slane %v3011, 1
        %v3539 = vsel %vm3514, %v3536, %v3538
        %v3540 = vrot.slane %v3012, 1
        %v3541 = vsel %vm3514, %v3538, %v3540
        %v3542 = vrot.slane %v3013, 1
        %v3543 = vsel %vm3514, %v3540, %v3542
        %v3544 = vrot.slane %v3014, 1
        %v3545 = vsel %vm3514, %v3542, %v3544
        %v3546 = vrot.slane %v3015, 1
        %v3547 = vsel %vm3514, %v3544, %v3546
        %v3556 = vunpack.c.l.b16 %v3489
        %v3557 = vunpack.c.l.b16 %v3490
        %v3558 = vunpack.c.l.b16 %v3491
        %v3559 = vunpack.c.l.b16 %v3492
        %v3560 = vunpack.c.l.b16 %v3493
        %v3561 = vunpack.c.l.b16 %v3494
        %v3562 = vunpack.c.l.b16 %v3495
        %v3563 = vunpack.c.l.b16 %v3496
        %v3564 = vpack.c.b16 %v3557, %v3556
        %v3565 = vpack.c.b16 %v3559, %v3558
        %v3566 = vpack.c.b16 %v3561, %v3560
        %v3567 = vpack.c.b16 %v3563, %v3562
        %v3573 = vsel %vm1027, %v3517, 0
        %v3576 = vsel %vm1027, %v3519, 0
        %v3579 = vsel %vm1027, %v3521, 0
        %v3582 = vsel %vm1027, %v3523, 0
        %v3585 = vsel %vm1027, %v3525, 0
        %v3588 = vsel %vm1027, %v3527, 0
        %v3591 = vsel %vm1027, %v3529, 0
        %v3594 = vsel %vm1027, %v3531, 0
        %v3597 = vsel %vm1027, %v3533, 0
        %v3600 = vsel %vm1027, %v3535, 0
        %v3603 = vsel %vm1027, %v3537, 0
        %v3606 = vsel %vm1027, %v3539, 0
        %v3609 = vsel %vm1027, %v3541, 0
        %v3612 = vsel %vm1027, %v3543, 0
        %v3615 = vsel %vm1027, %v3545, 0
        %v3618 = vsel %vm1027, %v3547, 0
        %3620 = vmatpush.bf16.msra.mxu0 0
        %3621 = vmatpush.bf16.msra.mxu0 0
        %3622 = vmatpush.bf16.msra.mxu0 0
        %3623 = vmatpush.bf16.msra.mxu0 0
        %3624 = vmatpush.bf16.msra.mxu0 %v3567
        %3625 = vmatpush.bf16.msra.mxu0 %v3566
        %3626 = vmatpush.bf16.msra.mxu0 %v3565
        %3627 = vmatpush.bf16.msra.mxu0 %v3564
        %3628 = vmatmul.bf16.gmra.mxu0 %v3573
        %v3629 = vpop.f32.mrf.mxu0
        %v3630 = vadd.f32 0.0, %v3629
        %v3631 = vpop.f32.mrf.mxu0
        %v3632 = vadd.f32 0.0, %v3631
        %3633 = vmatmul.bf16.gmra.mxu0 %v3576
        %v3634 = vpop.f32.mrf.mxu0
        %v3635 = vadd.f32 0.0, %v3634
        %v3636 = vpop.f32.mrf.mxu0
        %v3637 = vadd.f32 0.0, %v3636
        %3638 = vmatmul.bf16.gmra.mxu0 %v3579
        %v3639 = vpop.f32.mrf.mxu0
        %v3640 = vadd.f32 0.0, %v3639
        %v3641 = vpop.f32.mrf.mxu0
        %v3642 = vadd.f32 0.0, %v3641
        %3643 = vmatmul.bf16.gmra.mxu0 %v3582
        %v3644 = vpop.f32.mrf.mxu0
        %v3645 = vadd.f32 0.0, %v3644
        %v3646 = vpop.f32.mrf.mxu0
        %v3647 = vadd.f32 0.0, %v3646
        %3648 = vmatmul.bf16.gmra.mxu0 %v3585
        %v3649 = vpop.f32.mrf.mxu0
        %v3650 = vadd.f32 0.0, %v3649
        %v3651 = vpop.f32.mrf.mxu0
        %v3652 = vadd.f32 0.0, %v3651
        %3653 = vmatmul.bf16.gmra.mxu0 %v3588
        %v3654 = vpop.f32.mrf.mxu0
        %v3655 = vadd.f32 0.0, %v3654
        %v3656 = vpop.f32.mrf.mxu0
        %v3657 = vadd.f32 0.0, %v3656
        %3658 = vmatmul.bf16.gmra.mxu0 %v3591
        %v3659 = vpop.f32.mrf.mxu0
        %v3660 = vadd.f32 0.0, %v3659
        %v3661 = vpop.f32.mrf.mxu0
        %v3662 = vadd.f32 0.0, %v3661
        %3663 = vmatmul.bf16.gmra.mxu0 %v3594
        %v3664 = vpop.f32.mrf.mxu0
        %v3665 = vadd.f32 0.0, %v3664
        %v3666 = vpop.f32.mrf.mxu0
        %v3667 = vadd.f32 0.0, %v3666
        %3668 = vmatmul.bf16.gmra.mxu0 %v3597
        %v3669 = vpop.f32.mrf.mxu0
        %v3670 = vadd.f32 0.0, %v3669
        %v3671 = vpop.f32.mrf.mxu0
        %v3672 = vadd.f32 0.0, %v3671
        %3673 = vmatmul.bf16.gmra.mxu0 %v3600
        %v3674 = vpop.f32.mrf.mxu0
        %v3675 = vadd.f32 0.0, %v3674
        %v3676 = vpop.f32.mrf.mxu0
        %v3677 = vadd.f32 0.0, %v3676
        %3678 = vmatmul.bf16.gmra.mxu0 %v3603
        %v3679 = vpop.f32.mrf.mxu0
        %v3680 = vadd.f32 0.0, %v3679
        %v3681 = vpop.f32.mrf.mxu0
        %v3682 = vadd.f32 0.0, %v3681
        %3683 = vmatmul.bf16.gmra.mxu0 %v3606
        %v3684 = vpop.f32.mrf.mxu0
        %v3685 = vadd.f32 0.0, %v3684
        %v3686 = vpop.f32.mrf.mxu0
        %v3687 = vadd.f32 0.0, %v3686
        %3688 = vmatmul.bf16.gmra.mxu0 %v3609
        %v3689 = vpop.f32.mrf.mxu0
        %v3690 = vadd.f32 0.0, %v3689
        %v3691 = vpop.f32.mrf.mxu0
        %v3692 = vadd.f32 0.0, %v3691
        %3693 = vmatmul.bf16.gmra.mxu0 %v3612
        %v3694 = vpop.f32.mrf.mxu0
        %v3695 = vadd.f32 0.0, %v3694
        %v3696 = vpop.f32.mrf.mxu0
        %v3697 = vadd.f32 0.0, %v3696
        %3698 = vmatmul.bf16.gmra.mxu0 %v3615
        %v3699 = vpop.f32.mrf.mxu0
        %v3700 = vadd.f32 0.0, %v3699
        %v3701 = vpop.f32.mrf.mxu0
        %v3702 = vadd.f32 0.0, %v3701
        %3703 = vmatmul.bf16.gmra.mxu0 %v3618
        %v3704 = vpop.f32.mrf.mxu0
        %v3705 = vadd.f32 0.0, %v3704
        %v3706 = vpop.f32.mrf.mxu0
        %v3707 = vadd.f32 0.0, %v3706
        %3708 = vdwg.mxu0
        %v3709 = vadd.f32 %v3409, %v3630
        %v3710 = vadd.f32 %v3411, %v3632
        %v3711 = vadd.f32 %v3414, %v3635
        %v3712 = vadd.f32 %v3416, %v3637
        %v3713 = vadd.f32 %v3419, %v3640
        %v3714 = vadd.f32 %v3421, %v3642
        %v3715 = vadd.f32 %v3424, %v3645
        %v3716 = vadd.f32 %v3426, %v3647
        %v3717 = vadd.f32 %v3429, %v3650
        %v3718 = vadd.f32 %v3431, %v3652
        %v3719 = vadd.f32 %v3434, %v3655
        %v3720 = vadd.f32 %v3436, %v3657
        %v3721 = vadd.f32 %v3439, %v3660
        %v3722 = vadd.f32 %v3441, %v3662
        %v3723 = vadd.f32 %v3444, %v3665
        %v3724 = vadd.f32 %v3446, %v3667
        %v3725 = vadd.f32 %v3449, %v3670
        %v3726 = vadd.f32 %v3451, %v3672
        %v3727 = vadd.f32 %v3454, %v3675
        %v3728 = vadd.f32 %v3456, %v3677
        %v3729 = vadd.f32 %v3459, %v3680
        %v3730 = vadd.f32 %v3461, %v3682
        %v3731 = vadd.f32 %v3464, %v3685
        %v3732 = vadd.f32 %v3466, %v3687
        %v3733 = vadd.f32 %v3469, %v3690
        %v3734 = vadd.f32 %v3471, %v3692
        %v3735 = vadd.f32 %v3474, %v3695
        %v3736 = vadd.f32 %v3476, %v3697
        %v3737 = vadd.f32 %v3479, %v3700
        %v3738 = vadd.f32 %v3481, %v3702
        %v3739 = vadd.f32 %v3484, %v3705
        %v3740 = vadd.f32 %v3486, %v3707
        %s3741 = scalar_lea.vmem [#allocation2], 96
        %v3742 = vld [vmem:[%s3741] sm:$0xf]
        %v3743 = vld [vmem:[%s3741 + $0x4] sm:$0xf]
        %v3744 = vld [vmem:[%s3741 + $0x8] sm:$0xf]
        %v3745 = vld [vmem:[%s3741 + $0xc] sm:$0xf]
        %v3746 = vld [vmem:[%s3741 + $0x10] sm:$0xf]
        %v3747 = vld [vmem:[%s3741 + $0x14] sm:$0xf]
        %v3748 = vld [vmem:[%s3741 + $0x18] sm:$0xf]
        %v3749 = vld [vmem:[%s3741 + $0x1c] sm:$0xf]
        %v3758 = vunpack.c.l.b16 %v3742
        %v3759 = vunpack.c.l.b16 %v3743
        %v3760 = vunpack.c.l.b16 %v3744
        %v3761 = vunpack.c.l.b16 %v3745
        %v3762 = vunpack.c.l.b16 %v3746
        %v3763 = vunpack.c.l.b16 %v3747
        %v3764 = vunpack.c.l.b16 %v3748
        %v3765 = vunpack.c.l.b16 %v3749
        %v3766 = vpack.c.b16 %v3759, %v3758
        %v3767 = vpack.c.b16 %v3761, %v3760
        %v3768 = vpack.c.b16 %v3763, %v3762
        %v3769 = vpack.c.b16 %v3765, %v3764
        %v3775 = vsel %vm1027, %v2658, 0
        %3777 = vmatpush.bf16.msra.mxu0 0
        %3778 = vmatpush.bf16.msra.mxu0 0
        %3779 = vmatpush.bf16.msra.mxu0 0
        %3780 = vmatpush.bf16.msra.mxu0 0
        %3781 = vmatpush.bf16.msra.mxu0 %v3769
        %3782 = vmatpush.bf16.msra.mxu0 %v3768
        %3783 = vmatpush.bf16.msra.mxu0 %v3767
        %3784 = vmatpush.bf16.msra.mxu0 %v3766
        %3785 = vmatmul.bf16.gmra.mxu0 %v3355
        %v3786 = vpop.f32.mrf.mxu0
        %v3787 = vadd.f32 0.0, %v3786
        %v3788 = vpop.f32.mrf.mxu0
        %v3789 = vadd.f32 0.0, %v3788
        %3790 = vmatmul.bf16.gmra.mxu0 %v3358
        %v3791 = vpop.f32.mrf.mxu0
        %v3792 = vadd.f32 0.0, %v3791
        %v3793 = vpop.f32.mrf.mxu0
        %v3794 = vadd.f32 0.0, %v3793
        %3795 = vmatmul.bf16.gmra.mxu0 %v3361
        %v3796 = vpop.f32.mrf.mxu0
        %v3797 = vadd.f32 0.0, %v3796
        %v3798 = vpop.f32.mrf.mxu0
        %v3799 = vadd.f32 0.0, %v3798
        %3800 = vmatmul.bf16.gmra.mxu0 %v3364
        %v3801 = vpop.f32.mrf.mxu0
        %v3802 = vadd.f32 0.0, %v3801
        %v3803 = vpop.f32.mrf.mxu0
        %v3804 = vadd.f32 0.0, %v3803
        %3805 = vmatmul.bf16.gmra.mxu0 %v3367
        %v3806 = vpop.f32.mrf.mxu0
        %v3807 = vadd.f32 0.0, %v3806
        %v3808 = vpop.f32.mrf.mxu0
        %v3809 = vadd.f32 0.0, %v3808
        %3810 = vmatmul.bf16.gmra.mxu0 %v3370
        %v3811 = vpop.f32.mrf.mxu0
        %v3812 = vadd.f32 0.0, %v3811
        %v3813 = vpop.f32.mrf.mxu0
        %v3814 = vadd.f32 0.0, %v3813
        %3815 = vmatmul.bf16.gmra.mxu0 %v3373
        %v3816 = vpop.f32.mrf.mxu0
        %v3817 = vadd.f32 0.0, %v3816
        %v3818 = vpop.f32.mrf.mxu0
        %v3819 = vadd.f32 0.0, %v3818
        %3820 = vmatmul.bf16.gmra.mxu0 %v3376
        %v3821 = vpop.f32.mrf.mxu0
        %v3822 = vadd.f32 0.0, %v3821
        %v3823 = vpop.f32.mrf.mxu0
        %v3824 = vadd.f32 0.0, %v3823
        %3825 = vmatmul.bf16.gmra.mxu0 %v3379
        %v3826 = vpop.f32.mrf.mxu0
        %v3827 = vadd.f32 0.0, %v3826
        %v3828 = vpop.f32.mrf.mxu0
        %v3829 = vadd.f32 0.0, %v3828
        %3830 = vmatmul.bf16.gmra.mxu0 %v3382
        %v3831 = vpop.f32.mrf.mxu0
        %v3832 = vadd.f32 0.0, %v3831
        %v3833 = vpop.f32.mrf.mxu0
        %v3834 = vadd.f32 0.0, %v3833
        %3835 = vmatmul.bf16.gmra.mxu0 %v3385
        %v3836 = vpop.f32.mrf.mxu0
        %v3837 = vadd.f32 0.0, %v3836
        %v3838 = vpop.f32.mrf.mxu0
        %v3839 = vadd.f32 0.0, %v3838
        %3840 = vmatmul.bf16.gmra.mxu0 %v3388
        %v3841 = vpop.f32.mrf.mxu0
        %v3842 = vadd.f32 0.0, %v3841
        %v3843 = vpop.f32.mrf.mxu0
        %v3844 = vadd.f32 0.0, %v3843
        %3845 = vmatmul.bf16.gmra.mxu0 %v3391
        %v3846 = vpop.f32.mrf.mxu0
        %v3847 = vadd.f32 0.0, %v3846
        %v3848 = vpop.f32.mrf.mxu0
        %v3849 = vadd.f32 0.0, %v3848
        %3850 = vmatmul.bf16.gmra.mxu0 %v3394
        %v3851 = vpop.f32.mrf.mxu0
        %v3852 = vadd.f32 0.0, %v3851
        %v3853 = vpop.f32.mrf.mxu0
        %v3854 = vadd.f32 0.0, %v3853
        %3855 = vmatmul.bf16.gmra.mxu0 %v3397
        %v3856 = vpop.f32.mrf.mxu0
        %v3857 = vadd.f32 0.0, %v3856
        %v3858 = vpop.f32.mrf.mxu0
        %v3859 = vadd.f32 0.0, %v3858
        %3860 = vmatmul.bf16.gmra.mxu0 %v3775
        %v3861 = vpop.f32.mrf.mxu0
        %v3862 = vadd.f32 0.0, %v3861
        %v3863 = vpop.f32.mrf.mxu0
        %v3864 = vadd.f32 0.0, %v3863
        %3865 = vdwg.mxu0
        %v3866 = vadd.f32 %v3709, %v3787
        %v3867 = vadd.f32 %v3710, %v3789
        %v3868 = vadd.f32 %v3711, %v3792
        %v3869 = vadd.f32 %v3712, %v3794
        %v3870 = vadd.f32 %v3713, %v3797
        %v3871 = vadd.f32 %v3714, %v3799
        %v3872 = vadd.f32 %v3715, %v3802
        %v3873 = vadd.f32 %v3716, %v3804
        %v3874 = vadd.f32 %v3717, %v3807
        %v3875 = vadd.f32 %v3718, %v3809
        %v3876 = vadd.f32 %v3719, %v3812
        %v3877 = vadd.f32 %v3720, %v3814
        %v3878 = vadd.f32 %v3721, %v3817
        %v3879 = vadd.f32 %v3722, %v3819
        %v3880 = vadd.f32 %v3723, %v3822
        %v3881 = vadd.f32 %v3724, %v3824
        %v3882 = vadd.f32 %v3725, %v3827
        %v3883 = vadd.f32 %v3726, %v3829
        %v3884 = vadd.f32 %v3727, %v3832
        %v3885 = vadd.f32 %v3728, %v3834
        %v3886 = vadd.f32 %v3729, %v3837
        %v3887 = vadd.f32 %v3730, %v3839
        %v3888 = vadd.f32 %v3731, %v3842
        %v3889 = vadd.f32 %v3732, %v3844
        %v3890 = vadd.f32 %v3733, %v3847
        %v3891 = vadd.f32 %v3734, %v3849
        %v3892 = vadd.f32 %v3735, %v3852
        %v3893 = vadd.f32 %v3736, %v3854
        %v3894 = vadd.f32 %v3737, %v3857
        %v3895 = vadd.f32 %v3738, %v3859
        %v3896 = vadd.f32 %v3739, %v3862
        %v3897 = vadd.f32 %v3740, %v3864
        %s3898 = scalar_lea.vmem [#allocation2], 128
        %v3899 = vld [vmem:[%s3898] sm:$0xf]
        %v3900 = vld [vmem:[%s3898 + $0x4] sm:$0xf]
        %v3901 = vld [vmem:[%s3898 + $0x8] sm:$0xf]
        %v3902 = vld [vmem:[%s3898 + $0xc] sm:$0xf]
        %v3903 = vld [vmem:[%s3898 + $0x10] sm:$0xf]
        %v3904 = vld [vmem:[%s3898 + $0x14] sm:$0xf]
        %v3905 = vld [vmem:[%s3898 + $0x18] sm:$0xf]
        %v3906 = vld [vmem:[%s3898 + $0x1c] sm:$0xf]
        %v3907 = vshrl.u32 %v2281, 16
        %v3909 = vor.u32 %v3907, %v3165
        %v3911 = vshll.u32 %v2302, 16
        %v3913 = vrot.slane %v3911, 1
        %v3914 = vsel %vm3034, %v3909, %v3913
        %v3923 = vunpack.c.l.b16 %v3899
        %v3924 = vunpack.c.l.b16 %v3900
        %v3925 = vunpack.c.l.b16 %v3901
        %v3926 = vunpack.c.l.b16 %v3902
        %v3927 = vunpack.c.l.b16 %v3903
        %v3928 = vunpack.c.l.b16 %v3904
        %v3929 = vunpack.c.l.b16 %v3905
        %v3930 = vunpack.c.l.b16 %v3906
        %v3931 = vpack.c.b16 %v3924, %v3923
        %v3932 = vpack.c.b16 %v3926, %v3925
        %v3933 = vpack.c.b16 %v3928, %v3927
        %v3934 = vpack.c.b16 %v3930, %v3929
        %v3940 = vsel %vm1027, %v3914, 0
        %3942 = vmatpush.bf16.msra.mxu0 0
        %3943 = vmatpush.bf16.msra.mxu0 0
        %3944 = vmatpush.bf16.msra.mxu0 0
        %3945 = vmatpush.bf16.msra.mxu0 0
        %3946 = vmatpush.bf16.msra.mxu0 %v3934
        %3947 = vmatpush.bf16.msra.mxu0 %v3933
        %3948 = vmatpush.bf16.msra.mxu0 %v3932
        %3949 = vmatpush.bf16.msra.mxu0 %v3931
        %3950 = vmatmul.bf16.gmra.mxu0 %v3195
        %v3951 = vpop.f32.mrf.mxu0
        %v3952 = vadd.f32 0.0, %v3951
        %v3953 = vpop.f32.mrf.mxu0
        %v3954 = vadd.f32 0.0, %v3953
        %3955 = vmatmul.bf16.gmra.mxu0 %v3198
        %v3956 = vpop.f32.mrf.mxu0
        %v3957 = vadd.f32 0.0, %v3956
        %v3958 = vpop.f32.mrf.mxu0
        %v3959 = vadd.f32 0.0, %v3958
        %3960 = vmatmul.bf16.gmra.mxu0 %v3201
        %v3961 = vpop.f32.mrf.mxu0
        %v3962 = vadd.f32 0.0, %v3961
        %v3963 = vpop.f32.mrf.mxu0
        %v3964 = vadd.f32 0.0, %v3963
        %3965 = vmatmul.bf16.gmra.mxu0 %v3204
        %v3966 = vpop.f32.mrf.mxu0
        %v3967 = vadd.f32 0.0, %v3966
        %v3968 = vpop.f32.mrf.mxu0
        %v3969 = vadd.f32 0.0, %v3968
        %3970 = vmatmul.bf16.gmra.mxu0 %v3207
        %v3971 = vpop.f32.mrf.mxu0
        %v3972 = vadd.f32 0.0, %v3971
        %v3973 = vpop.f32.mrf.mxu0
        %v3974 = vadd.f32 0.0, %v3973
        %3975 = vmatmul.bf16.gmra.mxu0 %v3210
        %v3976 = vpop.f32.mrf.mxu0
        %v3977 = vadd.f32 0.0, %v3976
        %v3978 = vpop.f32.mrf.mxu0
        %v3979 = vadd.f32 0.0, %v3978
        %3980 = vmatmul.bf16.gmra.mxu0 %v3213
        %v3981 = vpop.f32.mrf.mxu0
        %v3982 = vadd.f32 0.0, %v3981
        %v3983 = vpop.f32.mrf.mxu0
        %v3984 = vadd.f32 0.0, %v3983
        %3985 = vmatmul.bf16.gmra.mxu0 %v3216
        %v3986 = vpop.f32.mrf.mxu0
        %v3987 = vadd.f32 0.0, %v3986
        %v3988 = vpop.f32.mrf.mxu0
        %v3989 = vadd.f32 0.0, %v3988
        %3990 = vmatmul.bf16.gmra.mxu0 %v3219
        %v3991 = vpop.f32.mrf.mxu0
        %v3992 = vadd.f32 0.0, %v3991
        %v3993 = vpop.f32.mrf.mxu0
        %v3994 = vadd.f32 0.0, %v3993
        %3995 = vmatmul.bf16.gmra.mxu0 %v3222
        %v3996 = vpop.f32.mrf.mxu0
        %v3997 = vadd.f32 0.0, %v3996
        %v3998 = vpop.f32.mrf.mxu0
        %v3999 = vadd.f32 0.0, %v3998
        %4000 = vmatmul.bf16.gmra.mxu0 %v3225
        %v4001 = vpop.f32.mrf.mxu0
        %v4002 = vadd.f32 0.0, %v4001
        %v4003 = vpop.f32.mrf.mxu0
        %v4004 = vadd.f32 0.0, %v4003
        %4005 = vmatmul.bf16.gmra.mxu0 %v3228
        %v4006 = vpop.f32.mrf.mxu0
        %v4007 = vadd.f32 0.0, %v4006
        %v4008 = vpop.f32.mrf.mxu0
        %v4009 = vadd.f32 0.0, %v4008
        %4010 = vmatmul.bf16.gmra.mxu0 %v3231
        %v4011 = vpop.f32.mrf.mxu0
        %v4012 = vadd.f32 0.0, %v4011
        %v4013 = vpop.f32.mrf.mxu0
        %v4014 = vadd.f32 0.0, %v4013
        %4015 = vmatmul.bf16.gmra.mxu0 %v3234
        %v4016 = vpop.f32.mrf.mxu0
        %v4017 = vadd.f32 0.0, %v4016
        %v4018 = vpop.f32.mrf.mxu0
        %v4019 = vadd.f32 0.0, %v4018
        %4020 = vmatmul.bf16.gmra.mxu0 %v3237
        %v4021 = vpop.f32.mrf.mxu0
        %v4022 = vadd.f32 0.0, %v4021
        %v4023 = vpop.f32.mrf.mxu0
        %v4024 = vadd.f32 0.0, %v4023
        %4025 = vmatmul.bf16.gmra.mxu0 %v3940
        %v4026 = vpop.f32.mrf.mxu0
        %v4027 = vadd.f32 0.0, %v4026
        %v4028 = vpop.f32.mrf.mxu0
        %v4029 = vadd.f32 0.0, %v4028
        %4030 = vdwg.mxu0
        %v4031 = vadd.f32 %v3866, %v3952
        %v4032 = vadd.f32 %v3867, %v3954
        %v4033 = vadd.f32 %v3868, %v3957
        %v4034 = vadd.f32 %v3869, %v3959
        %v4035 = vadd.f32 %v3870, %v3962
        %v4036 = vadd.f32 %v3871, %v3964
        %v4037 = vadd.f32 %v3872, %v3967
        %v4038 = vadd.f32 %v3873, %v3969
        %v4039 = vadd.f32 %v3874, %v3972
        %v4040 = vadd.f32 %v3875, %v3974
        %v4041 = vadd.f32 %v3876, %v3977
        %v4042 = vadd.f32 %v3877, %v3979
        %v4043 = vadd.f32 %v3878, %v3982
        %v4044 = vadd.f32 %v3879, %v3984
        %v4045 = vadd.f32 %v3880, %v3987
        %v4046 = vadd.f32 %v3881, %v3989
        %v4047 = vadd.f32 %v3882, %v3992
        %v4048 = vadd.f32 %v3883, %v3994
        %v4049 = vadd.f32 %v3884, %v3997
        %v4050 = vadd.f32 %v3885, %v3999
        %v4051 = vadd.f32 %v3886, %v4002
        %v4052 = vadd.f32 %v3887, %v4004
        %v4053 = vadd.f32 %v3888, %v4007
        %v4054 = vadd.f32 %v3889, %v4009
        %v4055 = vadd.f32 %v3890, %v4012
        %v4056 = vadd.f32 %v3891, %v4014
        %v4057 = vadd.f32 %v3892, %v4017
        %v4058 = vadd.f32 %v3893, %v4019
        %v4059 = vadd.f32 %v3894, %v4022
        %v4060 = vadd.f32 %v3895, %v4024
        %v4061 = vadd.f32 %v3896, %v4027
        %v4062 = vadd.f32 %v3897, %v4029
        %s4063 = scalar_lea.vmem [#allocation2], 160
        %v4064 = vld [vmem:[%s4063] sm:$0xf]
        %v4065 = vld [vmem:[%s4063 + $0x4] sm:$0xf]
        %v4066 = vld [vmem:[%s4063 + $0x8] sm:$0xf]
        %v4067 = vld [vmem:[%s4063 + $0xc] sm:$0xf]
        %v4068 = vld [vmem:[%s4063 + $0x10] sm:$0xf]
        %v4069 = vld [vmem:[%s4063 + $0x14] sm:$0xf]
        %v4070 = vld [vmem:[%s4063 + $0x18] sm:$0xf]
        %v4071 = vld [vmem:[%s4063 + $0x1c] sm:$0xf]
        %v4073 = vrot.slane %v3016, 1
        %v4074 = vsel %vm3514, %v3546, %v4073
        %v4083 = vunpack.c.l.b16 %v4064
        %v4084 = vunpack.c.l.b16 %v4065
        %v4085 = vunpack.c.l.b16 %v4066
        %v4086 = vunpack.c.l.b16 %v4067
        %v4087 = vunpack.c.l.b16 %v4068
        %v4088 = vunpack.c.l.b16 %v4069
        %v4089 = vunpack.c.l.b16 %v4070
        %v4090 = vunpack.c.l.b16 %v4071
        %v4091 = vpack.c.b16 %v4084, %v4083
        %v4092 = vpack.c.b16 %v4086, %v4085
        %v4093 = vpack.c.b16 %v4088, %v4087
        %v4094 = vpack.c.b16 %v4090, %v4089
        %v4100 = vsel %vm1027, %v4074, 0
        %4102 = vmatpush.bf16.msra.mxu0 0
        %4103 = vmatpush.bf16.msra.mxu0 0
        %4104 = vmatpush.bf16.msra.mxu0 0
        %4105 = vmatpush.bf16.msra.mxu0 0
        %4106 = vmatpush.bf16.msra.mxu0 %v4094
        %4107 = vmatpush.bf16.msra.mxu0 %v4093
        %4108 = vmatpush.bf16.msra.mxu0 %v4092
        %4109 = vmatpush.bf16.msra.mxu0 %v4091
        %4110 = vmatmul.bf16.gmra.mxu0 %v3576
        %v4111 = vpop.f32.mrf.mxu0
        %v4112 = vadd.f32 0.0, %v4111
        %v4113 = vpop.f32.mrf.mxu0
        %v4114 = vadd.f32 0.0, %v4113
        %4115 = vmatmul.bf16.gmra.mxu0 %v3579
        %v4116 = vpop.f32.mrf.mxu0
        %v4117 = vadd.f32 0.0, %v4116
        %v4118 = vpop.f32.mrf.mxu0
        %v4119 = vadd.f32 0.0, %v4118
        %4120 = vmatmul.bf16.gmra.mxu0 %v3582
        %v4121 = vpop.f32.mrf.mxu0
        %v4122 = vadd.f32 0.0, %v4121
        %v4123 = vpop.f32.mrf.mxu0
        %v4124 = vadd.f32 0.0, %v4123
        %4125 = vmatmul.bf16.gmra.mxu0 %v3585
        %v4126 = vpop.f32.mrf.mxu0
        %v4127 = vadd.f32 0.0, %v4126
        %v4128 = vpop.f32.mrf.mxu0
        %v4129 = vadd.f32 0.0, %v4128
        %4130 = vmatmul.bf16.gmra.mxu0 %v3588
        %v4131 = vpop.f32.mrf.mxu0
        %v4132 = vadd.f32 0.0, %v4131
        %v4133 = vpop.f32.mrf.mxu0
        %v4134 = vadd.f32 0.0, %v4133
        %4135 = vmatmul.bf16.gmra.mxu0 %v3591
        %v4136 = vpop.f32.mrf.mxu0
        %v4137 = vadd.f32 0.0, %v4136
        %v4138 = vpop.f32.mrf.mxu0
        %v4139 = vadd.f32 0.0, %v4138
        %4140 = vmatmul.bf16.gmra.mxu0 %v3594
        %v4141 = vpop.f32.mrf.mxu0
        %v4142 = vadd.f32 0.0, %v4141
        %v4143 = vpop.f32.mrf.mxu0
        %v4144 = vadd.f32 0.0, %v4143
        %4145 = vmatmul.bf16.gmra.mxu0 %v3597
        %v4146 = vpop.f32.mrf.mxu0
        %v4147 = vadd.f32 0.0, %v4146
        %v4148 = vpop.f32.mrf.mxu0
        %v4149 = vadd.f32 0.0, %v4148
        %4150 = vmatmul.bf16.gmra.mxu0 %v3600
        %v4151 = vpop.f32.mrf.mxu0
        %v4152 = vadd.f32 0.0, %v4151
        %v4153 = vpop.f32.mrf.mxu0
        %v4154 = vadd.f32 0.0, %v4153
        %4155 = vmatmul.bf16.gmra.mxu0 %v3603
        %v4156 = vpop.f32.mrf.mxu0
        %v4157 = vadd.f32 0.0, %v4156
        %v4158 = vpop.f32.mrf.mxu0
        %v4159 = vadd.f32 0.0, %v4158
        %4160 = vmatmul.bf16.gmra.mxu0 %v3606
        %v4161 = vpop.f32.mrf.mxu0
        %v4162 = vadd.f32 0.0, %v4161
        %v4163 = vpop.f32.mrf.mxu0
        %v4164 = vadd.f32 0.0, %v4163
        %4165 = vmatmul.bf16.gmra.mxu0 %v3609
        %v4166 = vpop.f32.mrf.mxu0
        %v4167 = vadd.f32 0.0, %v4166
        %v4168 = vpop.f32.mrf.mxu0
        %v4169 = vadd.f32 0.0, %v4168
        %4170 = vmatmul.bf16.gmra.mxu0 %v3612
        %v4171 = vpop.f32.mrf.mxu0
        %v4172 = vadd.f32 0.0, %v4171
        %v4173 = vpop.f32.mrf.mxu0
        %v4174 = vadd.f32 0.0, %v4173
        %4175 = vmatmul.bf16.gmra.mxu0 %v3615
        %v4176 = vpop.f32.mrf.mxu0
        %v4177 = vadd.f32 0.0, %v4176
        %v4178 = vpop.f32.mrf.mxu0
        %v4179 = vadd.f32 0.0, %v4178
        %4180 = vmatmul.bf16.gmra.mxu0 %v3618
        %v4181 = vpop.f32.mrf.mxu0
        %v4182 = vadd.f32 0.0, %v4181
        %v4183 = vpop.f32.mrf.mxu0
        %v4184 = vadd.f32 0.0, %v4183
        %4185 = vmatmul.bf16.gmra.mxu0 %v4100
        %v4186 = vpop.f32.mrf.mxu0
        %v4187 = vadd.f32 0.0, %v4186
        %v4188 = vpop.f32.mrf.mxu0
        %v4189 = vadd.f32 0.0, %v4188
        %4190 = vdwg.mxu0
        %v4191 = vadd.f32 %v4031, %v4112
        %v4192 = vadd.f32 %v4032, %v4114
        %v4193 = vadd.f32 %v4033, %v4117
        %v4194 = vadd.f32 %v4034, %v4119
        %v4195 = vadd.f32 %v4035, %v4122
        %v4196 = vadd.f32 %v4036, %v4124
        %v4197 = vadd.f32 %v4037, %v4127
        %v4198 = vadd.f32 %v4038, %v4129
        %v4199 = vadd.f32 %v4039, %v4132
        %v4200 = vadd.f32 %v4040, %v4134
        %v4201 = vadd.f32 %v4041, %v4137
        %v4202 = vadd.f32 %v4042, %v4139
        %v4203 = vadd.f32 %v4043, %v4142
        %v4204 = vadd.f32 %v4044, %v4144
        %v4205 = vadd.f32 %v4045, %v4147
        %v4206 = vadd.f32 %v4046, %v4149
        %v4207 = vadd.f32 %v4047, %v4152
        %v4208 = vadd.f32 %v4048, %v4154
        %v4209 = vadd.f32 %v4049, %v4157
        %v4210 = vadd.f32 %v4050, %v4159
        %v4211 = vadd.f32 %v4051, %v4162
        %v4212 = vadd.f32 %v4052, %v4164
        %v4213 = vadd.f32 %v4053, %v4167
        %v4214 = vadd.f32 %v4054, %v4169
        %v4215 = vadd.f32 %v4055, %v4172
        %v4216 = vadd.f32 %v4056, %v4174
        %v4217 = vadd.f32 %v4057, %v4177
        %v4218 = vadd.f32 %v4058, %v4179
        %v4219 = vadd.f32 %v4059, %v4182
        %v4220 = vadd.f32 %v4060, %v4184
        %v4221 = vadd.f32 %v4061, %v4187
        %v4222 = vadd.f32 %v4062, %v4189
        %s4223 = scalar_lea.vmem [#allocation2], 192
        %v4224 = vld [vmem:[%s4223] sm:$0xf]
        %v4225 = vld [vmem:[%s4223 + $0x4] sm:$0xf]
        %v4226 = vld [vmem:[%s4223 + $0x8] sm:$0xf]
        %v4227 = vld [vmem:[%s4223 + $0xc] sm:$0xf]
        %v4228 = vld [vmem:[%s4223 + $0x10] sm:$0xf]
        %v4229 = vld [vmem:[%s4223 + $0x14] sm:$0xf]
        %v4230 = vld [vmem:[%s4223 + $0x18] sm:$0xf]
        %v4231 = vld [vmem:[%s4223 + $0x1c] sm:$0xf]
        %v4240 = vunpack.c.l.b16 %v4224
        %v4241 = vunpack.c.l.b16 %v4225
        %v4242 = vunpack.c.l.b16 %v4226
        %v4243 = vunpack.c.l.b16 %v4227
        %v4244 = vunpack.c.l.b16 %v4228
        %v4245 = vunpack.c.l.b16 %v4229
        %v4246 = vunpack.c.l.b16 %v4230
        %v4247 = vunpack.c.l.b16 %v4231
        %v4248 = vpack.c.b16 %v4241, %v4240
        %v4249 = vpack.c.b16 %v4243, %v4242
        %v4250 = vpack.c.b16 %v4245, %v4244
        %v4251 = vpack.c.b16 %v4247, %v4246
        %v4257 = vsel %vm1027, %v2659, 0
        %4259 = vmatpush.bf16.msra.mxu0 0
        %4260 = vmatpush.bf16.msra.mxu0 0
        %4261 = vmatpush.bf16.msra.mxu0 0
        %4262 = vmatpush.bf16.msra.mxu0 0
        %4263 = vmatpush.bf16.msra.mxu0 %v4251
        %4264 = vmatpush.bf16.msra.mxu0 %v4250
        %4265 = vmatpush.bf16.msra.mxu0 %v4249
        %4266 = vmatpush.bf16.msra.mxu0 %v4248
        %4267 = vmatmul.bf16.gmra.mxu0 %v3358
        %v4268 = vpop.f32.mrf.mxu0
        %v4269 = vadd.f32 0.0, %v4268
        %v4270 = vpop.f32.mrf.mxu0
        %v4271 = vadd.f32 0.0, %v4270
        %4272 = vmatmul.bf16.gmra.mxu0 %v3361
        %v4273 = vpop.f32.mrf.mxu0
        %v4274 = vadd.f32 0.0, %v4273
        %v4275 = vpop.f32.mrf.mxu0
        %v4276 = vadd.f32 0.0, %v4275
        %4277 = vmatmul.bf16.gmra.mxu0 %v3364
        %v4278 = vpop.f32.mrf.mxu0
        %v4279 = vadd.f32 0.0, %v4278
        %v4280 = vpop.f32.mrf.mxu0
        %v4281 = vadd.f32 0.0, %v4280
        %4282 = vmatmul.bf16.gmra.mxu0 %v3367
        %v4283 = vpop.f32.mrf.mxu0
        %v4284 = vadd.f32 0.0, %v4283
        %v4285 = vpop.f32.mrf.mxu0
        %v4286 = vadd.f32 0.0, %v4285
        %4287 = vmatmul.bf16.gmra.mxu0 %v3370
        %v4288 = vpop.f32.mrf.mxu0
        %v4289 = vadd.f32 0.0, %v4288
        %v4290 = vpop.f32.mrf.mxu0
        %v4291 = vadd.f32 0.0, %v4290
        %4292 = vmatmul.bf16.gmra.mxu0 %v3373
        %v4293 = vpop.f32.mrf.mxu0
        %v4294 = vadd.f32 0.0, %v4293
        %v4295 = vpop.f32.mrf.mxu0
        %v4296 = vadd.f32 0.0, %v4295
        %4297 = vmatmul.bf16.gmra.mxu0 %v3376
        %v4298 = vpop.f32.mrf.mxu0
        %v4299 = vadd.f32 0.0, %v4298
        %v4300 = vpop.f32.mrf.mxu0
        %v4301 = vadd.f32 0.0, %v4300
        %4302 = vmatmul.bf16.gmra.mxu0 %v3379
        %v4303 = vpop.f32.mrf.mxu0
        %v4304 = vadd.f32 0.0, %v4303
        %v4305 = vpop.f32.mrf.mxu0
        %v4306 = vadd.f32 0.0, %v4305
        %4307 = vmatmul.bf16.gmra.mxu0 %v3382
        %v4308 = vpop.f32.mrf.mxu0
        %v4309 = vadd.f32 0.0, %v4308
        %v4310 = vpop.f32.mrf.mxu0
        %v4311 = vadd.f32 0.0, %v4310
        %4312 = vmatmul.bf16.gmra.mxu0 %v3385
        %v4313 = vpop.f32.mrf.mxu0
        %v4314 = vadd.f32 0.0, %v4313
        %v4315 = vpop.f32.mrf.mxu0
        %v4316 = vadd.f32 0.0, %v4315
        %4317 = vmatmul.bf16.gmra.mxu0 %v3388
        %v4318 = vpop.f32.mrf.mxu0
        %v4319 = vadd.f32 0.0, %v4318
        %v4320 = vpop.f32.mrf.mxu0
        %v4321 = vadd.f32 0.0, %v4320
        %4322 = vmatmul.bf16.gmra.mxu0 %v3391
        %v4323 = vpop.f32.mrf.mxu0
        %v4324 = vadd.f32 0.0, %v4323
        %v4325 = vpop.f32.mrf.mxu0
        %v4326 = vadd.f32 0.0, %v4325
        %4327 = vmatmul.bf16.gmra.mxu0 %v3394
        %v4328 = vpop.f32.mrf.mxu0
        %v4329 = vadd.f32 0.0, %v4328
        %v4330 = vpop.f32.mrf.mxu0
        %v4331 = vadd.f32 0.0, %v4330
        %4332 = vmatmul.bf16.gmra.mxu0 %v3397
        %v4333 = vpop.f32.mrf.mxu0
        %v4334 = vadd.f32 0.0, %v4333
        %v4335 = vpop.f32.mrf.mxu0
        %v4336 = vadd.f32 0.0, %v4335
        %4337 = vmatmul.bf16.gmra.mxu0 %v3775
        %v4338 = vpop.f32.mrf.mxu0
        %v4339 = vadd.f32 0.0, %v4338
        %v4340 = vpop.f32.mrf.mxu0
        %v4341 = vadd.f32 0.0, %v4340
        %4342 = vmatmul.bf16.gmra.mxu0 %v4257
        %v4343 = vpop.f32.mrf.mxu0
        %v4344 = vadd.f32 0.0, %v4343
        %v4345 = vpop.f32.mrf.mxu0
        %v4346 = vadd.f32 0.0, %v4345
        %4347 = vdwg.mxu0
        %v4348 = vadd.f32 %v4191, %v4269
        %v4349 = vadd.f32 %v4192, %v4271
        %v4350 = vadd.f32 %v4193, %v4274
        %v4351 = vadd.f32 %v4194, %v4276
        %v4352 = vadd.f32 %v4195, %v4279
        %v4353 = vadd.f32 %v4196, %v4281
        %v4354 = vadd.f32 %v4197, %v4284
        %v4355 = vadd.f32 %v4198, %v4286
        %v4356 = vadd.f32 %v4199, %v4289
        %v4357 = vadd.f32 %v4200, %v4291
        %v4358 = vadd.f32 %v4201, %v4294
        %v4359 = vadd.f32 %v4202, %v4296
        %v4360 = vadd.f32 %v4203, %v4299
        %v4361 = vadd.f32 %v4204, %v4301
        %v4362 = vadd.f32 %v4205, %v4304
        %v4363 = vadd.f32 %v4206, %v4306
        %v4364 = vadd.f32 %v4207, %v4309
        %v4365 = vadd.f32 %v4208, %v4311
        %v4366 = vadd.f32 %v4209, %v4314
        %v4367 = vadd.f32 %v4210, %v4316
        %v4368 = vadd.f32 %v4211, %v4319
        %v4369 = vadd.f32 %v4212, %v4321
        %v4370 = vadd.f32 %v4213, %v4324
        %v4371 = vadd.f32 %v4214, %v4326
        %v4372 = vadd.f32 %v4215, %v4329
        %v4373 = vadd.f32 %v4216, %v4331
        %v4374 = vadd.f32 %v4217, %v4334
        %v4375 = vadd.f32 %v4218, %v4336
        %v4376 = vadd.f32 %v4219, %v4339
        %v4377 = vadd.f32 %v4220, %v4341
        %v4378 = vadd.f32 %v4221, %v4344
        %v4379 = vadd.f32 %v4222, %v4346
        %s4380 = scalar_lea.vmem [#allocation2], 224
        %v4381 = vld [vmem:[%s4380] sm:$0xf]
        %v4382 = vld [vmem:[%s4380 + $0x4] sm:$0xf]
        %v4383 = vld [vmem:[%s4380 + $0x8] sm:$0xf]
        %v4384 = vld [vmem:[%s4380 + $0xc] sm:$0xf]
        %v4385 = vld [vmem:[%s4380 + $0x10] sm:$0xf]
        %v4386 = vld [vmem:[%s4380 + $0x14] sm:$0xf]
        %v4387 = vld [vmem:[%s4380 + $0x18] sm:$0xf]
        %v4388 = vld [vmem:[%s4380 + $0x1c] sm:$0xf]
        %v4389 = vshrl.u32 %v2302, 16
        %v4391 = vor.u32 %v4389, %v3913
        %v4392 = vsel %vm3034, %v4391, %v3040
        %v4401 = vunpack.c.l.b16 %v4381
        %v4402 = vunpack.c.l.b16 %v4382
        %v4403 = vunpack.c.l.b16 %v4383
        %v4404 = vunpack.c.l.b16 %v4384
        %v4405 = vunpack.c.l.b16 %v4385
        %v4406 = vunpack.c.l.b16 %v4386
        %v4407 = vunpack.c.l.b16 %v4387
        %v4408 = vunpack.c.l.b16 %v4388
        %v4409 = vpack.c.b16 %v4402, %v4401
        %v4410 = vpack.c.b16 %v4404, %v4403
        %v4411 = vpack.c.b16 %v4406, %v4405
        %v4412 = vpack.c.b16 %v4408, %v4407
        %v4418 = vsel %vm1027, %v4392, 0
        %4420 = vmatpush.bf16.msra.mxu0 0
        %4421 = vmatpush.bf16.msra.mxu0 0
        %4422 = vmatpush.bf16.msra.mxu0 0
        %4423 = vmatpush.bf16.msra.mxu0 0
        %4424 = vmatpush.bf16.msra.mxu0 %v4412
        %4425 = vmatpush.bf16.msra.mxu0 %v4411
        %4426 = vmatpush.bf16.msra.mxu0 %v4410
        %4427 = vmatpush.bf16.msra.mxu0 %v4409
        %4428 = vmatmul.bf16.gmra.mxu0 %v3198
        %v4429 = vpop.f32.mrf.mxu0
        %v4430 = vadd.f32 0.0, %v4429
        %v4431 = vpop.f32.mrf.mxu0
        %v4432 = vadd.f32 0.0, %v4431
        %4433 = vmatmul.bf16.gmra.mxu0 %v3201
        %v4434 = vpop.f32.mrf.mxu0
        %v4435 = vadd.f32 0.0, %v4434
        %v4436 = vpop.f32.mrf.mxu0
        %v4437 = vadd.f32 0.0, %v4436
        %4438 = vmatmul.bf16.gmra.mxu0 %v3204
        %v4439 = vpop.f32.mrf.mxu0
        %v4440 = vadd.f32 0.0, %v4439
        %v4441 = vpop.f32.mrf.mxu0
        %v4442 = vadd.f32 0.0, %v4441
        %4443 = vmatmul.bf16.gmra.mxu0 %v3207
        %v4444 = vpop.f32.mrf.mxu0
        %v4445 = vadd.f32 0.0, %v4444
        %v4446 = vpop.f32.mrf.mxu0
        %v4447 = vadd.f32 0.0, %v4446
        %4448 = vmatmul.bf16.gmra.mxu0 %v3210
        %v4449 = vpop.f32.mrf.mxu0
        %v4450 = vadd.f32 0.0, %v4449
        %v4451 = vpop.f32.mrf.mxu0
        %v4452 = vadd.f32 0.0, %v4451
        %4453 = vmatmul.bf16.gmra.mxu0 %v3213
        %v4454 = vpop.f32.mrf.mxu0
        %v4455 = vadd.f32 0.0, %v4454
        %v4456 = vpop.f32.mrf.mxu0
        %v4457 = vadd.f32 0.0, %v4456
        %4458 = vmatmul.bf16.gmra.mxu0 %v3216
        %v4459 = vpop.f32.mrf.mxu0
        %v4460 = vadd.f32 0.0, %v4459
        %v4461 = vpop.f32.mrf.mxu0
        %v4462 = vadd.f32 0.0, %v4461
        %4463 = vmatmul.bf16.gmra.mxu0 %v3219
        %v4464 = vpop.f32.mrf.mxu0
        %v4465 = vadd.f32 0.0, %v4464
        %v4466 = vpop.f32.mrf.mxu0
        %v4467 = vadd.f32 0.0, %v4466
        %4468 = vmatmul.bf16.gmra.mxu0 %v3222
        %v4469 = vpop.f32.mrf.mxu0
        %v4470 = vadd.f32 0.0, %v4469
        %v4471 = vpop.f32.mrf.mxu0
        %v4472 = vadd.f32 0.0, %v4471
        %4473 = vmatmul.bf16.gmra.mxu0 %v3225
        %v4474 = vpop.f32.mrf.mxu0
        %v4475 = vadd.f32 0.0, %v4474
        %v4476 = vpop.f32.mrf.mxu0
        %v4477 = vadd.f32 0.0, %v4476
        %4478 = vmatmul.bf16.gmra.mxu0 %v3228
        %v4479 = vpop.f32.mrf.mxu0
        %v4480 = vadd.f32 0.0, %v4479
        %v4481 = vpop.f32.mrf.mxu0
        %v4482 = vadd.f32 0.0, %v4481
        %4483 = vmatmul.bf16.gmra.mxu0 %v3231
        %v4484 = vpop.f32.mrf.mxu0
        %v4485 = vadd.f32 0.0, %v4484
        %v4486 = vpop.f32.mrf.mxu0
        %v4487 = vadd.f32 0.0, %v4486
        %4488 = vmatmul.bf16.gmra.mxu0 %v3234
        %v4489 = vpop.f32.mrf.mxu0
        %v4490 = vadd.f32 0.0, %v4489
        %v4491 = vpop.f32.mrf.mxu0
        %v4492 = vadd.f32 0.0, %v4491
        %4493 = vmatmul.bf16.gmra.mxu0 %v3237
        %v4494 = vpop.f32.mrf.mxu0
        %v4495 = vadd.f32 0.0, %v4494
        %v4496 = vpop.f32.mrf.mxu0
        %v4497 = vadd.f32 0.0, %v4496
        %4498 = vmatmul.bf16.gmra.mxu0 %v3940
        %v4499 = vpop.f32.mrf.mxu0
        %v4500 = vadd.f32 0.0, %v4499
        %v4501 = vpop.f32.mrf.mxu0
        %v4502 = vadd.f32 0.0, %v4501
        %4503 = vmatmul.bf16.gmra.mxu0 %v4418
        %v4504 = vpop.f32.mrf.mxu0
        %v4505 = vadd.f32 0.0, %v4504
        %v4506 = vpop.f32.mrf.mxu0
        %v4507 = vadd.f32 0.0, %v4506
        %4508 = vdwg.mxu0
        %v4509 = vadd.f32 %v4348, %v4430
        %v4510 = vadd.f32 %v4349, %v4432
        %v4511 = vadd.f32 %v4350, %v4435
        %v4512 = vadd.f32 %v4351, %v4437
        %v4513 = vadd.f32 %v4352, %v4440
        %v4514 = vadd.f32 %v4353, %v4442
        %v4515 = vadd.f32 %v4354, %v4445
        %v4516 = vadd.f32 %v4355, %v4447
        %v4517 = vadd.f32 %v4356, %v4450
        %v4518 = vadd.f32 %v4357, %v4452
        %v4519 = vadd.f32 %v4358, %v4455
        %v4520 = vadd.f32 %v4359, %v4457
        %v4521 = vadd.f32 %v4360, %v4460
        %v4522 = vadd.f32 %v4361, %v4462
        %v4523 = vadd.f32 %v4362, %v4465
        %v4524 = vadd.f32 %v4363, %v4467
        %v4525 = vadd.f32 %v4364, %v4470
        %v4526 = vadd.f32 %v4365, %v4472
        %v4527 = vadd.f32 %v4366, %v4475
        %v4528 = vadd.f32 %v4367, %v4477
        %v4529 = vadd.f32 %v4368, %v4480
        %v4530 = vadd.f32 %v4369, %v4482
        %v4531 = vadd.f32 %v4370, %v4485
        %v4532 = vadd.f32 %v4371, %v4487
        %v4533 = vadd.f32 %v4372, %v4490
        %v4534 = vadd.f32 %v4373, %v4492
        %v4535 = vadd.f32 %v4374, %v4495
        %v4536 = vadd.f32 %v4375, %v4497
        %v4537 = vadd.f32 %v4376, %v4500
        %v4538 = vadd.f32 %v4377, %v4502
        %v4539 = vadd.f32 %v4378, %v4505
        %v4540 = vadd.f32 %v4379, %v4507
        %s4541 = scalar_lea.vmem [#allocation2], 256
        %v4542 = vld [vmem:[%s4541] sm:$0xf]
        %v4543 = vld [vmem:[%s4541 + $0x4] sm:$0xf]
        %v4544 = vld [vmem:[%s4541 + $0x8] sm:$0xf]
        %v4545 = vld [vmem:[%s4541 + $0xc] sm:$0xf]
        %v4546 = vld [vmem:[%s4541 + $0x10] sm:$0xf]
        %v4547 = vld [vmem:[%s4541 + $0x14] sm:$0xf]
        %v4548 = vld [vmem:[%s4541 + $0x18] sm:$0xf]
        %v4549 = vld [vmem:[%s4541 + $0x1c] sm:$0xf]
        %v4550 = vsel %vm3514, %v4073, %v3515
        %v4559 = vunpack.c.l.b16 %v4542
        %v4560 = vunpack.c.l.b16 %v4543
        %v4561 = vunpack.c.l.b16 %v4544
        %v4562 = vunpack.c.l.b16 %v4545
        %v4563 = vunpack.c.l.b16 %v4546
        %v4564 = vunpack.c.l.b16 %v4547
        %v4565 = vunpack.c.l.b16 %v4548
        %v4566 = vunpack.c.l.b16 %v4549
        %v4567 = vpack.c.b16 %v4560, %v4559
        %v4568 = vpack.c.b16 %v4562, %v4561
        %v4569 = vpack.c.b16 %v4564, %v4563
        %v4570 = vpack.c.b16 %v4566, %v4565
        %v4576 = vsel %vm1027, %v4550, 0
        %4578 = vmatpush.bf16.msra.mxu0 0
        %4579 = vmatpush.bf16.msra.mxu0 0
        %4580 = vmatpush.bf16.msra.mxu0 0
        %4581 = vmatpush.bf16.msra.mxu0 0
        %4582 = vmatpush.bf16.msra.mxu0 %v4570
        %4583 = vmatpush.bf16.msra.mxu0 %v4569
        %4584 = vmatpush.bf16.msra.mxu0 %v4568
        %4585 = vmatpush.bf16.msra.mxu0 %v4567
        %4586 = vmatmul.bf16.gmra.mxu0 %v3579
        %v4587 = vpop.f32.mrf.mxu0
        %v4588 = vadd.f32 0.0, %v4587
        %v4589 = vpop.f32.mrf.mxu0
        %v4590 = vadd.f32 0.0, %v4589
        %4591 = vmatmul.bf16.gmra.mxu0 %v3582
        %v4592 = vpop.f32.mrf.mxu0
        %v4593 = vadd.f32 0.0, %v4592
        %v4594 = vpop.f32.mrf.mxu0
        %v4595 = vadd.f32 0.0, %v4594
        %4596 = vmatmul.bf16.gmra.mxu0 %v3585
        %v4597 = vpop.f32.mrf.mxu0
        %v4598 = vadd.f32 0.0, %v4597
        %v4599 = vpop.f32.mrf.mxu0
        %v4600 = vadd.f32 0.0, %v4599
        %4601 = vmatmul.bf16.gmra.mxu0 %v3588
        %v4602 = vpop.f32.mrf.mxu0
        %v4603 = vadd.f32 0.0, %v4602
        %v4604 = vpop.f32.mrf.mxu0
        %v4605 = vadd.f32 0.0, %v4604
        %4606 = vmatmul.bf16.gmra.mxu0 %v3591
        %v4607 = vpop.f32.mrf.mxu0
        %v4608 = vadd.f32 0.0, %v4607
        %v4609 = vpop.f32.mrf.mxu0
        %v4610 = vadd.f32 0.0, %v4609
        %4611 = vmatmul.bf16.gmra.mxu0 %v3594
        %v4612 = vpop.f32.mrf.mxu0
        %v4613 = vadd.f32 0.0, %v4612
        %v4614 = vpop.f32.mrf.mxu0
        %v4615 = vadd.f32 0.0, %v4614
        %4616 = vmatmul.bf16.gmra.mxu0 %v3597
        %v4617 = vpop.f32.mrf.mxu0
        %v4618 = vadd.f32 0.0, %v4617
        %v4619 = vpop.f32.mrf.mxu0
        %v4620 = vadd.f32 0.0, %v4619
        %4621 = vmatmul.bf16.gmra.mxu0 %v3600
        %v4622 = vpop.f32.mrf.mxu0
        %v4623 = vadd.f32 0.0, %v4622
        %v4624 = vpop.f32.mrf.mxu0
        %v4625 = vadd.f32 0.0, %v4624
        %4626 = vmatmul.bf16.gmra.mxu0 %v3603
        %v4627 = vpop.f32.mrf.mxu0
        %v4628 = vadd.f32 0.0, %v4627
        %v4629 = vpop.f32.mrf.mxu0
        %v4630 = vadd.f32 0.0, %v4629
        %4631 = vmatmul.bf16.gmra.mxu0 %v3606
        %v4632 = vpop.f32.mrf.mxu0
        %v4633 = vadd.f32 0.0, %v4632
        %v4634 = vpop.f32.mrf.mxu0
        %v4635 = vadd.f32 0.0, %v4634
        %4636 = vmatmul.bf16.gmra.mxu0 %v3609
        %v4637 = vpop.f32.mrf.mxu0
        %v4638 = vadd.f32 0.0, %v4637
        %v4639 = vpop.f32.mrf.mxu0
        %v4640 = vadd.f32 0.0, %v4639
        %4641 = vmatmul.bf16.gmra.mxu0 %v3612
        %v4642 = vpop.f32.mrf.mxu0
        %v4643 = vadd.f32 0.0, %v4642
        %v4644 = vpop.f32.mrf.mxu0
        %v4645 = vadd.f32 0.0, %v4644
        %4646 = vmatmul.bf16.gmra.mxu0 %v3615
        %v4647 = vpop.f32.mrf.mxu0
        %v4648 = vadd.f32 0.0, %v4647
        %v4649 = vpop.f32.mrf.mxu0
        %v4650 = vadd.f32 0.0, %v4649
        %4651 = vmatmul.bf16.gmra.mxu0 %v3618
        %v4652 = vpop.f32.mrf.mxu0
        %v4653 = vadd.f32 0.0, %v4652
        %v4654 = vpop.f32.mrf.mxu0
        %v4655 = vadd.f32 0.0, %v4654
        %4656 = vmatmul.bf16.gmra.mxu0 %v4100
        %v4657 = vpop.f32.mrf.mxu0
        %v4658 = vadd.f32 0.0, %v4657
        %v4659 = vpop.f32.mrf.mxu0
        %v4660 = vadd.f32 0.0, %v4659
        %4661 = vmatmul.bf16.gmra.mxu0 %v4576
        %v4662 = vpop.f32.mrf.mxu0
        %v4663 = vadd.f32 0.0, %v4662
        %v4664 = vpop.f32.mrf.mxu0
        %v4665 = vadd.f32 0.0, %v4664
        %4666 = vdwg.mxu0
        %v4667 = vadd.f32 %v4509, %v4588
        %v4668 = vadd.f32 %v4510, %v4590
        %v4669 = vadd.f32 %v4511, %v4593
        %v4670 = vadd.f32 %v4512, %v4595
        %v4671 = vadd.f32 %v4513, %v4598
        %v4672 = vadd.f32 %v4514, %v4600
        %v4673 = vadd.f32 %v4515, %v4603
        %v4674 = vadd.f32 %v4516, %v4605
        %v4675 = vadd.f32 %v4517, %v4608
        %v4676 = vadd.f32 %v4518, %v4610
        %v4677 = vadd.f32 %v4519, %v4613
        %v4678 = vadd.f32 %v4520, %v4615
        %v4679 = vadd.f32 %v4521, %v4618
        %v4680 = vadd.f32 %v4522, %v4620
        %v4681 = vadd.f32 %v4523, %v4623
        %v4682 = vadd.f32 %v4524, %v4625
        %v4683 = vadd.f32 %v4525, %v4628
        %v4684 = vadd.f32 %v4526, %v4630
        %v4685 = vadd.f32 %v4527, %v4633
        %v4686 = vadd.f32 %v4528, %v4635
        %v4687 = vadd.f32 %v4529, %v4638
        %v4688 = vadd.f32 %v4530, %v4640
        %v4689 = vadd.f32 %v4531, %v4643
        %v4690 = vadd.f32 %v4532, %v4645
        %v4691 = vadd.f32 %v4533, %v4648
        %v4692 = vadd.f32 %v4534, %v4650
        %v4693 = vadd.f32 %v4535, %v4653
        %v4694 = vadd.f32 %v4536, %v4655
        %v4695 = vadd.f32 %v4537, %v4658
        %v4696 = vadd.f32 %v4538, %v4660
        %v4697 = vadd.f32 %v4539, %v4663
        %v4698 = vadd.f32 %v4540, %v4665
        %v4699 = vld [vmem:[%s6] sm:$0x1]
        %v4701 = vperm.slane %v4699, 0
        %v4703 = vadd.f32 %v4667, %v4701
        %v4704 = vadd.f32 %v4668, %v4701
        %v4705 = vadd.f32 %v4669, %v4701
        %v4706 = vadd.f32 %v4670, %v4701
        %v4707 = vadd.f32 %v4671, %v4701
        %v4708 = vadd.f32 %v4672, %v4701
        %v4709 = vadd.f32 %v4673, %v4701
        %v4710 = vadd.f32 %v4674, %v4701
        %v4711 = vadd.f32 %v4675, %v4701
        %v4712 = vadd.f32 %v4676, %v4701
        %v4713 = vadd.f32 %v4677, %v4701
        %v4714 = vadd.f32 %v4678, %v4701
        %v4715 = vadd.f32 %v4679, %v4701
        %v4716 = vadd.f32 %v4680, %v4701
        %v4717 = vadd.f32 %v4681, %v4701
        %v4718 = vadd.f32 %v4682, %v4701
        %v4719 = vadd.f32 %v4683, %v4701
        %v4720 = vadd.f32 %v4684, %v4701
        %v4721 = vadd.f32 %v4685, %v4701
        %v4722 = vadd.f32 %v4686, %v4701
        %v4723 = vadd.f32 %v4687, %v4701
        %v4724 = vadd.f32 %v4688, %v4701
        %v4725 = vadd.f32 %v4689, %v4701
        %v4726 = vadd.f32 %v4690, %v4701
        %v4727 = vadd.f32 %v4691, %v4701
        %v4728 = vadd.f32 %v4692, %v4701
        %v4729 = vadd.f32 %v4693, %v4701
        %v4730 = vadd.f32 %v4694, %v4701
        %v4731 = vadd.f32 %v4695, %v4701
        %v4732 = vadd.f32 %v4696, %v4701
        %v4733 = vadd.f32 %v4697, %v4701
        %v4734 = vadd.f32 %v4698, %v4701
        %v4735 = vld [vmem:[%s513] sm:$0x1]
        %v4737 = vperm.slane %v4735, 0
        %v4739 = vadd.f32 %v4703, %v4737
        %v4740 = vadd.f32 %v4704, %v4737
        %v4741 = vadd.f32 %v4705, %v4737
        %v4742 = vadd.f32 %v4706, %v4737
        %v4743 = vadd.f32 %v4707, %v4737
        %v4744 = vadd.f32 %v4708, %v4737
        %v4745 = vadd.f32 %v4709, %v4737
        %v4746 = vadd.f32 %v4710, %v4737
        %v4747 = vadd.f32 %v4711, %v4737
        %v4748 = vadd.f32 %v4712, %v4737
        %v4749 = vadd.f32 %v4713, %v4737
        %v4750 = vadd.f32 %v4714, %v4737
        %v4751 = vadd.f32 %v4715, %v4737
        %v4752 = vadd.f32 %v4716, %v4737
        %v4753 = vadd.f32 %v4717, %v4737
        %v4754 = vadd.f32 %v4718, %v4737
        %v4755 = vadd.f32 %v4719, %v4737
        %v4756 = vadd.f32 %v4720, %v4737
        %v4757 = vadd.f32 %v4721, %v4737
        %v4758 = vadd.f32 %v4722, %v4737
        %v4759 = vadd.f32 %v4723, %v4737
        %v4760 = vadd.f32 %v4724, %v4737
        %v4761 = vadd.f32 %v4725, %v4737
        %v4762 = vadd.f32 %v4726, %v4737
        %v4763 = vadd.f32 %v4727, %v4737
        %v4764 = vadd.f32 %v4728, %v4737
        %v4765 = vadd.f32 %v4729, %v4737
        %v4766 = vadd.f32 %v4730, %v4737
        %v4767 = vadd.f32 %v4731, %v4737
        %v4768 = vadd.f32 %v4732, %v4737
        %v4769 = vadd.f32 %v4733, %v4737
        %v4770 = vadd.f32 %v4734, %v4737
        %v4771 = vadd.f32 %v4739, %v4740
        %v4772 = vadd.f32 %v4771, %v4741
        %v4773 = vadd.f32 %v4772, %v4742
        %v4774 = vadd.f32 %v4773, %v4743
        %v4775 = vadd.f32 %v4774, %v4744
        %v4776 = vadd.f32 %v4775, %v4745
        %v4777 = vadd.f32 %v4776, %v4746
        %v4778 = vadd.f32 %v4777, %v4747
        %v4779 = vadd.f32 %v4778, %v4748
        %v4780 = vadd.f32 %v4779, %v4749
        %v4781 = vadd.f32 %v4780, %v4750
        %v4782 = vadd.f32 %v4781, %v4751
        %v4783 = vadd.f32 %v4782, %v4752
        %v4784 = vadd.f32 %v4783, %v4753
        %v4785 = vadd.f32 %v4784, %v4754
        %v4786 = vadd.f32 %v4785, %v4755
        %v4787 = vadd.f32 %v4786, %v4756
        %v4788 = vadd.f32 %v4787, %v4757
        %v4789 = vadd.f32 %v4788, %v4758
        %v4790 = vadd.f32 %v4789, %v4759
        %v4791 = vadd.f32 %v4790, %v4760
        %v4792 = vadd.f32 %v4791, %v4761
        %v4793 = vadd.f32 %v4792, %v4762
        %v4794 = vadd.f32 %v4793, %v4763
        %v4795 = vadd.f32 %v4794, %v4764
        %v4796 = vadd.f32 %v4795, %v4765
        %v4797 = vadd.f32 %v4796, %v4766
        %v4798 = vadd.f32 %v4797, %v4767
        %v4799 = vadd.f32 %v4798, %v4768
        %v4800 = vadd.f32 %v4799, %v4769
        %v4801 = vadd.f32 %v4800, %v4770
        %v4802 = vrot.slane %v4801, 4
        %v4803 = vadd.f32 %v4801, %v4802
        %v4804 = vrot.slane %v4803, 2
        %v4805 = vadd.f32 %v4803, %v4804
        %v4806 = vrot.slane %v4805, 1
        %v4807 = vadd.f32 %v4805, %v4806
        %v4808 = vld [vmem:[%s9] sm:$0xff]
        %v4809 = vld [vmem:[%s9 + $0x8] sm:$0xff]
        %v4810 = vld [vmem:[%s9 + $0x10] sm:$0xff]
        %v4811 = vld [vmem:[%s9 + $0x18] sm:$0xff]
        %v4812 = vld [vmem:[%s9 + $0x20] sm:$0xff]
        %v4813 = vld [vmem:[%s9 + $0x28] sm:$0xff]
        %v4814 = vld [vmem:[%s9 + $0x30] sm:$0xff]
        %v4815 = vld [vmem:[%s9 + $0x38] sm:$0xff]
        %v4816 = vld [vmem:[%s9 + $0x40] sm:$0xff]
        %v4817 = vld [vmem:[%s9 + $0x48] sm:$0xff]
        %v4818 = vld [vmem:[%s9 + $0x50] sm:$0xff]
        %v4819 = vld [vmem:[%s9 + $0x58] sm:$0xff]
        %v4820 = vld [vmem:[%s9 + $0x60] sm:$0xff]
        %v4821 = vld [vmem:[%s9 + $0x68] sm:$0xff]
        %v4822 = vld [vmem:[%s9 + $0x70] sm:$0xff]
        %v4823 = vld [vmem:[%s9 + $0x78] sm:$0xff]
        %4824 = vmatpush.msra.mxu0 %v4823
        %4825 = vmatpush.msra.mxu0 %v4822
        %4826 = vmatpush.msra.mxu0 %v4821
        %4827 = vmatpush.msra.mxu0 %v4820
        %4828 = vmatpush.msra.mxu0 %v4819
        %4829 = vmatpush.msra.mxu0 %v4818
        %4830 = vmatpush.msra.mxu0 %v4817
        %4831 = vmatpush.msra.mxu0 %v4816
        %4832 = vmatpush.msra.mxu0 %v4815
        %4833 = vmatpush.msra.mxu0 %v4814
        %4834 = vmatpush.msra.mxu0 %v4813
        %4835 = vmatpush.msra.mxu0 %v4812
        %4836 = vmatpush.msra.mxu0 %v4811
        %4837 = vmatpush.msra.mxu0 %v4810
        %4838 = vmatpush.msra.mxu0 %v4809
        %4839 = vmatpush.msra.mxu0 %v4808
        %4840 = vmatmul.f32.gmra.mxu0 %v4807
        %v4841 = vpop.f32.mrf.mxu0
        %v4842 = vadd.f32 0.0, %v4841
        %4843 = vdwg.mxu0
        %v4844 = vperm.slane %v4842, 0
        %v4845 = vsub.f32 %v4739, %v4844
        %v4846 = vsub.f32 %v4740, %v4844
        %v4847 = vsub.f32 %v4741, %v4844
        %v4848 = vsub.f32 %v4742, %v4844
        %v4849 = vsub.f32 %v4743, %v4844
        %v4850 = vsub.f32 %v4744, %v4844
        %v4851 = vsub.f32 %v4745, %v4844
        %v4852 = vsub.f32 %v4746, %v4844
        %v4853 = vsub.f32 %v4747, %v4844
        %v4854 = vsub.f32 %v4748, %v4844
        %v4855 = vsub.f32 %v4749, %v4844
        %v4856 = vsub.f32 %v4750, %v4844
        %v4857 = vsub.f32 %v4751, %v4844
        %v4858 = vsub.f32 %v4752, %v4844
        %v4859 = vsub.f32 %v4753, %v4844
        %v4860 = vsub.f32 %v4754, %v4844
        %v4861 = vsub.f32 %v4755, %v4844
        %v4862 = vsub.f32 %v4756, %v4844
        %v4863 = vsub.f32 %v4757, %v4844
        %v4864 = vsub.f32 %v4758, %v4844
        %v4865 = vsub.f32 %v4759, %v4844
        %v4866 = vsub.f32 %v4760, %v4844
        %v4867 = vsub.f32 %v4761, %v4844
        %v4868 = vsub.f32 %v4762, %v4844
        %v4869 = vsub.f32 %v4763, %v4844
        %v4870 = vsub.f32 %v4764, %v4844
        %v4871 = vsub.f32 %v4765, %v4844
        %v4872 = vsub.f32 %v4766, %v4844
        %v4873 = vsub.f32 %v4767, %v4844
        %v4874 = vsub.f32 %v4768, %v4844
        %v4875 = vsub.f32 %v4769, %v4844
        %v4876 = vsub.f32 %v4770, %v4844
        %v4877 = vmul.f32 %v4845, %v4845
        %v4878 = vmul.f32 %v4846, %v4846
        %v4879 = vmul.f32 %v4847, %v4847
        %v4880 = vmul.f32 %v4848, %v4848
        %v4881 = vmul.f32 %v4849, %v4849
        %v4882 = vmul.f32 %v4850, %v4850
        %v4883 = vmul.f32 %v4851, %v4851
        %v4884 = vmul.f32 %v4852, %v4852
        %v4885 = vmul.f32 %v4853, %v4853
        %v4886 = vmul.f32 %v4854, %v4854
        %v4887 = vmul.f32 %v4855, %v4855
        %v4888 = vmul.f32 %v4856, %v4856
        %v4889 = vmul.f32 %v4857, %v4857
        %v4890 = vmul.f32 %v4858, %v4858
        %v4891 = vmul.f32 %v4859, %v4859
        %v4892 = vmul.f32 %v4860, %v4860
        %v4893 = vmul.f32 %v4861, %v4861
        %v4894 = vmul.f32 %v4862, %v4862
        %v4895 = vmul.f32 %v4863, %v4863
        %v4896 = vmul.f32 %v4864, %v4864
        %v4897 = vmul.f32 %v4865, %v4865
        %v4898 = vmul.f32 %v4866, %v4866
        %v4899 = vmul.f32 %v4867, %v4867
        %v4900 = vmul.f32 %v4868, %v4868
        %v4901 = vmul.f32 %v4869, %v4869
        %v4902 = vmul.f32 %v4870, %v4870
        %v4903 = vmul.f32 %v4871, %v4871
        %v4904 = vmul.f32 %v4872, %v4872
        %v4905 = vmul.f32 %v4873, %v4873
        %v4906 = vmul.f32 %v4874, %v4874
        %v4907 = vmul.f32 %v4875, %v4875
        %v4908 = vmul.f32 %v4876, %v4876
        %v4909 = vadd.f32 %v4877, %v4878
        %v4910 = vadd.f32 %v4909, %v4879
        %v4911 = vadd.f32 %v4910, %v4880
        %v4912 = vadd.f32 %v4911, %v4881
        %v4913 = vadd.f32 %v4912, %v4882
        %v4914 = vadd.f32 %v4913, %v4883
        %v4915 = vadd.f32 %v4914, %v4884
        %v4916 = vadd.f32 %v4915, %v4885
        %v4917 = vadd.f32 %v4916, %v4886
        %v4918 = vadd.f32 %v4917, %v4887
        %v4919 = vadd.f32 %v4918, %v4888
        %v4920 = vadd.f32 %v4919, %v4889
        %v4921 = vadd.f32 %v4920, %v4890
        %v4922 = vadd.f32 %v4921, %v4891
        %v4923 = vadd.f32 %v4922, %v4892
        %v4924 = vadd.f32 %v4923, %v4893
        %v4925 = vadd.f32 %v4924, %v4894
        %v4926 = vadd.f32 %v4925, %v4895
        %v4927 = vadd.f32 %v4926, %v4896
        %v4928 = vadd.f32 %v4927, %v4897
        %v4929 = vadd.f32 %v4928, %v4898
        %v4930 = vadd.f32 %v4929, %v4899
        %v4931 = vadd.f32 %v4930, %v4900
        %v4932 = vadd.f32 %v4931, %v4901
        %v4933 = vadd.f32 %v4932, %v4902
        %v4934 = vadd.f32 %v4933, %v4903
        %v4935 = vadd.f32 %v4934, %v4904
        %v4936 = vadd.f32 %v4935, %v4905
        %v4937 = vadd.f32 %v4936, %v4906
        %v4938 = vadd.f32 %v4937, %v4907
        %v4939 = vadd.f32 %v4938, %v4908
        %v4940 = vrot.slane %v4939, 4
        %v4941 = vadd.f32 %v4939, %v4940
        %v4942 = vrot.slane %v4941, 2
        %v4943 = vadd.f32 %v4941, %v4942
        %v4944 = vrot.slane %v4943, 1
        %v4945 = vadd.f32 %v4943, %v4944
        %4946 = vmatpush.msra.mxu0 %v4823
        %4947 = vmatpush.msra.mxu0 %v4822
        %4948 = vmatpush.msra.mxu0 %v4821
        %4949 = vmatpush.msra.mxu0 %v4820
        %4950 = vmatpush.msra.mxu0 %v4819
        %4951 = vmatpush.msra.mxu0 %v4818
        %4952 = vmatpush.msra.mxu0 %v4817
        %4953 = vmatpush.msra.mxu0 %v4816
        %4954 = vmatpush.msra.mxu0 %v4815
        %4955 = vmatpush.msra.mxu0 %v4814
        %4956 = vmatpush.msra.mxu0 %v4813
        %4957 = vmatpush.msra.mxu0 %v4812
        %4958 = vmatpush.msra.mxu0 %v4811
        %4959 = vmatpush.msra.mxu0 %v4810
        %4960 = vmatpush.msra.mxu0 %v4809
        %4961 = vmatpush.msra.mxu0 %v4808
        %4962 = vmatmul.f32.gmra.mxu0 %v4945
        %v4963 = vpop.f32.mrf.mxu0
        %v4964 = vadd.f32 0.0, %v4963
        %4965 = vdwg.mxu0
        %v4966 = vmax.f32 %v4964, 0.0
        %v4967 = vadd.f32 %v4966, 1e-05
        %v4968 = vrsqrt.pop %v4967
        %v4969 = vmul.f32 %v4968, %v4967
        %v4970 = vmul.f32 %v4969, %v4968
        %v4971 = vmul.f32 0.5, %v4970
        %v4972 = vsub.f32 1.5, %v4971
        %v4973 = vmul.f32 %v4968, %v4972
        %vm4974 = vweird.f32 %v4967
        %vm4975 = vweird.f32 %v4968
        %vm4976 = vmor %vm4974, %vm4975
        %v4977 = vsel %vm4976, %v4968, %v4973
        %v4978 = vperm.slane %v4977, 0
        %v4979 = vmul.f32 %v4845, %v4978
        %v4980 = vmul.f32 %v4846, %v4978
        %v4981 = vmul.f32 %v4847, %v4978
        %v4982 = vmul.f32 %v4848, %v4978
        %v4983 = vmul.f32 %v4849, %v4978
        %v4984 = vmul.f32 %v4850, %v4978
        %v4985 = vmul.f32 %v4851, %v4978
        %v4986 = vmul.f32 %v4852, %v4978
        %v4987 = vmul.f32 %v4853, %v4978
        %v4988 = vmul.f32 %v4854, %v4978
        %v4989 = vmul.f32 %v4855, %v4978
        %v4990 = vmul.f32 %v4856, %v4978
        %v4991 = vmul.f32 %v4857, %v4978
        %v4992 = vmul.f32 %v4858, %v4978
        %v4993 = vmul.f32 %v4859, %v4978
        %v4994 = vmul.f32 %v4860, %v4978
        %v4995 = vmul.f32 %v4861, %v4978
        %v4996 = vmul.f32 %v4862, %v4978
        %v4997 = vmul.f32 %v4863, %v4978
        %v4998 = vmul.f32 %v4864, %v4978
        %v4999 = vmul.f32 %v4865, %v4978
        %v5000 = vmul.f32 %v4866, %v4978
        %v5001 = vmul.f32 %v4867, %v4978
        %v5002 = vmul.f32 %v4868, %v4978
        %v5003 = vmul.f32 %v4869, %v4978
        %v5004 = vmul.f32 %v4870, %v4978
        %v5005 = vmul.f32 %v4871, %v4978
        %v5006 = vmul.f32 %v4872, %v4978
        %v5007 = vmul.f32 %v4873, %v4978
        %v5008 = vmul.f32 %v4874, %v4978
        %v5009 = vmul.f32 %v4875, %v4978
        %v5010 = vmul.f32 %v4876, %v4978
        %v5011 = vld [vmem:[%s7] sm:$0x1]
        %v5013 = vperm.slane %v5011, 0
        %v5015 = vmul.f32 %v4979, %v5013
        %v5016 = vmul.f32 %v4980, %v5013
        %v5017 = vmul.f32 %v4981, %v5013
        %v5018 = vmul.f32 %v4982, %v5013
        %v5019 = vmul.f32 %v4983, %v5013
        %v5020 = vmul.f32 %v4984, %v5013
        %v5021 = vmul.f32 %v4985, %v5013
        %v5022 = vmul.f32 %v4986, %v5013
        %v5023 = vmul.f32 %v4987, %v5013
        %v5024 = vmul.f32 %v4988, %v5013
        %v5025 = vmul.f32 %v4989, %v5013
        %v5026 = vmul.f32 %v4990, %v5013
        %v5027 = vmul.f32 %v4991, %v5013
        %v5028 = vmul.f32 %v4992, %v5013
        %v5029 = vmul.f32 %v4993, %v5013
        %v5030 = vmul.f32 %v4994, %v5013
        %v5031 = vmul.f32 %v4995, %v5013
        %v5032 = vmul.f32 %v4996, %v5013
        %v5033 = vmul.f32 %v4997, %v5013
        %v5034 = vmul.f32 %v4998, %v5013
        %v5035 = vmul.f32 %v4999, %v5013
        %v5036 = vmul.f32 %v5000, %v5013
        %v5037 = vmul.f32 %v5001, %v5013
        %v5038 = vmul.f32 %v5002, %v5013
        %v5039 = vmul.f32 %v5003, %v5013
        %v5040 = vmul.f32 %v5004, %v5013
        %v5041 = vmul.f32 %v5005, %v5013
        %v5042 = vmul.f32 %v5006, %v5013
        %v5043 = vmul.f32 %v5007, %v5013
        %v5044 = vmul.f32 %v5008, %v5013
        %v5045 = vmul.f32 %v5009, %v5013
        %v5046 = vmul.f32 %v5010, %v5013
        %v5047 = vld [vmem:[%s8] sm:$0x1]
        %v5049 = vperm.slane %v5047, 0
        %v5051 = vadd.f32 %v5015, %v5049
        %v5052 = vadd.f32 %v5016, %v5049
        %v5053 = vadd.f32 %v5017, %v5049
        %v5054 = vadd.f32 %v5018, %v5049
        %v5055 = vadd.f32 %v5019, %v5049
        %v5056 = vadd.f32 %v5020, %v5049
        %v5057 = vadd.f32 %v5021, %v5049
        %v5058 = vadd.f32 %v5022, %v5049
        %v5059 = vadd.f32 %v5023, %v5049
        %v5060 = vadd.f32 %v5024, %v5049
        %v5061 = vadd.f32 %v5025, %v5049
        %v5062 = vadd.f32 %v5026, %v5049
        %v5063 = vadd.f32 %v5027, %v5049
        %v5064 = vadd.f32 %v5028, %v5049
        %v5065 = vadd.f32 %v5029, %v5049
        %v5066 = vadd.f32 %v5030, %v5049
        %v5067 = vadd.f32 %v5031, %v5049
        %v5068 = vadd.f32 %v5032, %v5049
        %v5069 = vadd.f32 %v5033, %v5049
        %v5070 = vadd.f32 %v5034, %v5049
        %v5071 = vadd.f32 %v5035, %v5049
        %v5072 = vadd.f32 %v5036, %v5049
        %v5073 = vadd.f32 %v5037, %v5049
        %v5074 = vadd.f32 %v5038, %v5049
        %v5075 = vadd.f32 %v5039, %v5049
        %v5076 = vadd.f32 %v5040, %v5049
        %v5077 = vadd.f32 %v5041, %v5049
        %v5078 = vadd.f32 %v5042, %v5049
        %v5079 = vadd.f32 %v5043, %v5049
        %v5080 = vadd.f32 %v5044, %v5049
        %v5081 = vadd.f32 %v5045, %v5049
        %v5082 = vadd.f32 %v5046, %v5049
        %v5083 = vxor.u32 %v5051, 2147483648
        %v5084 = vxor.u32 %v5052, 2147483648
        %v5085 = vxor.u32 %v5053, 2147483648
        %v5086 = vxor.u32 %v5054, 2147483648
        %v5087 = vxor.u32 %v5055, 2147483648
        %v5088 = vxor.u32 %v5056, 2147483648
        %v5089 = vxor.u32 %v5057, 2147483648
        %v5090 = vxor.u32 %v5058, 2147483648
        %v5091 = vxor.u32 %v5059, 2147483648
        %v5092 = vxor.u32 %v5060, 2147483648
        %v5093 = vxor.u32 %v5061, 2147483648
        %v5094 = vxor.u32 %v5062, 2147483648
        %v5095 = vxor.u32 %v5063, 2147483648
        %v5096 = vxor.u32 %v5064, 2147483648
        %v5097 = vxor.u32 %v5065, 2147483648
        %v5098 = vxor.u32 %v5066, 2147483648
        %v5099 = vxor.u32 %v5067, 2147483648
        %v5100 = vxor.u32 %v5068, 2147483648
        %v5101 = vxor.u32 %v5069, 2147483648
        %v5102 = vxor.u32 %v5070, 2147483648
        %v5103 = vxor.u32 %v5071, 2147483648
        %v5104 = vxor.u32 %v5072, 2147483648
        %v5105 = vxor.u32 %v5073, 2147483648
        %v5106 = vxor.u32 %v5074, 2147483648
        %v5107 = vxor.u32 %v5075, 2147483648
        %v5108 = vxor.u32 %v5076, 2147483648
        %v5109 = vxor.u32 %v5077, 2147483648
        %v5110 = vxor.u32 %v5078, 2147483648
        %v5111 = vxor.u32 %v5079, 2147483648
        %v5112 = vxor.u32 %v5080, 2147483648
        %v5113 = vxor.u32 %v5081, 2147483648
        %v5114 = vxor.u32 %v5082, 2147483648
        %v5115 = vmul.f32 %v5083, 1.442695
        %v5116 = vpow.pop %v5115
        %v5117 = vmul.f32 %v5084, 1.442695
        %v5118 = vpow.pop %v5117
        %v5119 = vmul.f32 %v5085, 1.442695
        %v5120 = vpow.pop %v5119
        %v5121 = vmul.f32 %v5086, 1.442695
        %v5122 = vpow.pop %v5121
        %v5123 = vmul.f32 %v5087, 1.442695
        %v5124 = vpow.pop %v5123
        %v5125 = vmul.f32 %v5088, 1.442695
        %v5126 = vpow.pop %v5125
        %v5127 = vmul.f32 %v5089, 1.442695
        %v5128 = vpow.pop %v5127
        %v5129 = vmul.f32 %v5090, 1.442695
        %v5130 = vpow.pop %v5129
        %v5131 = vmul.f32 %v5091, 1.442695
        %v5132 = vpow.pop %v5131
        %v5133 = vmul.f32 %v5092, 1.442695
        %v5134 = vpow.pop %v5133
        %v5135 = vmul.f32 %v5093, 1.442695
        %v5136 = vpow.pop %v5135
        %v5137 = vmul.f32 %v5094, 1.442695
        %v5138 = vpow.pop %v5137
        %v5139 = vmul.f32 %v5095, 1.442695
        %v5140 = vpow.pop %v5139
        %v5141 = vmul.f32 %v5096, 1.442695
        %v5142 = vpow.pop %v5141
        %v5143 = vmul.f32 %v5097, 1.442695
        %v5144 = vpow.pop %v5143
        %v5145 = vmul.f32 %v5098, 1.442695
        %v5146 = vpow.pop %v5145
        %v5147 = vmul.f32 %v5099, 1.442695
        %v5148 = vpow.pop %v5147
        %v5149 = vmul.f32 %v5100, 1.442695
        %v5150 = vpow.pop %v5149
        %v5151 = vmul.f32 %v5101, 1.442695
        %v5152 = vpow.pop %v5151
        %v5153 = vmul.f32 %v5102, 1.442695
        %v5154 = vpow.pop %v5153
        %v5155 = vmul.f32 %v5103, 1.442695
        %v5156 = vpow.pop %v5155
        %v5157 = vmul.f32 %v5104, 1.442695
        %v5158 = vpow.pop %v5157
        %v5159 = vmul.f32 %v5105, 1.442695
        %v5160 = vpow.pop %v5159
        %v5161 = vmul.f32 %v5106, 1.442695
        %v5162 = vpow.pop %v5161
        %v5163 = vmul.f32 %v5107, 1.442695
        %v5164 = vpow.pop %v5163
        %v5165 = vmul.f32 %v5108, 1.442695
        %v5166 = vpow.pop %v5165
        %v5167 = vmul.f32 %v5109, 1.442695
        %v5168 = vpow.pop %v5167
        %v5169 = vmul.f32 %v5110, 1.442695
        %v5170 = vpow.pop %v5169
        %v5171 = vmul.f32 %v5111, 1.442695
        %v5172 = vpow.pop %v5171
        %v5173 = vmul.f32 %v5112, 1.442695
        %v5174 = vpow.pop %v5173
        %v5175 = vmul.f32 %v5113, 1.442695
        %v5176 = vpow.pop %v5175
        %v5177 = vmul.f32 %v5114, 1.442695
        %v5178 = vpow.pop %v5177
        %v5179 = vadd.f32 %v5116, 1.0
        %v5180 = vadd.f32 %v5118, 1.0
        %v5181 = vadd.f32 %v5120, 1.0
        %v5182 = vadd.f32 %v5122, 1.0
        %v5183 = vadd.f32 %v5124, 1.0
        %v5184 = vadd.f32 %v5126, 1.0
        %v5185 = vadd.f32 %v5128, 1.0
        %v5186 = vadd.f32 %v5130, 1.0
        %v5187 = vadd.f32 %v5132, 1.0
        %v5188 = vadd.f32 %v5134, 1.0
        %v5189 = vadd.f32 %v5136, 1.0
        %v5190 = vadd.f32 %v5138, 1.0
        %v5191 = vadd.f32 %v5140, 1.0
        %v5192 = vadd.f32 %v5142, 1.0
        %v5193 = vadd.f32 %v5144, 1.0
        %v5194 = vadd.f32 %v5146, 1.0
        %v5195 = vadd.f32 %v5148, 1.0
        %v5196 = vadd.f32 %v5150, 1.0
        %v5197 = vadd.f32 %v5152, 1.0
        %v5198 = vadd.f32 %v5154, 1.0
        %v5199 = vadd.f32 %v5156, 1.0
        %v5200 = vadd.f32 %v5158, 1.0
        %v5201 = vadd.f32 %v5160, 1.0
        %v5202 = vadd.f32 %v5162, 1.0
        %v5203 = vadd.f32 %v5164, 1.0
        %v5204 = vadd.f32 %v5166, 1.0
        %v5205 = vadd.f32 %v5168, 1.0
        %v5206 = vadd.f32 %v5170, 1.0
        %v5207 = vadd.f32 %v5172, 1.0
        %v5208 = vadd.f32 %v5174, 1.0
        %v5209 = vadd.f32 %v5176, 1.0
        %v5210 = vadd.f32 %v5178, 1.0
        %v5211 = vrcp.pop %v5179
        %v5212 = vmul.f32 %v5179, %v5211
        %v5213 = vsub.f32 1.0, %v5212
        %v5214 = vmul.f32 %v5211, %v5213
        %v5215 = vadd.f32 %v5211, %v5214
        %vm5216 = vweird.f32 %v5179
        %vm5217 = vweird.f32 %v5211
        %vm5218 = vmor %vm5216, %vm5217
        %v5219 = vsel %vm5218, %v5211, %v5215
        %v5220 = vand.u32 2147483647, %v5179
        %vm5221 = vcmp.eq.f32.partialorder %v5220, 8.507059e+37
        %v5222 = vand.u32 %v5179, 2147483648
        %v5223 = vor.u32 1.1754944e-38, %v5222
        %v5224 = vsel %vm5221, %v5223, %v5219
        %v5225 = vmul.f32 1.0, %v5224
        %v5226 = vrcp.pop %v5180
        %v5227 = vmul.f32 %v5180, %v5226
        %v5228 = vsub.f32 1.0, %v5227
        %v5229 = vmul.f32 %v5226, %v5228
        %v5230 = vadd.f32 %v5226, %v5229
        %vm5231 = vweird.f32 %v5180
        %vm5232 = vweird.f32 %v5226
        %vm5233 = vmor %vm5231, %vm5232
        %v5234 = vsel %vm5233, %v5226, %v5230
        %v5235 = vand.u32 2147483647, %v5180
        %vm5236 = vcmp.eq.f32.partialorder %v5235, 8.507059e+37
        %v5237 = vand.u32 %v5180, 2147483648
        %v5238 = vor.u32 1.1754944e-38, %v5237
        %v5239 = vsel %vm5236, %v5238, %v5234
        %v5240 = vmul.f32 1.0, %v5239
        %v5241 = vrcp.pop %v5181
        %v5242 = vmul.f32 %v5181, %v5241
        %v5243 = vsub.f32 1.0, %v5242
        %v5244 = vmul.f32 %v5241, %v5243
        %v5245 = vadd.f32 %v5241, %v5244
        %vm5246 = vweird.f32 %v5181
        %vm5247 = vweird.f32 %v5241
        %vm5248 = vmor %vm5246, %vm5247
        %v5249 = vsel %vm5248, %v5241, %v5245
        %v5250 = vand.u32 2147483647, %v5181
        %vm5251 = vcmp.eq.f32.partialorder %v5250, 8.507059e+37
        %v5252 = vand.u32 %v5181, 2147483648
        %v5253 = vor.u32 1.1754944e-38, %v5252
        %v5254 = vsel %vm5251, %v5253, %v5249
        %v5255 = vmul.f32 1.0, %v5254
        %v5256 = vrcp.pop %v5182
        %v5257 = vmul.f32 %v5182, %v5256
        %v5258 = vsub.f32 1.0, %v5257
        %v5259 = vmul.f32 %v5256, %v5258
        %v5260 = vadd.f32 %v5256, %v5259
        %vm5261 = vweird.f32 %v5182
        %vm5262 = vweird.f32 %v5256
        %vm5263 = vmor %vm5261, %vm5262
        %v5264 = vsel %vm5263, %v5256, %v5260
        %v5265 = vand.u32 2147483647, %v5182
        %vm5266 = vcmp.eq.f32.partialorder %v5265, 8.507059e+37
        %v5267 = vand.u32 %v5182, 2147483648
        %v5268 = vor.u32 1.1754944e-38, %v5267
        %v5269 = vsel %vm5266, %v5268, %v5264
        %v5270 = vmul.f32 1.0, %v5269
        %v5271 = vrcp.pop %v5183
        %v5272 = vmul.f32 %v5183, %v5271
        %v5273 = vsub.f32 1.0, %v5272
        %v5274 = vmul.f32 %v5271, %v5273
        %v5275 = vadd.f32 %v5271, %v5274
        %vm5276 = vweird.f32 %v5183
        %vm5277 = vweird.f32 %v5271
        %vm5278 = vmor %vm5276, %vm5277
        %v5279 = vsel %vm5278, %v5271, %v5275
        %v5280 = vand.u32 2147483647, %v5183
        %vm5281 = vcmp.eq.f32.partialorder %v5280, 8.507059e+37
        %v5282 = vand.u32 %v5183, 2147483648
        %v5283 = vor.u32 1.1754944e-38, %v5282
        %v5284 = vsel %vm5281, %v5283, %v5279
        %v5285 = vmul.f32 1.0, %v5284
        %v5286 = vrcp.pop %v5184
        %v5287 = vmul.f32 %v5184, %v5286
        %v5288 = vsub.f32 1.0, %v5287
        %v5289 = vmul.f32 %v5286, %v5288
        %v5290 = vadd.f32 %v5286, %v5289
        %vm5291 = vweird.f32 %v5184
        %vm5292 = vweird.f32 %v5286
        %vm5293 = vmor %vm5291, %vm5292
        %v5294 = vsel %vm5293, %v5286, %v5290
        %v5295 = vand.u32 2147483647, %v5184
        %vm5296 = vcmp.eq.f32.partialorder %v5295, 8.507059e+37
        %v5297 = vand.u32 %v5184, 2147483648
        %v5298 = vor.u32 1.1754944e-38, %v5297
        %v5299 = vsel %vm5296, %v5298, %v5294
        %v5300 = vmul.f32 1.0, %v5299
        %v5301 = vrcp.pop %v5185
        %v5302 = vmul.f32 %v5185, %v5301
        %v5303 = vsub.f32 1.0, %v5302
        %v5304 = vmul.f32 %v5301, %v5303
        %v5305 = vadd.f32 %v5301, %v5304
        %vm5306 = vweird.f32 %v5185
        %vm5307 = vweird.f32 %v5301
        %vm5308 = vmor %vm5306, %vm5307
        %v5309 = vsel %vm5308, %v5301, %v5305
        %v5310 = vand.u32 2147483647, %v5185
        %vm5311 = vcmp.eq.f32.partialorder %v5310, 8.507059e+37
        %v5312 = vand.u32 %v5185, 2147483648
        %v5313 = vor.u32 1.1754944e-38, %v5312
        %v5314 = vsel %vm5311, %v5313, %v5309
        %v5315 = vmul.f32 1.0, %v5314
        %v5316 = vrcp.pop %v5186
        %v5317 = vmul.f32 %v5186, %v5316
        %v5318 = vsub.f32 1.0, %v5317
        %v5319 = vmul.f32 %v5316, %v5318
        %v5320 = vadd.f32 %v5316, %v5319
        %vm5321 = vweird.f32 %v5186
        %vm5322 = vweird.f32 %v5316
        %vm5323 = vmor %vm5321, %vm5322
        %v5324 = vsel %vm5323, %v5316, %v5320
        %v5325 = vand.u32 2147483647, %v5186
        %vm5326 = vcmp.eq.f32.partialorder %v5325, 8.507059e+37
        %v5327 = vand.u32 %v5186, 2147483648
        %v5328 = vor.u32 1.1754944e-38, %v5327
        %v5329 = vsel %vm5326, %v5328, %v5324
        %v5330 = vmul.f32 1.0, %v5329
        %v5331 = vrcp.pop %v5187
        %v5332 = vmul.f32 %v5187, %v5331
        %v5333 = vsub.f32 1.0, %v5332
        %v5334 = vmul.f32 %v5331, %v5333
        %v5335 = vadd.f32 %v5331, %v5334
        %vm5336 = vweird.f32 %v5187
        %vm5337 = vweird.f32 %v5331
        %vm5338 = vmor %vm5336, %vm5337
        %v5339 = vsel %vm5338, %v5331, %v5335
        %v5340 = vand.u32 2147483647, %v5187
        %vm5341 = vcmp.eq.f32.partialorder %v5340, 8.507059e+37
        %v5342 = vand.u32 %v5187, 2147483648
        %v5343 = vor.u32 1.1754944e-38, %v5342
        %v5344 = vsel %vm5341, %v5343, %v5339
        %v5345 = vmul.f32 1.0, %v5344
        %v5346 = vrcp.pop %v5188
        %v5347 = vmul.f32 %v5188, %v5346
        %v5348 = vsub.f32 1.0, %v5347
        %v5349 = vmul.f32 %v5346, %v5348
        %v5350 = vadd.f32 %v5346, %v5349
        %vm5351 = vweird.f32 %v5188
        %vm5352 = vweird.f32 %v5346
        %vm5353 = vmor %vm5351, %vm5352
        %v5354 = vsel %vm5353, %v5346, %v5350
        %v5355 = vand.u32 2147483647, %v5188
        %vm5356 = vcmp.eq.f32.partialorder %v5355, 8.507059e+37
        %v5357 = vand.u32 %v5188, 2147483648
        %v5358 = vor.u32 1.1754944e-38, %v5357
        %v5359 = vsel %vm5356, %v5358, %v5354
        %v5360 = vmul.f32 1.0, %v5359
        %v5361 = vrcp.pop %v5189
        %v5362 = vmul.f32 %v5189, %v5361
        %v5363 = vsub.f32 1.0, %v5362
        %v5364 = vmul.f32 %v5361, %v5363
        %v5365 = vadd.f32 %v5361, %v5364
        %vm5366 = vweird.f32 %v5189
        %vm5367 = vweird.f32 %v5361
        %vm5368 = vmor %vm5366, %vm5367
        %v5369 = vsel %vm5368, %v5361, %v5365
        %v5370 = vand.u32 2147483647, %v5189
        %vm5371 = vcmp.eq.f32.partialorder %v5370, 8.507059e+37
        %v5372 = vand.u32 %v5189, 2147483648
        %v5373 = vor.u32 1.1754944e-38, %v5372
        %v5374 = vsel %vm5371, %v5373, %v5369
        %v5375 = vmul.f32 1.0, %v5374
        %v5376 = vrcp.pop %v5190
        %v5377 = vmul.f32 %v5190, %v5376
        %v5378 = vsub.f32 1.0, %v5377
        %v5379 = vmul.f32 %v5376, %v5378
        %v5380 = vadd.f32 %v5376, %v5379
        %vm5381 = vweird.f32 %v5190
        %vm5382 = vweird.f32 %v5376
        %vm5383 = vmor %vm5381, %vm5382
        %v5384 = vsel %vm5383, %v5376, %v5380
        %v5385 = vand.u32 2147483647, %v5190
        %vm5386 = vcmp.eq.f32.partialorder %v5385, 8.507059e+37
        %v5387 = vand.u32 %v5190, 2147483648
        %v5388 = vor.u32 1.1754944e-38, %v5387
        %v5389 = vsel %vm5386, %v5388, %v5384
        %v5390 = vmul.f32 1.0, %v5389
        %v5391 = vrcp.pop %v5191
        %v5392 = vmul.f32 %v5191, %v5391
        %v5393 = vsub.f32 1.0, %v5392
        %v5394 = vmul.f32 %v5391, %v5393
        %v5395 = vadd.f32 %v5391, %v5394
        %vm5396 = vweird.f32 %v5191
        %vm5397 = vweird.f32 %v5391
        %vm5398 = vmor %vm5396, %vm5397
        %v5399 = vsel %vm5398, %v5391, %v5395
        %v5400 = vand.u32 2147483647, %v5191
        %vm5401 = vcmp.eq.f32.partialorder %v5400, 8.507059e+37
        %v5402 = vand.u32 %v5191, 2147483648
        %v5403 = vor.u32 1.1754944e-38, %v5402
        %v5404 = vsel %vm5401, %v5403, %v5399
        %v5405 = vmul.f32 1.0, %v5404
        %v5406 = vrcp.pop %v5192
        %v5407 = vmul.f32 %v5192, %v5406
        %v5408 = vsub.f32 1.0, %v5407
        %v5409 = vmul.f32 %v5406, %v5408
        %v5410 = vadd.f32 %v5406, %v5409
        %vm5411 = vweird.f32 %v5192
        %vm5412 = vweird.f32 %v5406
        %vm5413 = vmor %vm5411, %vm5412
        %v5414 = vsel %vm5413, %v5406, %v5410
        %v5415 = vand.u32 2147483647, %v5192
        %vm5416 = vcmp.eq.f32.partialorder %v5415, 8.507059e+37
        %v5417 = vand.u32 %v5192, 2147483648
        %v5418 = vor.u32 1.1754944e-38, %v5417
        %v5419 = vsel %vm5416, %v5418, %v5414
        %v5420 = vmul.f32 1.0, %v5419
        %v5421 = vrcp.pop %v5193
        %v5422 = vmul.f32 %v5193, %v5421
        %v5423 = vsub.f32 1.0, %v5422
        %v5424 = vmul.f32 %v5421, %v5423
        %v5425 = vadd.f32 %v5421, %v5424
        %vm5426 = vweird.f32 %v5193
        %vm5427 = vweird.f32 %v5421
        %vm5428 = vmor %vm5426, %vm5427
        %v5429 = vsel %vm5428, %v5421, %v5425
        %v5430 = vand.u32 2147483647, %v5193
        %vm5431 = vcmp.eq.f32.partialorder %v5430, 8.507059e+37
        %v5432 = vand.u32 %v5193, 2147483648
        %v5433 = vor.u32 1.1754944e-38, %v5432
        %v5434 = vsel %vm5431, %v5433, %v5429
        %v5435 = vmul.f32 1.0, %v5434
        %v5436 = vrcp.pop %v5194
        %v5437 = vmul.f32 %v5194, %v5436
        %v5438 = vsub.f32 1.0, %v5437
        %v5439 = vmul.f32 %v5436, %v5438
        %v5440 = vadd.f32 %v5436, %v5439
        %vm5441 = vweird.f32 %v5194
        %vm5442 = vweird.f32 %v5436
        %vm5443 = vmor %vm5441, %vm5442
        %v5444 = vsel %vm5443, %v5436, %v5440
        %v5445 = vand.u32 2147483647, %v5194
        %vm5446 = vcmp.eq.f32.partialorder %v5445, 8.507059e+37
        %v5447 = vand.u32 %v5194, 2147483648
        %v5448 = vor.u32 1.1754944e-38, %v5447
        %v5449 = vsel %vm5446, %v5448, %v5444
        %v5450 = vmul.f32 1.0, %v5449
        %v5451 = vrcp.pop %v5195
        %v5452 = vmul.f32 %v5195, %v5451
        %v5453 = vsub.f32 1.0, %v5452
        %v5454 = vmul.f32 %v5451, %v5453
        %v5455 = vadd.f32 %v5451, %v5454
        %vm5456 = vweird.f32 %v5195
        %vm5457 = vweird.f32 %v5451
        %vm5458 = vmor %vm5456, %vm5457
        %v5459 = vsel %vm5458, %v5451, %v5455
        %v5460 = vand.u32 2147483647, %v5195
        %vm5461 = vcmp.eq.f32.partialorder %v5460, 8.507059e+37
        %v5462 = vand.u32 %v5195, 2147483648
        %v5463 = vor.u32 1.1754944e-38, %v5462
        %v5464 = vsel %vm5461, %v5463, %v5459
        %v5465 = vmul.f32 1.0, %v5464
        %v5466 = vrcp.pop %v5196
        %v5467 = vmul.f32 %v5196, %v5466
        %v5468 = vsub.f32 1.0, %v5467
        %v5469 = vmul.f32 %v5466, %v5468
        %v5470 = vadd.f32 %v5466, %v5469
        %vm5471 = vweird.f32 %v5196
        %vm5472 = vweird.f32 %v5466
        %vm5473 = vmor %vm5471, %vm5472
        %v5474 = vsel %vm5473, %v5466, %v5470
        %v5475 = vand.u32 2147483647, %v5196
        %vm5476 = vcmp.eq.f32.partialorder %v5475, 8.507059e+37
        %v5477 = vand.u32 %v5196, 2147483648
        %v5478 = vor.u32 1.1754944e-38, %v5477
        %v5479 = vsel %vm5476, %v5478, %v5474
        %v5480 = vmul.f32 1.0, %v5479
        %v5481 = vrcp.pop %v5197
        %v5482 = vmul.f32 %v5197, %v5481
        %v5483 = vsub.f32 1.0, %v5482
        %v5484 = vmul.f32 %v5481, %v5483
        %v5485 = vadd.f32 %v5481, %v5484
        %vm5486 = vweird.f32 %v5197
        %vm5487 = vweird.f32 %v5481
        %vm5488 = vmor %vm5486, %vm5487
        %v5489 = vsel %vm5488, %v5481, %v5485
        %v5490 = vand.u32 2147483647, %v5197
        %vm5491 = vcmp.eq.f32.partialorder %v5490, 8.507059e+37
        %v5492 = vand.u32 %v5197, 2147483648
        %v5493 = vor.u32 1.1754944e-38, %v5492
        %v5494 = vsel %vm5491, %v5493, %v5489
        %v5495 = vmul.f32 1.0, %v5494
        %v5496 = vrcp.pop %v5198
        %v5497 = vmul.f32 %v5198, %v5496
        %v5498 = vsub.f32 1.0, %v5497
        %v5499 = vmul.f32 %v5496, %v5498
        %v5500 = vadd.f32 %v5496, %v5499
        %vm5501 = vweird.f32 %v5198
        %vm5502 = vweird.f32 %v5496
        %vm5503 = vmor %vm5501, %vm5502
        %v5504 = vsel %vm5503, %v5496, %v5500
        %v5505 = vand.u32 2147483647, %v5198
        %vm5506 = vcmp.eq.f32.partialorder %v5505, 8.507059e+37
        %v5507 = vand.u32 %v5198, 2147483648
        %v5508 = vor.u32 1.1754944e-38, %v5507
        %v5509 = vsel %vm5506, %v5508, %v5504
        %v5510 = vmul.f32 1.0, %v5509
        %v5511 = vrcp.pop %v5199
        %v5512 = vmul.f32 %v5199, %v5511
        %v5513 = vsub.f32 1.0, %v5512
        %v5514 = vmul.f32 %v5511, %v5513
        %v5515 = vadd.f32 %v5511, %v5514
        %vm5516 = vweird.f32 %v5199
        %vm5517 = vweird.f32 %v5511
        %vm5518 = vmor %vm5516, %vm5517
        %v5519 = vsel %vm5518, %v5511, %v5515
        %v5520 = vand.u32 2147483647, %v5199
        %vm5521 = vcmp.eq.f32.partialorder %v5520, 8.507059e+37
        %v5522 = vand.u32 %v5199, 2147483648
        %v5523 = vor.u32 1.1754944e-38, %v5522
        %v5524 = vsel %vm5521, %v5523, %v5519
        %v5525 = vmul.f32 1.0, %v5524
        %v5526 = vrcp.pop %v5200
        %v5527 = vmul.f32 %v5200, %v5526
        %v5528 = vsub.f32 1.0, %v5527
        %v5529 = vmul.f32 %v5526, %v5528
        %v5530 = vadd.f32 %v5526, %v5529
        %vm5531 = vweird.f32 %v5200
        %vm5532 = vweird.f32 %v5526
        %vm5533 = vmor %vm5531, %vm5532
        %v5534 = vsel %vm5533, %v5526, %v5530
        %v5535 = vand.u32 2147483647, %v5200
        %vm5536 = vcmp.eq.f32.partialorder %v5535, 8.507059e+37
        %v5537 = vand.u32 %v5200, 2147483648
        %v5538 = vor.u32 1.1754944e-38, %v5537
        %v5539 = vsel %vm5536, %v5538, %v5534
        %v5540 = vmul.f32 1.0, %v5539
        %v5541 = vrcp.pop %v5201
        %v5542 = vmul.f32 %v5201, %v5541
        %v5543 = vsub.f32 1.0, %v5542
        %v5544 = vmul.f32 %v5541, %v5543
        %v5545 = vadd.f32 %v5541, %v5544
        %vm5546 = vweird.f32 %v5201
        %vm5547 = vweird.f32 %v5541
        %vm5548 = vmor %vm5546, %vm5547
        %v5549 = vsel %vm5548, %v5541, %v5545
        %v5550 = vand.u32 2147483647, %v5201
        %vm5551 = vcmp.eq.f32.partialorder %v5550, 8.507059e+37
        %v5552 = vand.u32 %v5201, 2147483648
        %v5553 = vor.u32 1.1754944e-38, %v5552
        %v5554 = vsel %vm5551, %v5553, %v5549
        %v5555 = vmul.f32 1.0, %v5554
        %v5556 = vrcp.pop %v5202
        %v5557 = vmul.f32 %v5202, %v5556
        %v5558 = vsub.f32 1.0, %v5557
        %v5559 = vmul.f32 %v5556, %v5558
        %v5560 = vadd.f32 %v5556, %v5559
        %vm5561 = vweird.f32 %v5202
        %vm5562 = vweird.f32 %v5556
        %vm5563 = vmor %vm5561, %vm5562
        %v5564 = vsel %vm5563, %v5556, %v5560
        %v5565 = vand.u32 2147483647, %v5202
        %vm5566 = vcmp.eq.f32.partialorder %v5565, 8.507059e+37
        %v5567 = vand.u32 %v5202, 2147483648
        %v5568 = vor.u32 1.1754944e-38, %v5567
        %v5569 = vsel %vm5566, %v5568, %v5564
        %v5570 = vmul.f32 1.0, %v5569
        %v5571 = vrcp.pop %v5203
        %v5572 = vmul.f32 %v5203, %v5571
        %v5573 = vsub.f32 1.0, %v5572
        %v5574 = vmul.f32 %v5571, %v5573
        %v5575 = vadd.f32 %v5571, %v5574
        %vm5576 = vweird.f32 %v5203
        %vm5577 = vweird.f32 %v5571
        %vm5578 = vmor %vm5576, %vm5577
        %v5579 = vsel %vm5578, %v5571, %v5575
        %v5580 = vand.u32 2147483647, %v5203
        %vm5581 = vcmp.eq.f32.partialorder %v5580, 8.507059e+37
        %v5582 = vand.u32 %v5203, 2147483648
        %v5583 = vor.u32 1.1754944e-38, %v5582
        %v5584 = vsel %vm5581, %v5583, %v5579
        %v5585 = vmul.f32 1.0, %v5584
        %v5586 = vrcp.pop %v5204
        %v5587 = vmul.f32 %v5204, %v5586
        %v5588 = vsub.f32 1.0, %v5587
        %v5589 = vmul.f32 %v5586, %v5588
        %v5590 = vadd.f32 %v5586, %v5589
        %vm5591 = vweird.f32 %v5204
        %vm5592 = vweird.f32 %v5586
        %vm5593 = vmor %vm5591, %vm5592
        %v5594 = vsel %vm5593, %v5586, %v5590
        %v5595 = vand.u32 2147483647, %v5204
        %vm5596 = vcmp.eq.f32.partialorder %v5595, 8.507059e+37
        %v5597 = vand.u32 %v5204, 2147483648
        %v5598 = vor.u32 1.1754944e-38, %v5597
        %v5599 = vsel %vm5596, %v5598, %v5594
        %v5600 = vmul.f32 1.0, %v5599
        %v5601 = vrcp.pop %v5205
        %v5602 = vmul.f32 %v5205, %v5601
        %v5603 = vsub.f32 1.0, %v5602
        %v5604 = vmul.f32 %v5601, %v5603
        %v5605 = vadd.f32 %v5601, %v5604
        %vm5606 = vweird.f32 %v5205
        %vm5607 = vweird.f32 %v5601
        %vm5608 = vmor %vm5606, %vm5607
        %v5609 = vsel %vm5608, %v5601, %v5605
        %v5610 = vand.u32 2147483647, %v5205
        %vm5611 = vcmp.eq.f32.partialorder %v5610, 8.507059e+37
        %v5612 = vand.u32 %v5205, 2147483648
        %v5613 = vor.u32 1.1754944e-38, %v5612
        %v5614 = vsel %vm5611, %v5613, %v5609
        %v5615 = vmul.f32 1.0, %v5614
        %v5616 = vrcp.pop %v5206
        %v5617 = vmul.f32 %v5206, %v5616
        %v5618 = vsub.f32 1.0, %v5617
        %v5619 = vmul.f32 %v5616, %v5618
        %v5620 = vadd.f32 %v5616, %v5619
        %vm5621 = vweird.f32 %v5206
        %vm5622 = vweird.f32 %v5616
        %vm5623 = vmor %vm5621, %vm5622
        %v5624 = vsel %vm5623, %v5616, %v5620
        %v5625 = vand.u32 2147483647, %v5206
        %vm5626 = vcmp.eq.f32.partialorder %v5625, 8.507059e+37
        %v5627 = vand.u32 %v5206, 2147483648
        %v5628 = vor.u32 1.1754944e-38, %v5627
        %v5629 = vsel %vm5626, %v5628, %v5624
        %v5630 = vmul.f32 1.0, %v5629
        %v5631 = vrcp.pop %v5207
        %v5632 = vmul.f32 %v5207, %v5631
        %v5633 = vsub.f32 1.0, %v5632
        %v5634 = vmul.f32 %v5631, %v5633
        %v5635 = vadd.f32 %v5631, %v5634
        %vm5636 = vweird.f32 %v5207
        %vm5637 = vweird.f32 %v5631
        %vm5638 = vmor %vm5636, %vm5637
        %v5639 = vsel %vm5638, %v5631, %v5635
        %v5640 = vand.u32 2147483647, %v5207
        %vm5641 = vcmp.eq.f32.partialorder %v5640, 8.507059e+37
        %v5642 = vand.u32 %v5207, 2147483648
        %v5643 = vor.u32 1.1754944e-38, %v5642
        %v5644 = vsel %vm5641, %v5643, %v5639
        %v5645 = vmul.f32 1.0, %v5644
        %v5646 = vrcp.pop %v5208
        %v5647 = vmul.f32 %v5208, %v5646
        %v5648 = vsub.f32 1.0, %v5647
        %v5649 = vmul.f32 %v5646, %v5648
        %v5650 = vadd.f32 %v5646, %v5649
        %vm5651 = vweird.f32 %v5208
        %vm5652 = vweird.f32 %v5646
        %vm5653 = vmor %vm5651, %vm5652
        %v5654 = vsel %vm5653, %v5646, %v5650
        %v5655 = vand.u32 2147483647, %v5208
        %vm5656 = vcmp.eq.f32.partialorder %v5655, 8.507059e+37
        %v5657 = vand.u32 %v5208, 2147483648
        %v5658 = vor.u32 1.1754944e-38, %v5657
        %v5659 = vsel %vm5656, %v5658, %v5654
        %v5660 = vmul.f32 1.0, %v5659
        %v5661 = vrcp.pop %v5209
        %v5662 = vmul.f32 %v5209, %v5661
        %v5663 = vsub.f32 1.0, %v5662
        %v5664 = vmul.f32 %v5661, %v5663
        %v5665 = vadd.f32 %v5661, %v5664
        %vm5666 = vweird.f32 %v5209
        %vm5667 = vweird.f32 %v5661
        %vm5668 = vmor %vm5666, %vm5667
        %v5669 = vsel %vm5668, %v5661, %v5665
        %v5670 = vand.u32 2147483647, %v5209
        %vm5671 = vcmp.eq.f32.partialorder %v5670, 8.507059e+37
        %v5672 = vand.u32 %v5209, 2147483648
        %v5673 = vor.u32 1.1754944e-38, %v5672
        %v5674 = vsel %vm5671, %v5673, %v5669
        %v5675 = vmul.f32 1.0, %v5674
        %v5676 = vrcp.pop %v5210
        %v5677 = vmul.f32 %v5210, %v5676
        %v5678 = vsub.f32 1.0, %v5677
        %v5679 = vmul.f32 %v5676, %v5678
        %v5680 = vadd.f32 %v5676, %v5679
        %vm5681 = vweird.f32 %v5210
        %vm5682 = vweird.f32 %v5676
        %vm5683 = vmor %vm5681, %vm5682
        %v5684 = vsel %vm5683, %v5676, %v5680
        %v5685 = vand.u32 2147483647, %v5210
        %vm5686 = vcmp.eq.f32.partialorder %v5685, 8.507059e+37
        %v5687 = vand.u32 %v5210, 2147483648
        %v5688 = vor.u32 1.1754944e-38, %v5687
        %v5689 = vsel %vm5686, %v5688, %v5684
        %v5690 = vmul.f32 1.0, %v5689
        %v5691 = vmul.f32 %v5051, %v5225
        %v5692 = vmul.f32 %v5052, %v5240
        %v5693 = vmul.f32 %v5053, %v5255
        %v5694 = vmul.f32 %v5054, %v5270
        %v5695 = vmul.f32 %v5055, %v5285
        %v5696 = vmul.f32 %v5056, %v5300
        %v5697 = vmul.f32 %v5057, %v5315
        %v5698 = vmul.f32 %v5058, %v5330
        %v5699 = vmul.f32 %v5059, %v5345
        %v5700 = vmul.f32 %v5060, %v5360
        %v5701 = vmul.f32 %v5061, %v5375
        %v5702 = vmul.f32 %v5062, %v5390
        %v5703 = vmul.f32 %v5063, %v5405
        %v5704 = vmul.f32 %v5064, %v5420
        %v5705 = vmul.f32 %v5065, %v5435
        %v5706 = vmul.f32 %v5066, %v5450
        %v5707 = vmul.f32 %v5067, %v5465
        %v5708 = vmul.f32 %v5068, %v5480
        %v5709 = vmul.f32 %v5069, %v5495
        %v5710 = vmul.f32 %v5070, %v5510
        %v5711 = vmul.f32 %v5071, %v5525
        %v5712 = vmul.f32 %v5072, %v5540
        %v5713 = vmul.f32 %v5073, %v5555
        %v5714 = vmul.f32 %v5074, %v5570
        %v5715 = vmul.f32 %v5075, %v5585
        %v5716 = vmul.f32 %v5076, %v5600
        %v5717 = vmul.f32 %v5077, %v5615
        %v5718 = vmul.f32 %v5078, %v5630
        %v5719 = vmul.f32 %v5079, %v5645
        %v5720 = vmul.f32 %v5080, %v5660
        %v5721 = vmul.f32 %v5081, %v5675
        %v5722 = vmul.f32 %v5082, %v5690
        %v5723 = vpack.c.bf16 %v5691, %v5691
        %v5724 = vpack.c.bf16 %v5692, %v5692
        %v5725 = vpack.c.bf16 %v5693, %v5693
        %v5726 = vpack.c.bf16 %v5694, %v5694
        %v5727 = vpack.c.bf16 %v5695, %v5695
        %v5728 = vpack.c.bf16 %v5696, %v5696
        %v5729 = vpack.c.bf16 %v5697, %v5697
        %v5730 = vpack.c.bf16 %v5698, %v5698
        %v5731 = vpack.c.bf16 %v5699, %v5699
        %v5732 = vpack.c.bf16 %v5700, %v5700
        %v5733 = vpack.c.bf16 %v5701, %v5701
        %v5734 = vpack.c.bf16 %v5702, %v5702
        %v5735 = vpack.c.bf16 %v5703, %v5703
        %v5736 = vpack.c.bf16 %v5704, %v5704
        %v5737 = vpack.c.bf16 %v5705, %v5705
        %v5738 = vpack.c.bf16 %v5706, %v5706
        %v5739 = vpack.c.bf16 %v5707, %v5707
        %v5740 = vpack.c.bf16 %v5708, %v5708
        %v5741 = vpack.c.bf16 %v5709, %v5709
        %v5742 = vpack.c.bf16 %v5710, %v5710
        %v5743 = vpack.c.bf16 %v5711, %v5711
        %v5744 = vpack.c.bf16 %v5712, %v5712
        %v5745 = vpack.c.bf16 %v5713, %v5713
        %v5746 = vpack.c.bf16 %v5714, %v5714
        %v5747 = vpack.c.bf16 %v5715, %v5715
        %v5748 = vpack.c.bf16 %v5716, %v5716
        %v5749 = vpack.c.bf16 %v5717, %v5717
        %v5750 = vpack.c.bf16 %v5718, %v5718
        %v5751 = vpack.c.bf16 %v5719, %v5719
        %v5752 = vpack.c.bf16 %v5720, %v5720
        %v5753 = vpack.c.bf16 %v5721, %v5721
        %v5754 = vpack.c.bf16 %v5722, %v5722
        %v5787 = vunpack.c.l.b16 %v5723
        %v5788 = vunpack.c.l.b16 %v5724
        %v5789 = vunpack.c.l.b16 %v5725
        %v5790 = vunpack.c.l.b16 %v5726
        %v5791 = vunpack.c.l.b16 %v5727
        %v5792 = vunpack.c.l.b16 %v5728
        %v5793 = vunpack.c.l.b16 %v5729
        %v5794 = vunpack.c.l.b16 %v5730
        %v5795 = vunpack.c.l.b16 %v5731
        %v5796 = vunpack.c.l.b16 %v5732
        %v5797 = vunpack.c.l.b16 %v5733
        %v5798 = vunpack.c.l.b16 %v5734
        %v5799 = vunpack.c.l.b16 %v5735
        %v5800 = vunpack.c.l.b16 %v5736
        %v5801 = vunpack.c.l.b16 %v5737
        %v5802 = vunpack.c.l.b16 %v5738
        %v5803 = vunpack.c.l.b16 %v5739
        %v5804 = vunpack.c.l.b16 %v5740
        %v5805 = vunpack.c.l.b16 %v5741
        %v5806 = vunpack.c.l.b16 %v5742
        %v5807 = vunpack.c.l.b16 %v5743
        %v5808 = vunpack.c.l.b16 %v5744
        %v5809 = vunpack.c.l.b16 %v5745
        %v5810 = vunpack.c.l.b16 %v5746
        %v5811 = vunpack.c.l.b16 %v5747
        %v5812 = vunpack.c.l.b16 %v5748
        %v5813 = vunpack.c.l.b16 %v5749
        %v5814 = vunpack.c.l.b16 %v5750
        %v5815 = vunpack.c.l.b16 %v5751
        %v5816 = vunpack.c.l.b16 %v5752
        %v5817 = vunpack.c.l.b16 %v5753
        %v5818 = vunpack.c.l.b16 %v5754
        %v5819 = vpack.c.b16 %v5788, %v5787
        %v5820 = vpack.c.b16 %v5790, %v5789
        %v5821 = vpack.c.b16 %v5792, %v5791
        %v5822 = vpack.c.b16 %v5794, %v5793
        %v5823 = vpack.c.b16 %v5796, %v5795
        %v5824 = vpack.c.b16 %v5798, %v5797
        %v5825 = vpack.c.b16 %v5800, %v5799
        %v5826 = vpack.c.b16 %v5802, %v5801
        %v5827 = vpack.c.b16 %v5804, %v5803
        %v5828 = vpack.c.b16 %v5806, %v5805
        %v5829 = vpack.c.b16 %v5808, %v5807
        %v5830 = vpack.c.b16 %v5810, %v5809
        %v5831 = vpack.c.b16 %v5812, %v5811
        %v5832 = vpack.c.b16 %v5814, %v5813
        %v5833 = vpack.c.b16 %v5816, %v5815
        %v5834 = vpack.c.b16 %v5818, %v5817
        %v5836 = vshrl.u32 %v5819, 16
        %v5838 = vrot.slane %v5836, 7
        %v5839 = vshll.u32 %v5819, 16
        %v5841 = vor.u32 %v5838, %v5839
        %v5843 = vshrl.u32 %v5820, 16
        %v5845 = vrot.slane %v5843, 7
        %v5846 = vshll.u32 %v5820, 16
        %v5848 = vor.u32 %v5845, %v5846
        %v5849 = vsel %vm2154, %v5838, %v5848
        %v5851 = vshrl.u32 %v5821, 16
        %v5853 = vrot.slane %v5851, 7
        %v5854 = vshll.u32 %v5821, 16
        %v5856 = vor.u32 %v5853, %v5854
        %v5857 = vsel %vm2154, %v5845, %v5856
        %v5859 = vshrl.u32 %v5822, 16
        %v5861 = vrot.slane %v5859, 7
        %v5862 = vshll.u32 %v5822, 16
        %v5864 = vor.u32 %v5861, %v5862
        %v5865 = vsel %vm2154, %v5853, %v5864
        %v5867 = vshrl.u32 %v5823, 16
        %v5869 = vrot.slane %v5867, 7
        %v5870 = vshll.u32 %v5823, 16
        %v5872 = vor.u32 %v5869, %v5870
        %v5873 = vsel %vm2154, %v5861, %v5872
        %v5875 = vshrl.u32 %v5824, 16
        %v5877 = vrot.slane %v5875, 7
        %v5878 = vshll.u32 %v5824, 16
        %v5880 = vor.u32 %v5877, %v5878
        %v5881 = vsel %vm2154, %v5869, %v5880
        %v5883 = vshrl.u32 %v5825, 16
        %v5885 = vrot.slane %v5883, 7
        %v5886 = vshll.u32 %v5825, 16
        %v5888 = vor.u32 %v5885, %v5886
        %v5889 = vsel %vm2154, %v5877, %v5888
        %v5891 = vshrl.u32 %v5826, 16
        %v5893 = vrot.slane %v5891, 7
        %v5894 = vshll.u32 %v5826, 16
        %v5896 = vor.u32 %v5893, %v5894
        %v5897 = vsel %vm2154, %v5885, %v5896
        %v5899 = vshrl.u32 %v5827, 16
        %v5901 = vrot.slane %v5899, 7
        %v5902 = vshll.u32 %v5827, 16
        %v5904 = vor.u32 %v5901, %v5902
        %v5905 = vsel %vm2154, %v5893, %v5904
        %v5907 = vshrl.u32 %v5828, 16
        %v5909 = vrot.slane %v5907, 7
        %v5910 = vshll.u32 %v5828, 16
        %v5912 = vor.u32 %v5909, %v5910
        %v5913 = vsel %vm2154, %v5901, %v5912
        %v5915 = vshrl.u32 %v5829, 16
        %v5917 = vrot.slane %v5915, 7
        %v5918 = vshll.u32 %v5829, 16
        %v5920 = vor.u32 %v5917, %v5918
        %v5921 = vsel %vm2154, %v5909, %v5920
        %v5923 = vshrl.u32 %v5830, 16
        %v5925 = vrot.slane %v5923, 7
        %v5926 = vshll.u32 %v5830, 16
        %v5928 = vor.u32 %v5925, %v5926
        %v5929 = vsel %vm2154, %v5917, %v5928
        %v5931 = vshrl.u32 %v5831, 16
        %v5933 = vrot.slane %v5931, 7
        %v5934 = vshll.u32 %v5831, 16
        %v5936 = vor.u32 %v5933, %v5934
        %v5937 = vsel %vm2154, %v5925, %v5936
        %v5939 = vshrl.u32 %v5832, 16
        %v5941 = vrot.slane %v5939, 7
        %v5942 = vshll.u32 %v5832, 16
        %v5944 = vor.u32 %v5941, %v5942
        %v5945 = vsel %vm2154, %v5933, %v5944
        %v5947 = vshrl.u32 %v5833, 16
        %v5949 = vrot.slane %v5947, 7
        %v5950 = vshll.u32 %v5833, 16
        %v5952 = vor.u32 %v5949, %v5950
        %v5953 = vsel %vm2154, %v5941, %v5952
        %v5955 = vshrl.u32 %v5834, 16
        %v5957 = vrot.slane %v5955, 7
        %v5958 = vshll.u32 %v5834, 16
        %v5960 = vor.u32 %v5957, %v5958
        %v5961 = vsel %vm2154, %v5949, %v5960
        %v5979 = vsel %vm2300, 0, %v5841
        %v5980 = vsel %vm2300, %v5957, 0
        %v5981 = vsel %vm2530, %v5979, 0
        %v5982 = vsel %vm2537, %v5849, 0
        %v5983 = vsel %vm2544, %v5857, 0
        %v5984 = vsel %vm2551, %v5865, 0
        %v5985 = vsel %vm2558, %v5873, 0
        %v5986 = vsel %vm2565, %v5881, 0
        %v5987 = vsel %vm2572, %v5889, 0
        %v5988 = vsel %vm2579, %v5897, 0
        %v5989 = vsel %vm2586, %v5905, 0
        %v5990 = vsel %vm2593, %v5913, 0
        %v5991 = vsel %vm2600, %v5921, 0
        %v5992 = vsel %vm2607, %v5929, 0
        %v5993 = vsel %vm2614, %v5937, 0
        %v5994 = vsel %vm2621, %v5945, 0
        %v5995 = vsel %vm2628, %v5953, 0
        %v5996 = vsel %vm2635, %v5961, 0
        %v5997 = vsel %vm2642, %v5980, 0
        %v5998 = vsel %vm2887, %v5979, 0
        %v5999 = vsel %vm2894, %v5849, 0
        %v6000 = vsel %vm2901, %v5857, 0
        %v6001 = vsel %vm2908, %v5865, 0
        %v6002 = vsel %vm2915, %v5873, 0
        %v6003 = vsel %vm2922, %v5881, 0
        %v6004 = vsel %vm2929, %v5889, 0
        %v6005 = vsel %vm2936, %v5897, 0
        %v6006 = vsel %vm2943, %v5905, 0
        %v6007 = vsel %vm2950, %v5913, 0
        %v6008 = vsel %vm2957, %v5921, 0
        %v6009 = vsel %vm2964, %v5929, 0
        %v6010 = vsel %vm2971, %v5937, 0
        %v6011 = vsel %vm2978, %v5945, 0
        %v6012 = vsel %vm2985, %v5953, 0
        %v6013 = vsel %vm2992, %v5961, 0
        %v6014 = vsel %vm2999, %v5980, 0
        %v6015 = vld [vmem:[%s10] sm:$0xf]
        %v6016 = vld [vmem:[%s10 + $0x4] sm:$0xf]
        %v6017 = vld [vmem:[%s10 + $0x8] sm:$0xf]
        %v6018 = vld [vmem:[%s10 + $0xc] sm:$0xf]
        %v6019 = vld [vmem:[%s10 + $0x10] sm:$0xf]
        %v6020 = vld [vmem:[%s10 + $0x14] sm:$0xf]
        %v6021 = vld [vmem:[%s10 + $0x18] sm:$0xf]
        %v6022 = vld [vmem:[%s10 + $0x1c] sm:$0xf]
        %v6023 = vld [vmem:[%s10 + $0x20] sm:$0xf]
        %v6024 = vld [vmem:[%s10 + $0x24] sm:$0xf]
        %v6025 = vld [vmem:[%s10 + $0x28] sm:$0xf]
        %v6026 = vld [vmem:[%s10 + $0x2c] sm:$0xf]
        %v6027 = vld [vmem:[%s10 + $0x30] sm:$0xf]
        %v6028 = vld [vmem:[%s10 + $0x34] sm:$0xf]
        %v6029 = vld [vmem:[%s10 + $0x38] sm:$0xf]
        %v6030 = vld [vmem:[%s10 + $0x3c] sm:$0xf]
        %s6031 = scalar_lea.vmem %s10, 64
        %v6032 = vld [vmem:[%s6031] sm:$0xf]
        %v6033 = vld [vmem:[%s6031 + $0x4] sm:$0xf]
        %v6034 = vld [vmem:[%s6031 + $0x8] sm:$0xf]
        %v6035 = vld [vmem:[%s6031 + $0xc] sm:$0xf]
        %v6036 = vld [vmem:[%s6031 + $0x10] sm:$0xf]
        %v6037 = vld [vmem:[%s6031 + $0x14] sm:$0xf]
        %v6038 = vld [vmem:[%s6031 + $0x18] sm:$0xf]
        %v6039 = vld [vmem:[%s6031 + $0x1c] sm:$0xf]
        %v6040 = vld [vmem:[%s6031 + $0x20] sm:$0xf]
        %v6041 = vld [vmem:[%s6031 + $0x24] sm:$0xf]
        %v6042 = vld [vmem:[%s6031 + $0x28] sm:$0xf]
        %v6043 = vld [vmem:[%s6031 + $0x2c] sm:$0xf]
        %v6044 = vld [vmem:[%s6031 + $0x30] sm:$0xf]
        %v6045 = vld [vmem:[%s6031 + $0x34] sm:$0xf]
        %v6046 = vld [vmem:[%s6031 + $0x38] sm:$0xf]
        %v6047 = vld [vmem:[%s6031 + $0x3c] sm:$0xf]
        %v6049 = vshll.u32 %v5979, 16
        %v6051 = vrot.slane %v6049, 1
        %v6052 = vsel %vm3034, %v3041, %v6051
        %v6053 = vshrl.u32 %v5979, 16
        %v6055 = vor.u32 %v6053, %v6051
        %v6057 = vshll.u32 %v5849, 16
        %v6059 = vrot.slane %v6057, 1
        %v6060 = vsel %vm3034, %v6055, %v6059
        %v6061 = vshrl.u32 %v5849, 16
        %v6063 = vor.u32 %v6061, %v6059
        %v6065 = vshll.u32 %v5857, 16
        %v6067 = vrot.slane %v6065, 1
        %v6068 = vsel %vm3034, %v6063, %v6067
        %v6069 = vshrl.u32 %v5857, 16
        %v6071 = vor.u32 %v6069, %v6067
        %v6073 = vshll.u32 %v5865, 16
        %v6075 = vrot.slane %v6073, 1
        %v6076 = vsel %vm3034, %v6071, %v6075
        %v6077 = vshrl.u32 %v5865, 16
        %v6079 = vor.u32 %v6077, %v6075
        %v6081 = vshll.u32 %v5873, 16
        %v6083 = vrot.slane %v6081, 1
        %v6084 = vsel %vm3034, %v6079, %v6083
        %v6085 = vshrl.u32 %v5873, 16
        %v6087 = vor.u32 %v6085, %v6083
        %v6089 = vshll.u32 %v5881, 16
        %v6091 = vrot.slane %v6089, 1
        %v6092 = vsel %vm3034, %v6087, %v6091
        %v6093 = vshrl.u32 %v5881, 16
        %v6095 = vor.u32 %v6093, %v6091
        %v6097 = vshll.u32 %v5889, 16
        %v6099 = vrot.slane %v6097, 1
        %v6100 = vsel %vm3034, %v6095, %v6099
        %v6101 = vshrl.u32 %v5889, 16
        %v6103 = vor.u32 %v6101, %v6099
        %v6105 = vshll.u32 %v5897, 16
        %v6107 = vrot.slane %v6105, 1
        %v6108 = vsel %vm3034, %v6103, %v6107
        %v6109 = vshrl.u32 %v5897, 16
        %v6111 = vor.u32 %v6109, %v6107
        %v6113 = vshll.u32 %v5905, 16
        %v6115 = vrot.slane %v6113, 1
        %v6116 = vsel %vm3034, %v6111, %v6115
        %v6117 = vshrl.u32 %v5905, 16
        %v6119 = vor.u32 %v6117, %v6115
        %v6121 = vshll.u32 %v5913, 16
        %v6123 = vrot.slane %v6121, 1
        %v6124 = vsel %vm3034, %v6119, %v6123
        %v6125 = vshrl.u32 %v5913, 16
        %v6127 = vor.u32 %v6125, %v6123
        %v6129 = vshll.u32 %v5921, 16
        %v6131 = vrot.slane %v6129, 1
        %v6132 = vsel %vm3034, %v6127, %v6131
        %v6133 = vshrl.u32 %v5921, 16
        %v6135 = vor.u32 %v6133, %v6131
        %v6137 = vshll.u32 %v5929, 16
        %v6139 = vrot.slane %v6137, 1
        %v6140 = vsel %vm3034, %v6135, %v6139
        %v6141 = vshrl.u32 %v5929, 16
        %v6143 = vor.u32 %v6141, %v6139
        %v6145 = vshll.u32 %v5937, 16
        %v6147 = vrot.slane %v6145, 1
        %v6148 = vsel %vm3034, %v6143, %v6147
        %v6149 = vshrl.u32 %v5937, 16
        %v6151 = vor.u32 %v6149, %v6147
        %v6153 = vshll.u32 %v5945, 16
        %v6155 = vrot.slane %v6153, 1
        %v6156 = vsel %vm3034, %v6151, %v6155
        %v6157 = vshrl.u32 %v5945, 16
        %v6159 = vor.u32 %v6157, %v6155
        %v6161 = vshll.u32 %v5953, 16
        %v6163 = vrot.slane %v6161, 1
        %v6164 = vsel %vm3034, %v6159, %v6163
        %v6165 = vshrl.u32 %v5953, 16
        %v6167 = vor.u32 %v6165, %v6163
        %v6169 = vshll.u32 %v5961, 16
        %v6171 = vrot.slane %v6169, 1
        %v6172 = vsel %vm3034, %v6167, %v6171
        %v6205 = vunpack.c.l.b16 %v6032
        %v6206 = vunpack.c.l.b16 %v6033
        %v6207 = vunpack.c.l.b16 %v6034
        %v6208 = vunpack.c.l.b16 %v6035
        %v6209 = vunpack.c.l.b16 %v6036
        %v6210 = vunpack.c.l.b16 %v6037
        %v6211 = vunpack.c.l.b16 %v6038
        %v6212 = vunpack.c.l.b16 %v6039
        %v6213 = vunpack.c.l.b16 %v6040
        %v6214 = vunpack.c.l.b16 %v6041
        %v6215 = vunpack.c.l.b16 %v6042
        %v6216 = vunpack.c.l.b16 %v6043
        %v6217 = vunpack.c.l.b16 %v6044
        %v6218 = vunpack.c.l.b16 %v6045
        %v6219 = vunpack.c.l.b16 %v6046
        %v6220 = vunpack.c.l.b16 %v6047
        %v6221 = vpack.c.b16 %v6206, %v6205
        %v6222 = vpack.c.b16 %v6208, %v6207
        %v6223 = vpack.c.b16 %v6210, %v6209
        %v6224 = vpack.c.b16 %v6212, %v6211
        %v6225 = vpack.c.b16 %v6214, %v6213
        %v6226 = vpack.c.b16 %v6216, %v6215
        %v6227 = vpack.c.b16 %v6218, %v6217
        %v6228 = vpack.c.b16 %v6220, %v6219
        %6237 = vmatpush.bf16.msra.mxu0 %v6228
        %6238 = vmatpush.bf16.msra.mxu0 %v6227
        %6239 = vmatpush.bf16.msra.mxu0 %v6226
        %6240 = vmatpush.bf16.msra.mxu0 %v6225
        %6241 = vmatpush.bf16.msra.mxu0 %v6224
        %6242 = vmatpush.bf16.msra.mxu0 %v6223
        %6243 = vmatpush.bf16.msra.mxu0 %v6222
        %6244 = vmatpush.bf16.msra.mxu0 %v6221
        %6245 = vmatmul.bf16.gmra.mxu0 %v6052
        %v6246 = vpop.f32.mrf.mxu0
        %v6247 = vadd.f32 0.0, %v6246
        %v6248 = vpop.f32.mrf.mxu0
        %v6249 = vadd.f32 0.0, %v6248
        %6250 = vmatmul.bf16.gmra.mxu0 %v6060
        %v6251 = vpop.f32.mrf.mxu0
        %v6252 = vadd.f32 0.0, %v6251
        %v6253 = vpop.f32.mrf.mxu0
        %v6254 = vadd.f32 0.0, %v6253
        %6255 = vmatmul.bf16.gmra.mxu0 %v6068
        %v6256 = vpop.f32.mrf.mxu0
        %v6257 = vadd.f32 0.0, %v6256
        %v6258 = vpop.f32.mrf.mxu0
        %v6259 = vadd.f32 0.0, %v6258
        %6260 = vmatmul.bf16.gmra.mxu0 %v6076
        %v6261 = vpop.f32.mrf.mxu0
        %v6262 = vadd.f32 0.0, %v6261
        %v6263 = vpop.f32.mrf.mxu0
        %v6264 = vadd.f32 0.0, %v6263
        %6265 = vmatmul.bf16.gmra.mxu0 %v6084
        %v6266 = vpop.f32.mrf.mxu0
        %v6267 = vadd.f32 0.0, %v6266
        %v6268 = vpop.f32.mrf.mxu0
        %v6269 = vadd.f32 0.0, %v6268
        %6270 = vmatmul.bf16.gmra.mxu0 %v6092
        %v6271 = vpop.f32.mrf.mxu0
        %v6272 = vadd.f32 0.0, %v6271
        %v6273 = vpop.f32.mrf.mxu0
        %v6274 = vadd.f32 0.0, %v6273
        %6275 = vmatmul.bf16.gmra.mxu0 %v6100
        %v6276 = vpop.f32.mrf.mxu0
        %v6277 = vadd.f32 0.0, %v6276
        %v6278 = vpop.f32.mrf.mxu0
        %v6279 = vadd.f32 0.0, %v6278
        %6280 = vmatmul.bf16.gmra.mxu0 %v6108
        %v6281 = vpop.f32.mrf.mxu0
        %v6282 = vadd.f32 0.0, %v6281
        %v6283 = vpop.f32.mrf.mxu0
        %v6284 = vadd.f32 0.0, %v6283
        %6285 = vmatmul.bf16.gmra.mxu0 %v6116
        %v6286 = vpop.f32.mrf.mxu0
        %v6287 = vadd.f32 0.0, %v6286
        %v6288 = vpop.f32.mrf.mxu0
        %v6289 = vadd.f32 0.0, %v6288
        %6290 = vmatmul.bf16.gmra.mxu0 %v6124
        %v6291 = vpop.f32.mrf.mxu0
        %v6292 = vadd.f32 0.0, %v6291
        %v6293 = vpop.f32.mrf.mxu0
        %v6294 = vadd.f32 0.0, %v6293
        %6295 = vmatmul.bf16.gmra.mxu0 %v6132
        %v6296 = vpop.f32.mrf.mxu0
        %v6297 = vadd.f32 0.0, %v6296
        %v6298 = vpop.f32.mrf.mxu0
        %v6299 = vadd.f32 0.0, %v6298
        %6300 = vmatmul.bf16.gmra.mxu0 %v6140
        %v6301 = vpop.f32.mrf.mxu0
        %v6302 = vadd.f32 0.0, %v6301
        %v6303 = vpop.f32.mrf.mxu0
        %v6304 = vadd.f32 0.0, %v6303
        %6305 = vmatmul.bf16.gmra.mxu0 %v6148
        %v6306 = vpop.f32.mrf.mxu0
        %v6307 = vadd.f32 0.0, %v6306
        %v6308 = vpop.f32.mrf.mxu0
        %v6309 = vadd.f32 0.0, %v6308
        %6310 = vmatmul.bf16.gmra.mxu0 %v6156
        %v6311 = vpop.f32.mrf.mxu0
        %v6312 = vadd.f32 0.0, %v6311
        %v6313 = vpop.f32.mrf.mxu0
        %v6314 = vadd.f32 0.0, %v6313
        %6315 = vmatmul.bf16.gmra.mxu0 %v6164
        %v6316 = vpop.f32.mrf.mxu0
        %v6317 = vadd.f32 0.0, %v6316
        %v6318 = vpop.f32.mrf.mxu0
        %v6319 = vadd.f32 0.0, %v6318
        %6320 = vmatmul.bf16.gmra.mxu0 %v6172
        %v6321 = vpop.f32.mrf.mxu0
        %v6322 = vadd.f32 0.0, %v6321
        %v6323 = vpop.f32.mrf.mxu0
        %v6324 = vadd.f32 0.0, %v6323
        %6325 = vdwg.mxu0
        %v6342 = vunpack.c.l.b16 %v6015
        %v6343 = vunpack.c.l.b16 %v6016
        %v6344 = vunpack.c.l.b16 %v6017
        %v6345 = vunpack.c.l.b16 %v6018
        %v6346 = vunpack.c.l.b16 %v6019
        %v6347 = vunpack.c.l.b16 %v6020
        %v6348 = vunpack.c.l.b16 %v6021
        %v6349 = vunpack.c.l.b16 %v6022
        %v6350 = vunpack.c.l.b16 %v6023
        %v6351 = vunpack.c.l.b16 %v6024
        %v6352 = vunpack.c.l.b16 %v6025
        %v6353 = vunpack.c.l.b16 %v6026
        %v6354 = vunpack.c.l.b16 %v6027
        %v6355 = vunpack.c.l.b16 %v6028
        %v6356 = vunpack.c.l.b16 %v6029
        %v6357 = vunpack.c.l.b16 %v6030
        %v6358 = vpack.c.b16 %v6343, %v6342
        %v6359 = vpack.c.b16 %v6345, %v6344
        %v6360 = vpack.c.b16 %v6347, %v6346
        %v6361 = vpack.c.b16 %v6349, %v6348
        %v6362 = vpack.c.b16 %v6351, %v6350
        %v6363 = vpack.c.b16 %v6353, %v6352
        %v6364 = vpack.c.b16 %v6355, %v6354
        %v6365 = vpack.c.b16 %v6357, %v6356
        %6374 = vmatpush.bf16.msra.mxu0 %v6365
        %6375 = vmatpush.bf16.msra.mxu0 %v6364
        %6376 = vmatpush.bf16.msra.mxu0 %v6363
        %6377 = vmatpush.bf16.msra.mxu0 %v6362
        %6378 = vmatpush.bf16.msra.mxu0 %v6361
        %6379 = vmatpush.bf16.msra.mxu0 %v6360
        %6380 = vmatpush.bf16.msra.mxu0 %v6359
        %6381 = vmatpush.bf16.msra.mxu0 %v6358
        %6382 = vmatmul.bf16.gmra.mxu0 0
        %v6383 = vpop.f32.mrf.mxu0
        %v6384 = vadd.f32 %v6247, %v6383
        %v6385 = vpop.f32.mrf.mxu0
        %v6386 = vadd.f32 %v6249, %v6385
        %6387 = vmatmul.bf16.gmra.mxu0 %v5981
        %v6388 = vpop.f32.mrf.mxu0
        %v6389 = vadd.f32 %v6252, %v6388
        %v6390 = vpop.f32.mrf.mxu0
        %v6391 = vadd.f32 %v6254, %v6390
        %6392 = vmatmul.bf16.gmra.mxu0 %v5982
        %v6393 = vpop.f32.mrf.mxu0
        %v6394 = vadd.f32 %v6257, %v6393
        %v6395 = vpop.f32.mrf.mxu0
        %v6396 = vadd.f32 %v6259, %v6395
        %6397 = vmatmul.bf16.gmra.mxu0 %v5983
        %v6398 = vpop.f32.mrf.mxu0
        %v6399 = vadd.f32 %v6262, %v6398
        %v6400 = vpop.f32.mrf.mxu0
        %v6401 = vadd.f32 %v6264, %v6400
        %6402 = vmatmul.bf16.gmra.mxu0 %v5984
        %v6403 = vpop.f32.mrf.mxu0
        %v6404 = vadd.f32 %v6267, %v6403
        %v6405 = vpop.f32.mrf.mxu0
        %v6406 = vadd.f32 %v6269, %v6405
        %6407 = vmatmul.bf16.gmra.mxu0 %v5985
        %v6408 = vpop.f32.mrf.mxu0
        %v6409 = vadd.f32 %v6272, %v6408
        %v6410 = vpop.f32.mrf.mxu0
        %v6411 = vadd.f32 %v6274, %v6410
        %6412 = vmatmul.bf16.gmra.mxu0 %v5986
        %v6413 = vpop.f32.mrf.mxu0
        %v6414 = vadd.f32 %v6277, %v6413
        %v6415 = vpop.f32.mrf.mxu0
        %v6416 = vadd.f32 %v6279, %v6415
        %6417 = vmatmul.bf16.gmra.mxu0 %v5987
        %v6418 = vpop.f32.mrf.mxu0
        %v6419 = vadd.f32 %v6282, %v6418
        %v6420 = vpop.f32.mrf.mxu0
        %v6421 = vadd.f32 %v6284, %v6420
        %6422 = vmatmul.bf16.gmra.mxu0 %v5988
        %v6423 = vpop.f32.mrf.mxu0
        %v6424 = vadd.f32 %v6287, %v6423
        %v6425 = vpop.f32.mrf.mxu0
        %v6426 = vadd.f32 %v6289, %v6425
        %6427 = vmatmul.bf16.gmra.mxu0 %v5989
        %v6428 = vpop.f32.mrf.mxu0
        %v6429 = vadd.f32 %v6292, %v6428
        %v6430 = vpop.f32.mrf.mxu0
        %v6431 = vadd.f32 %v6294, %v6430
        %6432 = vmatmul.bf16.gmra.mxu0 %v5990
        %v6433 = vpop.f32.mrf.mxu0
        %v6434 = vadd.f32 %v6297, %v6433
        %v6435 = vpop.f32.mrf.mxu0
        %v6436 = vadd.f32 %v6299, %v6435
        %6437 = vmatmul.bf16.gmra.mxu0 %v5991
        %v6438 = vpop.f32.mrf.mxu0
        %v6439 = vadd.f32 %v6302, %v6438
        %v6440 = vpop.f32.mrf.mxu0
        %v6441 = vadd.f32 %v6304, %v6440
        %6442 = vmatmul.bf16.gmra.mxu0 %v5992
        %v6443 = vpop.f32.mrf.mxu0
        %v6444 = vadd.f32 %v6307, %v6443
        %v6445 = vpop.f32.mrf.mxu0
        %v6446 = vadd.f32 %v6309, %v6445
        %6447 = vmatmul.bf16.gmra.mxu0 %v5993
        %v6448 = vpop.f32.mrf.mxu0
        %v6449 = vadd.f32 %v6312, %v6448
        %v6450 = vpop.f32.mrf.mxu0
        %v6451 = vadd.f32 %v6314, %v6450
        %6452 = vmatmul.bf16.gmra.mxu0 %v5994
        %v6453 = vpop.f32.mrf.mxu0
        %v6454 = vadd.f32 %v6317, %v6453
        %v6455 = vpop.f32.mrf.mxu0
        %v6456 = vadd.f32 %v6319, %v6455
        %6457 = vmatmul.bf16.gmra.mxu0 %v5995
        %v6458 = vpop.f32.mrf.mxu0
        %v6459 = vadd.f32 %v6322, %v6458
        %v6460 = vpop.f32.mrf.mxu0
        %v6461 = vadd.f32 %v6324, %v6460
        %6462 = vdwg.mxu0
        %s6463 = scalar_lea.vmem %s10, 128
        %v6464 = vld [vmem:[%s6463] sm:$0xf]
        %v6465 = vld [vmem:[%s6463 + $0x4] sm:$0xf]
        %v6466 = vld [vmem:[%s6463 + $0x8] sm:$0xf]
        %v6467 = vld [vmem:[%s6463 + $0xc] sm:$0xf]
        %v6468 = vld [vmem:[%s6463 + $0x10] sm:$0xf]
        %v6469 = vld [vmem:[%s6463 + $0x14] sm:$0xf]
        %v6470 = vld [vmem:[%s6463 + $0x18] sm:$0xf]
        %v6471 = vld [vmem:[%s6463 + $0x1c] sm:$0xf]
        %v6472 = vld [vmem:[%s6463 + $0x20] sm:$0xf]
        %v6473 = vld [vmem:[%s6463 + $0x24] sm:$0xf]
        %v6474 = vld [vmem:[%s6463 + $0x28] sm:$0xf]
        %v6475 = vld [vmem:[%s6463 + $0x2c] sm:$0xf]
        %v6476 = vld [vmem:[%s6463 + $0x30] sm:$0xf]
        %v6477 = vld [vmem:[%s6463 + $0x34] sm:$0xf]
        %v6478 = vld [vmem:[%s6463 + $0x38] sm:$0xf]
        %v6479 = vld [vmem:[%s6463 + $0x3c] sm:$0xf]
        %v6496 = vrot.slane %v5998, 1
        %v6497 = vsel %vm3514, %v3515, %v6496
        %v6498 = vrot.slane %v5999, 1
        %v6499 = vsel %vm3514, %v6496, %v6498
        %v6500 = vrot.slane %v6000, 1
        %v6501 = vsel %vm3514, %v6498, %v6500
        %v6502 = vrot.slane %v6001, 1
        %v6503 = vsel %vm3514, %v6500, %v6502
        %v6504 = vrot.slane %v6002, 1
        %v6505 = vsel %vm3514, %v6502, %v6504
        %v6506 = vrot.slane %v6003, 1
        %v6507 = vsel %vm3514, %v6504, %v6506
        %v6508 = vrot.slane %v6004, 1
        %v6509 = vsel %vm3514, %v6506, %v6508
        %v6510 = vrot.slane %v6005, 1
        %v6511 = vsel %vm3514, %v6508, %v6510
        %v6512 = vrot.slane %v6006, 1
        %v6513 = vsel %vm3514, %v6510, %v6512
        %v6514 = vrot.slane %v6007, 1
        %v6515 = vsel %vm3514, %v6512, %v6514
        %v6516 = vrot.slane %v6008, 1
        %v6517 = vsel %vm3514, %v6514, %v6516
        %v6518 = vrot.slane %v6009, 1
        %v6519 = vsel %vm3514, %v6516, %v6518
        %v6520 = vrot.slane %v6010, 1
        %v6521 = vsel %vm3514, %v6518, %v6520
        %v6522 = vrot.slane %v6011, 1
        %v6523 = vsel %vm3514, %v6520, %v6522
        %v6524 = vrot.slane %v6012, 1
        %v6525 = vsel %vm3514, %v6522, %v6524
        %v6526 = vrot.slane %v6013, 1
        %v6527 = vsel %vm3514, %v6524, %v6526
        %v6560 = vunpack.c.l.b16 %v6464
        %v6561 = vunpack.c.l.b16 %v6465
        %v6562 = vunpack.c.l.b16 %v6466
        %v6563 = vunpack.c.l.b16 %v6467
        %v6564 = vunpack.c.l.b16 %v6468
        %v6565 = vunpack.c.l.b16 %v6469
        %v6566 = vunpack.c.l.b16 %v6470
        %v6567 = vunpack.c.l.b16 %v6471
        %v6568 = vunpack.c.l.b16 %v6472
        %v6569 = vunpack.c.l.b16 %v6473
        %v6570 = vunpack.c.l.b16 %v6474
        %v6571 = vunpack.c.l.b16 %v6475
        %v6572 = vunpack.c.l.b16 %v6476
        %v6573 = vunpack.c.l.b16 %v6477
        %v6574 = vunpack.c.l.b16 %v6478
        %v6575 = vunpack.c.l.b16 %v6479
        %v6576 = vpack.c.b16 %v6561, %v6560
        %v6577 = vpack.c.b16 %v6563, %v6562
        %v6578 = vpack.c.b16 %v6565, %v6564
        %v6579 = vpack.c.b16 %v6567, %v6566
        %v6580 = vpack.c.b16 %v6569, %v6568
        %v6581 = vpack.c.b16 %v6571, %v6570
        %v6582 = vpack.c.b16 %v6573, %v6572
        %v6583 = vpack.c.b16 %v6575, %v6574
        %6592 = vmatpush.bf16.msra.mxu0 %v6583
        %6593 = vmatpush.bf16.msra.mxu0 %v6582
        %6594 = vmatpush.bf16.msra.mxu0 %v6581
        %6595 = vmatpush.bf16.msra.mxu0 %v6580
        %6596 = vmatpush.bf16.msra.mxu0 %v6579
        %6597 = vmatpush.bf16.msra.mxu0 %v6578
        %6598 = vmatpush.bf16.msra.mxu0 %v6577
        %6599 = vmatpush.bf16.msra.mxu0 %v6576
        %6600 = vmatmul.bf16.gmra.mxu0 %v6497
        %v6601 = vpop.f32.mrf.mxu0
        %v6602 = vadd.f32 0.0, %v6601
        %v6603 = vpop.f32.mrf.mxu0
        %v6604 = vadd.f32 0.0, %v6603
        %6605 = vmatmul.bf16.gmra.mxu0 %v6499
        %v6606 = vpop.f32.mrf.mxu0
        %v6607 = vadd.f32 0.0, %v6606
        %v6608 = vpop.f32.mrf.mxu0
        %v6609 = vadd.f32 0.0, %v6608
        %6610 = vmatmul.bf16.gmra.mxu0 %v6501
        %v6611 = vpop.f32.mrf.mxu0
        %v6612 = vadd.f32 0.0, %v6611
        %v6613 = vpop.f32.mrf.mxu0
        %v6614 = vadd.f32 0.0, %v6613
        %6615 = vmatmul.bf16.gmra.mxu0 %v6503
        %v6616 = vpop.f32.mrf.mxu0
        %v6617 = vadd.f32 0.0, %v6616
        %v6618 = vpop.f32.mrf.mxu0
        %v6619 = vadd.f32 0.0, %v6618
        %6620 = vmatmul.bf16.gmra.mxu0 %v6505
        %v6621 = vpop.f32.mrf.mxu0
        %v6622 = vadd.f32 0.0, %v6621
        %v6623 = vpop.f32.mrf.mxu0
        %v6624 = vadd.f32 0.0, %v6623
        %6625 = vmatmul.bf16.gmra.mxu0 %v6507
        %v6626 = vpop.f32.mrf.mxu0
        %v6627 = vadd.f32 0.0, %v6626
        %v6628 = vpop.f32.mrf.mxu0
        %v6629 = vadd.f32 0.0, %v6628
        %6630 = vmatmul.bf16.gmra.mxu0 %v6509
        %v6631 = vpop.f32.mrf.mxu0
        %v6632 = vadd.f32 0.0, %v6631
        %v6633 = vpop.f32.mrf.mxu0
        %v6634 = vadd.f32 0.0, %v6633
        %6635 = vmatmul.bf16.gmra.mxu0 %v6511
        %v6636 = vpop.f32.mrf.mxu0
        %v6637 = vadd.f32 0.0, %v6636
        %v6638 = vpop.f32.mrf.mxu0
        %v6639 = vadd.f32 0.0, %v6638
        %6640 = vmatmul.bf16.gmra.mxu0 %v6513
        %v6641 = vpop.f32.mrf.mxu0
        %v6642 = vadd.f32 0.0, %v6641
        %v6643 = vpop.f32.mrf.mxu0
        %v6644 = vadd.f32 0.0, %v6643
        %6645 = vmatmul.bf16.gmra.mxu0 %v6515
        %v6646 = vpop.f32.mrf.mxu0
        %v6647 = vadd.f32 0.0, %v6646
        %v6648 = vpop.f32.mrf.mxu0
        %v6649 = vadd.f32 0.0, %v6648
        %6650 = vmatmul.bf16.gmra.mxu0 %v6517
        %v6651 = vpop.f32.mrf.mxu0
        %v6652 = vadd.f32 0.0, %v6651
        %v6653 = vpop.f32.mrf.mxu0
        %v6654 = vadd.f32 0.0, %v6653
        %6655 = vmatmul.bf16.gmra.mxu0 %v6519
        %v6656 = vpop.f32.mrf.mxu0
        %v6657 = vadd.f32 0.0, %v6656
        %v6658 = vpop.f32.mrf.mxu0
        %v6659 = vadd.f32 0.0, %v6658
        %6660 = vmatmul.bf16.gmra.mxu0 %v6521
        %v6661 = vpop.f32.mrf.mxu0
        %v6662 = vadd.f32 0.0, %v6661
        %v6663 = vpop.f32.mrf.mxu0
        %v6664 = vadd.f32 0.0, %v6663
        %6665 = vmatmul.bf16.gmra.mxu0 %v6523
        %v6666 = vpop.f32.mrf.mxu0
        %v6667 = vadd.f32 0.0, %v6666
        %v6668 = vpop.f32.mrf.mxu0
        %v6669 = vadd.f32 0.0, %v6668
        %6670 = vmatmul.bf16.gmra.mxu0 %v6525
        %v6671 = vpop.f32.mrf.mxu0
        %v6672 = vadd.f32 0.0, %v6671
        %v6673 = vpop.f32.mrf.mxu0
        %v6674 = vadd.f32 0.0, %v6673
        %6675 = vmatmul.bf16.gmra.mxu0 %v6527
        %v6676 = vpop.f32.mrf.mxu0
        %v6677 = vadd.f32 0.0, %v6676
        %v6678 = vpop.f32.mrf.mxu0
        %v6679 = vadd.f32 0.0, %v6678
        %6680 = vdwg.mxu0
        %v6681 = vadd.f32 %v6384, %v6602
        %v6682 = vadd.f32 %v6386, %v6604
        %v6683 = vadd.f32 %v6389, %v6607
        %v6684 = vadd.f32 %v6391, %v6609
        %v6685 = vadd.f32 %v6394, %v6612
        %v6686 = vadd.f32 %v6396, %v6614
        %v6687 = vadd.f32 %v6399, %v6617
        %v6688 = vadd.f32 %v6401, %v6619
        %v6689 = vadd.f32 %v6404, %v6622
        %v6690 = vadd.f32 %v6406, %v6624
        %v6691 = vadd.f32 %v6409, %v6627
        %v6692 = vadd.f32 %v6411, %v6629
        %v6693 = vadd.f32 %v6414, %v6632
        %v6694 = vadd.f32 %v6416, %v6634
        %v6695 = vadd.f32 %v6419, %v6637
        %v6696 = vadd.f32 %v6421, %v6639
        %v6697 = vadd.f32 %v6424, %v6642
        %v6698 = vadd.f32 %v6426, %v6644
        %v6699 = vadd.f32 %v6429, %v6647
        %v6700 = vadd.f32 %v6431, %v6649
        %v6701 = vadd.f32 %v6434, %v6652
        %v6702 = vadd.f32 %v6436, %v6654
        %v6703 = vadd.f32 %v6439, %v6657
        %v6704 = vadd.f32 %v6441, %v6659
        %v6705 = vadd.f32 %v6444, %v6662
        %v6706 = vadd.f32 %v6446, %v6664
        %v6707 = vadd.f32 %v6449, %v6667
        %v6708 = vadd.f32 %v6451, %v6669
        %v6709 = vadd.f32 %v6454, %v6672
        %v6710 = vadd.f32 %v6456, %v6674
        %v6711 = vadd.f32 %v6459, %v6677
        %v6712 = vadd.f32 %v6461, %v6679
        %s6713 = scalar_lea.vmem %s10, 192
        %v6714 = vld [vmem:[%s6713] sm:$0xf]
        %v6715 = vld [vmem:[%s6713 + $0x4] sm:$0xf]
        %v6716 = vld [vmem:[%s6713 + $0x8] sm:$0xf]
        %v6717 = vld [vmem:[%s6713 + $0xc] sm:$0xf]
        %v6718 = vld [vmem:[%s6713 + $0x10] sm:$0xf]
        %v6719 = vld [vmem:[%s6713 + $0x14] sm:$0xf]
        %v6720 = vld [vmem:[%s6713 + $0x18] sm:$0xf]
        %v6721 = vld [vmem:[%s6713 + $0x1c] sm:$0xf]
        %v6722 = vld [vmem:[%s6713 + $0x20] sm:$0xf]
        %v6723 = vld [vmem:[%s6713 + $0x24] sm:$0xf]
        %v6724 = vld [vmem:[%s6713 + $0x28] sm:$0xf]
        %v6725 = vld [vmem:[%s6713 + $0x2c] sm:$0xf]
        %v6726 = vld [vmem:[%s6713 + $0x30] sm:$0xf]
        %v6727 = vld [vmem:[%s6713 + $0x34] sm:$0xf]
        %v6728 = vld [vmem:[%s6713 + $0x38] sm:$0xf]
        %v6729 = vld [vmem:[%s6713 + $0x3c] sm:$0xf]
        %v6746 = vunpack.c.l.b16 %v6714
        %v6747 = vunpack.c.l.b16 %v6715
        %v6748 = vunpack.c.l.b16 %v6716
        %v6749 = vunpack.c.l.b16 %v6717
        %v6750 = vunpack.c.l.b16 %v6718
        %v6751 = vunpack.c.l.b16 %v6719
        %v6752 = vunpack.c.l.b16 %v6720
        %v6753 = vunpack.c.l.b16 %v6721
        %v6754 = vunpack.c.l.b16 %v6722
        %v6755 = vunpack.c.l.b16 %v6723
        %v6756 = vunpack.c.l.b16 %v6724
        %v6757 = vunpack.c.l.b16 %v6725
        %v6758 = vunpack.c.l.b16 %v6726
        %v6759 = vunpack.c.l.b16 %v6727
        %v6760 = vunpack.c.l.b16 %v6728
        %v6761 = vunpack.c.l.b16 %v6729
        %v6762 = vpack.c.b16 %v6747, %v6746
        %v6763 = vpack.c.b16 %v6749, %v6748
        %v6764 = vpack.c.b16 %v6751, %v6750
        %v6765 = vpack.c.b16 %v6753, %v6752
        %v6766 = vpack.c.b16 %v6755, %v6754
        %v6767 = vpack.c.b16 %v6757, %v6756
        %v6768 = vpack.c.b16 %v6759, %v6758
        %v6769 = vpack.c.b16 %v6761, %v6760
        %6778 = vmatpush.bf16.msra.mxu0 %v6769
        %6779 = vmatpush.bf16.msra.mxu0 %v6768
        %6780 = vmatpush.bf16.msra.mxu0 %v6767
        %6781 = vmatpush.bf16.msra.mxu0 %v6766
        %6782 = vmatpush.bf16.msra.mxu0 %v6765
        %6783 = vmatpush.bf16.msra.mxu0 %v6764
        %6784 = vmatpush.bf16.msra.mxu0 %v6763
        %6785 = vmatpush.bf16.msra.mxu0 %v6762
        %6786 = vmatmul.bf16.gmra.mxu0 %v5981
        %v6787 = vpop.f32.mrf.mxu0
        %v6788 = vadd.f32 0.0, %v6787
        %v6789 = vpop.f32.mrf.mxu0
        %v6790 = vadd.f32 0.0, %v6789
        %6791 = vmatmul.bf16.gmra.mxu0 %v5982
        %v6792 = vpop.f32.mrf.mxu0
        %v6793 = vadd.f32 0.0, %v6792
        %v6794 = vpop.f32.mrf.mxu0
        %v6795 = vadd.f32 0.0, %v6794
        %6796 = vmatmul.bf16.gmra.mxu0 %v5983
        %v6797 = vpop.f32.mrf.mxu0
        %v6798 = vadd.f32 0.0, %v6797
        %v6799 = vpop.f32.mrf.mxu0
        %v6800 = vadd.f32 0.0, %v6799
        %6801 = vmatmul.bf16.gmra.mxu0 %v5984
        %v6802 = vpop.f32.mrf.mxu0
        %v6803 = vadd.f32 0.0, %v6802
        %v6804 = vpop.f32.mrf.mxu0
        %v6805 = vadd.f32 0.0, %v6804
        %6806 = vmatmul.bf16.gmra.mxu0 %v5985
        %v6807 = vpop.f32.mrf.mxu0
        %v6808 = vadd.f32 0.0, %v6807
        %v6809 = vpop.f32.mrf.mxu0
        %v6810 = vadd.f32 0.0, %v6809
        %6811 = vmatmul.bf16.gmra.mxu0 %v5986
        %v6812 = vpop.f32.mrf.mxu0
        %v6813 = vadd.f32 0.0, %v6812
        %v6814 = vpop.f32.mrf.mxu0
        %v6815 = vadd.f32 0.0, %v6814
        %6816 = vmatmul.bf16.gmra.mxu0 %v5987
        %v6817 = vpop.f32.mrf.mxu0
        %v6818 = vadd.f32 0.0, %v6817
        %v6819 = vpop.f32.mrf.mxu0
        %v6820 = vadd.f32 0.0, %v6819
        %6821 = vmatmul.bf16.gmra.mxu0 %v5988
        %v6822 = vpop.f32.mrf.mxu0
        %v6823 = vadd.f32 0.0, %v6822
        %v6824 = vpop.f32.mrf.mxu0
        %v6825 = vadd.f32 0.0, %v6824
        %6826 = vmatmul.bf16.gmra.mxu0 %v5989
        %v6827 = vpop.f32.mrf.mxu0
        %v6828 = vadd.f32 0.0, %v6827
        %v6829 = vpop.f32.mrf.mxu0
        %v6830 = vadd.f32 0.0, %v6829
        %6831 = vmatmul.bf16.gmra.mxu0 %v5990
        %v6832 = vpop.f32.mrf.mxu0
        %v6833 = vadd.f32 0.0, %v6832
        %v6834 = vpop.f32.mrf.mxu0
        %v6835 = vadd.f32 0.0, %v6834
        %6836 = vmatmul.bf16.gmra.mxu0 %v5991
        %v6837 = vpop.f32.mrf.mxu0
        %v6838 = vadd.f32 0.0, %v6837
        %v6839 = vpop.f32.mrf.mxu0
        %v6840 = vadd.f32 0.0, %v6839
        %6841 = vmatmul.bf16.gmra.mxu0 %v5992
        %v6842 = vpop.f32.mrf.mxu0
        %v6843 = vadd.f32 0.0, %v6842
        %v6844 = vpop.f32.mrf.mxu0
        %v6845 = vadd.f32 0.0, %v6844
        %6846 = vmatmul.bf16.gmra.mxu0 %v5993
        %v6847 = vpop.f32.mrf.mxu0
        %v6848 = vadd.f32 0.0, %v6847
        %v6849 = vpop.f32.mrf.mxu0
        %v6850 = vadd.f32 0.0, %v6849
        %6851 = vmatmul.bf16.gmra.mxu0 %v5994
        %v6852 = vpop.f32.mrf.mxu0
        %v6853 = vadd.f32 0.0, %v6852
        %v6854 = vpop.f32.mrf.mxu0
        %v6855 = vadd.f32 0.0, %v6854
        %6856 = vmatmul.bf16.gmra.mxu0 %v5995
        %v6857 = vpop.f32.mrf.mxu0
        %v6858 = vadd.f32 0.0, %v6857
        %v6859 = vpop.f32.mrf.mxu0
        %v6860 = vadd.f32 0.0, %v6859
        %6861 = vmatmul.bf16.gmra.mxu0 %v5996
        %v6862 = vpop.f32.mrf.mxu0
        %v6863 = vadd.f32 0.0, %v6862
        %v6864 = vpop.f32.mrf.mxu0
        %v6865 = vadd.f32 0.0, %v6864
        %6866 = vdwg.mxu0
        %v6867 = vadd.f32 %v6681, %v6788
        %v6868 = vadd.f32 %v6682, %v6790
        %v6869 = vadd.f32 %v6683, %v6793
        %v6870 = vadd.f32 %v6684, %v6795
        %v6871 = vadd.f32 %v6685, %v6798
        %v6872 = vadd.f32 %v6686, %v6800
        %v6873 = vadd.f32 %v6687, %v6803
        %v6874 = vadd.f32 %v6688, %v6805
        %v6875 = vadd.f32 %v6689, %v6808
        %v6876 = vadd.f32 %v6690, %v6810
        %v6877 = vadd.f32 %v6691, %v6813
        %v6878 = vadd.f32 %v6692, %v6815
        %v6879 = vadd.f32 %v6693, %v6818
        %v6880 = vadd.f32 %v6694, %v6820
        %v6881 = vadd.f32 %v6695, %v6823
        %v6882 = vadd.f32 %v6696, %v6825
        %v6883 = vadd.f32 %v6697, %v6828
        %v6884 = vadd.f32 %v6698, %v6830
        %v6885 = vadd.f32 %v6699, %v6833
        %v6886 = vadd.f32 %v6700, %v6835
        %v6887 = vadd.f32 %v6701, %v6838
        %v6888 = vadd.f32 %v6702, %v6840
        %v6889 = vadd.f32 %v6703, %v6843
        %v6890 = vadd.f32 %v6704, %v6845
        %v6891 = vadd.f32 %v6705, %v6848
        %v6892 = vadd.f32 %v6706, %v6850
        %v6893 = vadd.f32 %v6707, %v6853
        %v6894 = vadd.f32 %v6708, %v6855
        %v6895 = vadd.f32 %v6709, %v6858
        %v6896 = vadd.f32 %v6710, %v6860
        %v6897 = vadd.f32 %v6711, %v6863
        %v6898 = vadd.f32 %v6712, %v6865
        %s6899 = scalar_lea.vmem %s10, 256
        %v6900 = vld [vmem:[%s6899] sm:$0xf]
        %v6901 = vld [vmem:[%s6899 + $0x4] sm:$0xf]
        %v6902 = vld [vmem:[%s6899 + $0x8] sm:$0xf]
        %v6903 = vld [vmem:[%s6899 + $0xc] sm:$0xf]
        %v6904 = vld [vmem:[%s6899 + $0x10] sm:$0xf]
        %v6905 = vld [vmem:[%s6899 + $0x14] sm:$0xf]
        %v6906 = vld [vmem:[%s6899 + $0x18] sm:$0xf]
        %v6907 = vld [vmem:[%s6899 + $0x1c] sm:$0xf]
        %v6908 = vld [vmem:[%s6899 + $0x20] sm:$0xf]
        %v6909 = vld [vmem:[%s6899 + $0x24] sm:$0xf]
        %v6910 = vld [vmem:[%s6899 + $0x28] sm:$0xf]
        %v6911 = vld [vmem:[%s6899 + $0x2c] sm:$0xf]
        %v6912 = vld [vmem:[%s6899 + $0x30] sm:$0xf]
        %v6913 = vld [vmem:[%s6899 + $0x34] sm:$0xf]
        %v6914 = vld [vmem:[%s6899 + $0x38] sm:$0xf]
        %v6915 = vld [vmem:[%s6899 + $0x3c] sm:$0xf]
        %v6916 = vshrl.u32 %v5961, 16
        %v6918 = vor.u32 %v6916, %v6171
        %v6920 = vshll.u32 %v5980, 16
        %v6922 = vrot.slane %v6920, 1
        %v6923 = vsel %vm3034, %v6918, %v6922
        %v6941 = vunpack.c.l.b16 %v6900
        %v6942 = vunpack.c.l.b16 %v6901
        %v6943 = vunpack.c.l.b16 %v6902
        %v6944 = vunpack.c.l.b16 %v6903
        %v6945 = vunpack.c.l.b16 %v6904
        %v6946 = vunpack.c.l.b16 %v6905
        %v6947 = vunpack.c.l.b16 %v6906
        %v6948 = vunpack.c.l.b16 %v6907
        %v6949 = vunpack.c.l.b16 %v6908
        %v6950 = vunpack.c.l.b16 %v6909
        %v6951 = vunpack.c.l.b16 %v6910
        %v6952 = vunpack.c.l.b16 %v6911
        %v6953 = vunpack.c.l.b16 %v6912
        %v6954 = vunpack.c.l.b16 %v6913
        %v6955 = vunpack.c.l.b16 %v6914
        %v6956 = vunpack.c.l.b16 %v6915
        %v6957 = vpack.c.b16 %v6942, %v6941
        %v6958 = vpack.c.b16 %v6944, %v6943
        %v6959 = vpack.c.b16 %v6946, %v6945
        %v6960 = vpack.c.b16 %v6948, %v6947
        %v6961 = vpack.c.b16 %v6950, %v6949
        %v6962 = vpack.c.b16 %v6952, %v6951
        %v6963 = vpack.c.b16 %v6954, %v6953
        %v6964 = vpack.c.b16 %v6956, %v6955
        %6973 = vmatpush.bf16.msra.mxu0 %v6964
        %6974 = vmatpush.bf16.msra.mxu0 %v6963
        %6975 = vmatpush.bf16.msra.mxu0 %v6962
        %6976 = vmatpush.bf16.msra.mxu0 %v6961
        %6977 = vmatpush.bf16.msra.mxu0 %v6960
        %6978 = vmatpush.bf16.msra.mxu0 %v6959
        %6979 = vmatpush.bf16.msra.mxu0 %v6958
        %6980 = vmatpush.bf16.msra.mxu0 %v6957
        %6981 = vmatmul.bf16.gmra.mxu0 %v6060
        %v6982 = vpop.f32.mrf.mxu0
        %v6983 = vadd.f32 0.0, %v6982
        %v6984 = vpop.f32.mrf.mxu0
        %v6985 = vadd.f32 0.0, %v6984
        %6986 = vmatmul.bf16.gmra.mxu0 %v6068
        %v6987 = vpop.f32.mrf.mxu0
        %v6988 = vadd.f32 0.0, %v6987
        %v6989 = vpop.f32.mrf.mxu0
        %v6990 = vadd.f32 0.0, %v6989
        %6991 = vmatmul.bf16.gmra.mxu0 %v6076
        %v6992 = vpop.f32.mrf.mxu0
        %v6993 = vadd.f32 0.0, %v6992
        %v6994 = vpop.f32.mrf.mxu0
        %v6995 = vadd.f32 0.0, %v6994
        %6996 = vmatmul.bf16.gmra.mxu0 %v6084
        %v6997 = vpop.f32.mrf.mxu0
        %v6998 = vadd.f32 0.0, %v6997
        %v6999 = vpop.f32.mrf.mxu0
        %v7000 = vadd.f32 0.0, %v6999
        %7001 = vmatmul.bf16.gmra.mxu0 %v6092
        %v7002 = vpop.f32.mrf.mxu0
        %v7003 = vadd.f32 0.0, %v7002
        %v7004 = vpop.f32.mrf.mxu0
        %v7005 = vadd.f32 0.0, %v7004
        %7006 = vmatmul.bf16.gmra.mxu0 %v6100
        %v7007 = vpop.f32.mrf.mxu0
        %v7008 = vadd.f32 0.0, %v7007
        %v7009 = vpop.f32.mrf.mxu0
        %v7010 = vadd.f32 0.0, %v7009
        %7011 = vmatmul.bf16.gmra.mxu0 %v6108
        %v7012 = vpop.f32.mrf.mxu0
        %v7013 = vadd.f32 0.0, %v7012
        %v7014 = vpop.f32.mrf.mxu0
        %v7015 = vadd.f32 0.0, %v7014
        %7016 = vmatmul.bf16.gmra.mxu0 %v6116
        %v7017 = vpop.f32.mrf.mxu0
        %v7018 = vadd.f32 0.0, %v7017
        %v7019 = vpop.f32.mrf.mxu0
        %v7020 = vadd.f32 0.0, %v7019
        %7021 = vmatmul.bf16.gmra.mxu0 %v6124
        %v7022 = vpop.f32.mrf.mxu0
        %v7023 = vadd.f32 0.0, %v7022
        %v7024 = vpop.f32.mrf.mxu0
        %v7025 = vadd.f32 0.0, %v7024
        %7026 = vmatmul.bf16.gmra.mxu0 %v6132
        %v7027 = vpop.f32.mrf.mxu0
        %v7028 = vadd.f32 0.0, %v7027
        %v7029 = vpop.f32.mrf.mxu0
        %v7030 = vadd.f32 0.0, %v7029
        %7031 = vmatmul.bf16.gmra.mxu0 %v6140
        %v7032 = vpop.f32.mrf.mxu0
        %v7033 = vadd.f32 0.0, %v7032
        %v7034 = vpop.f32.mrf.mxu0
        %v7035 = vadd.f32 0.0, %v7034
        %7036 = vmatmul.bf16.gmra.mxu0 %v6148
        %v7037 = vpop.f32.mrf.mxu0
        %v7038 = vadd.f32 0.0, %v7037
        %v7039 = vpop.f32.mrf.mxu0
        %v7040 = vadd.f32 0.0, %v7039
        %7041 = vmatmul.bf16.gmra.mxu0 %v6156
        %v7042 = vpop.f32.mrf.mxu0
        %v7043 = vadd.f32 0.0, %v7042
        %v7044 = vpop.f32.mrf.mxu0
        %v7045 = vadd.f32 0.0, %v7044
        %7046 = vmatmul.bf16.gmra.mxu0 %v6164
        %v7047 = vpop.f32.mrf.mxu0
        %v7048 = vadd.f32 0.0, %v7047
        %v7049 = vpop.f32.mrf.mxu0
        %v7050 = vadd.f32 0.0, %v7049
        %7051 = vmatmul.bf16.gmra.mxu0 %v6172
        %v7052 = vpop.f32.mrf.mxu0
        %v7053 = vadd.f32 0.0, %v7052
        %v7054 = vpop.f32.mrf.mxu0
        %v7055 = vadd.f32 0.0, %v7054
        %7056 = vmatmul.bf16.gmra.mxu0 %v6923
        %v7057 = vpop.f32.mrf.mxu0
        %v7058 = vadd.f32 0.0, %v7057
        %v7059 = vpop.f32.mrf.mxu0
        %v7060 = vadd.f32 0.0, %v7059
        %7061 = vdwg.mxu0
        %v7062 = vadd.f32 %v6867, %v6983
        %v7063 = vadd.f32 %v6868, %v6985
        %v7064 = vadd.f32 %v6869, %v6988
        %v7065 = vadd.f32 %v6870, %v6990
        %v7066 = vadd.f32 %v6871, %v6993
        %v7067 = vadd.f32 %v6872, %v6995
        %v7068 = vadd.f32 %v6873, %v6998
        %v7069 = vadd.f32 %v6874, %v7000
        %v7070 = vadd.f32 %v6875, %v7003
        %v7071 = vadd.f32 %v6876, %v7005
        %v7072 = vadd.f32 %v6877, %v7008
        %v7073 = vadd.f32 %v6878, %v7010
        %v7074 = vadd.f32 %v6879, %v7013
        %v7075 = vadd.f32 %v6880, %v7015
        %v7076 = vadd.f32 %v6881, %v7018
        %v7077 = vadd.f32 %v6882, %v7020
        %v7078 = vadd.f32 %v6883, %v7023
        %v7079 = vadd.f32 %v6884, %v7025
        %v7080 = vadd.f32 %v6885, %v7028
        %v7081 = vadd.f32 %v6886, %v7030
        %v7082 = vadd.f32 %v6887, %v7033
        %v7083 = vadd.f32 %v6888, %v7035
        %v7084 = vadd.f32 %v6889, %v7038
        %v7085 = vadd.f32 %v6890, %v7040
        %v7086 = vadd.f32 %v6891, %v7043
        %v7087 = vadd.f32 %v6892, %v7045
        %v7088 = vadd.f32 %v6893, %v7048
        %v7089 = vadd.f32 %v6894, %v7050
        %v7090 = vadd.f32 %v6895, %v7053
        %v7091 = vadd.f32 %v6896, %v7055
        %v7092 = vadd.f32 %v6897, %v7058
        %v7093 = vadd.f32 %v6898, %v7060
        %s7094 = scalar_lea.vmem %s10, 320
        %v7095 = vld [vmem:[%s7094] sm:$0xf]
        %v7096 = vld [vmem:[%s7094 + $0x4] sm:$0xf]
        %v7097 = vld [vmem:[%s7094 + $0x8] sm:$0xf]
        %v7098 = vld [vmem:[%s7094 + $0xc] sm:$0xf]
        %v7099 = vld [vmem:[%s7094 + $0x10] sm:$0xf]
        %v7100 = vld [vmem:[%s7094 + $0x14] sm:$0xf]
        %v7101 = vld [vmem:[%s7094 + $0x18] sm:$0xf]
        %v7102 = vld [vmem:[%s7094 + $0x1c] sm:$0xf]
        %v7103 = vld [vmem:[%s7094 + $0x20] sm:$0xf]
        %v7104 = vld [vmem:[%s7094 + $0x24] sm:$0xf]
        %v7105 = vld [vmem:[%s7094 + $0x28] sm:$0xf]
        %v7106 = vld [vmem:[%s7094 + $0x2c] sm:$0xf]
        %v7107 = vld [vmem:[%s7094 + $0x30] sm:$0xf]
        %v7108 = vld [vmem:[%s7094 + $0x34] sm:$0xf]
        %v7109 = vld [vmem:[%s7094 + $0x38] sm:$0xf]
        %v7110 = vld [vmem:[%s7094 + $0x3c] sm:$0xf]
        %v7112 = vrot.slane %v6014, 1
        %v7113 = vsel %vm3514, %v6526, %v7112
        %v7131 = vunpack.c.l.b16 %v7095
        %v7132 = vunpack.c.l.b16 %v7096
        %v7133 = vunpack.c.l.b16 %v7097
        %v7134 = vunpack.c.l.b16 %v7098
        %v7135 = vunpack.c.l.b16 %v7099
        %v7136 = vunpack.c.l.b16 %v7100
        %v7137 = vunpack.c.l.b16 %v7101
        %v7138 = vunpack.c.l.b16 %v7102
        %v7139 = vunpack.c.l.b16 %v7103
        %v7140 = vunpack.c.l.b16 %v7104
        %v7141 = vunpack.c.l.b16 %v7105
        %v7142 = vunpack.c.l.b16 %v7106
        %v7143 = vunpack.c.l.b16 %v7107
        %v7144 = vunpack.c.l.b16 %v7108
        %v7145 = vunpack.c.l.b16 %v7109
        %v7146 = vunpack.c.l.b16 %v7110
        %v7147 = vpack.c.b16 %v7132, %v7131
        %v7148 = vpack.c.b16 %v7134, %v7133
        %v7149 = vpack.c.b16 %v7136, %v7135
        %v7150 = vpack.c.b16 %v7138, %v7137
        %v7151 = vpack.c.b16 %v7140, %v7139
        %v7152 = vpack.c.b16 %v7142, %v7141
        %v7153 = vpack.c.b16 %v7144, %v7143
        %v7154 = vpack.c.b16 %v7146, %v7145
        %7163 = vmatpush.bf16.msra.mxu0 %v7154
        %7164 = vmatpush.bf16.msra.mxu0 %v7153
        %7165 = vmatpush.bf16.msra.mxu0 %v7152
        %7166 = vmatpush.bf16.msra.mxu0 %v7151
        %7167 = vmatpush.bf16.msra.mxu0 %v7150
        %7168 = vmatpush.bf16.msra.mxu0 %v7149
        %7169 = vmatpush.bf16.msra.mxu0 %v7148
        %7170 = vmatpush.bf16.msra.mxu0 %v7147
        %7171 = vmatmul.bf16.gmra.mxu0 %v6499
        %v7172 = vpop.f32.mrf.mxu0
        %v7173 = vadd.f32 0.0, %v7172
        %v7174 = vpop.f32.mrf.mxu0
        %v7175 = vadd.f32 0.0, %v7174
        %7176 = vmatmul.bf16.gmra.mxu0 %v6501
        %v7177 = vpop.f32.mrf.mxu0
        %v7178 = vadd.f32 0.0, %v7177
        %v7179 = vpop.f32.mrf.mxu0
        %v7180 = vadd.f32 0.0, %v7179
        %7181 = vmatmul.bf16.gmra.mxu0 %v6503
        %v7182 = vpop.f32.mrf.mxu0
        %v7183 = vadd.f32 0.0, %v7182
        %v7184 = vpop.f32.mrf.mxu0
        %v7185 = vadd.f32 0.0, %v7184
        %7186 = vmatmul.bf16.gmra.mxu0 %v6505
        %v7187 = vpop.f32.mrf.mxu0
        %v7188 = vadd.f32 0.0, %v7187
        %v7189 = vpop.f32.mrf.mxu0
        %v7190 = vadd.f32 0.0, %v7189
        %7191 = vmatmul.bf16.gmra.mxu0 %v6507
        %v7192 = vpop.f32.mrf.mxu0
        %v7193 = vadd.f32 0.0, %v7192
        %v7194 = vpop.f32.mrf.mxu0
        %v7195 = vadd.f32 0.0, %v7194
        %7196 = vmatmul.bf16.gmra.mxu0 %v6509
        %v7197 = vpop.f32.mrf.mxu0
        %v7198 = vadd.f32 0.0, %v7197
        %v7199 = vpop.f32.mrf.mxu0
        %v7200 = vadd.f32 0.0, %v7199
        %7201 = vmatmul.bf16.gmra.mxu0 %v6511
        %v7202 = vpop.f32.mrf.mxu0
        %v7203 = vadd.f32 0.0, %v7202
        %v7204 = vpop.f32.mrf.mxu0
        %v7205 = vadd.f32 0.0, %v7204
        %7206 = vmatmul.bf16.gmra.mxu0 %v6513
        %v7207 = vpop.f32.mrf.mxu0
        %v7208 = vadd.f32 0.0, %v7207
        %v7209 = vpop.f32.mrf.mxu0
        %v7210 = vadd.f32 0.0, %v7209
        %7211 = vmatmul.bf16.gmra.mxu0 %v6515
        %v7212 = vpop.f32.mrf.mxu0
        %v7213 = vadd.f32 0.0, %v7212
        %v7214 = vpop.f32.mrf.mxu0
        %v7215 = vadd.f32 0.0, %v7214
        %7216 = vmatmul.bf16.gmra.mxu0 %v6517
        %v7217 = vpop.f32.mrf.mxu0
        %v7218 = vadd.f32 0.0, %v7217
        %v7219 = vpop.f32.mrf.mxu0
        %v7220 = vadd.f32 0.0, %v7219
        %7221 = vmatmul.bf16.gmra.mxu0 %v6519
        %v7222 = vpop.f32.mrf.mxu0
        %v7223 = vadd.f32 0.0, %v7222
        %v7224 = vpop.f32.mrf.mxu0
        %v7225 = vadd.f32 0.0, %v7224
        %7226 = vmatmul.bf16.gmra.mxu0 %v6521
        %v7227 = vpop.f32.mrf.mxu0
        %v7228 = vadd.f32 0.0, %v7227
        %v7229 = vpop.f32.mrf.mxu0
        %v7230 = vadd.f32 0.0, %v7229
        %7231 = vmatmul.bf16.gmra.mxu0 %v6523
        %v7232 = vpop.f32.mrf.mxu0
        %v7233 = vadd.f32 0.0, %v7232
        %v7234 = vpop.f32.mrf.mxu0
        %v7235 = vadd.f32 0.0, %v7234
        %7236 = vmatmul.bf16.gmra.mxu0 %v6525
        %v7237 = vpop.f32.mrf.mxu0
        %v7238 = vadd.f32 0.0, %v7237
        %v7239 = vpop.f32.mrf.mxu0
        %v7240 = vadd.f32 0.0, %v7239
        %7241 = vmatmul.bf16.gmra.mxu0 %v6527
        %v7242 = vpop.f32.mrf.mxu0
        %v7243 = vadd.f32 0.0, %v7242
        %v7244 = vpop.f32.mrf.mxu0
        %v7245 = vadd.f32 0.0, %v7244
        %7246 = vmatmul.bf16.gmra.mxu0 %v7113
        %v7247 = vpop.f32.mrf.mxu0
        %v7248 = vadd.f32 0.0, %v7247
        %v7249 = vpop.f32.mrf.mxu0
        %v7250 = vadd.f32 0.0, %v7249
        %7251 = vdwg.mxu0
        %v7252 = vadd.f32 %v7062, %v7173
        %v7253 = vadd.f32 %v7063, %v7175
        %v7254 = vadd.f32 %v7064, %v7178
        %v7255 = vadd.f32 %v7065, %v7180
        %v7256 = vadd.f32 %v7066, %v7183
        %v7257 = vadd.f32 %v7067, %v7185
        %v7258 = vadd.f32 %v7068, %v7188
        %v7259 = vadd.f32 %v7069, %v7190
        %v7260 = vadd.f32 %v7070, %v7193
        %v7261 = vadd.f32 %v7071, %v7195
        %v7262 = vadd.f32 %v7072, %v7198
        %v7263 = vadd.f32 %v7073, %v7200
        %v7264 = vadd.f32 %v7074, %v7203
        %v7265 = vadd.f32 %v7075, %v7205
        %v7266 = vadd.f32 %v7076, %v7208
        %v7267 = vadd.f32 %v7077, %v7210
        %v7268 = vadd.f32 %v7078, %v7213
        %v7269 = vadd.f32 %v7079, %v7215
        %v7270 = vadd.f32 %v7080, %v7218
        %v7271 = vadd.f32 %v7081, %v7220
        %v7272 = vadd.f32 %v7082, %v7223
        %v7273 = vadd.f32 %v7083, %v7225
        %v7274 = vadd.f32 %v7084, %v7228
        %v7275 = vadd.f32 %v7085, %v7230
        %v7276 = vadd.f32 %v7086, %v7233
        %v7277 = vadd.f32 %v7087, %v7235
        %v7278 = vadd.f32 %v7088, %v7238
        %v7279 = vadd.f32 %v7089, %v7240
        %v7280 = vadd.f32 %v7090, %v7243
        %v7281 = vadd.f32 %v7091, %v7245
        %v7282 = vadd.f32 %v7092, %v7248
        %v7283 = vadd.f32 %v7093, %v7250
        %s7284 = scalar_lea.vmem %s10, 384
        %v7285 = vld [vmem:[%s7284] sm:$0xf]
        %v7286 = vld [vmem:[%s7284 + $0x4] sm:$0xf]
        %v7287 = vld [vmem:[%s7284 + $0x8] sm:$0xf]
        %v7288 = vld [vmem:[%s7284 + $0xc] sm:$0xf]
        %v7289 = vld [vmem:[%s7284 + $0x10] sm:$0xf]
        %v7290 = vld [vmem:[%s7284 + $0x14] sm:$0xf]
        %v7291 = vld [vmem:[%s7284 + $0x18] sm:$0xf]
        %v7292 = vld [vmem:[%s7284 + $0x1c] sm:$0xf]
        %v7293 = vld [vmem:[%s7284 + $0x20] sm:$0xf]
        %v7294 = vld [vmem:[%s7284 + $0x24] sm:$0xf]
        %v7295 = vld [vmem:[%s7284 + $0x28] sm:$0xf]
        %v7296 = vld [vmem:[%s7284 + $0x2c] sm:$0xf]
        %v7297 = vld [vmem:[%s7284 + $0x30] sm:$0xf]
        %v7298 = vld [vmem:[%s7284 + $0x34] sm:$0xf]
        %v7299 = vld [vmem:[%s7284 + $0x38] sm:$0xf]
        %v7300 = vld [vmem:[%s7284 + $0x3c] sm:$0xf]
        %v7317 = vunpack.c.l.b16 %v7285
        %v7318 = vunpack.c.l.b16 %v7286
        %v7319 = vunpack.c.l.b16 %v7287
        %v7320 = vunpack.c.l.b16 %v7288
        %v7321 = vunpack.c.l.b16 %v7289
        %v7322 = vunpack.c.l.b16 %v7290
        %v7323 = vunpack.c.l.b16 %v7291
        %v7324 = vunpack.c.l.b16 %v7292
        %v7325 = vunpack.c.l.b16 %v7293
        %v7326 = vunpack.c.l.b16 %v7294
        %v7327 = vunpack.c.l.b16 %v7295
        %v7328 = vunpack.c.l.b16 %v7296
        %v7329 = vunpack.c.l.b16 %v7297
        %v7330 = vunpack.c.l.b16 %v7298
        %v7331 = vunpack.c.l.b16 %v7299
        %v7332 = vunpack.c.l.b16 %v7300
        %v7333 = vpack.c.b16 %v7318, %v7317
        %v7334 = vpack.c.b16 %v7320, %v7319
        %v7335 = vpack.c.b16 %v7322, %v7321
        %v7336 = vpack.c.b16 %v7324, %v7323
        %v7337 = vpack.c.b16 %v7326, %v7325
        %v7338 = vpack.c.b16 %v7328, %v7327
        %v7339 = vpack.c.b16 %v7330, %v7329
        %v7340 = vpack.c.b16 %v7332, %v7331
        %7349 = vmatpush.bf16.msra.mxu0 %v7340
        %7350 = vmatpush.bf16.msra.mxu0 %v7339
        %7351 = vmatpush.bf16.msra.mxu0 %v7338
        %7352 = vmatpush.bf16.msra.mxu0 %v7337
        %7353 = vmatpush.bf16.msra.mxu0 %v7336
        %7354 = vmatpush.bf16.msra.mxu0 %v7335
        %7355 = vmatpush.bf16.msra.mxu0 %v7334
        %7356 = vmatpush.bf16.msra.mxu0 %v7333
        %7357 = vmatmul.bf16.gmra.mxu0 %v5982
        %v7358 = vpop.f32.mrf.mxu0
        %v7359 = vadd.f32 0.0, %v7358
        %v7360 = vpop.f32.mrf.mxu0
        %v7361 = vadd.f32 0.0, %v7360
        %7362 = vmatmul.bf16.gmra.mxu0 %v5983
        %v7363 = vpop.f32.mrf.mxu0
        %v7364 = vadd.f32 0.0, %v7363
        %v7365 = vpop.f32.mrf.mxu0
        %v7366 = vadd.f32 0.0, %v7365
        %7367 = vmatmul.bf16.gmra.mxu0 %v5984
        %v7368 = vpop.f32.mrf.mxu0
        %v7369 = vadd.f32 0.0, %v7368
        %v7370 = vpop.f32.mrf.mxu0
        %v7371 = vadd.f32 0.0, %v7370
        %7372 = vmatmul.bf16.gmra.mxu0 %v5985
        %v7373 = vpop.f32.mrf.mxu0
        %v7374 = vadd.f32 0.0, %v7373
        %v7375 = vpop.f32.mrf.mxu0
        %v7376 = vadd.f32 0.0, %v7375
        %7377 = vmatmul.bf16.gmra.mxu0 %v5986
        %v7378 = vpop.f32.mrf.mxu0
        %v7379 = vadd.f32 0.0, %v7378
        %v7380 = vpop.f32.mrf.mxu0
        %v7381 = vadd.f32 0.0, %v7380
        %7382 = vmatmul.bf16.gmra.mxu0 %v5987
        %v7383 = vpop.f32.mrf.mxu0
        %v7384 = vadd.f32 0.0, %v7383
        %v7385 = vpop.f32.mrf.mxu0
        %v7386 = vadd.f32 0.0, %v7385
        %7387 = vmatmul.bf16.gmra.mxu0 %v5988
        %v7388 = vpop.f32.mrf.mxu0
        %v7389 = vadd.f32 0.0, %v7388
        %v7390 = vpop.f32.mrf.mxu0
        %v7391 = vadd.f32 0.0, %v7390
        %7392 = vmatmul.bf16.gmra.mxu0 %v5989
        %v7393 = vpop.f32.mrf.mxu0
        %v7394 = vadd.f32 0.0, %v7393
        %v7395 = vpop.f32.mrf.mxu0
        %v7396 = vadd.f32 0.0, %v7395
        %7397 = vmatmul.bf16.gmra.mxu0 %v5990
        %v7398 = vpop.f32.mrf.mxu0
        %v7399 = vadd.f32 0.0, %v7398
        %v7400 = vpop.f32.mrf.mxu0
        %v7401 = vadd.f32 0.0, %v7400
        %7402 = vmatmul.bf16.gmra.mxu0 %v5991
        %v7403 = vpop.f32.mrf.mxu0
        %v7404 = vadd.f32 0.0, %v7403
        %v7405 = vpop.f32.mrf.mxu0
        %v7406 = vadd.f32 0.0, %v7405
        %7407 = vmatmul.bf16.gmra.mxu0 %v5992
        %v7408 = vpop.f32.mrf.mxu0
        %v7409 = vadd.f32 0.0, %v7408
        %v7410 = vpop.f32.mrf.mxu0
        %v7411 = vadd.f32 0.0, %v7410
        %7412 = vmatmul.bf16.gmra.mxu0 %v5993
        %v7413 = vpop.f32.mrf.mxu0
        %v7414 = vadd.f32 0.0, %v7413
        %v7415 = vpop.f32.mrf.mxu0
        %v7416 = vadd.f32 0.0, %v7415
        %7417 = vmatmul.bf16.gmra.mxu0 %v5994
        %v7418 = vpop.f32.mrf.mxu0
        %v7419 = vadd.f32 0.0, %v7418
        %v7420 = vpop.f32.mrf.mxu0
        %v7421 = vadd.f32 0.0, %v7420
        %7422 = vmatmul.bf16.gmra.mxu0 %v5995
        %v7423 = vpop.f32.mrf.mxu0
        %v7424 = vadd.f32 0.0, %v7423
        %v7425 = vpop.f32.mrf.mxu0
        %v7426 = vadd.f32 0.0, %v7425
        %7427 = vmatmul.bf16.gmra.mxu0 %v5996
        %v7428 = vpop.f32.mrf.mxu0
        %v7429 = vadd.f32 0.0, %v7428
        %v7430 = vpop.f32.mrf.mxu0
        %v7431 = vadd.f32 0.0, %v7430
        %7432 = vmatmul.bf16.gmra.mxu0 %v5997
        %v7433 = vpop.f32.mrf.mxu0
        %v7434 = vadd.f32 0.0, %v7433
        %v7435 = vpop.f32.mrf.mxu0
        %v7436 = vadd.f32 0.0, %v7435
        %7437 = vdwg.mxu0
        %v7438 = vadd.f32 %v7252, %v7359
        %v7439 = vadd.f32 %v7253, %v7361
        %v7440 = vadd.f32 %v7254, %v7364
        %v7441 = vadd.f32 %v7255, %v7366
        %v7442 = vadd.f32 %v7256, %v7369
        %v7443 = vadd.f32 %v7257, %v7371
        %v7444 = vadd.f32 %v7258, %v7374
        %v7445 = vadd.f32 %v7259, %v7376
        %v7446 = vadd.f32 %v7260, %v7379
        %v7447 = vadd.f32 %v7261, %v7381
        %v7448 = vadd.f32 %v7262, %v7384
        %v7449 = vadd.f32 %v7263, %v7386
        %v7450 = vadd.f32 %v7264, %v7389
        %v7451 = vadd.f32 %v7265, %v7391
        %v7452 = vadd.f32 %v7266, %v7394
        %v7453 = vadd.f32 %v7267, %v7396
        %v7454 = vadd.f32 %v7268, %v7399
        %v7455 = vadd.f32 %v7269, %v7401
        %v7456 = vadd.f32 %v7270, %v7404
        %v7457 = vadd.f32 %v7271, %v7406
        %v7458 = vadd.f32 %v7272, %v7409
        %v7459 = vadd.f32 %v7273, %v7411
        %v7460 = vadd.f32 %v7274, %v7414
        %v7461 = vadd.f32 %v7275, %v7416
        %v7462 = vadd.f32 %v7276, %v7419
        %v7463 = vadd.f32 %v7277, %v7421
        %v7464 = vadd.f32 %v7278, %v7424
        %v7465 = vadd.f32 %v7279, %v7426
        %v7466 = vadd.f32 %v7280, %v7429
        %v7467 = vadd.f32 %v7281, %v7431
        %v7468 = vadd.f32 %v7282, %v7434
        %v7469 = vadd.f32 %v7283, %v7436
        %s7470 = scalar_lea.vmem %s10, 448
        %v7471 = vld [vmem:[%s7470] sm:$0xf]
        %v7472 = vld [vmem:[%s7470 + $0x4] sm:$0xf]
        %v7473 = vld [vmem:[%s7470 + $0x8] sm:$0xf]
        %v7474 = vld [vmem:[%s7470 + $0xc] sm:$0xf]
        %v7475 = vld [vmem:[%s7470 + $0x10] sm:$0xf]
        %v7476 = vld [vmem:[%s7470 + $0x14] sm:$0xf]
        %v7477 = vld [vmem:[%s7470 + $0x18] sm:$0xf]
        %v7478 = vld [vmem:[%s7470 + $0x1c] sm:$0xf]
        %v7479 = vld [vmem:[%s7470 + $0x20] sm:$0xf]
        %v7480 = vld [vmem:[%s7470 + $0x24] sm:$0xf]
        %v7481 = vld [vmem:[%s7470 + $0x28] sm:$0xf]
        %v7482 = vld [vmem:[%s7470 + $0x2c] sm:$0xf]
        %v7483 = vld [vmem:[%s7470 + $0x30] sm:$0xf]
        %v7484 = vld [vmem:[%s7470 + $0x34] sm:$0xf]
        %v7485 = vld [vmem:[%s7470 + $0x38] sm:$0xf]
        %v7486 = vld [vmem:[%s7470 + $0x3c] sm:$0xf]
        %v7487 = vshrl.u32 %v5980, 16
        %v7489 = vor.u32 %v7487, %v6922
        %v7490 = vsel %vm3034, %v7489, %v3040
        %v7508 = vunpack.c.l.b16 %v7471
        %v7509 = vunpack.c.l.b16 %v7472
        %v7510 = vunpack.c.l.b16 %v7473
        %v7511 = vunpack.c.l.b16 %v7474
        %v7512 = vunpack.c.l.b16 %v7475
        %v7513 = vunpack.c.l.b16 %v7476
        %v7514 = vunpack.c.l.b16 %v7477
        %v7515 = vunpack.c.l.b16 %v7478
        %v7516 = vunpack.c.l.b16 %v7479
        %v7517 = vunpack.c.l.b16 %v7480
        %v7518 = vunpack.c.l.b16 %v7481
        %v7519 = vunpack.c.l.b16 %v7482
        %v7520 = vunpack.c.l.b16 %v7483
        %v7521 = vunpack.c.l.b16 %v7484
        %v7522 = vunpack.c.l.b16 %v7485
        %v7523 = vunpack.c.l.b16 %v7486
        %v7524 = vpack.c.b16 %v7509, %v7508
        %v7525 = vpack.c.b16 %v7511, %v7510
        %v7526 = vpack.c.b16 %v7513, %v7512
        %v7527 = vpack.c.b16 %v7515, %v7514
        %v7528 = vpack.c.b16 %v7517, %v7516
        %v7529 = vpack.c.b16 %v7519, %v7518
        %v7530 = vpack.c.b16 %v7521, %v7520
        %v7531 = vpack.c.b16 %v7523, %v7522
        %7540 = vmatpush.bf16.msra.mxu0 %v7531
        %7541 = vmatpush.bf16.msra.mxu0 %v7530
        %7542 = vmatpush.bf16.msra.mxu0 %v7529
        %7543 = vmatpush.bf16.msra.mxu0 %v7528
        %7544 = vmatpush.bf16.msra.mxu0 %v7527
        %7545 = vmatpush.bf16.msra.mxu0 %v7526
        %7546 = vmatpush.bf16.msra.mxu0 %v7525
        %7547 = vmatpush.bf16.msra.mxu0 %v7524
        %7548 = vmatmul.bf16.gmra.mxu0 %v6068
        %v7549 = vpop.f32.mrf.mxu0
        %v7550 = vadd.f32 0.0, %v7549
        %v7551 = vpop.f32.mrf.mxu0
        %v7552 = vadd.f32 0.0, %v7551
        %7553 = vmatmul.bf16.gmra.mxu0 %v6076
        %v7554 = vpop.f32.mrf.mxu0
        %v7555 = vadd.f32 0.0, %v7554
        %v7556 = vpop.f32.mrf.mxu0
        %v7557 = vadd.f32 0.0, %v7556
        %7558 = vmatmul.bf16.gmra.mxu0 %v6084
        %v7559 = vpop.f32.mrf.mxu0
        %v7560 = vadd.f32 0.0, %v7559
        %v7561 = vpop.f32.mrf.mxu0
        %v7562 = vadd.f32 0.0, %v7561
        %7563 = vmatmul.bf16.gmra.mxu0 %v6092
        %v7564 = vpop.f32.mrf.mxu0
        %v7565 = vadd.f32 0.0, %v7564
        %v7566 = vpop.f32.mrf.mxu0
        %v7567 = vadd.f32 0.0, %v7566
        %7568 = vmatmul.bf16.gmra.mxu0 %v6100
        %v7569 = vpop.f32.mrf.mxu0
        %v7570 = vadd.f32 0.0, %v7569
        %v7571 = vpop.f32.mrf.mxu0
        %v7572 = vadd.f32 0.0, %v7571
        %7573 = vmatmul.bf16.gmra.mxu0 %v6108
        %v7574 = vpop.f32.mrf.mxu0
        %v7575 = vadd.f32 0.0, %v7574
        %v7576 = vpop.f32.mrf.mxu0
        %v7577 = vadd.f32 0.0, %v7576
        %7578 = vmatmul.bf16.gmra.mxu0 %v6116
        %v7579 = vpop.f32.mrf.mxu0
        %v7580 = vadd.f32 0.0, %v7579
        %v7581 = vpop.f32.mrf.mxu0
        %v7582 = vadd.f32 0.0, %v7581
        %7583 = vmatmul.bf16.gmra.mxu0 %v6124
        %v7584 = vpop.f32.mrf.mxu0
        %v7585 = vadd.f32 0.0, %v7584
        %v7586 = vpop.f32.mrf.mxu0
        %v7587 = vadd.f32 0.0, %v7586
        %7588 = vmatmul.bf16.gmra.mxu0 %v6132
        %v7589 = vpop.f32.mrf.mxu0
        %v7590 = vadd.f32 0.0, %v7589
        %v7591 = vpop.f32.mrf.mxu0
        %v7592 = vadd.f32 0.0, %v7591
        %7593 = vmatmul.bf16.gmra.mxu0 %v6140
        %v7594 = vpop.f32.mrf.mxu0
        %v7595 = vadd.f32 0.0, %v7594
        %v7596 = vpop.f32.mrf.mxu0
        %v7597 = vadd.f32 0.0, %v7596
        %7598 = vmatmul.bf16.gmra.mxu0 %v6148
        %v7599 = vpop.f32.mrf.mxu0
        %v7600 = vadd.f32 0.0, %v7599
        %v7601 = vpop.f32.mrf.mxu0
        %v7602 = vadd.f32 0.0, %v7601
        %7603 = vmatmul.bf16.gmra.mxu0 %v6156
        %v7604 = vpop.f32.mrf.mxu0
        %v7605 = vadd.f32 0.0, %v7604
        %v7606 = vpop.f32.mrf.mxu0
        %v7607 = vadd.f32 0.0, %v7606
        %7608 = vmatmul.bf16.gmra.mxu0 %v6164
        %v7609 = vpop.f32.mrf.mxu0
        %v7610 = vadd.f32 0.0, %v7609
        %v7611 = vpop.f32.mrf.mxu0
        %v7612 = vadd.f32 0.0, %v7611
        %7613 = vmatmul.bf16.gmra.mxu0 %v6172
        %v7614 = vpop.f32.mrf.mxu0
        %v7615 = vadd.f32 0.0, %v7614
        %v7616 = vpop.f32.mrf.mxu0
        %v7617 = vadd.f32 0.0, %v7616
        %7618 = vmatmul.bf16.gmra.mxu0 %v6923
        %v7619 = vpop.f32.mrf.mxu0
        %v7620 = vadd.f32 0.0, %v7619
        %v7621 = vpop.f32.mrf.mxu0
        %v7622 = vadd.f32 0.0, %v7621
        %7623 = vmatmul.bf16.gmra.mxu0 %v7490
        %v7624 = vpop.f32.mrf.mxu0
        %v7625 = vadd.f32 0.0, %v7624
        %v7626 = vpop.f32.mrf.mxu0
        %v7627 = vadd.f32 0.0, %v7626
        %7628 = vdwg.mxu0
        %v7629 = vadd.f32 %v7438, %v7550
        %v7630 = vadd.f32 %v7439, %v7552
        %v7631 = vadd.f32 %v7440, %v7555
        %v7632 = vadd.f32 %v7441, %v7557
        %v7633 = vadd.f32 %v7442, %v7560
        %v7634 = vadd.f32 %v7443, %v7562
        %v7635 = vadd.f32 %v7444, %v7565
        %v7636 = vadd.f32 %v7445, %v7567
        %v7637 = vadd.f32 %v7446, %v7570
        %v7638 = vadd.f32 %v7447, %v7572
        %v7639 = vadd.f32 %v7448, %v7575
        %v7640 = vadd.f32 %v7449, %v7577
        %v7641 = vadd.f32 %v7450, %v7580
        %v7642 = vadd.f32 %v7451, %v7582
        %v7643 = vadd.f32 %v7452, %v7585
        %v7644 = vadd.f32 %v7453, %v7587
        %v7645 = vadd.f32 %v7454, %v7590
        %v7646 = vadd.f32 %v7455, %v7592
        %v7647 = vadd.f32 %v7456, %v7595
        %v7648 = vadd.f32 %v7457, %v7597
        %v7649 = vadd.f32 %v7458, %v7600
        %v7650 = vadd.f32 %v7459, %v7602
        %v7651 = vadd.f32 %v7460, %v7605
        %v7652 = vadd.f32 %v7461, %v7607
        %v7653 = vadd.f32 %v7462, %v7610
        %v7654 = vadd.f32 %v7463, %v7612
        %v7655 = vadd.f32 %v7464, %v7615
        %v7656 = vadd.f32 %v7465, %v7617
        %v7657 = vadd.f32 %v7466, %v7620
        %v7658 = vadd.f32 %v7467, %v7622
        %v7659 = vadd.f32 %v7468, %v7625
        %v7660 = vadd.f32 %v7469, %v7627
        %s7661 = scalar_lea.vmem %s10, 512
        %v7662 = vld [vmem:[%s7661] sm:$0xf]
        %v7663 = vld [vmem:[%s7661 + $0x4] sm:$0xf]
        %v7664 = vld [vmem:[%s7661 + $0x8] sm:$0xf]
        %v7665 = vld [vmem:[%s7661 + $0xc] sm:$0xf]
        %v7666 = vld [vmem:[%s7661 + $0x10] sm:$0xf]
        %v7667 = vld [vmem:[%s7661 + $0x14] sm:$0xf]
        %v7668 = vld [vmem:[%s7661 + $0x18] sm:$0xf]
        %v7669 = vld [vmem:[%s7661 + $0x1c] sm:$0xf]
        %v7670 = vld [vmem:[%s7661 + $0x20] sm:$0xf]
        %v7671 = vld [vmem:[%s7661 + $0x24] sm:$0xf]
        %v7672 = vld [vmem:[%s7661 + $0x28] sm:$0xf]
        %v7673 = vld [vmem:[%s7661 + $0x2c] sm:$0xf]
        %v7674 = vld [vmem:[%s7661 + $0x30] sm:$0xf]
        %v7675 = vld [vmem:[%s7661 + $0x34] sm:$0xf]
        %v7676 = vld [vmem:[%s7661 + $0x38] sm:$0xf]
        %v7677 = vld [vmem:[%s7661 + $0x3c] sm:$0xf]
        %v7678 = vsel %vm3514, %v7112, %v3515
        %v7696 = vunpack.c.l.b16 %v7662
        %v7697 = vunpack.c.l.b16 %v7663
        %v7698 = vunpack.c.l.b16 %v7664
        %v7699 = vunpack.c.l.b16 %v7665
        %v7700 = vunpack.c.l.b16 %v7666
        %v7701 = vunpack.c.l.b16 %v7667
        %v7702 = vunpack.c.l.b16 %v7668
        %v7703 = vunpack.c.l.b16 %v7669
        %v7704 = vunpack.c.l.b16 %v7670
        %v7705 = vunpack.c.l.b16 %v7671
        %v7706 = vunpack.c.l.b16 %v7672
        %v7707 = vunpack.c.l.b16 %v7673
        %v7708 = vunpack.c.l.b16 %v7674
        %v7709 = vunpack.c.l.b16 %v7675
        %v7710 = vunpack.c.l.b16 %v7676
        %v7711 = vunpack.c.l.b16 %v7677
        %v7712 = vpack.c.b16 %v7697, %v7696
        %v7713 = vpack.c.b16 %v7699, %v7698
        %v7714 = vpack.c.b16 %v7701, %v7700
        %v7715 = vpack.c.b16 %v7703, %v7702
        %v7716 = vpack.c.b16 %v7705, %v7704
        %v7717 = vpack.c.b16 %v7707, %v7706
        %v7718 = vpack.c.b16 %v7709, %v7708
        %v7719 = vpack.c.b16 %v7711, %v7710
        %7728 = vmatpush.bf16.msra.mxu0 %v7719
        %7729 = vmatpush.bf16.msra.mxu0 %v7718
        %7730 = vmatpush.bf16.msra.mxu0 %v7717
        %7731 = vmatpush.bf16.msra.mxu0 %v7716
        %7732 = vmatpush.bf16.msra.mxu0 %v7715
        %7733 = vmatpush.bf16.msra.mxu0 %v7714
        %7734 = vmatpush.bf16.msra.mxu0 %v7713
        %7735 = vmatpush.bf16.msra.mxu0 %v7712
        %7736 = vmatmul.bf16.gmra.mxu0 %v6501
        %v7737 = vpop.f32.mrf.mxu0
        %v7738 = vadd.f32 0.0, %v7737
        %v7739 = vpop.f32.mrf.mxu0
        %v7740 = vadd.f32 0.0, %v7739
        %7741 = vmatmul.bf16.gmra.mxu0 %v6503
        %v7742 = vpop.f32.mrf.mxu0
        %v7743 = vadd.f32 0.0, %v7742
        %v7744 = vpop.f32.mrf.mxu0
        %v7745 = vadd.f32 0.0, %v7744
        %7746 = vmatmul.bf16.gmra.mxu0 %v6505
        %v7747 = vpop.f32.mrf.mxu0
        %v7748 = vadd.f32 0.0, %v7747
        %v7749 = vpop.f32.mrf.mxu0
        %v7750 = vadd.f32 0.0, %v7749
        %7751 = vmatmul.bf16.gmra.mxu0 %v6507
        %v7752 = vpop.f32.mrf.mxu0
        %v7753 = vadd.f32 0.0, %v7752
        %v7754 = vpop.f32.mrf.mxu0
        %v7755 = vadd.f32 0.0, %v7754
        %7756 = vmatmul.bf16.gmra.mxu0 %v6509
        %v7757 = vpop.f32.mrf.mxu0
        %v7758 = vadd.f32 0.0, %v7757
        %v7759 = vpop.f32.mrf.mxu0
        %v7760 = vadd.f32 0.0, %v7759
        %7761 = vmatmul.bf16.gmra.mxu0 %v6511
        %v7762 = vpop.f32.mrf.mxu0
        %v7763 = vadd.f32 0.0, %v7762
        %v7764 = vpop.f32.mrf.mxu0
        %v7765 = vadd.f32 0.0, %v7764
        %7766 = vmatmul.bf16.gmra.mxu0 %v6513
        %v7767 = vpop.f32.mrf.mxu0
        %v7768 = vadd.f32 0.0, %v7767
        %v7769 = vpop.f32.mrf.mxu0
        %v7770 = vadd.f32 0.0, %v7769
        %7771 = vmatmul.bf16.gmra.mxu0 %v6515
        %v7772 = vpop.f32.mrf.mxu0
        %v7773 = vadd.f32 0.0, %v7772
        %v7774 = vpop.f32.mrf.mxu0
        %v7775 = vadd.f32 0.0, %v7774
        %7776 = vmatmul.bf16.gmra.mxu0 %v6517
        %v7777 = vpop.f32.mrf.mxu0
        %v7778 = vadd.f32 0.0, %v7777
        %v7779 = vpop.f32.mrf.mxu0
        %v7780 = vadd.f32 0.0, %v7779
        %7781 = vmatmul.bf16.gmra.mxu0 %v6519
        %v7782 = vpop.f32.mrf.mxu0
        %v7783 = vadd.f32 0.0, %v7782
        %v7784 = vpop.f32.mrf.mxu0
        %v7785 = vadd.f32 0.0, %v7784
        %7786 = vmatmul.bf16.gmra.mxu0 %v6521
        %v7787 = vpop.f32.mrf.mxu0
        %v7788 = vadd.f32 0.0, %v7787
        %v7789 = vpop.f32.mrf.mxu0
        %v7790 = vadd.f32 0.0, %v7789
        %7791 = vmatmul.bf16.gmra.mxu0 %v6523
        %v7792 = vpop.f32.mrf.mxu0
        %v7793 = vadd.f32 0.0, %v7792
        %v7794 = vpop.f32.mrf.mxu0
        %v7795 = vadd.f32 0.0, %v7794
        %7796 = vmatmul.bf16.gmra.mxu0 %v6525
        %v7797 = vpop.f32.mrf.mxu0
        %v7798 = vadd.f32 0.0, %v7797
        %v7799 = vpop.f32.mrf.mxu0
        %v7800 = vadd.f32 0.0, %v7799
        %7801 = vmatmul.bf16.gmra.mxu0 %v6527
        %v7802 = vpop.f32.mrf.mxu0
        %v7803 = vadd.f32 0.0, %v7802
        %v7804 = vpop.f32.mrf.mxu0
        %v7805 = vadd.f32 0.0, %v7804
        %7806 = vmatmul.bf16.gmra.mxu0 %v7113
        %v7807 = vpop.f32.mrf.mxu0
        %v7808 = vadd.f32 0.0, %v7807
        %v7809 = vpop.f32.mrf.mxu0
        %v7810 = vadd.f32 0.0, %v7809
        %7811 = vmatmul.bf16.gmra.mxu0 %v7678
        %v7812 = vpop.f32.mrf.mxu0
        %v7813 = vadd.f32 0.0, %v7812
        %v7814 = vpop.f32.mrf.mxu0
        %v7815 = vadd.f32 0.0, %v7814
        %7816 = vdwg.mxu0
        %v7817 = vadd.f32 %v7629, %v7738
        %v7818 = vadd.f32 %v7630, %v7740
        %v7819 = vadd.f32 %v7631, %v7743
        %v7820 = vadd.f32 %v7632, %v7745
        %v7821 = vadd.f32 %v7633, %v7748
        %v7822 = vadd.f32 %v7634, %v7750
        %v7823 = vadd.f32 %v7635, %v7753
        %v7824 = vadd.f32 %v7636, %v7755
        %v7825 = vadd.f32 %v7637, %v7758
        %v7826 = vadd.f32 %v7638, %v7760
        %v7827 = vadd.f32 %v7639, %v7763
        %v7828 = vadd.f32 %v7640, %v7765
        %v7829 = vadd.f32 %v7641, %v7768
        %v7830 = vadd.f32 %v7642, %v7770
        %v7831 = vadd.f32 %v7643, %v7773
        %v7832 = vadd.f32 %v7644, %v7775
        %v7833 = vadd.f32 %v7645, %v7778
        %v7834 = vadd.f32 %v7646, %v7780
        %v7835 = vadd.f32 %v7647, %v7783
        %v7836 = vadd.f32 %v7648, %v7785
        %v7837 = vadd.f32 %v7649, %v7788
        %v7838 = vadd.f32 %v7650, %v7790
        %v7839 = vadd.f32 %v7651, %v7793
        %v7840 = vadd.f32 %v7652, %v7795
        %v7841 = vadd.f32 %v7653, %v7798
        %v7842 = vadd.f32 %v7654, %v7800
        %v7843 = vadd.f32 %v7655, %v7803
        %v7844 = vadd.f32 %v7656, %v7805
        %v7845 = vadd.f32 %v7657, %v7808
        %v7846 = vadd.f32 %v7658, %v7810
        %v7847 = vadd.f32 %v7659, %v7813
        %v7848 = vadd.f32 %v7660, %v7815
        %v7849 = vld [vmem:[%s11] sm:$0x1]
        %v7851 = vperm.slane %v7849, 0
        %v7853 = vadd.f32 %v7817, %v7851
        %v7854 = vadd.f32 %v7818, %v7851
        %v7855 = vadd.f32 %v7819, %v7851
        %v7856 = vadd.f32 %v7820, %v7851
        %v7857 = vadd.f32 %v7821, %v7851
        %v7858 = vadd.f32 %v7822, %v7851
        %v7859 = vadd.f32 %v7823, %v7851
        %v7860 = vadd.f32 %v7824, %v7851
        %v7861 = vadd.f32 %v7825, %v7851
        %v7862 = vadd.f32 %v7826, %v7851
        %v7863 = vadd.f32 %v7827, %v7851
        %v7864 = vadd.f32 %v7828, %v7851
        %v7865 = vadd.f32 %v7829, %v7851
        %v7866 = vadd.f32 %v7830, %v7851
        %v7867 = vadd.f32 %v7831, %v7851
        %v7868 = vadd.f32 %v7832, %v7851
        %v7869 = vadd.f32 %v7833, %v7851
        %v7870 = vadd.f32 %v7834, %v7851
        %v7871 = vadd.f32 %v7835, %v7851
        %v7872 = vadd.f32 %v7836, %v7851
        %v7873 = vadd.f32 %v7837, %v7851
        %v7874 = vadd.f32 %v7838, %v7851
        %v7875 = vadd.f32 %v7839, %v7851
        %v7876 = vadd.f32 %v7840, %v7851
        %v7877 = vadd.f32 %v7841, %v7851
        %v7878 = vadd.f32 %v7842, %v7851
        %v7879 = vadd.f32 %v7843, %v7851
        %v7880 = vadd.f32 %v7844, %v7851
        %v7881 = vadd.f32 %v7845, %v7851
        %v7882 = vadd.f32 %v7846, %v7851
        %v7883 = vadd.f32 %v7847, %v7851
        %v7884 = vadd.f32 %v7848, %v7851
        %v7885 = vpack.c.bf16 %v518, %v517
        %v7886 = vpack.c.bf16 %v520, %v519
        %v7887 = vpack.c.bf16 %v522, %v521
        %v7888 = vpack.c.bf16 %v524, %v523
        %v7889 = vpack.c.bf16 %v526, %v525
        %v7890 = vpack.c.bf16 %v528, %v527
        %v7891 = vpack.c.bf16 %v530, %v529
        %v7892 = vpack.c.bf16 %v532, %v531
        %v7893 = vpack.c.bf16 %v534, %v533
        %v7894 = vpack.c.bf16 %v536, %v535
        %v7895 = vpack.c.bf16 %v538, %v537
        %v7896 = vpack.c.bf16 %v540, %v539
        %v7897 = vpack.c.bf16 %v542, %v541
        %v7898 = vpack.c.bf16 %v544, %v543
        %v7899 = vpack.c.bf16 %v546, %v545
        %v7900 = vpack.c.bf16 %v548, %v547
        %v7901 = vld [vmem:[#allocation5] sm:$0xf]
        %v7902 = vld [vmem:[#allocation5 + $0x4] sm:$0xf]
        %v7903 = vld [vmem:[#allocation5 + $0x8] sm:$0xf]
        %v7904 = vld [vmem:[#allocation5 + $0xc] sm:$0xf]
        %v7905 = vld [vmem:[#allocation5 + $0x10] sm:$0xf]
        %v7906 = vld [vmem:[#allocation5 + $0x14] sm:$0xf]
        %v7907 = vld [vmem:[#allocation5 + $0x18] sm:$0xf]
        %v7908 = vld [vmem:[#allocation5 + $0x1c] sm:$0xf]
        %v7909 = vld [vmem:[%s13] sm:$0x1]
        %v7911 = vperm.slane %v7909, 0
        %v7921 = vunpack.c.l.b16 %v7901
        %v7922 = vunpack.c.l.b16 %v7902
        %v7923 = vunpack.c.l.b16 %v7903
        %v7924 = vunpack.c.l.b16 %v7904
        %v7925 = vunpack.c.l.b16 %v7905
        %v7926 = vunpack.c.l.b16 %v7906
        %v7927 = vunpack.c.l.b16 %v7907
        %v7928 = vunpack.c.l.b16 %v7908
        %v7929 = vpack.c.b16 %v7922, %v7921
        %v7930 = vpack.c.b16 %v7924, %v7923
        %v7931 = vpack.c.b16 %v7926, %v7925
        %v7932 = vpack.c.b16 %v7928, %v7927
        %v7938 = vsel %vm1027, %v7885, 0
        %v7941 = vsel %vm1027, %v7886, 0
        %v7944 = vsel %vm1027, %v7887, 0
        %v7947 = vsel %vm1027, %v7888, 0
        %v7950 = vsel %vm1027, %v7889, 0
        %v7953 = vsel %vm1027, %v7890, 0
        %v7956 = vsel %vm1027, %v7891, 0
        %v7959 = vsel %vm1027, %v7892, 0
        %v7962 = vsel %vm1027, %v7893, 0
        %v7965 = vsel %vm1027, %v7894, 0
        %v7968 = vsel %vm1027, %v7895, 0
        %v7971 = vsel %vm1027, %v7896, 0
        %v7974 = vsel %vm1027, %v7897, 0
        %v7977 = vsel %vm1027, %v7898, 0
        %v7980 = vsel %vm1027, %v7899, 0
        %v7983 = vsel %vm1027, %v7900, 0
        %7985 = vmatpush.bf16.msra.mxu0 0
        %7986 = vmatpush.bf16.msra.mxu0 0
        %7987 = vmatpush.bf16.msra.mxu0 0
        %7988 = vmatpush.bf16.msra.mxu0 0
        %7989 = vmatpush.bf16.msra.mxu0 %v7932
        %7990 = vmatpush.bf16.msra.mxu0 %v7931
        %7991 = vmatpush.bf16.msra.mxu0 %v7930
        %7992 = vmatpush.bf16.msra.mxu0 %v7929
        %7993 = vmatmul.bf16.gmra.mxu0 %v7938
        %v7994 = vpop.f32.mrf.mxu0
        %v7995 = vadd.f32 %v7911, %v7994
        %v7996 = vpop.f32.mrf.mxu0
        %v7997 = vadd.f32 %v7911, %v7996
        %7998 = vmatmul.bf16.gmra.mxu0 %v7941
        %v7999 = vpop.f32.mrf.mxu0
        %v8000 = vadd.f32 %v7911, %v7999
        %v8001 = vpop.f32.mrf.mxu0
        %v8002 = vadd.f32 %v7911, %v8001
        %8003 = vmatmul.bf16.gmra.mxu0 %v7944
        %v8004 = vpop.f32.mrf.mxu0
        %v8005 = vadd.f32 %v7911, %v8004
        %v8006 = vpop.f32.mrf.mxu0
        %v8007 = vadd.f32 %v7911, %v8006
        %8008 = vmatmul.bf16.gmra.mxu0 %v7947
        %v8009 = vpop.f32.mrf.mxu0
        %v8010 = vadd.f32 %v7911, %v8009
        %v8011 = vpop.f32.mrf.mxu0
        %v8012 = vadd.f32 %v7911, %v8011
        %8013 = vmatmul.bf16.gmra.mxu0 %v7950
        %v8014 = vpop.f32.mrf.mxu0
        %v8015 = vadd.f32 %v7911, %v8014
        %v8016 = vpop.f32.mrf.mxu0
        %v8017 = vadd.f32 %v7911, %v8016
        %8018 = vmatmul.bf16.gmra.mxu0 %v7953
        %v8019 = vpop.f32.mrf.mxu0
        %v8020 = vadd.f32 %v7911, %v8019
        %v8021 = vpop.f32.mrf.mxu0
        %v8022 = vadd.f32 %v7911, %v8021
        %8023 = vmatmul.bf16.gmra.mxu0 %v7956
        %v8024 = vpop.f32.mrf.mxu0
        %v8025 = vadd.f32 %v7911, %v8024
        %v8026 = vpop.f32.mrf.mxu0
        %v8027 = vadd.f32 %v7911, %v8026
        %8028 = vmatmul.bf16.gmra.mxu0 %v7959
        %v8029 = vpop.f32.mrf.mxu0
        %v8030 = vadd.f32 %v7911, %v8029
        %v8031 = vpop.f32.mrf.mxu0
        %v8032 = vadd.f32 %v7911, %v8031
        %8033 = vmatmul.bf16.gmra.mxu0 %v7962
        %v8034 = vpop.f32.mrf.mxu0
        %v8035 = vadd.f32 %v7911, %v8034
        %v8036 = vpop.f32.mrf.mxu0
        %v8037 = vadd.f32 %v7911, %v8036
        %8038 = vmatmul.bf16.gmra.mxu0 %v7965
        %v8039 = vpop.f32.mrf.mxu0
        %v8040 = vadd.f32 %v7911, %v8039
        %v8041 = vpop.f32.mrf.mxu0
        %v8042 = vadd.f32 %v7911, %v8041
        %8043 = vmatmul.bf16.gmra.mxu0 %v7968
        %v8044 = vpop.f32.mrf.mxu0
        %v8045 = vadd.f32 %v7911, %v8044
        %v8046 = vpop.f32.mrf.mxu0
        %v8047 = vadd.f32 %v7911, %v8046
        %8048 = vmatmul.bf16.gmra.mxu0 %v7971
        %v8049 = vpop.f32.mrf.mxu0
        %v8050 = vadd.f32 %v7911, %v8049
        %v8051 = vpop.f32.mrf.mxu0
        %v8052 = vadd.f32 %v7911, %v8051
        %8053 = vmatmul.bf16.gmra.mxu0 %v7974
        %v8054 = vpop.f32.mrf.mxu0
        %v8055 = vadd.f32 %v7911, %v8054
        %v8056 = vpop.f32.mrf.mxu0
        %v8057 = vadd.f32 %v7911, %v8056
        %8058 = vmatmul.bf16.gmra.mxu0 %v7977
        %v8059 = vpop.f32.mrf.mxu0
        %v8060 = vadd.f32 %v7911, %v8059
        %v8061 = vpop.f32.mrf.mxu0
        %v8062 = vadd.f32 %v7911, %v8061
        %8063 = vmatmul.bf16.gmra.mxu0 %v7980
        %v8064 = vpop.f32.mrf.mxu0
        %v8065 = vadd.f32 %v7911, %v8064
        %v8066 = vpop.f32.mrf.mxu0
        %v8067 = vadd.f32 %v7911, %v8066
        %8068 = vmatmul.bf16.gmra.mxu0 %v7983
        %v8069 = vpop.f32.mrf.mxu0
        %v8070 = vadd.f32 %v7911, %v8069
        %v8071 = vpop.f32.mrf.mxu0
        %v8072 = vadd.f32 %v7911, %v8071
        %8073 = vdwg.mxu0
        %v8074 = vadd.f32 %v7853, %v7995
        %v8075 = vadd.f32 %v7854, %v7997
        %v8076 = vadd.f32 %v7855, %v8000
        %v8077 = vadd.f32 %v7856, %v8002
        %v8078 = vadd.f32 %v7857, %v8005
        %v8079 = vadd.f32 %v7858, %v8007
        %v8080 = vadd.f32 %v7859, %v8010
        %v8081 = vadd.f32 %v7860, %v8012
        %v8082 = vadd.f32 %v7861, %v8015
        %v8083 = vadd.f32 %v7862, %v8017
        %v8084 = vadd.f32 %v7863, %v8020
        %v8085 = vadd.f32 %v7864, %v8022
        %v8086 = vadd.f32 %v7865, %v8025
        %v8087 = vadd.f32 %v7866, %v8027
        %v8088 = vadd.f32 %v7867, %v8030
        %v8089 = vadd.f32 %v7868, %v8032
        %v8090 = vadd.f32 %v7869, %v8035
        %v8091 = vadd.f32 %v7870, %v8037
        %v8092 = vadd.f32 %v7871, %v8040
        %v8093 = vadd.f32 %v7872, %v8042
        %v8094 = vadd.f32 %v7873, %v8045
        %v8095 = vadd.f32 %v7874, %v8047
        %v8096 = vadd.f32 %v7875, %v8050
        %v8097 = vadd.f32 %v7876, %v8052
        %v8098 = vadd.f32 %v7877, %v8055
        %v8099 = vadd.f32 %v7878, %v8057
        %v8100 = vadd.f32 %v7879, %v8060
        %v8101 = vadd.f32 %v7880, %v8062
        %v8102 = vadd.f32 %v7881, %v8065
        %v8103 = vadd.f32 %v7882, %v8067
        %v8104 = vadd.f32 %v7883, %v8070
        %v8105 = vadd.f32 %v7884, %v8072
        %8106 = vst [vmem:[%s505] sm:$0xff] %v8074
        %8107 = vst [vmem:[%s505 + $0x8] sm:$0xff] %v8075
        %8108 = vst [vmem:[%s505 + $0x10] sm:$0xff] %v8076
        %8109 = vst [vmem:[%s505 + $0x18] sm:$0xff] %v8077
        %8110 = vst [vmem:[%s505 + $0x20] sm:$0xff] %v8078
        %8111 = vst [vmem:[%s505 + $0x28] sm:$0xff] %v8079
        %8112 = vst [vmem:[%s505 + $0x30] sm:$0xff] %v8080
        %8113 = vst [vmem:[%s505 + $0x38] sm:$0xff] %v8081
        %8114 = vst [vmem:[%s505 + $0x40] sm:$0xff] %v8082
        %8115 = vst [vmem:[%s505 + $0x48] sm:$0xff] %v8083
        %8116 = vst [vmem:[%s505 + $0x50] sm:$0xff] %v8084
        %8117 = vst [vmem:[%s505 + $0x58] sm:$0xff] %v8085
        %8118 = vst [vmem:[%s505 + $0x60] sm:$0xff] %v8086
        %8119 = vst [vmem:[%s505 + $0x68] sm:$0xff] %v8087
        %8120 = vst [vmem:[%s505 + $0x70] sm:$0xff] %v8088
        %8121 = vst [vmem:[%s505 + $0x78] sm:$0xff] %v8089
        %8122 = vst [vmem:[%s505 + $0x80] sm:$0xff] %v8090
        %8123 = vst [vmem:[%s505 + $0x88] sm:$0xff] %v8091
        %8124 = vst [vmem:[%s505 + $0x90] sm:$0xff] %v8092
        %8125 = vst [vmem:[%s505 + $0x98] sm:$0xff] %v8093
        %8126 = vst [vmem:[%s505 + $0xa0] sm:$0xff] %v8094
        %8127 = vst [vmem:[%s505 + $0xa8] sm:$0xff] %v8095
        %8128 = vst [vmem:[%s505 + $0xb0] sm:$0xff] %v8096
        %8129 = vst [vmem:[%s505 + $0xb8] sm:$0xff] %v8097
        %8130 = vst [vmem:[%s505 + $0xc0] sm:$0xff] %v8098
        %8131 = vst [vmem:[%s505 + $0xc8] sm:$0xff] %v8099
        %8132 = vst [vmem:[%s505 + $0xd0] sm:$0xff] %v8100
        %8133 = vst [vmem:[%s505 + $0xd8] sm:$0xff] %v8101
        %8134 = vst [vmem:[%s505 + $0xe0] sm:$0xff] %v8102
        %8135 = vst [vmem:[%s505 + $0xe8] sm:$0xff] %v8103
        %8136 = vst [vmem:[%s505 + $0xf0] sm:$0xff] %v8104
        %8137 = vst [vmem:[%s505 + $0xf8] sm:$0xff] %v8105
        %s8138 = sand.u32 %s342, 1
        %s8139 = scalar_lea.sflag [#allocation4], %s8138
        %s8140 = sand.u32 %s342, 1
        %s8141 = smul.addr %s8140, 256
        %s8142 = scalar_lea.vmem [#allocation7], %s8141
        // Predicated region
        $region85: #{tpu_custom_call.1} parent=75 // pred_check
          %p8143 = pneg %p352
        $region86: #{tpu_custom_call.1} parent=75 // pred_check_branch
          %8145 = sbr.rel (%p8143) target = $region88
        $region87: #{tpu_custom_call.1} parent=75 // pred_region
          %8147 = vsyncadd %s8139, 0
          %s8148 = smul.addr %s30, 32
          %s8149 = smul.addr %s8148, 8
          %s8150 = scalar_lea.hbm %s14, %s8149
          %s8151 = sshll.u32 %s8142, 4
          %s8152 = int_to_ptr.vmem [resolvable:$true] %s8151
          %s8153 = sshll.u32 %s8150, 4
          %s8154 = int_to_ptr.hbm [resolvable:$true] %s8153
          %8159 = dma.vmem_to_hbm [thread:$0]  %s8152, 4096, %s8154, %s8139, 128, 128, 8
        $region88: #{tpu_custom_call.1} parent=75 // pred_fallthru
          _
      $region76: #{tpu_custom_call.1} parent=5 // pred_fallthru
        _
      %p8160 = scmp.le.s32.totalorder 2, %s25
      // Predicated region
      $region89: #{tpu_custom_call.1} parent=5 // pred_check
        %p8161 = pneg %p8160
      $region90: #{tpu_custom_call.1} parent=5 // pred_check_branch
        %8163 = sbr.rel (%p8161) target = $region92
      $region91: #{tpu_custom_call.1} parent=5 // pred_region
        %s8164 = ssub.s32 %s25, 2
        // Predicated region
        $region93: #{tpu_custom_call.1} parent=91 // pred_check
          %p8165 = pneg %p358
        $region94: #{tpu_custom_call.1} parent=91 // pred_check_branch
          %8167 = sbr.rel (%p8165) target = $region96
        $region95: #{tpu_custom_call.1} parent=91 // pred_region
          %s8168 = sand.u32 %s343, 1
          %s8169 = scalar_lea.sflag [#allocation4], %s8168
          %s8170 = sand.u32 %s343, 1
          %s8171 = smul.addr %s8170, 256
          %s8172 = scalar_lea.vmem [#allocation7], %s8171
          %8174 = dma.done %s8169, 4096
        $region96: #{tpu_custom_call.1} parent=91 // pred_fallthru
          _
      $region92: #{tpu_custom_call.1} parent=5 // pred_fallthru
        _
    $region6: #{tpu_custom_call.1} parent=1 // loop_footer
      %s29 = sadd.s32 1, %s25
    $region7: #{tpu_custom_call.1} parent=1 // loop_footer_branch
      %24 = sbr.rel target = $region3
    $region8: #{tpu_custom_call.1} parent=1 // loop_exit
      _
    %8175 = vsyncpa [#allocation3], 1
    %s8176 = scalar_lea.sflag [#allocation3], 1
    %8177 = vsyncpa %s8176, 1
    %8178 = vsyncpa [#allocation6], 1
    %8179 = vsyncpa [#allocation4], 1
    %s8180 = scalar_lea.sflag [#allocation4], 1
    %8181 = vsyncpa %s8180, 1

</llo_original>
